<compile_context>
chip_gen: v7x
topology: tpu7x:2x2x1
jax: 0.10.0
libtpu: 0.0.40
codegen_flags: <defaults>
</compile_context>

<pallas_src>
import functools

import jax
import jax.numpy as jnp
from jax.experimental import pallas as pl
from jax.experimental.pallas import tpu as pltpu

LANE = 128
SUBLANE = 8

# Packed gate slot s holds PyTorch gate _PACK[s]:  packed order [i, f, o, g]
# so the three sigmoid gates are one contiguous lane slab.
_PACK = (0, 1, 3, 2)


def _round_up(n, m):
    return ((n + m - 1) // m) * m


# ----------------------------- Pallas kernel ------------------------------ #

def _encoder_kernel(x_ref, wih1_ref, whh1_ref, b1_ref, h0_ref, c0_ref,
                    wih23_ref, whh23_ref, b23_ref, h1_ref, c1_ref,
                    out_ref, hseq_ref, xproj_ref, *, T, L, Hp, HEADW):
    """Whole encoder: L stacked LSTM layers + fused mu/logvar LSTM heads.

    Layer-major: per layer, the x @ W_ih projection for all T steps is one
    batched MXU matmul written to xproj scratch; the serial time loop then only
    carries (h, c) and issues the single recurrent h @ W_hh matmul per step.
    """
    Bp = out_ref.shape[0]
    GW = 4 * Hp                                  # == 4 * HEADW  (H = 2*E)

    def batched_input_proj(xin, wih, bias):
        """x_t @ W_ih + b for all T steps in one (T*Bp, Hp)x(Hp, GW) matmul."""
        lhs = xin.reshape(T * Bp, Hp).astype(jnp.bfloat16)   # f32 reshape = view
        proj = jnp.dot(lhs, wih, preferred_element_type=jnp.float32)
        xproj_ref[...] = (proj + bias).reshape(T, Bp, GW)

    def lstm_pass(whh, h, c, gw, keep_seq):
        """Serial recurrence; only h_{t-1} @ W_hh sits on the per-step path."""
        for t in range(T):                       # static unroll (T is small)
            gates = xproj_ref[t] + jnp.dot(h.astype(jnp.bfloat16), whh[...],
                                           preferred_element_type=jnp.float32)
            ifo = jax.nn.sigmoid(gates[:, :3 * gw])   # [i | f | o] one dispatch
            g = jnp.tanh(gates[:, 3 * gw:])
            c = ifo[:, gw:2 * gw] * c + ifo[:, :gw] * g
            h = ifo[:, 2 * gw:3 * gw] * jnp.tanh(c)
            if keep_seq:
                hseq_ref[t] = h                  # becomes the next layer's input
        return h

    # ---------------- stacked rnn1 layers, layer-major ---------------- #
    for l in range(L):                           # static unroll over layers
        xin = x_ref[...] if l == 0 else hseq_ref[...]          # (T, Bp, Hp) f32
        batched_input_proj(xin, wih1_ref[l], b1_ref[l])
        lstm_pass(whh1_ref.at[l], h0_ref[l], c0_ref[l], Hp, keep_seq=True)
        # TODO(synk): inter-layer dropout (p=0.8) of nn.LSTM skipped (eval mode).

    # ------------- fused rnn2 (mu) + rnn3 (logvar) heads --------------- #
    batched_input_proj(hseq_ref[...], wih23_ref[...], b23_ref[...])
    hh = lstm_pass(whh23_ref, h1_ref[...], c1_ref[...], HEADW, keep_seq=False)
    out_ref[...] = hh                            # lanes [0,E)=mu, [E,2E)=logvar


def encoder_fused(x_pad, wih1, whh1, b1, h0, c0, wih23, whh23, b23, h1, c1,
                  *, T, L, Hp, HEADW):
    Bp = x_pad.shape[1]
    assert 4 * Hp == 4 * HEADW, "xproj scratch is shared between layers and head"
    kernel = functools.partial(_encoder_kernel, T=T, L=L, Hp=Hp, HEADW=HEADW)
    vmem = pl.BlockSpec(memory_space=pltpu.MemorySpace.VMEM)   # whole array resident
    return pl.pallas_call(
        kernel,
        out_shape=jax.ShapeDtypeStruct((Bp, HEADW), jnp.float32),
        in_specs=[vmem] * 11,
        out_specs=vmem,
        scratch_shapes=[pltpu.VMEM((T, Bp, Hp), jnp.float32),       # h sequence
                        pltpu.VMEM((T, Bp, 4 * Hp), jnp.float32)],  # x projections
        compiler_params=pltpu.CompilerParams(vmem_limit_bytes=32 * 1024 * 1024),
    )(x_pad, wih1, whh1, b1, h0, c0, wih23, whh23, b23, h1, c1)


# --------------------------- parameter helpers ----------------------------- #

def init_lstm_weights(key, in_size, hidden):
    """PyTorch-style uniform(-1/sqrt(H), 1/sqrt(H)); gate order [i, f, g, o]."""
    bound = 1.0 / float(hidden) ** 0.5
    k1, k2, k3, k4 = jax.random.split(key, 4)
    w_ih = jax.random.uniform(k1, (in_size, 4 * hidden), jnp.float32, -bound, bound)
    w_hh = jax.random.uniform(k2, (hidden, 4 * hidden), jnp.float32, -bound, bound)
    b = (jax.random.uniform(k3, (4 * hidden,), jnp.float32, -bound, bound)
         + jax.random.uniform(k4, (4 * hidden,), jnp.float32, -bound, bound))
    return w_ih, w_hh, b


def init_encoder_params(key, n_features, embedding_dim, layers):
    H = 2 * embedding_dim
    E = embedding_dim
    Hp = _round_up(H, LANE)
    HEADW = _round_up(2 * E, LANE)   # one 128-lane gate block holds BOTH heads
    assert n_features <= Hp, "feature dim is packed into the Hp-wide lane slot"
    assert 2 * E <= HEADW

    keys = jax.random.split(key, layers + 2)

    # --- stacked rnn1 layers: packed gate s of layer l lives at cols [s*Hp, s*Hp+H)
    wih1 = jnp.zeros((layers, Hp, 4 * Hp), jnp.float32)
    whh1 = jnp.zeros((layers, Hp, 4 * Hp), jnp.float32)
    b1 = jnp.zeros((layers, 1, 4 * Hp), jnp.float32)
    for l in range(layers):
        in_size = n_features if l == 0 else H
        w_ih, w_hh, b = init_lstm_weights(keys[l], in_size, H)
        for s, p in enumerate(_PACK):
            col = s * Hp
            wih1 = wih1.at[l, :in_size, col:col + H].set(w_ih[:, p * H:(p + 1) * H])
            whh1 = whh1.at[l, :H, col:col + H].set(w_hh[:, p * H:(p + 1) * H])
            b1 = b1.at[l, 0, col:col + H].set(b[p * H:(p + 1) * H])

    # --- fused rnn2/rnn3 heads at 64-lane stride inside each 128-lane gate block:
    #     packed gate s, head m occupies cols [s*HEADW + m*E, s*HEADW + (m+1)*E).
    #     W_hh is block-diagonal over the concatenated (h_mu | h_logvar) state.
    wih23 = jnp.zeros((Hp, 4 * HEADW), jnp.float32)
    whh23 = jnp.zeros((HEADW, 4 * HEADW), jnp.float32)
    b23 = jnp.zeros((1, 4 * HEADW), jnp.float32)
    heads = [init_lstm_weights(keys[layers], H, E),       # rnn2 -> mu
             init_lstm_weights(keys[layers + 1], H, E)]   # rnn3 -> logvar
    for m, (w_ih, w_hh, b) in enumerate(heads):
        for s, p in enumerate(_PACK):
            col = s * HEADW + m * E
            wih23 = wih23.at[:H, col:col + E].set(w_ih[:, p * E:(p + 1) * E])
            whh23 = whh23.at[m * E:(m + 1) * E, col:col + E].set(
                w_hh[:, p * E:(p + 1) * E])
            b23 = b23.at[0, col:col + E].set(b[p * E:(p + 1) * E])

    # bf16 weights for the MXU (f32 accumulation); biases stay f32.
    return dict(
        wih1=wih1.astype(jnp.bfloat16), whh1=whh1.astype(jnp.bfloat16), b1=b1,
        wih23=wih23.astype(jnp.bfloat16), whh23=whh23.astype(jnp.bfloat16), b23=b23,
        H=H, E=E, L=layers, Hp=Hp, HEADW=HEADW,
    )


# ------------------------------ forward pass ------------------------------- #

def encoder_forward(params, x, state_key):
    """x: (seq_len, batch, n_features) -> (mu, logvar), each (1, batch, E)."""
    T, B, F = x.shape
    H, E, L = params["H"], params["E"], params["L"]
    Hp, HEADW = params["Hp"], params["HEADW"]
    Bp = _round_up(max(B, SUBLANE), SUBLANE)

    # Random initial states, mirroring torch.randn(...) in forward().  (The
    # reference passes its draws as (c, h); since both are fresh N(0,1) draws
    # the assignment below is distributionally identical.)
    k0, k1, k2, k3 = jax.random.split(state_key, 4)
    h0 = jax.random.normal(k0, (L, B, H), jnp.float32)
    c0 = jax.random.normal(k1, (L, B, H), jnp.float32)
    h1 = jax.random.normal(k2, (1, B, E), jnp.float32)   # shared by both heads,
    c1 = jax.random.normal(k3, (1, B, E), jnp.float32)   # as in the reference.

    # Zero-pad batch to 8 sublanes and all lane dims to 128 multiples.
    x_pad = jnp.zeros((T, Bp, Hp), jnp.float32).at[:, :B, :F].set(x)
    h0_pad = jnp.zeros((L, Bp, Hp), jnp.float32).at[:, :B, :H].set(h0)
    c0_pad = jnp.zeros((L, Bp, Hp), jnp.float32).at[:, :B, :H].set(c0)
    # Fused head state layout: lanes [0,E) = rnn2 (mu), [E,2E) = rnn3 (logvar).
    h1_pad = (jnp.zeros((Bp, HEADW), jnp.float32)
              .at[:B, 0:E].set(h1[0]).at[:B, E:2 * E].set(h1[0]))
    c1_pad = (jnp.zeros((Bp, HEADW), jnp.float32)
              .at[:B, 0:E].set(c1[0]).at[:B, E:2 * E].set(c1[0]))

    out = encoder_fused(x_pad, params["wih1"], params["whh1"], params["b1"],
                        h0_pad, c0_pad,
                        params["wih23"], params["whh23"], params["b23"],
                        h1_pad, c1_pad, T=T, L=L, Hp=Hp, HEADW=HEADW)

    mu = out[:B, 0:E][None, :, :]
    logvar = out[:B, E:2 * E][None, :, :]
    return mu, logvar


# ----------------------------------- main ---------------------------------- #

if __name__ == "__main__":
    seq_len, batch, n_features = 8, 4, 8
    embedding_dim, layers = 32, 3

    root = jax.random.PRNGKey(0)
    k_params, k_x, k_state = jax.random.split(root, 3)

    params = init_encoder_params(k_params, n_features, embedding_dim, layers)
    x = jax.random.normal(k_x, (seq_len, batch, n_features), jnp.float32)

    mu, logvar = encoder_forward(params, x, k_state)
    jax.block_until_ready((mu, logvar))

    assert mu.shape == (1, batch, embedding_dim), mu.shape
    assert logvar.shape == (1, batch, embedding_dim), logvar.shape
    assert bool(jnp.all(jnp.isfinite(mu))) and bool(jnp.all(jnp.isfinite(logvar)))
    print("KERNEL_OK")
</pallas_src>

<mosaic_0001>
module attributes {stable_mosaic.version = 11 : i64} {
  func.func @_encoder_kernel(%arg0: memref<8x8x128xf32, #tpu.memory_space<vmem>>, %arg1: memref<3x128x512xbf16, #tpu.memory_space<vmem>>, %arg2: memref<3x128x512xbf16, #tpu.memory_space<vmem>>, %arg3: memref<3x1x512xf32, #tpu.memory_space<vmem>>, %arg4: memref<3x8x128xf32, #tpu.memory_space<vmem>>, %arg5: memref<3x8x128xf32, #tpu.memory_space<vmem>>, %arg6: memref<128x512xbf16, #tpu.memory_space<vmem>>, %arg7: memref<128x512xbf16, #tpu.memory_space<vmem>>, %arg8: memref<1x512xf32, #tpu.memory_space<vmem>>, %arg9: memref<8x128xf32, #tpu.memory_space<vmem>>, %arg10: memref<8x128xf32, #tpu.memory_space<vmem>>, %arg11: memref<8x128xf32, #tpu.memory_space<vmem>>, %arg12: memref<8x8x128xf32, #tpu.memory_space<vmem>>, %arg13: memref<8x8x512xf32, #tpu.memory_space<vmem>>) attributes {dimension_semantics = [], scalar_prefetch = 0 : i64, scratch_operands = 2 : i64, tpu.core_type = #tpu.core_type<tc>} {
    %c0 = arith.constant 0 : index
    %c0_0 = arith.constant 0 : index
    %c0_1 = arith.constant 0 : index
    %0 = vector.load %arg0[%c0, %c0_0, %c0_1] : memref<8x8x128xf32, #tpu.memory_space<vmem>>, vector<8x8x128xf32>
    %c0_2 = arith.constant 0 : index
    %c0_3 = arith.constant 0 : index
    %c0_4 = arith.constant 0 : index
    %1 = vector.load %arg1[%c0_2, %c0_3, %c0_4] : memref<3x128x512xbf16, #tpu.memory_space<vmem>>, vector<1x128x512xbf16>
    %2 = vector.shape_cast %1 : vector<1x128x512xbf16> to vector<128x512xbf16>
    %c0_5 = arith.constant 0 : index
    %c0_6 = arith.constant 0 : index
    %c0_7 = arith.constant 0 : index
    %3 = vector.load %arg3[%c0_5, %c0_6, %c0_7] : memref<3x1x512xf32, #tpu.memory_space<vmem>>, vector<1x1x512xf32>
    %4 = vector.shape_cast %3 : vector<1x1x512xf32> to vector<1x512xf32>
    %5 = vector.shape_cast %0 : vector<8x8x128xf32> to vector<64x128xf32>
    %6 = arith.truncf %5 : vector<64x128xf32> to vector<64x128xbf16>
    %cst = arith.constant dense<0.000000e+00> : vector<64x512xf32>
    %7 = tpu.matmul %6, %2, %cst {dimension_numbers = #tpu.dot_dimension_numbers<[1], [0], [0], [1], [0, 0, 1, 1], [], []>} : vector<64x128xbf16>, vector<128x512xbf16>, vector<64x512xf32> -> vector<64x512xf32>
    %8 = vector.broadcast %4 : vector<1x512xf32> to vector<64x512xf32>
    %9 = arith.addf %7, %8 : vector<64x512xf32>
    %10 = vector.shape_cast %9 : vector<64x512xf32> to vector<8x8x512xf32>
    %c0_8 = arith.constant 0 : index
    %c0_9 = arith.constant 0 : index
    %c0_10 = arith.constant 0 : index
    %11 = vector.load %arg13[%c0_8, %c0_9, %c0_10] : memref<8x8x512xf32, #tpu.memory_space<vmem>>, vector<8x8x512xf32>
    tpu.vector_store %arg13[%c0_8, %c0_9, %c0_10], %10 {strides = array<i32>} : memref<8x8x512xf32, #tpu.memory_space<vmem>>, vector<8x8x512xf32>,
    %c0_11 = arith.constant 0 : index
    %c0_12 = arith.constant 0 : index
    %c0_13 = arith.constant 0 : index
    %12 = vector.load %arg4[%c0_11, %c0_12, %c0_13] : memref<3x8x128xf32, #tpu.memory_space<vmem>>, vector<1x8x128xf32>
    %13 = vector.shape_cast %12 : vector<1x8x128xf32> to vector<8x128xf32>
    %c0_14 = arith.constant 0 : index
    %c0_15 = arith.constant 0 : index
    %c0_16 = arith.constant 0 : index
    %14 = vector.load %arg5[%c0_14, %c0_15, %c0_16] : memref<3x8x128xf32, #tpu.memory_space<vmem>>, vector<1x8x128xf32>
    %15 = vector.shape_cast %14 : vector<1x8x128xf32> to vector<8x128xf32>
    %c0_17 = arith.constant 0 : index
    %c0_18 = arith.constant 0 : index
    %c0_19 = arith.constant 0 : index
    %16 = vector.load %arg13[%c0_17, %c0_18, %c0_19] : memref<8x8x512xf32, #tpu.memory_space<vmem>>, vector<1x8x512xf32>
    %17 = vector.shape_cast %16 : vector<1x8x512xf32> to vector<8x512xf32>
    %18 = arith.truncf %13 : vector<8x128xf32> to vector<8x128xbf16>
    %c0_20 = arith.constant 0 : index
    %c0_21 = arith.constant 0 : index
    %c0_22 = arith.constant 0 : index
    %19 = vector.load %arg2[%c0_20, %c0_21, %c0_22] : memref<3x128x512xbf16, #tpu.memory_space<vmem>>, vector<1x128x512xbf16>
    %20 = vector.shape_cast %19 : vector<1x128x512xbf16> to vector<128x512xbf16>
    %cst_23 = arith.constant dense<0.000000e+00> : vector<8x512xf32>
    %21 = tpu.matmul %18, %20, %cst_23 {dimension_numbers = #tpu.dot_dimension_numbers<[1], [0], [0], [1], [0, 0, 1, 1], [], []>} : vector<8x128xbf16>, vector<128x512xbf16>, vector<8x512xf32> -> vector<8x512xf32>
    %22 = arith.addf %17, %21 : vector<8x512xf32>
    %23 = vector.extract_strided_slice %22 {offsets = [0, 0], sizes = [8, 384], strides = [1, 1]} : vector<8x512xf32> to vector<8x384xf32>
    %24 = arith.negf %23 : vector<8x384xf32>
    %25 = math.exp %24 : vector<8x384xf32>
    %cst_24 = arith.constant 1.000000e+00 : f32
    %26 = vector.broadcast %cst_24 : f32 to vector<8x384xf32>
    %27 = arith.addf %26, %25 : vector<8x384xf32>
    %28 = arith.divf %26, %27 : vector<8x384xf32>
    %29 = vector.extract_strided_slice %22 {offsets = [0, 384], sizes = [8, 128], strides = [1, 1]} : vector<8x512xf32> to vector<8x128xf32>
    %30 = math.tanh %29 : vector<8x128xf32>
    %31 = vector.extract_strided_slice %28 {offsets = [0, 128], sizes = [8, 128], strides = [1, 1]} : vector<8x384xf32> to vector<8x128xf32>
    %32 = arith.mulf %31, %15 : vector<8x128xf32>
    %33 = vector.extract_strided_slice %28 {offsets = [0, 0], sizes = [8, 128], strides = [1, 1]} : vector<8x384xf32> to vector<8x128xf32>
    %34 = arith.mulf %33, %30 : vector<8x128xf32>
    %35 = arith.addf %32, %34 : vector<8x128xf32>
    %36 = vector.extract_strided_slice %28 {offsets = [0, 256], sizes = [8, 128], strides = [1, 1]} : vector<8x384xf32> to vector<8x128xf32>
    %37 = math.tanh %35 : vector<8x128xf32>
    %38 = arith.mulf %36, %37 : vector<8x128xf32>
    %c0_25 = arith.constant 0 : index
    %c0_26 = arith.constant 0 : index
    %c0_27 = arith.constant 0 : index
    %39 = vector.load %arg12[%c0_25, %c0_26, %c0_27] : memref<8x8x128xf32, #tpu.memory_space<vmem>>, vector<1x8x128xf32>
    %40 = vector.shape_cast %39 : vector<1x8x128xf32> to vector<8x128xf32>
    %41 = vector.shape_cast %38 : vector<8x128xf32> to vector<1x8x128xf32>
    tpu.vector_store %arg12[%c0_25, %c0_26, %c0_27], %41 {strides = array<i32>} : memref<8x8x128xf32, #tpu.memory_space<vmem>>, vector<1x8x128xf32>,
    %c1 = arith.constant 1 : index
    %c0_28 = arith.constant 0 : index
    %c0_29 = arith.constant 0 : index
    %42 = vector.load %arg13[%c1, %c0_28, %c0_29] : memref<8x8x512xf32, #tpu.memory_space<vmem>>, vector<1x8x512xf32>
    %43 = vector.shape_cast %42 : vector<1x8x512xf32> to vector<8x512xf32>
    %44 = arith.truncf %38 : vector<8x128xf32> to vector<8x128xbf16>
    %c0_30 = arith.constant 0 : index
    %c0_31 = arith.constant 0 : index
    %c0_32 = arith.constant 0 : index
    %45 = vector.load %arg2[%c0_30, %c0_31, %c0_32] : memref<3x128x512xbf16, #tpu.memory_space<vmem>>, vector<1x128x512xbf16>
    %46 = vector.shape_cast %45 : vector<1x128x512xbf16> to vector<128x512xbf16>
    %cst_33 = arith.constant dense<0.000000e+00> : vector<8x512xf32>
    %47 = tpu.matmul %44, %46, %cst_33 {dimension_numbers = #tpu.dot_dimension_numbers<[1], [0], [0], [1], [0, 0, 1, 1], [], []>} : vector<8x128xbf16>, vector<128x512xbf16>, vector<8x512xf32> -> vector<8x512xf32>
    %48 = arith.addf %43, %47 : vector<8x512xf32>
    %49 = vector.extract_strided_slice %48 {offsets = [0, 0], sizes = [8, 384], strides = [1, 1]} : vector<8x512xf32> to vector<8x384xf32>
    %50 = arith.negf %49 : vector<8x384xf32>
    %51 = math.exp %50 : vector<8x384xf32>
    %cst_34 = arith.constant 1.000000e+00 : f32
    %52 = vector.broadcast %cst_34 : f32 to vector<8x384xf32>
    %53 = arith.addf %52, %51 : vector<8x384xf32>
    %54 = arith.divf %52, %53 : vector<8x384xf32>
    %55 = vector.extract_strided_slice %48 {offsets = [0, 384], sizes = [8, 128], strides = [1, 1]} : vector<8x512xf32> to vector<8x128xf32>
    %56 = math.tanh %55 : vector<8x128xf32>
    %57 = vector.extract_strided_slice %54 {offsets = [0, 128], sizes = [8, 128], strides = [1, 1]} : vector<8x384xf32> to vector<8x128xf32>
    %58 = arith.mulf %57, %35 : vector<8x128xf32>
    %59 = vector.extract_strided_slice %54 {offsets = [0, 0], sizes = [8, 128], strides = [1, 1]} : vector<8x384xf32> to vector<8x128xf32>
    %60 = arith.mulf %59, %56 : vector<8x128xf32>
    %61 = arith.addf %58, %60 : vector<8x128xf32>
    %62 = vector.extract_strided_slice %54 {offsets = [0, 256], sizes = [8, 128], strides = [1, 1]} : vector<8x384xf32> to vector<8x128xf32>
    %63 = math.tanh %61 : vector<8x128xf32>
    %64 = arith.mulf %62, %63 : vector<8x128xf32>
    %c1_35 = arith.constant 1 : index
    %c0_36 = arith.constant 0 : index
    %c0_37 = arith.constant 0 : index
    %65 = vector.load %arg12[%c1_35, %c0_36, %c0_37] : memref<8x8x128xf32, #tpu.memory_space<vmem>>, vector<1x8x128xf32>
    %66 = vector.shape_cast %65 : vector<1x8x128xf32> to vector<8x128xf32>
    %67 = vector.shape_cast %64 : vector<8x128xf32> to vector<1x8x128xf32>
    tpu.vector_store %arg12[%c1_35, %c0_36, %c0_37], %67 {strides = array<i32>} : memref<8x8x128xf32, #tpu.memory_space<vmem>>, vector<1x8x128xf32>,
    %c2 = arith.constant 2 : index
    %c0_38 = arith.constant 0 : index
    %c0_39 = arith.constant 0 : index
    %68 = vector.load %arg13[%c2, %c0_38, %c0_39] : memref<8x8x512xf32, #tpu.memory_space<vmem>>, vector<1x8x512xf32>
    %69 = vector.shape_cast %68 : vector<1x8x512xf32> to vector<8x512xf32>
    %70 = arith.truncf %64 : vector<8x128xf32> to vector<8x128xbf16>
    %c0_40 = arith.constant 0 : index
    %c0_41 = arith.constant 0 : index
    %c0_42 = arith.constant 0 : index
    %71 = vector.load %arg2[%c0_40, %c0_41, %c0_42] : memref<3x128x512xbf16, #tpu.memory_space<vmem>>, vector<1x128x512xbf16>
    %72 = vector.shape_cast %71 : vector<1x128x512xbf16> to vector<128x512xbf16>
    %cst_43 = arith.constant dense<0.000000e+00> : vector<8x512xf32>
    %73 = tpu.matmul %70, %72, %cst_43 {dimension_numbers = #tpu.dot_dimension_numbers<[1], [0], [0], [1], [0, 0, 1, 1], [], []>} : vector<8x128xbf16>, vector<128x512xbf16>, vector<8x512xf32> -> vector<8x512xf32>
    %74 = arith.addf %69, %73 : vector<8x512xf32>
    %75 = vector.extract_strided_slice %74 {offsets = [0, 0], sizes = [8, 384], strides = [1, 1]} : vector<8x512xf32> to vector<8x384xf32>
    %76 = arith.negf %75 : vector<8x384xf32>
    %77 = math.exp %76 : vector<8x384xf32>
    %cst_44 = arith.constant 1.000000e+00 : f32
    %78 = vector.broadcast %cst_44 : f32 to vector<8x384xf32>
    %79 = arith.addf %78, %77 : vector<8x384xf32>
    %80 = arith.divf %78, %79 : vector<8x384xf32>
    %81 = vector.extract_strided_slice %74 {offsets = [0, 384], sizes = [8, 128], strides = [1, 1]} : vector<8x512xf32> to vector<8x128xf32>
    %82 = math.tanh %81 : vector<8x128xf32>
    %83 = vector.extract_strided_slice %80 {offsets = [0, 128], sizes = [8, 128], strides = [1, 1]} : vector<8x384xf32> to vector<8x128xf32>
    %84 = arith.mulf %83, %61 : vector<8x128xf32>
    %85 = vector.extract_strided_slice %80 {offsets = [0, 0], sizes = [8, 128], strides = [1, 1]} : vector<8x384xf32> to vector<8x128xf32>
    %86 = arith.mulf %85, %82 : vector<8x128xf32>
    %87 = arith.addf %84, %86 : vector<8x128xf32>
    %88 = vector.extract_strided_slice %80 {offsets = [0, 256], sizes = [8, 128], strides = [1, 1]} : vector<8x384xf32> to vector<8x128xf32>
    %89 = math.tanh %87 : vector<8x128xf32>
    %90 = arith.mulf %88, %89 : vector<8x128xf32>
    %c2_45 = arith.constant 2 : index
    %c0_46 = arith.constant 0 : index
    %c0_47 = arith.constant 0 : index
    %91 = vector.load %arg12[%c2_45, %c0_46, %c0_47] : memref<8x8x128xf32, #tpu.memory_space<vmem>>, vector<1x8x128xf32>
    %92 = vector.shape_cast %91 : vector<1x8x128xf32> to vector<8x128xf32>
    %93 = vector.shape_cast %90 : vector<8x128xf32> to vector<1x8x128xf32>
    tpu.vector_store %arg12[%c2_45, %c0_46, %c0_47], %93 {strides = array<i32>} : memref<8x8x128xf32, #tpu.memory_space<vmem>>, vector<1x8x128xf32>,
    %c3 = arith.constant 3 : index
    %c0_48 = arith.constant 0 : index
    %c0_49 = arith.constant 0 : index
    %94 = vector.load %arg13[%c3, %c0_48, %c0_49] : memref<8x8x512xf32, #tpu.memory_space<vmem>>, vector<1x8x512xf32>
    %95 = vector.shape_cast %94 : vector<1x8x512xf32> to vector<8x512xf32>
    %96 = arith.truncf %90 : vector<8x128xf32> to vector<8x128xbf16>
    %c0_50 = arith.constant 0 : index
    %c0_51 = arith.constant 0 : index
    %c0_52 = arith.constant 0 : index
    %97 = vector.load %arg2[%c0_50, %c0_51, %c0_52] : memref<3x128x512xbf16, #tpu.memory_space<vmem>>, vector<1x128x512xbf16>
    %98 = vector.shape_cast %97 : vector<1x128x512xbf16> to vector<128x512xbf16>
    %cst_53 = arith.constant dense<0.000000e+00> : vector<8x512xf32>
    %99 = tpu.matmul %96, %98, %cst_53 {dimension_numbers = #tpu.dot_dimension_numbers<[1], [0], [0], [1], [0, 0, 1, 1], [], []>} : vector<8x128xbf16>, vector<128x512xbf16>, vector<8x512xf32> -> vector<8x512xf32>
    %100 = arith.addf %95, %99 : vector<8x512xf32>
    %101 = vector.extract_strided_slice %100 {offsets = [0, 0], sizes = [8, 384], strides = [1, 1]} : vector<8x512xf32> to vector<8x384xf32>
    %102 = arith.negf %101 : vector<8x384xf32>
    %103 = math.exp %102 : vector<8x384xf32>
    %cst_54 = arith.constant 1.000000e+00 : f32
    %104 = vector.broadcast %cst_54 : f32 to vector<8x384xf32>
    %105 = arith.addf %104, %103 : vector<8x384xf32>
    %106 = arith.divf %104, %105 : vector<8x384xf32>
    %107 = vector.extract_strided_slice %100 {offsets = [0, 384], sizes = [8, 128], strides = [1, 1]} : vector<8x512xf32> to vector<8x128xf32>
    %108 = math.tanh %107 : vector<8x128xf32>
    %109 = vector.extract_strided_slice %106 {offsets = [0, 128], sizes = [8, 128], strides = [1, 1]} : vector<8x384xf32> to vector<8x128xf32>
    %110 = arith.mulf %109, %87 : vector<8x128xf32>
    %111 = vector.extract_strided_slice %106 {offsets = [0, 0], sizes = [8, 128], strides = [1, 1]} : vector<8x384xf32> to vector<8x128xf32>
    %112 = arith.mulf %111, %108 : vector<8x128xf32>
    %113 = arith.addf %110, %112 : vector<8x128xf32>
    %114 = vector.extract_strided_slice %106 {offsets = [0, 256], sizes = [8, 128], strides = [1, 1]} : vector<8x384xf32> to vector<8x128xf32>
    %115 = math.tanh %113 : vector<8x128xf32>
    %116 = arith.mulf %114, %115 : vector<8x128xf32>
    %c3_55 = arith.constant 3 : index
    %c0_56 = arith.constant 0 : index
    %c0_57 = arith.constant 0 : index
    %117 = vector.load %arg12[%c3_55, %c0_56, %c0_57] : memref<8x8x128xf32, #tpu.memory_space<vmem>>, vector<1x8x128xf32>
    %118 = vector.shape_cast %117 : vector<1x8x128xf32> to vector<8x128xf32>
    %119 = vector.shape_cast %116 : vector<8x128xf32> to vector<1x8x128xf32>
    tpu.vector_store %arg12[%c3_55, %c0_56, %c0_57], %119 {strides = array<i32>} : memref<8x8x128xf32, #tpu.memory_space<vmem>>, vector<1x8x128xf32>,
    %c4 = arith.constant 4 : index
    %c0_58 = arith.constant 0 : index
    %c0_59 = arith.constant 0 : index
    %120 = vector.load %arg13[%c4, %c0_58, %c0_59] : memref<8x8x512xf32, #tpu.memory_space<vmem>>, vector<1x8x512xf32>
    %121 = vector.shape_cast %120 : vector<1x8x512xf32> to vector<8x512xf32>
    %122 = arith.truncf %116 : vector<8x128xf32> to vector<8x128xbf16>
    %c0_60 = arith.constant 0 : index
    %c0_61 = arith.constant 0 : index
    %c0_62 = arith.constant 0 : index
    %123 = vector.load %arg2[%c0_60, %c0_61, %c0_62] : memref<3x128x512xbf16, #tpu.memory_space<vmem>>, vector<1x128x512xbf16>
    %124 = vector.shape_cast %123 : vector<1x128x512xbf16> to vector<128x512xbf16>
    %cst_63 = arith.constant dense<0.000000e+00> : vector<8x512xf32>
    %125 = tpu.matmul %122, %124, %cst_63 {dimension_numbers = #tpu.dot_dimension_numbers<[1], [0], [0], [1], [0, 0, 1, 1], [], []>} : vector<8x128xbf16>, vector<128x512xbf16>, vector<8x512xf32> -> vector<8x512xf32>
    %126 = arith.addf %121, %125 : vector<8x512xf32>
    %127 = vector.extract_strided_slice %126 {offsets = [0, 0], sizes = [8, 384], strides = [1, 1]} : vector<8x512xf32> to vector<8x384xf32>
    %128 = arith.negf %127 : vector<8x384xf32>
    %129 = math.exp %128 : vector<8x384xf32>
    %cst_64 = arith.constant 1.000000e+00 : f32
    %130 = vector.broadcast %cst_64 : f32 to vector<8x384xf32>
    %131 = arith.addf %130, %129 : vector<8x384xf32>
    %132 = arith.divf %130, %131 : vector<8x384xf32>
    %133 = vector.extract_strided_slice %126 {offsets = [0, 384], sizes = [8, 128], strides = [1, 1]} : vector<8x512xf32> to vector<8x128xf32>
    %134 = math.tanh %133 : vector<8x128xf32>
    %135 = vector.extract_strided_slice %132 {offsets = [0, 128], sizes = [8, 128], strides = [1, 1]} : vector<8x384xf32> to vector<8x128xf32>
    %136 = arith.mulf %135, %113 : vector<8x128xf32>
    %137 = vector.extract_strided_slice %132 {offsets = [0, 0], sizes = [8, 128], strides = [1, 1]} : vector<8x384xf32> to vector<8x128xf32>
    %138 = arith.mulf %137, %134 : vector<8x128xf32>
    %139 = arith.addf %136, %138 : vector<8x128xf32>
    %140 = vector.extract_strided_slice %132 {offsets = [0, 256], sizes = [8, 128], strides = [1, 1]} : vector<8x384xf32> to vector<8x128xf32>
    %141 = math.tanh %139 : vector<8x128xf32>
    %142 = arith.mulf %140, %141 : vector<8x128xf32>
    %c4_65 = arith.constant 4 : index
    %c0_66 = arith.constant 0 : index
    %c0_67 = arith.constant 0 : index
    %143 = vector.load %arg12[%c4_65, %c0_66, %c0_67] : memref<8x8x128xf32, #tpu.memory_space<vmem>>, vector<1x8x128xf32>
    %144 = vector.shape_cast %143 : vector<1x8x128xf32> to vector<8x128xf32>
    %145 = vector.shape_cast %142 : vector<8x128xf32> to vector<1x8x128xf32>
    tpu.vector_store %arg12[%c4_65, %c0_66, %c0_67], %145 {strides = array<i32>} : memref<8x8x128xf32, #tpu.memory_space<vmem>>, vector<1x8x128xf32>,
    %c5 = arith.constant 5 : index
    %c0_68 = arith.constant 0 : index
    %c0_69 = arith.constant 0 : index
    %146 = vector.load %arg13[%c5, %c0_68, %c0_69] : memref<8x8x512xf32, #tpu.memory_space<vmem>>, vector<1x8x512xf32>
    %147 = vector.shape_cast %146 : vector<1x8x512xf32> to vector<8x512xf32>
    %148 = arith.truncf %142 : vector<8x128xf32> to vector<8x128xbf16>
    %c0_70 = arith.constant 0 : index
    %c0_71 = arith.constant 0 : index
    %c0_72 = arith.constant 0 : index
    %149 = vector.load %arg2[%c0_70, %c0_71, %c0_72] : memref<3x128x512xbf16, #tpu.memory_space<vmem>>, vector<1x128x512xbf16>
    %150 = vector.shape_cast %149 : vector<1x128x512xbf16> to vector<128x512xbf16>
    %cst_73 = arith.constant dense<0.000000e+00> : vector<8x512xf32>
    %151 = tpu.matmul %148, %150, %cst_73 {dimension_numbers = #tpu.dot_dimension_numbers<[1], [0], [0], [1], [0, 0, 1, 1], [], []>} : vector<8x128xbf16>, vector<128x512xbf16>, vector<8x512xf32> -> vector<8x512xf32>
    %152 = arith.addf %147, %151 : vector<8x512xf32>
    %153 = vector.extract_strided_slice %152 {offsets = [0, 0], sizes = [8, 384], strides = [1, 1]} : vector<8x512xf32> to vector<8x384xf32>
    %154 = arith.negf %153 : vector<8x384xf32>
    %155 = math.exp %154 : vector<8x384xf32>
    %cst_74 = arith.constant 1.000000e+00 : f32
    %156 = vector.broadcast %cst_74 : f32 to vector<8x384xf32>
    %157 = arith.addf %156, %155 : vector<8x384xf32>
    %158 = arith.divf %156, %157 : vector<8x384xf32>
    %159 = vector.extract_strided_slice %152 {offsets = [0, 384], sizes = [8, 128], strides = [1, 1]} : vector<8x512xf32> to vector<8x128xf32>
    %160 = math.tanh %159 : vector<8x128xf32>
    %161 = vector.extract_strided_slice %158 {offsets = [0, 128], sizes = [8, 128], strides = [1, 1]} : vector<8x384xf32> to vector<8x128xf32>
    %162 = arith.mulf %161, %139 : vector<8x128xf32>
    %163 = vector.extract_strided_slice %158 {offsets = [0, 0], sizes = [8, 128], strides = [1, 1]} : vector<8x384xf32> to vector<8x128xf32>
    %164 = arith.mulf %163, %160 : vector<8x128xf32>
    %165 = arith.addf %162, %164 : vector<8x128xf32>
    %166 = vector.extract_strided_slice %158 {offsets = [0, 256], sizes = [8, 128], strides = [1, 1]} : vector<8x384xf32> to vector<8x128xf32>
    %167 = math.tanh %165 : vector<8x128xf32>
    %168 = arith.mulf %166, %167 : vector<8x128xf32>
    %c5_75 = arith.constant 5 : index
    %c0_76 = arith.constant 0 : index
    %c0_77 = arith.constant 0 : index
    %169 = vector.load %arg12[%c5_75, %c0_76, %c0_77] : memref<8x8x128xf32, #tpu.memory_space<vmem>>, vector<1x8x128xf32>
    %170 = vector.shape_cast %169 : vector<1x8x128xf32> to vector<8x128xf32>
    %171 = vector.shape_cast %168 : vector<8x128xf32> to vector<1x8x128xf32>
    tpu.vector_store %arg12[%c5_75, %c0_76, %c0_77], %171 {strides = array<i32>} : memref<8x8x128xf32, #tpu.memory_space<vmem>>, vector<1x8x128xf32>,
    %c6 = arith.constant 6 : index
    %c0_78 = arith.constant 0 : index
    %c0_79 = arith.constant 0 : index
    %172 = vector.load %arg13[%c6, %c0_78, %c0_79] : memref<8x8x512xf32, #tpu.memory_space<vmem>>, vector<1x8x512xf32>
    %173 = vector.shape_cast %172 : vector<1x8x512xf32> to vector<8x512xf32>
    %174 = arith.truncf %168 : vector<8x128xf32> to vector<8x128xbf16>
    %c0_80 = arith.constant 0 : index
    %c0_81 = arith.constant 0 : index
    %c0_82 = arith.constant 0 : index
    %175 = vector.load %arg2[%c0_80, %c0_81, %c0_82] : memref<3x128x512xbf16, #tpu.memory_space<vmem>>, vector<1x128x512xbf16>
    %176 = vector.shape_cast %175 : vector<1x128x512xbf16> to vector<128x512xbf16>
    %cst_83 = arith.constant dense<0.000000e+00> : vector<8x512xf32>
    %177 = tpu.matmul %174, %176, %cst_83 {dimension_numbers = #tpu.dot_dimension_numbers<[1], [0], [0], [1], [0, 0, 1, 1], [], []>} : vector<8x128xbf16>, vector<128x512xbf16>, vector<8x512xf32> -> vector<8x512xf32>
    %178 = arith.addf %173, %177 : vector<8x512xf32>
    %179 = vector.extract_strided_slice %178 {offsets = [0, 0], sizes = [8, 384], strides = [1, 1]} : vector<8x512xf32> to vector<8x384xf32>
    %180 = arith.negf %179 : vector<8x384xf32>
    %181 = math.exp %180 : vector<8x384xf32>
    %cst_84 = arith.constant 1.000000e+00 : f32
    %182 = vector.broadcast %cst_84 : f32 to vector<8x384xf32>
    %183 = arith.addf %182, %181 : vector<8x384xf32>
    %184 = arith.divf %182, %183 : vector<8x384xf32>
    %185 = vector.extract_strided_slice %178 {offsets = [0, 384], sizes = [8, 128], strides = [1, 1]} : vector<8x512xf32> to vector<8x128xf32>
    %186 = math.tanh %185 : vector<8x128xf32>
    %187 = vector.extract_strided_slice %184 {offsets = [0, 128], sizes = [8, 128], strides = [1, 1]} : vector<8x384xf32> to vector<8x128xf32>
    %188 = arith.mulf %187, %165 : vector<8x128xf32>
    %189 = vector.extract_strided_slice %184 {offsets = [0, 0], sizes = [8, 128], strides = [1, 1]} : vector<8x384xf32> to vector<8x128xf32>
    %190 = arith.mulf %189, %186 : vector<8x128xf32>
    %191 = arith.addf %188, %190 : vector<8x128xf32>
    %192 = vector.extract_strided_slice %184 {offsets = [0, 256], sizes = [8, 128], strides = [1, 1]} : vector<8x384xf32> to vector<8x128xf32>
    %193 = math.tanh %191 : vector<8x128xf32>
    %194 = arith.mulf %192, %193 : vector<8x128xf32>
    %c6_85 = arith.constant 6 : index
    %c0_86 = arith.constant 0 : index
    %c0_87 = arith.constant 0 : index
    %195 = vector.load %arg12[%c6_85, %c0_86, %c0_87] : memref<8x8x128xf32, #tpu.memory_space<vmem>>, vector<1x8x128xf32>
    %196 = vector.shape_cast %195 : vector<1x8x128xf32> to vector<8x128xf32>
    %197 = vector.shape_cast %194 : vector<8x128xf32> to vector<1x8x128xf32>
    tpu.vector_store %arg12[%c6_85, %c0_86, %c0_87], %197 {strides = array<i32>} : memref<8x8x128xf32, #tpu.memory_space<vmem>>, vector<1x8x128xf32>,
    %c7 = arith.constant 7 : index
    %c0_88 = arith.constant 0 : index
    %c0_89 = arith.constant 0 : index
    %198 = vector.load %arg13[%c7, %c0_88, %c0_89] : memref<8x8x512xf32, #tpu.memory_space<vmem>>, vector<1x8x512xf32>
    %199 = vector.shape_cast %198 : vector<1x8x512xf32> to vector<8x512xf32>
    %200 = arith.truncf %194 : vector<8x128xf32> to vector<8x128xbf16>
    %c0_90 = arith.constant 0 : index
    %c0_91 = arith.constant 0 : index
    %c0_92 = arith.constant 0 : index
    %201 = vector.load %arg2[%c0_90, %c0_91, %c0_92] : memref<3x128x512xbf16, #tpu.memory_space<vmem>>, vector<1x128x512xbf16>
    %202 = vector.shape_cast %201 : vector<1x128x512xbf16> to vector<128x512xbf16>
    %cst_93 = arith.constant dense<0.000000e+00> : vector<8x512xf32>
    %203 = tpu.matmul %200, %202, %cst_93 {dimension_numbers = #tpu.dot_dimension_numbers<[1], [0], [0], [1], [0, 0, 1, 1], [], []>} : vector<8x128xbf16>, vector<128x512xbf16>, vector<8x512xf32> -> vector<8x512xf32>
    %204 = arith.addf %199, %203 : vector<8x512xf32>
    %205 = vector.extract_strided_slice %204 {offsets = [0, 0], sizes = [8, 384], strides = [1, 1]} : vector<8x512xf32> to vector<8x384xf32>
    %206 = arith.negf %205 : vector<8x384xf32>
    %207 = math.exp %206 : vector<8x384xf32>
    %cst_94 = arith.constant 1.000000e+00 : f32
    %208 = vector.broadcast %cst_94 : f32 to vector<8x384xf32>
    %209 = arith.addf %208, %207 : vector<8x384xf32>
    %210 = arith.divf %208, %209 : vector<8x384xf32>
    %211 = vector.extract_strided_slice %204 {offsets = [0, 384], sizes = [8, 128], strides = [1, 1]} : vector<8x512xf32> to vector<8x128xf32>
    %212 = math.tanh %211 : vector<8x128xf32>
    %213 = vector.extract_strided_slice %210 {offsets = [0, 128], sizes = [8, 128], strides = [1, 1]} : vector<8x384xf32> to vector<8x128xf32>
    %214 = arith.mulf %213, %191 : vector<8x128xf32>
    %215 = vector.extract_strided_slice %210 {offsets = [0, 0], sizes = [8, 128], strides = [1, 1]} : vector<8x384xf32> to vector<8x128xf32>
    %216 = arith.mulf %215, %212 : vector<8x128xf32>
    %217 = arith.addf %214, %216 : vector<8x128xf32>
    %218 = vector.extract_strided_slice %210 {offsets = [0, 256], sizes = [8, 128], strides = [1, 1]} : vector<8x384xf32> to vector<8x128xf32>
    %219 = math.tanh %217 : vector<8x128xf32>
    %220 = arith.mulf %218, %219 : vector<8x128xf32>
    %c7_95 = arith.constant 7 : index
    %c0_96 = arith.constant 0 : index
    %c0_97 = arith.constant 0 : index
    %221 = vector.load %arg12[%c7_95, %c0_96, %c0_97] : memref<8x8x128xf32, #tpu.memory_space<vmem>>, vector<1x8x128xf32>
    %222 = vector.shape_cast %221 : vector<1x8x128xf32> to vector<8x128xf32>
    %223 = vector.shape_cast %220 : vector<8x128xf32> to vector<1x8x128xf32>
    tpu.vector_store %arg12[%c7_95, %c0_96, %c0_97], %223 {strides = array<i32>} : memref<8x8x128xf32, #tpu.memory_space<vmem>>, vector<1x8x128xf32>,
    %c0_98 = arith.constant 0 : index
    %c0_99 = arith.constant 0 : index
    %c0_100 = arith.constant 0 : index
    %224 = vector.load %arg12[%c0_98, %c0_99, %c0_100] : memref<8x8x128xf32, #tpu.memory_space<vmem>>, vector<8x8x128xf32>
    %c1_101 = arith.constant 1 : index
    %c0_102 = arith.constant 0 : index
    %c0_103 = arith.constant 0 : index
    %225 = vector.load %arg1[%c1_101, %c0_102, %c0_103] : memref<3x128x512xbf16, #tpu.memory_space<vmem>>, vector<1x128x512xbf16>
    %226 = vector.shape_cast %225 : vector<1x128x512xbf16> to vector<128x512xbf16>
    %c1_104 = arith.constant 1 : index
    %c0_105 = arith.constant 0 : index
    %c0_106 = arith.constant 0 : index
    %227 = vector.load %arg3[%c1_104, %c0_105, %c0_106] : memref<3x1x512xf32, #tpu.memory_space<vmem>>, vector<1x1x512xf32>
    %228 = vector.shape_cast %227 : vector<1x1x512xf32> to vector<1x512xf32>
    %229 = vector.shape_cast %224 : vector<8x8x128xf32> to vector<64x128xf32>
    %230 = arith.truncf %229 : vector<64x128xf32> to vector<64x128xbf16>
    %cst_107 = arith.constant dense<0.000000e+00> : vector<64x512xf32>
    %231 = tpu.matmul %230, %226, %cst_107 {dimension_numbers = #tpu.dot_dimension_numbers<[1], [0], [0], [1], [0, 0, 1, 1], [], []>} : vector<64x128xbf16>, vector<128x512xbf16>, vector<64x512xf32> -> vector<64x512xf32>
    %232 = vector.broadcast %228 : vector<1x512xf32> to vector<64x512xf32>
    %233 = arith.addf %231, %232 : vector<64x512xf32>
    %234 = vector.shape_cast %233 : vector<64x512xf32> to vector<8x8x512xf32>
    %c0_108 = arith.constant 0 : index
    %c0_109 = arith.constant 0 : index
    %c0_110 = arith.constant 0 : index
    %235 = vector.load %arg13[%c0_108, %c0_109, %c0_110] : memref<8x8x512xf32, #tpu.memory_space<vmem>>, vector<8x8x512xf32>
    tpu.vector_store %arg13[%c0_108, %c0_109, %c0_110], %234 {strides = array<i32>} : memref<8x8x512xf32, #tpu.memory_space<vmem>>, vector<8x8x512xf32>,
    %c1_111 = arith.constant 1 : index
    %c0_112 = arith.constant 0 : index
    %c0_113 = arith.constant 0 : index
    %236 = vector.load %arg4[%c1_111, %c0_112, %c0_113] : memref<3x8x128xf32, #tpu.memory_space<vmem>>, vector<1x8x128xf32>
    %237 = vector.shape_cast %236 : vector<1x8x128xf32> to vector<8x128xf32>
    %c1_114 = arith.constant 1 : index
    %c0_115 = arith.constant 0 : index
    %c0_116 = arith.constant 0 : index
    %238 = vector.load %arg5[%c1_114, %c0_115, %c0_116] : memref<3x8x128xf32, #tpu.memory_space<vmem>>, vector<1x8x128xf32>
    %239 = vector.shape_cast %238 : vector<1x8x128xf32> to vector<8x128xf32>
    %c0_117 = arith.constant 0 : index
    %c0_118 = arith.constant 0 : index
    %c0_119 = arith.constant 0 : index
    %240 = vector.load %arg13[%c0_117, %c0_118, %c0_119] : memref<8x8x512xf32, #tpu.memory_space<vmem>>, vector<1x8x512xf32>
    %241 = vector.shape_cast %240 : vector<1x8x512xf32> to vector<8x512xf32>
    %242 = arith.truncf %237 : vector<8x128xf32> to vector<8x128xbf16>
    %c1_120 = arith.constant 1 : index
    %c0_121 = arith.constant 0 : index
    %c0_122 = arith.constant 0 : index
    %243 = vector.load %arg2[%c1_120, %c0_121, %c0_122] : memref<3x128x512xbf16, #tpu.memory_space<vmem>>, vector<1x128x512xbf16>
    %244 = vector.shape_cast %243 : vector<1x128x512xbf16> to vector<128x512xbf16>
    %cst_123 = arith.constant dense<0.000000e+00> : vector<8x512xf32>
    %245 = tpu.matmul %242, %244, %cst_123 {dimension_numbers = #tpu.dot_dimension_numbers<[1], [0], [0], [1], [0, 0, 1, 1], [], []>} : vector<8x128xbf16>, vector<128x512xbf16>, vector<8x512xf32> -> vector<8x512xf32>
    %246 = arith.addf %241, %245 : vector<8x512xf32>
    %247 = vector.extract_strided_slice %246 {offsets = [0, 0], sizes = [8, 384], strides = [1, 1]} : vector<8x512xf32> to vector<8x384xf32>
    %248 = arith.negf %247 : vector<8x384xf32>
    %249 = math.exp %248 : vector<8x384xf32>
    %cst_124 = arith.constant 1.000000e+00 : f32
    %250 = vector.broadcast %cst_124 : f32 to vector<8x384xf32>
    %251 = arith.addf %250, %249 : vector<8x384xf32>
    %252 = arith.divf %250, %251 : vector<8x384xf32>
    %253 = vector.extract_strided_slice %246 {offsets = [0, 384], sizes = [8, 128], strides = [1, 1]} : vector<8x512xf32> to vector<8x128xf32>
    %254 = math.tanh %253 : vector<8x128xf32>
    %255 = vector.extract_strided_slice %252 {offsets = [0, 128], sizes = [8, 128], strides = [1, 1]} : vector<8x384xf32> to vector<8x128xf32>
    %256 = arith.mulf %255, %239 : vector<8x128xf32>
    %257 = vector.extract_strided_slice %252 {offsets = [0, 0], sizes = [8, 128], strides = [1, 1]} : vector<8x384xf32> to vector<8x128xf32>
    %258 = arith.mulf %257, %254 : vector<8x128xf32>
    %259 = arith.addf %256, %258 : vector<8x128xf32>
    %260 = vector.extract_strided_slice %252 {offsets = [0, 256], sizes = [8, 128], strides = [1, 1]} : vector<8x384xf32> to vector<8x128xf32>
    %261 = math.tanh %259 : vector<8x128xf32>
    %262 = arith.mulf %260, %261 : vector<8x128xf32>
    %c0_125 = arith.constant 0 : index
    %c0_126 = arith.constant 0 : index
    %c0_127 = arith.constant 0 : index
    %263 = vector.load %arg12[%c0_125, %c0_126, %c0_127] : memref<8x8x128xf32, #tpu.memory_space<vmem>>, vector<1x8x128xf32>
    %264 = vector.shape_cast %263 : vector<1x8x128xf32> to vector<8x128xf32>
    %265 = vector.shape_cast %262 : vector<8x128xf32> to vector<1x8x128xf32>
    tpu.vector_store %arg12[%c0_125, %c0_126, %c0_127], %265 {strides = array<i32>} : memref<8x8x128xf32, #tpu.memory_space<vmem>>, vector<1x8x128xf32>,
    %c1_128 = arith.constant 1 : index
    %c0_129 = arith.constant 0 : index
    %c0_130 = arith.constant 0 : index
    %266 = vector.load %arg13[%c1_128, %c0_129, %c0_130] : memref<8x8x512xf32, #tpu.memory_space<vmem>>, vector<1x8x512xf32>
    %267 = vector.shape_cast %266 : vector<1x8x512xf32> to vector<8x512xf32>
    %268 = arith.truncf %262 : vector<8x128xf32> to vector<8x128xbf16>
    %c1_131 = arith.constant 1 : index
    %c0_132 = arith.constant 0 : index
    %c0_133 = arith.constant 0 : index
    %269 = vector.load %arg2[%c1_131, %c0_132, %c0_133] : memref<3x128x512xbf16, #tpu.memory_space<vmem>>, vector<1x128x512xbf16>
    %270 = vector.shape_cast %269 : vector<1x128x512xbf16> to vector<128x512xbf16>
    %cst_134 = arith.constant dense<0.000000e+00> : vector<8x512xf32>
    %271 = tpu.matmul %268, %270, %cst_134 {dimension_numbers = #tpu.dot_dimension_numbers<[1], [0], [0], [1], [0, 0, 1, 1], [], []>} : vector<8x128xbf16>, vector<128x512xbf16>, vector<8x512xf32> -> vector<8x512xf32>
    %272 = arith.addf %267, %271 : vector<8x512xf32>
    %273 = vector.extract_strided_slice %272 {offsets = [0, 0], sizes = [8, 384], strides = [1, 1]} : vector<8x512xf32> to vector<8x384xf32>
    %274 = arith.negf %273 : vector<8x384xf32>
    %275 = math.exp %274 : vector<8x384xf32>
    %cst_135 = arith.constant 1.000000e+00 : f32
    %276 = vector.broadcast %cst_135 : f32 to vector<8x384xf32>
    %277 = arith.addf %276, %275 : vector<8x384xf32>
    %278 = arith.divf %276, %277 : vector<8x384xf32>
    %279 = vector.extract_strided_slice %272 {offsets = [0, 384], sizes = [8, 128], strides = [1, 1]} : vector<8x512xf32> to vector<8x128xf32>
    %280 = math.tanh %279 : vector<8x128xf32>
    %281 = vector.extract_strided_slice %278 {offsets = [0, 128], sizes = [8, 128], strides = [1, 1]} : vector<8x384xf32> to vector<8x128xf32>
    %282 = arith.mulf %281, %259 : vector<8x128xf32>
    %283 = vector.extract_strided_slice %278 {offsets = [0, 0], sizes = [8, 128], strides = [1, 1]} : vector<8x384xf32> to vector<8x128xf32>
    %284 = arith.mulf %283, %280 : vector<8x128xf32>
    %285 = arith.addf %282, %284 : vector<8x128xf32>
    %286 = vector.extract_strided_slice %278 {offsets = [0, 256], sizes = [8, 128], strides = [1, 1]} : vector<8x384xf32> to vector<8x128xf32>
    %287 = math.tanh %285 : vector<8x128xf32>
    %288 = arith.mulf %286, %287 : vector<8x128xf32>
    %c1_136 = arith.constant 1 : index
    %c0_137 = arith.constant 0 : index
    %c0_138 = arith.constant 0 : index
    %289 = vector.load %arg12[%c1_136, %c0_137, %c0_138] : memref<8x8x128xf32, #tpu.memory_space<vmem>>, vector<1x8x128xf32>
    %290 = vector.shape_cast %289 : vector<1x8x128xf32> to vector<8x128xf32>
    %291 = vector.shape_cast %288 : vector<8x128xf32> to vector<1x8x128xf32>
    tpu.vector_store %arg12[%c1_136, %c0_137, %c0_138], %291 {strides = array<i32>} : memref<8x8x128xf32, #tpu.memory_space<vmem>>, vector<1x8x128xf32>,
    %c2_139 = arith.constant 2 : index
    %c0_140 = arith.constant 0 : index
    %c0_141 = arith.constant 0 : index
    %292 = vector.load %arg13[%c2_139, %c0_140, %c0_141] : memref<8x8x512xf32, #tpu.memory_space<vmem>>, vector<1x8x512xf32>
    %293 = vector.shape_cast %292 : vector<1x8x512xf32> to vector<8x512xf32>
    %294 = arith.truncf %288 : vector<8x128xf32> to vector<8x128xbf16>
    %c1_142 = arith.constant 1 : index
    %c0_143 = arith.constant 0 : index
    %c0_144 = arith.constant 0 : index
    %295 = vector.load %arg2[%c1_142, %c0_143, %c0_144] : memref<3x128x512xbf16, #tpu.memory_space<vmem>>, vector<1x128x512xbf16>
    %296 = vector.shape_cast %295 : vector<1x128x512xbf16> to vector<128x512xbf16>
    %cst_145 = arith.constant dense<0.000000e+00> : vector<8x512xf32>
    %297 = tpu.matmul %294, %296, %cst_145 {dimension_numbers = #tpu.dot_dimension_numbers<[1], [0], [0], [1], [0, 0, 1, 1], [], []>} : vector<8x128xbf16>, vector<128x512xbf16>, vector<8x512xf32> -> vector<8x512xf32>
    %298 = arith.addf %293, %297 : vector<8x512xf32>
    %299 = vector.extract_strided_slice %298 {offsets = [0, 0], sizes = [8, 384], strides = [1, 1]} : vector<8x512xf32> to vector<8x384xf32>
    %300 = arith.negf %299 : vector<8x384xf32>
    %301 = math.exp %300 : vector<8x384xf32>
    %cst_146 = arith.constant 1.000000e+00 : f32
    %302 = vector.broadcast %cst_146 : f32 to vector<8x384xf32>
    %303 = arith.addf %302, %301 : vector<8x384xf32>
    %304 = arith.divf %302, %303 : vector<8x384xf32>
    %305 = vector.extract_strided_slice %298 {offsets = [0, 384], sizes = [8, 128], strides = [1, 1]} : vector<8x512xf32> to vector<8x128xf32>
    %306 = math.tanh %305 : vector<8x128xf32>
    %307 = vector.extract_strided_slice %304 {offsets = [0, 128], sizes = [8, 128], strides = [1, 1]} : vector<8x384xf32> to vector<8x128xf32>
    %308 = arith.mulf %307, %285 : vector<8x128xf32>
    %309 = vector.extract_strided_slice %304 {offsets = [0, 0], sizes = [8, 128], strides = [1, 1]} : vector<8x384xf32> to vector<8x128xf32>
    %310 = arith.mulf %309, %306 : vector<8x128xf32>
    %311 = arith.addf %308, %310 : vector<8x128xf32>
    %312 = vector.extract_strided_slice %304 {offsets = [0, 256], sizes = [8, 128], strides = [1, 1]} : vector<8x384xf32> to vector<8x128xf32>
    %313 = math.tanh %311 : vector<8x128xf32>
    %314 = arith.mulf %312, %313 : vector<8x128xf32>
    %c2_147 = arith.constant 2 : index
    %c0_148 = arith.constant 0 : index
    %c0_149 = arith.constant 0 : index
    %315 = vector.load %arg12[%c2_147, %c0_148, %c0_149] : memref<8x8x128xf32, #tpu.memory_space<vmem>>, vector<1x8x128xf32>
    %316 = vector.shape_cast %315 : vector<1x8x128xf32> to vector<8x128xf32>
    %317 = vector.shape_cast %314 : vector<8x128xf32> to vector<1x8x128xf32>
    tpu.vector_store %arg12[%c2_147, %c0_148, %c0_149], %317 {strides = array<i32>} : memref<8x8x128xf32, #tpu.memory_space<vmem>>, vector<1x8x128xf32>,
    %c3_150 = arith.constant 3 : index
    %c0_151 = arith.constant 0 : index
    %c0_152 = arith.constant 0 : index
    %318 = vector.load %arg13[%c3_150, %c0_151, %c0_152] : memref<8x8x512xf32, #tpu.memory_space<vmem>>, vector<1x8x512xf32>
    %319 = vector.shape_cast %318 : vector<1x8x512xf32> to vector<8x512xf32>
    %320 = arith.truncf %314 : vector<8x128xf32> to vector<8x128xbf16>
    %c1_153 = arith.constant 1 : index
    %c0_154 = arith.constant 0 : index
    %c0_155 = arith.constant 0 : index
    %321 = vector.load %arg2[%c1_153, %c0_154, %c0_155] : memref<3x128x512xbf16, #tpu.memory_space<vmem>>, vector<1x128x512xbf16>
    %322 = vector.shape_cast %321 : vector<1x128x512xbf16> to vector<128x512xbf16>
    %cst_156 = arith.constant dense<0.000000e+00> : vector<8x512xf32>
    %323 = tpu.matmul %320, %322, %cst_156 {dimension_numbers = #tpu.dot_dimension_numbers<[1], [0], [0], [1], [0, 0, 1, 1], [], []>} : vector<8x128xbf16>, vector<128x512xbf16>, vector<8x512xf32> -> vector<8x512xf32>
    %324 = arith.addf %319, %323 : vector<8x512xf32>
    %325 = vector.extract_strided_slice %324 {offsets = [0, 0], sizes = [8, 384], strides = [1, 1]} : vector<8x512xf32> to vector<8x384xf32>
    %326 = arith.negf %325 : vector<8x384xf32>
    %327 = math.exp %326 : vector<8x384xf32>
    %cst_157 = arith.constant 1.000000e+00 : f32
    %328 = vector.broadcast %cst_157 : f32 to vector<8x384xf32>
    %329 = arith.addf %328, %327 : vector<8x384xf32>
    %330 = arith.divf %328, %329 : vector<8x384xf32>
    %331 = vector.extract_strided_slice %324 {offsets = [0, 384], sizes = [8, 128], strides = [1, 1]} : vector<8x512xf32> to vector<8x128xf32>
    %332 = math.tanh %331 : vector<8x128xf32>
    %333 = vector.extract_strided_slice %330 {offsets = [0, 128], sizes = [8, 128], strides = [1, 1]} : vector<8x384xf32> to vector<8x128xf32>
    %334 = arith.mulf %333, %311 : vector<8x128xf32>
    %335 = vector.extract_strided_slice %330 {offsets = [0, 0], sizes = [8, 128], strides = [1, 1]} : vector<8x384xf32> to vector<8x128xf32>
    %336 = arith.mulf %335, %332 : vector<8x128xf32>
    %337 = arith.addf %334, %336 : vector<8x128xf32>
    %338 = vector.extract_strided_slice %330 {offsets = [0, 256], sizes = [8, 128], strides = [1, 1]} : vector<8x384xf32> to vector<8x128xf32>
    %339 = math.tanh %337 : vector<8x128xf32>
    %340 = arith.mulf %338, %339 : vector<8x128xf32>
    %c3_158 = arith.constant 3 : index
    %c0_159 = arith.constant 0 : index
    %c0_160 = arith.constant 0 : index
    %341 = vector.load %arg12[%c3_158, %c0_159, %c0_160] : memref<8x8x128xf32, #tpu.memory_space<vmem>>, vector<1x8x128xf32>
    %342 = vector.shape_cast %341 : vector<1x8x128xf32> to vector<8x128xf32>
    %343 = vector.shape_cast %340 : vector<8x128xf32> to vector<1x8x128xf32>
    tpu.vector_store %arg12[%c3_158, %c0_159, %c0_160], %343 {strides = array<i32>} : memref<8x8x128xf32, #tpu.memory_space<vmem>>, vector<1x8x128xf32>,
    %c4_161 = arith.constant 4 : index
    %c0_162 = arith.constant 0 : index
    %c0_163 = arith.constant 0 : index
    %344 = vector.load %arg13[%c4_161, %c0_162, %c0_163] : memref<8x8x512xf32, #tpu.memory_space<vmem>>, vector<1x8x512xf32>
    %345 = vector.shape_cast %344 : vector<1x8x512xf32> to vector<8x512xf32>
    %346 = arith.truncf %340 : vector<8x128xf32> to vector<8x128xbf16>
    %c1_164 = arith.constant 1 : index
    %c0_165 = arith.constant 0 : index
    %c0_166 = arith.constant 0 : index
    %347 = vector.load %arg2[%c1_164, %c0_165, %c0_166] : memref<3x128x512xbf16, #tpu.memory_space<vmem>>, vector<1x128x512xbf16>
    %348 = vector.shape_cast %347 : vector<1x128x512xbf16> to vector<128x512xbf16>
    %cst_167 = arith.constant dense<0.000000e+00> : vector<8x512xf32>
    %349 = tpu.matmul %346, %348, %cst_167 {dimension_numbers = #tpu.dot_dimension_numbers<[1], [0], [0], [1], [0, 0, 1, 1], [], []>} : vector<8x128xbf16>, vector<128x512xbf16>, vector<8x512xf32> -> vector<8x512xf32>
    %350 = arith.addf %345, %349 : vector<8x512xf32>
    %351 = vector.extract_strided_slice %350 {offsets = [0, 0], sizes = [8, 384], strides = [1, 1]} : vector<8x512xf32> to vector<8x384xf32>
    %352 = arith.negf %351 : vector<8x384xf32>
    %353 = math.exp %352 : vector<8x384xf32>
    %cst_168 = arith.constant 1.000000e+00 : f32
    %354 = vector.broadcast %cst_168 : f32 to vector<8x384xf32>
    %355 = arith.addf %354, %353 : vector<8x384xf32>
    %356 = arith.divf %354, %355 : vector<8x384xf32>
    %357 = vector.extract_strided_slice %350 {offsets = [0, 384], sizes = [8, 128], strides = [1, 1]} : vector<8x512xf32> to vector<8x128xf32>
    %358 = math.tanh %357 : vector<8x128xf32>
    %359 = vector.extract_strided_slice %356 {offsets = [0, 128], sizes = [8, 128], strides = [1, 1]} : vector<8x384xf32> to vector<8x128xf32>
    %360 = arith.mulf %359, %337 : vector<8x128xf32>
    %361 = vector.extract_strided_slice %356 {offsets = [0, 0], sizes = [8, 128], strides = [1, 1]} : vector<8x384xf32> to vector<8x128xf32>
    %362 = arith.mulf %361, %358 : vector<8x128xf32>
    %363 = arith.addf %360, %362 : vector<8x128xf32>
    %364 = vector.extract_strided_slice %356 {offsets = [0, 256], sizes = [8, 128], strides = [1, 1]} : vector<8x384xf32> to vector<8x128xf32>
    %365 = math.tanh %363 : vector<8x128xf32>
    %366 = arith.mulf %364, %365 : vector<8x128xf32>
    %c4_169 = arith.constant 4 : index
    %c0_170 = arith.constant 0 : index
    %c0_171 = arith.constant 0 : index
    %367 = vector.load %arg12[%c4_169, %c0_170, %c0_171] : memref<8x8x128xf32, #tpu.memory_space<vmem>>, vector<1x8x128xf32>
    %368 = vector.shape_cast %367 : vector<1x8x128xf32> to vector<8x128xf32>
    %369 = vector.shape_cast %366 : vector<8x128xf32> to vector<1x8x128xf32>
    tpu.vector_store %arg12[%c4_169, %c0_170, %c0_171], %369 {strides = array<i32>} : memref<8x8x128xf32, #tpu.memory_space<vmem>>, vector<1x8x128xf32>,
    %c5_172 = arith.constant 5 : index
    %c0_173 = arith.constant 0 : index
    %c0_174 = arith.constant 0 : index
    %370 = vector.load %arg13[%c5_172, %c0_173, %c0_174] : memref<8x8x512xf32, #tpu.memory_space<vmem>>, vector<1x8x512xf32>
    %371 = vector.shape_cast %370 : vector<1x8x512xf32> to vector<8x512xf32>
    %372 = arith.truncf %366 : vector<8x128xf32> to vector<8x128xbf16>
    %c1_175 = arith.constant 1 : index
    %c0_176 = arith.constant 0 : index
    %c0_177 = arith.constant 0 : index
    %373 = vector.load %arg2[%c1_175, %c0_176, %c0_177] : memref<3x128x512xbf16, #tpu.memory_space<vmem>>, vector<1x128x512xbf16>
    %374 = vector.shape_cast %373 : vector<1x128x512xbf16> to vector<128x512xbf16>
    %cst_178 = arith.constant dense<0.000000e+00> : vector<8x512xf32>
    %375 = tpu.matmul %372, %374, %cst_178 {dimension_numbers = #tpu.dot_dimension_numbers<[1], [0], [0], [1], [0, 0, 1, 1], [], []>} : vector<8x128xbf16>, vector<128x512xbf16>, vector<8x512xf32> -> vector<8x512xf32>
    %376 = arith.addf %371, %375 : vector<8x512xf32>
    %377 = vector.extract_strided_slice %376 {offsets = [0, 0], sizes = [8, 384], strides = [1, 1]} : vector<8x512xf32> to vector<8x384xf32>
    %378 = arith.negf %377 : vector<8x384xf32>
    %379 = math.exp %378 : vector<8x384xf32>
    %cst_179 = arith.constant 1.000000e+00 : f32
    %380 = vector.broadcast %cst_179 : f32 to vector<8x384xf32>
    %381 = arith.addf %380, %379 : vector<8x384xf32>
    %382 = arith.divf %380, %381 : vector<8x384xf32>
    %383 = vector.extract_strided_slice %376 {offsets = [0, 384], sizes = [8, 128], strides = [1, 1]} : vector<8x512xf32> to vector<8x128xf32>
    %384 = math.tanh %383 : vector<8x128xf32>
    %385 = vector.extract_strided_slice %382 {offsets = [0, 128], sizes = [8, 128], strides = [1, 1]} : vector<8x384xf32> to vector<8x128xf32>
    %386 = arith.mulf %385, %363 : vector<8x128xf32>
    %387 = vector.extract_strided_slice %382 {offsets = [0, 0], sizes = [8, 128], strides = [1, 1]} : vector<8x384xf32> to vector<8x128xf32>
    %388 = arith.mulf %387, %384 : vector<8x128xf32>
    %389 = arith.addf %386, %388 : vector<8x128xf32>
    %390 = vector.extract_strided_slice %382 {offsets = [0, 256], sizes = [8, 128], strides = [1, 1]} : vector<8x384xf32> to vector<8x128xf32>
    %391 = math.tanh %389 : vector<8x128xf32>
    %392 = arith.mulf %390, %391 : vector<8x128xf32>
    %c5_180 = arith.constant 5 : index
    %c0_181 = arith.constant 0 : index
    %c0_182 = arith.constant 0 : index
    %393 = vector.load %arg12[%c5_180, %c0_181, %c0_182] : memref<8x8x128xf32, #tpu.memory_space<vmem>>, vector<1x8x128xf32>
    %394 = vector.shape_cast %393 : vector<1x8x128xf32> to vector<8x128xf32>
    %395 = vector.shape_cast %392 : vector<8x128xf32> to vector<1x8x128xf32>
    tpu.vector_store %arg12[%c5_180, %c0_181, %c0_182], %395 {strides = array<i32>} : memref<8x8x128xf32, #tpu.memory_space<vmem>>, vector<1x8x128xf32>,
    %c6_183 = arith.constant 6 : index
    %c0_184 = arith.constant 0 : index
    %c0_185 = arith.constant 0 : index
    %396 = vector.load %arg13[%c6_183, %c0_184, %c0_185] : memref<8x8x512xf32, #tpu.memory_space<vmem>>, vector<1x8x512xf32>
    %397 = vector.shape_cast %396 : vector<1x8x512xf32> to vector<8x512xf32>
    %398 = arith.truncf %392 : vector<8x128xf32> to vector<8x128xbf16>
    %c1_186 = arith.constant 1 : index
    %c0_187 = arith.constant 0 : index
    %c0_188 = arith.constant 0 : index
    %399 = vector.load %arg2[%c1_186, %c0_187, %c0_188] : memref<3x128x512xbf16, #tpu.memory_space<vmem>>, vector<1x128x512xbf16>
    %400 = vector.shape_cast %399 : vector<1x128x512xbf16> to vector<128x512xbf16>
    %cst_189 = arith.constant dense<0.000000e+00> : vector<8x512xf32>
    %401 = tpu.matmul %398, %400, %cst_189 {dimension_numbers = #tpu.dot_dimension_numbers<[1], [0], [0], [1], [0, 0, 1, 1], [], []>} : vector<8x128xbf16>, vector<128x512xbf16>, vector<8x512xf32> -> vector<8x512xf32>
    %402 = arith.addf %397, %401 : vector<8x512xf32>
    %403 = vector.extract_strided_slice %402 {offsets = [0, 0], sizes = [8, 384], strides = [1, 1]} : vector<8x512xf32> to vector<8x384xf32>
    %404 = arith.negf %403 : vector<8x384xf32>
    %405 = math.exp %404 : vector<8x384xf32>
    %cst_190 = arith.constant 1.000000e+00 : f32
    %406 = vector.broadcast %cst_190 : f32 to vector<8x384xf32>
    %407 = arith.addf %406, %405 : vector<8x384xf32>
    %408 = arith.divf %406, %407 : vector<8x384xf32>
    %409 = vector.extract_strided_slice %402 {offsets = [0, 384], sizes = [8, 128], strides = [1, 1]} : vector<8x512xf32> to vector<8x128xf32>
    %410 = math.tanh %409 : vector<8x128xf32>
    %411 = vector.extract_strided_slice %408 {offsets = [0, 128], sizes = [8, 128], strides = [1, 1]} : vector<8x384xf32> to vector<8x128xf32>
    %412 = arith.mulf %411, %389 : vector<8x128xf32>
    %413 = vector.extract_strided_slice %408 {offsets = [0, 0], sizes = [8, 128], strides = [1, 1]} : vector<8x384xf32> to vector<8x128xf32>
    %414 = arith.mulf %413, %410 : vector<8x128xf32>
    %415 = arith.addf %412, %414 : vector<8x128xf32>
    %416 = vector.extract_strided_slice %408 {offsets = [0, 256], sizes = [8, 128], strides = [1, 1]} : vector<8x384xf32> to vector<8x128xf32>
    %417 = math.tanh %415 : vector<8x128xf32>
    %418 = arith.mulf %416, %417 : vector<8x128xf32>
    %c6_191 = arith.constant 6 : index
    %c0_192 = arith.constant 0 : index
    %c0_193 = arith.constant 0 : index
    %419 = vector.load %arg12[%c6_191, %c0_192, %c0_193] : memref<8x8x128xf32, #tpu.memory_space<vmem>>, vector<1x8x128xf32>
    %420 = vector.shape_cast %419 : vector<1x8x128xf32> to vector<8x128xf32>
    %421 = vector.shape_cast %418 : vector<8x128xf32> to vector<1x8x128xf32>
    tpu.vector_store %arg12[%c6_191, %c0_192, %c0_193], %421 {strides = array<i32>} : memref<8x8x128xf32, #tpu.memory_space<vmem>>, vector<1x8x128xf32>,
    %c7_194 = arith.constant 7 : index
    %c0_195 = arith.constant 0 : index
    %c0_196 = arith.constant 0 : index
    %422 = vector.load %arg13[%c7_194, %c0_195, %c0_196] : memref<8x8x512xf32, #tpu.memory_space<vmem>>, vector<1x8x512xf32>
    %423 = vector.shape_cast %422 : vector<1x8x512xf32> to vector<8x512xf32>
    %424 = arith.truncf %418 : vector<8x128xf32> to vector<8x128xbf16>
    %c1_197 = arith.constant 1 : index
    %c0_198 = arith.constant 0 : index
    %c0_199 = arith.constant 0 : index
    %425 = vector.load %arg2[%c1_197, %c0_198, %c0_199] : memref<3x128x512xbf16, #tpu.memory_space<vmem>>, vector<1x128x512xbf16>
    %426 = vector.shape_cast %425 : vector<1x128x512xbf16> to vector<128x512xbf16>
    %cst_200 = arith.constant dense<0.000000e+00> : vector<8x512xf32>
    %427 = tpu.matmul %424, %426, %cst_200 {dimension_numbers = #tpu.dot_dimension_numbers<[1], [0], [0], [1], [0, 0, 1, 1], [], []>} : vector<8x128xbf16>, vector<128x512xbf16>, vector<8x512xf32> -> vector<8x512xf32>
    %428 = arith.addf %423, %427 : vector<8x512xf32>
    %429 = vector.extract_strided_slice %428 {offsets = [0, 0], sizes = [8, 384], strides = [1, 1]} : vector<8x512xf32> to vector<8x384xf32>
    %430 = arith.negf %429 : vector<8x384xf32>
    %431 = math.exp %430 : vector<8x384xf32>
    %cst_201 = arith.constant 1.000000e+00 : f32
    %432 = vector.broadcast %cst_201 : f32 to vector<8x384xf32>
    %433 = arith.addf %432, %431 : vector<8x384xf32>
    %434 = arith.divf %432, %433 : vector<8x384xf32>
    %435 = vector.extract_strided_slice %428 {offsets = [0, 384], sizes = [8, 128], strides = [1, 1]} : vector<8x512xf32> to vector<8x128xf32>
    %436 = math.tanh %435 : vector<8x128xf32>
    %437 = vector.extract_strided_slice %434 {offsets = [0, 128], sizes = [8, 128], strides = [1, 1]} : vector<8x384xf32> to vector<8x128xf32>
    %438 = arith.mulf %437, %415 : vector<8x128xf32>
    %439 = vector.extract_strided_slice %434 {offsets = [0, 0], sizes = [8, 128], strides = [1, 1]} : vector<8x384xf32> to vector<8x128xf32>
    %440 = arith.mulf %439, %436 : vector<8x128xf32>
    %441 = arith.addf %438, %440 : vector<8x128xf32>
    %442 = vector.extract_strided_slice %434 {offsets = [0, 256], sizes = [8, 128], strides = [1, 1]} : vector<8x384xf32> to vector<8x128xf32>
    %443 = math.tanh %441 : vector<8x128xf32>
    %444 = arith.mulf %442, %443 : vector<8x128xf32>
    %c7_202 = arith.constant 7 : index
    %c0_203 = arith.constant 0 : index
    %c0_204 = arith.constant 0 : index
    %445 = vector.load %arg12[%c7_202, %c0_203, %c0_204] : memref<8x8x128xf32, #tpu.memory_space<vmem>>, vector<1x8x128xf32>
    %446 = vector.shape_cast %445 : vector<1x8x128xf32> to vector<8x128xf32>
    %447 = vector.shape_cast %444 : vector<8x128xf32> to vector<1x8x128xf32>
    tpu.vector_store %arg12[%c7_202, %c0_203, %c0_204], %447 {strides = array<i32>} : memref<8x8x128xf32, #tpu.memory_space<vmem>>, vector<1x8x128xf32>,
    %c0_205 = arith.constant 0 : index
    %c0_206 = arith.constant 0 : index
    %c0_207 = arith.constant 0 : index
    %448 = vector.load %arg12[%c0_205, %c0_206, %c0_207] : memref<8x8x128xf32, #tpu.memory_space<vmem>>, vector<8x8x128xf32>
    %c2_208 = arith.constant 2 : index
    %c0_209 = arith.constant 0 : index
    %c0_210 = arith.constant 0 : index
    %449 = vector.load %arg1[%c2_208, %c0_209, %c0_210] : memref<3x128x512xbf16, #tpu.memory_space<vmem>>, vector<1x128x512xbf16>
    %450 = vector.shape_cast %449 : vector<1x128x512xbf16> to vector<128x512xbf16>
    %c2_211 = arith.constant 2 : index
    %c0_212 = arith.constant 0 : index
    %c0_213 = arith.constant 0 : index
    %451 = vector.load %arg3[%c2_211, %c0_212, %c0_213] : memref<3x1x512xf32, #tpu.memory_space<vmem>>, vector<1x1x512xf32>
    %452 = vector.shape_cast %451 : vector<1x1x512xf32> to vector<1x512xf32>
    %453 = vector.shape_cast %448 : vector<8x8x128xf32> to vector<64x128xf32>
    %454 = arith.truncf %453 : vector<64x128xf32> to vector<64x128xbf16>
    %cst_214 = arith.constant dense<0.000000e+00> : vector<64x512xf32>
    %455 = tpu.matmul %454, %450, %cst_214 {dimension_numbers = #tpu.dot_dimension_numbers<[1], [0], [0], [1], [0, 0, 1, 1], [], []>} : vector<64x128xbf16>, vector<128x512xbf16>, vector<64x512xf32> -> vector<64x512xf32>
    %456 = vector.broadcast %452 : vector<1x512xf32> to vector<64x512xf32>
    %457 = arith.addf %455, %456 : vector<64x512xf32>
    %458 = vector.shape_cast %457 : vector<64x512xf32> to vector<8x8x512xf32>
    %c0_215 = arith.constant 0 : index
    %c0_216 = arith.constant 0 : index
    %c0_217 = arith.constant 0 : index
    %459 = vector.load %arg13[%c0_215, %c0_216, %c0_217] : memref<8x8x512xf32, #tpu.memory_space<vmem>>, vector<8x8x512xf32>
    tpu.vector_store %arg13[%c0_215, %c0_216, %c0_217], %458 {strides = array<i32>} : memref<8x8x512xf32, #tpu.memory_space<vmem>>, vector<8x8x512xf32>,
    %c2_218 = arith.constant 2 : index
    %c0_219 = arith.constant 0 : index
    %c0_220 = arith.constant 0 : index
    %460 = vector.load %arg4[%c2_218, %c0_219, %c0_220] : memref<3x8x128xf32, #tpu.memory_space<vmem>>, vector<1x8x128xf32>
    %461 = vector.shape_cast %460 : vector<1x8x128xf32> to vector<8x128xf32>
    %c2_221 = arith.constant 2 : index
    %c0_222 = arith.constant 0 : index
    %c0_223 = arith.constant 0 : index
    %462 = vector.load %arg5[%c2_221, %c0_222, %c0_223] : memref<3x8x128xf32, #tpu.memory_space<vmem>>, vector<1x8x128xf32>
    %463 = vector.shape_cast %462 : vector<1x8x128xf32> to vector<8x128xf32>
    %c0_224 = arith.constant 0 : index
    %c0_225 = arith.constant 0 : index
    %c0_226 = arith.constant 0 : index
    %464 = vector.load %arg13[%c0_224, %c0_225, %c0_226] : memref<8x8x512xf32, #tpu.memory_space<vmem>>, vector<1x8x512xf32>
    %465 = vector.shape_cast %464 : vector<1x8x512xf32> to vector<8x512xf32>
    %466 = arith.truncf %461 : vector<8x128xf32> to vector<8x128xbf16>
    %c2_227 = arith.constant 2 : index
    %c0_228 = arith.constant 0 : index
    %c0_229 = arith.constant 0 : index
    %467 = vector.load %arg2[%c2_227, %c0_228, %c0_229] : memref<3x128x512xbf16, #tpu.memory_space<vmem>>, vector<1x128x512xbf16>
    %468 = vector.shape_cast %467 : vector<1x128x512xbf16> to vector<128x512xbf16>
    %cst_230 = arith.constant dense<0.000000e+00> : vector<8x512xf32>
    %469 = tpu.matmul %466, %468, %cst_230 {dimension_numbers = #tpu.dot_dimension_numbers<[1], [0], [0], [1], [0, 0, 1, 1], [], []>} : vector<8x128xbf16>, vector<128x512xbf16>, vector<8x512xf32> -> vector<8x512xf32>
    %470 = arith.addf %465, %469 : vector<8x512xf32>
    %471 = vector.extract_strided_slice %470 {offsets = [0, 0], sizes = [8, 384], strides = [1, 1]} : vector<8x512xf32> to vector<8x384xf32>
    %472 = arith.negf %471 : vector<8x384xf32>
    %473 = math.exp %472 : vector<8x384xf32>
    %cst_231 = arith.constant 1.000000e+00 : f32
    %474 = vector.broadcast %cst_231 : f32 to vector<8x384xf32>
    %475 = arith.addf %474, %473 : vector<8x384xf32>
    %476 = arith.divf %474, %475 : vector<8x384xf32>
    %477 = vector.extract_strided_slice %470 {offsets = [0, 384], sizes = [8, 128], strides = [1, 1]} : vector<8x512xf32> to vector<8x128xf32>
    %478 = math.tanh %477 : vector<8x128xf32>
    %479 = vector.extract_strided_slice %476 {offsets = [0, 128], sizes = [8, 128], strides = [1, 1]} : vector<8x384xf32> to vector<8x128xf32>
    %480 = arith.mulf %479, %463 : vector<8x128xf32>
    %481 = vector.extract_strided_slice %476 {offsets = [0, 0], sizes = [8, 128], strides = [1, 1]} : vector<8x384xf32> to vector<8x128xf32>
    %482 = arith.mulf %481, %478 : vector<8x128xf32>
    %483 = arith.addf %480, %482 : vector<8x128xf32>
    %484 = vector.extract_strided_slice %476 {offsets = [0, 256], sizes = [8, 128], strides = [1, 1]} : vector<8x384xf32> to vector<8x128xf32>
    %485 = math.tanh %483 : vector<8x128xf32>
    %486 = arith.mulf %484, %485 : vector<8x128xf32>
    %c0_232 = arith.constant 0 : index
    %c0_233 = arith.constant 0 : index
    %c0_234 = arith.constant 0 : index
    %487 = vector.load %arg12[%c0_232, %c0_233, %c0_234] : memref<8x8x128xf32, #tpu.memory_space<vmem>>, vector<1x8x128xf32>
    %488 = vector.shape_cast %487 : vector<1x8x128xf32> to vector<8x128xf32>
    %489 = vector.shape_cast %486 : vector<8x128xf32> to vector<1x8x128xf32>
    tpu.vector_store %arg12[%c0_232, %c0_233, %c0_234], %489 {strides = array<i32>} : memref<8x8x128xf32, #tpu.memory_space<vmem>>, vector<1x8x128xf32>,
    %c1_235 = arith.constant 1 : index
    %c0_236 = arith.constant 0 : index
    %c0_237 = arith.constant 0 : index
    %490 = vector.load %arg13[%c1_235, %c0_236, %c0_237] : memref<8x8x512xf32, #tpu.memory_space<vmem>>, vector<1x8x512xf32>
    %491 = vector.shape_cast %490 : vector<1x8x512xf32> to vector<8x512xf32>
    %492 = arith.truncf %486 : vector<8x128xf32> to vector<8x128xbf16>
    %c2_238 = arith.constant 2 : index
    %c0_239 = arith.constant 0 : index
    %c0_240 = arith.constant 0 : index
    %493 = vector.load %arg2[%c2_238, %c0_239, %c0_240] : memref<3x128x512xbf16, #tpu.memory_space<vmem>>, vector<1x128x512xbf16>
    %494 = vector.shape_cast %493 : vector<1x128x512xbf16> to vector<128x512xbf16>
    %cst_241 = arith.constant dense<0.000000e+00> : vector<8x512xf32>
    %495 = tpu.matmul %492, %494, %cst_241 {dimension_numbers = #tpu.dot_dimension_numbers<[1], [0], [0], [1], [0, 0, 1, 1], [], []>} : vector<8x128xbf16>, vector<128x512xbf16>, vector<8x512xf32> -> vector<8x512xf32>
    %496 = arith.addf %491, %495 : vector<8x512xf32>
    %497 = vector.extract_strided_slice %496 {offsets = [0, 0], sizes = [8, 384], strides = [1, 1]} : vector<8x512xf32> to vector<8x384xf32>
    %498 = arith.negf %497 : vector<8x384xf32>
    %499 = math.exp %498 : vector<8x384xf32>
    %cst_242 = arith.constant 1.000000e+00 : f32
    %500 = vector.broadcast %cst_242 : f32 to vector<8x384xf32>
    %501 = arith.addf %500, %499 : vector<8x384xf32>
    %502 = arith.divf %500, %501 : vector<8x384xf32>
    %503 = vector.extract_strided_slice %496 {offsets = [0, 384], sizes = [8, 128], strides = [1, 1]} : vector<8x512xf32> to vector<8x128xf32>
    %504 = math.tanh %503 : vector<8x128xf32>
    %505 = vector.extract_strided_slice %502 {offsets = [0, 128], sizes = [8, 128], strides = [1, 1]} : vector<8x384xf32> to vector<8x128xf32>
    %506 = arith.mulf %505, %483 : vector<8x128xf32>
    %507 = vector.extract_strided_slice %502 {offsets = [0, 0], sizes = [8, 128], strides = [1, 1]} : vector<8x384xf32> to vector<8x128xf32>
    %508 = arith.mulf %507, %504 : vector<8x128xf32>
    %509 = arith.addf %506, %508 : vector<8x128xf32>
    %510 = vector.extract_strided_slice %502 {offsets = [0, 256], sizes = [8, 128], strides = [1, 1]} : vector<8x384xf32> to vector<8x128xf32>
    %511 = math.tanh %509 : vector<8x128xf32>
    %512 = arith.mulf %510, %511 : vector<8x128xf32>
    %c1_243 = arith.constant 1 : index
    %c0_244 = arith.constant 0 : index
    %c0_245 = arith.constant 0 : index
    %513 = vector.load %arg12[%c1_243, %c0_244, %c0_245] : memref<8x8x128xf32, #tpu.memory_space<vmem>>, vector<1x8x128xf32>
    %514 = vector.shape_cast %513 : vector<1x8x128xf32> to vector<8x128xf32>
    %515 = vector.shape_cast %512 : vector<8x128xf32> to vector<1x8x128xf32>
    tpu.vector_store %arg12[%c1_243, %c0_244, %c0_245], %515 {strides = array<i32>} : memref<8x8x128xf32, #tpu.memory_space<vmem>>, vector<1x8x128xf32>,
    %c2_246 = arith.constant 2 : index
    %c0_247 = arith.constant 0 : index
    %c0_248 = arith.constant 0 : index
    %516 = vector.load %arg13[%c2_246, %c0_247, %c0_248] : memref<8x8x512xf32, #tpu.memory_space<vmem>>, vector<1x8x512xf32>
    %517 = vector.shape_cast %516 : vector<1x8x512xf32> to vector<8x512xf32>
    %518 = arith.truncf %512 : vector<8x128xf32> to vector<8x128xbf16>
    %c2_249 = arith.constant 2 : index
    %c0_250 = arith.constant 0 : index
    %c0_251 = arith.constant 0 : index
    %519 = vector.load %arg2[%c2_249, %c0_250, %c0_251] : memref<3x128x512xbf16, #tpu.memory_space<vmem>>, vector<1x128x512xbf16>
    %520 = vector.shape_cast %519 : vector<1x128x512xbf16> to vector<128x512xbf16>
    %cst_252 = arith.constant dense<0.000000e+00> : vector<8x512xf32>
    %521 = tpu.matmul %518, %520, %cst_252 {dimension_numbers = #tpu.dot_dimension_numbers<[1], [0], [0], [1], [0, 0, 1, 1], [], []>} : vector<8x128xbf16>, vector<128x512xbf16>, vector<8x512xf32> -> vector<8x512xf32>
    %522 = arith.addf %517, %521 : vector<8x512xf32>
    %523 = vector.extract_strided_slice %522 {offsets = [0, 0], sizes = [8, 384], strides = [1, 1]} : vector<8x512xf32> to vector<8x384xf32>
    %524 = arith.negf %523 : vector<8x384xf32>
    %525 = math.exp %524 : vector<8x384xf32>
    %cst_253 = arith.constant 1.000000e+00 : f32
    %526 = vector.broadcast %cst_253 : f32 to vector<8x384xf32>
    %527 = arith.addf %526, %525 : vector<8x384xf32>
    %528 = arith.divf %526, %527 : vector<8x384xf32>
    %529 = vector.extract_strided_slice %522 {offsets = [0, 384], sizes = [8, 128], strides = [1, 1]} : vector<8x512xf32> to vector<8x128xf32>
    %530 = math.tanh %529 : vector<8x128xf32>
    %531 = vector.extract_strided_slice %528 {offsets = [0, 128], sizes = [8, 128], strides = [1, 1]} : vector<8x384xf32> to vector<8x128xf32>
    %532 = arith.mulf %531, %509 : vector<8x128xf32>
    %533 = vector.extract_strided_slice %528 {offsets = [0, 0], sizes = [8, 128], strides = [1, 1]} : vector<8x384xf32> to vector<8x128xf32>
    %534 = arith.mulf %533, %530 : vector<8x128xf32>
    %535 = arith.addf %532, %534 : vector<8x128xf32>
    %536 = vector.extract_strided_slice %528 {offsets = [0, 256], sizes = [8, 128], strides = [1, 1]} : vector<8x384xf32> to vector<8x128xf32>
    %537 = math.tanh %535 : vector<8x128xf32>
    %538 = arith.mulf %536, %537 : vector<8x128xf32>
    %c2_254 = arith.constant 2 : index
    %c0_255 = arith.constant 0 : index
    %c0_256 = arith.constant 0 : index
    %539 = vector.load %arg12[%c2_254, %c0_255, %c0_256] : memref<8x8x128xf32, #tpu.memory_space<vmem>>, vector<1x8x128xf32>
    %540 = vector.shape_cast %539 : vector<1x8x128xf32> to vector<8x128xf32>
    %541 = vector.shape_cast %538 : vector<8x128xf32> to vector<1x8x128xf32>
    tpu.vector_store %arg12[%c2_254, %c0_255, %c0_256], %541 {strides = array<i32>} : memref<8x8x128xf32, #tpu.memory_space<vmem>>, vector<1x8x128xf32>,
    %c3_257 = arith.constant 3 : index
    %c0_258 = arith.constant 0 : index
    %c0_259 = arith.constant 0 : index
    %542 = vector.load %arg13[%c3_257, %c0_258, %c0_259] : memref<8x8x512xf32, #tpu.memory_space<vmem>>, vector<1x8x512xf32>
    %543 = vector.shape_cast %542 : vector<1x8x512xf32> to vector<8x512xf32>
    %544 = arith.truncf %538 : vector<8x128xf32> to vector<8x128xbf16>
    %c2_260 = arith.constant 2 : index
    %c0_261 = arith.constant 0 : index
    %c0_262 = arith.constant 0 : index
    %545 = vector.load %arg2[%c2_260, %c0_261, %c0_262] : memref<3x128x512xbf16, #tpu.memory_space<vmem>>, vector<1x128x512xbf16>
    %546 = vector.shape_cast %545 : vector<1x128x512xbf16> to vector<128x512xbf16>
    %cst_263 = arith.constant dense<0.000000e+00> : vector<8x512xf32>
    %547 = tpu.matmul %544, %546, %cst_263 {dimension_numbers = #tpu.dot_dimension_numbers<[1], [0], [0], [1], [0, 0, 1, 1], [], []>} : vector<8x128xbf16>, vector<128x512xbf16>, vector<8x512xf32> -> vector<8x512xf32>
    %548 = arith.addf %543, %547 : vector<8x512xf32>
    %549 = vector.extract_strided_slice %548 {offsets = [0, 0], sizes = [8, 384], strides = [1, 1]} : vector<8x512xf32> to vector<8x384xf32>
    %550 = arith.negf %549 : vector<8x384xf32>
    %551 = math.exp %550 : vector<8x384xf32>
    %cst_264 = arith.constant 1.000000e+00 : f32
    %552 = vector.broadcast %cst_264 : f32 to vector<8x384xf32>
    %553 = arith.addf %552, %551 : vector<8x384xf32>
    %554 = arith.divf %552, %553 : vector<8x384xf32>
    %555 = vector.extract_strided_slice %548 {offsets = [0, 384], sizes = [8, 128], strides = [1, 1]} : vector<8x512xf32> to vector<8x128xf32>
    %556 = math.tanh %555 : vector<8x128xf32>
    %557 = vector.extract_strided_slice %554 {offsets = [0, 128], sizes = [8, 128], strides = [1, 1]} : vector<8x384xf32> to vector<8x128xf32>
    %558 = arith.mulf %557, %535 : vector<8x128xf32>
    %559 = vector.extract_strided_slice %554 {offsets = [0, 0], sizes = [8, 128], strides = [1, 1]} : vector<8x384xf32> to vector<8x128xf32>
    %560 = arith.mulf %559, %556 : vector<8x128xf32>
    %561 = arith.addf %558, %560 : vector<8x128xf32>
    %562 = vector.extract_strided_slice %554 {offsets = [0, 256], sizes = [8, 128], strides = [1, 1]} : vector<8x384xf32> to vector<8x128xf32>
    %563 = math.tanh %561 : vector<8x128xf32>
    %564 = arith.mulf %562, %563 : vector<8x128xf32>
    %c3_265 = arith.constant 3 : index
    %c0_266 = arith.constant 0 : index
    %c0_267 = arith.constant 0 : index
    %565 = vector.load %arg12[%c3_265, %c0_266, %c0_267] : memref<8x8x128xf32, #tpu.memory_space<vmem>>, vector<1x8x128xf32>
    %566 = vector.shape_cast %565 : vector<1x8x128xf32> to vector<8x128xf32>
    %567 = vector.shape_cast %564 : vector<8x128xf32> to vector<1x8x128xf32>
    tpu.vector_store %arg12[%c3_265, %c0_266, %c0_267], %567 {strides = array<i32>} : memref<8x8x128xf32, #tpu.memory_space<vmem>>, vector<1x8x128xf32>,
    %c4_268 = arith.constant 4 : index
    %c0_269 = arith.constant 0 : index
    %c0_270 = arith.constant 0 : index
    %568 = vector.load %arg13[%c4_268, %c0_269, %c0_270] : memref<8x8x512xf32, #tpu.memory_space<vmem>>, vector<1x8x512xf32>
    %569 = vector.shape_cast %568 : vector<1x8x512xf32> to vector<8x512xf32>
    %570 = arith.truncf %564 : vector<8x128xf32> to vector<8x128xbf16>
    %c2_271 = arith.constant 2 : index
    %c0_272 = arith.constant 0 : index
    %c0_273 = arith.constant 0 : index
    %571 = vector.load %arg2[%c2_271, %c0_272, %c0_273] : memref<3x128x512xbf16, #tpu.memory_space<vmem>>, vector<1x128x512xbf16>
    %572 = vector.shape_cast %571 : vector<1x128x512xbf16> to vector<128x512xbf16>
    %cst_274 = arith.constant dense<0.000000e+00> : vector<8x512xf32>
    %573 = tpu.matmul %570, %572, %cst_274 {dimension_numbers = #tpu.dot_dimension_numbers<[1], [0], [0], [1], [0, 0, 1, 1], [], []>} : vector<8x128xbf16>, vector<128x512xbf16>, vector<8x512xf32> -> vector<8x512xf32>
    %574 = arith.addf %569, %573 : vector<8x512xf32>
    %575 = vector.extract_strided_slice %574 {offsets = [0, 0], sizes = [8, 384], strides = [1, 1]} : vector<8x512xf32> to vector<8x384xf32>
    %576 = arith.negf %575 : vector<8x384xf32>
    %577 = math.exp %576 : vector<8x384xf32>
    %cst_275 = arith.constant 1.000000e+00 : f32
    %578 = vector.broadcast %cst_275 : f32 to vector<8x384xf32>
    %579 = arith.addf %578, %577 : vector<8x384xf32>
    %580 = arith.divf %578, %579 : vector<8x384xf32>
    %581 = vector.extract_strided_slice %574 {offsets = [0, 384], sizes = [8, 128], strides = [1, 1]} : vector<8x512xf32> to vector<8x128xf32>
    %582 = math.tanh %581 : vector<8x128xf32>
    %583 = vector.extract_strided_slice %580 {offsets = [0, 128], sizes = [8, 128], strides = [1, 1]} : vector<8x384xf32> to vector<8x128xf32>
    %584 = arith.mulf %583, %561 : vector<8x128xf32>
    %585 = vector.extract_strided_slice %580 {offsets = [0, 0], sizes = [8, 128], strides = [1, 1]} : vector<8x384xf32> to vector<8x128xf32>
    %586 = arith.mulf %585, %582 : vector<8x128xf32>
    %587 = arith.addf %584, %586 : vector<8x128xf32>
    %588 = vector.extract_strided_slice %580 {offsets = [0, 256], sizes = [8, 128], strides = [1, 1]} : vector<8x384xf32> to vector<8x128xf32>
    %589 = math.tanh %587 : vector<8x128xf32>
    %590 = arith.mulf %588, %589 : vector<8x128xf32>
    %c4_276 = arith.constant 4 : index
    %c0_277 = arith.constant 0 : index
    %c0_278 = arith.constant 0 : index
    %591 = vector.load %arg12[%c4_276, %c0_277, %c0_278] : memref<8x8x128xf32, #tpu.memory_space<vmem>>, vector<1x8x128xf32>
    %592 = vector.shape_cast %591 : vector<1x8x128xf32> to vector<8x128xf32>
    %593 = vector.shape_cast %590 : vector<8x128xf32> to vector<1x8x128xf32>
    tpu.vector_store %arg12[%c4_276, %c0_277, %c0_278], %593 {strides = array<i32>} : memref<8x8x128xf32, #tpu.memory_space<vmem>>, vector<1x8x128xf32>,
    %c5_279 = arith.constant 5 : index
    %c0_280 = arith.constant 0 : index
    %c0_281 = arith.constant 0 : index
    %594 = vector.load %arg13[%c5_279, %c0_280, %c0_281] : memref<8x8x512xf32, #tpu.memory_space<vmem>>, vector<1x8x512xf32>
    %595 = vector.shape_cast %594 : vector<1x8x512xf32> to vector<8x512xf32>
    %596 = arith.truncf %590 : vector<8x128xf32> to vector<8x128xbf16>
    %c2_282 = arith.constant 2 : index
    %c0_283 = arith.constant 0 : index
    %c0_284 = arith.constant 0 : index
    %597 = vector.load %arg2[%c2_282, %c0_283, %c0_284] : memref<3x128x512xbf16, #tpu.memory_space<vmem>>, vector<1x128x512xbf16>
    %598 = vector.shape_cast %597 : vector<1x128x512xbf16> to vector<128x512xbf16>
    %cst_285 = arith.constant dense<0.000000e+00> : vector<8x512xf32>
    %599 = tpu.matmul %596, %598, %cst_285 {dimension_numbers = #tpu.dot_dimension_numbers<[1], [0], [0], [1], [0, 0, 1, 1], [], []>} : vector<8x128xbf16>, vector<128x512xbf16>, vector<8x512xf32> -> vector<8x512xf32>
    %600 = arith.addf %595, %599 : vector<8x512xf32>
    %601 = vector.extract_strided_slice %600 {offsets = [0, 0], sizes = [8, 384], strides = [1, 1]} : vector<8x512xf32> to vector<8x384xf32>
    %602 = arith.negf %601 : vector<8x384xf32>
    %603 = math.exp %602 : vector<8x384xf32>
    %cst_286 = arith.constant 1.000000e+00 : f32
    %604 = vector.broadcast %cst_286 : f32 to vector<8x384xf32>
    %605 = arith.addf %604, %603 : vector<8x384xf32>
    %606 = arith.divf %604, %605 : vector<8x384xf32>
    %607 = vector.extract_strided_slice %600 {offsets = [0, 384], sizes = [8, 128], strides = [1, 1]} : vector<8x512xf32> to vector<8x128xf32>
    %608 = math.tanh %607 : vector<8x128xf32>
    %609 = vector.extract_strided_slice %606 {offsets = [0, 128], sizes = [8, 128], strides = [1, 1]} : vector<8x384xf32> to vector<8x128xf32>
    %610 = arith.mulf %609, %587 : vector<8x128xf32>
    %611 = vector.extract_strided_slice %606 {offsets = [0, 0], sizes = [8, 128], strides = [1, 1]} : vector<8x384xf32> to vector<8x128xf32>
    %612 = arith.mulf %611, %608 : vector<8x128xf32>
    %613 = arith.addf %610, %612 : vector<8x128xf32>
    %614 = vector.extract_strided_slice %606 {offsets = [0, 256], sizes = [8, 128], strides = [1, 1]} : vector<8x384xf32> to vector<8x128xf32>
    %615 = math.tanh %613 : vector<8x128xf32>
    %616 = arith.mulf %614, %615 : vector<8x128xf32>
    %c5_287 = arith.constant 5 : index
    %c0_288 = arith.constant 0 : index
    %c0_289 = arith.constant 0 : index
    %617 = vector.load %arg12[%c5_287, %c0_288, %c0_289] : memref<8x8x128xf32, #tpu.memory_space<vmem>>, vector<1x8x128xf32>
    %618 = vector.shape_cast %617 : vector<1x8x128xf32> to vector<8x128xf32>
    %619 = vector.shape_cast %616 : vector<8x128xf32> to vector<1x8x128xf32>
    tpu.vector_store %arg12[%c5_287, %c0_288, %c0_289], %619 {strides = array<i32>} : memref<8x8x128xf32, #tpu.memory_space<vmem>>, vector<1x8x128xf32>,
    %c6_290 = arith.constant 6 : index
    %c0_291 = arith.constant 0 : index
    %c0_292 = arith.constant 0 : index
    %620 = vector.load %arg13[%c6_290, %c0_291, %c0_292] : memref<8x8x512xf32, #tpu.memory_space<vmem>>, vector<1x8x512xf32>
    %621 = vector.shape_cast %620 : vector<1x8x512xf32> to vector<8x512xf32>
    %622 = arith.truncf %616 : vector<8x128xf32> to vector<8x128xbf16>
    %c2_293 = arith.constant 2 : index
    %c0_294 = arith.constant 0 : index
    %c0_295 = arith.constant 0 : index
    %623 = vector.load %arg2[%c2_293, %c0_294, %c0_295] : memref<3x128x512xbf16, #tpu.memory_space<vmem>>, vector<1x128x512xbf16>
    %624 = vector.shape_cast %623 : vector<1x128x512xbf16> to vector<128x512xbf16>
    %cst_296 = arith.constant dense<0.000000e+00> : vector<8x512xf32>
    %625 = tpu.matmul %622, %624, %cst_296 {dimension_numbers = #tpu.dot_dimension_numbers<[1], [0], [0], [1], [0, 0, 1, 1], [], []>} : vector<8x128xbf16>, vector<128x512xbf16>, vector<8x512xf32> -> vector<8x512xf32>
    %626 = arith.addf %621, %625 : vector<8x512xf32>
    %627 = vector.extract_strided_slice %626 {offsets = [0, 0], sizes = [8, 384], strides = [1, 1]} : vector<8x512xf32> to vector<8x384xf32>
    %628 = arith.negf %627 : vector<8x384xf32>
    %629 = math.exp %628 : vector<8x384xf32>
    %cst_297 = arith.constant 1.000000e+00 : f32
    %630 = vector.broadcast %cst_297 : f32 to vector<8x384xf32>
    %631 = arith.addf %630, %629 : vector<8x384xf32>
    %632 = arith.divf %630, %631 : vector<8x384xf32>
    %633 = vector.extract_strided_slice %626 {offsets = [0, 384], sizes = [8, 128], strides = [1, 1]} : vector<8x512xf32> to vector<8x128xf32>
    %634 = math.tanh %633 : vector<8x128xf32>
    %635 = vector.extract_strided_slice %632 {offsets = [0, 128], sizes = [8, 128], strides = [1, 1]} : vector<8x384xf32> to vector<8x128xf32>
    %636 = arith.mulf %635, %613 : vector<8x128xf32>
    %637 = vector.extract_strided_slice %632 {offsets = [0, 0], sizes = [8, 128], strides = [1, 1]} : vector<8x384xf32> to vector<8x128xf32>
    %638 = arith.mulf %637, %634 : vector<8x128xf32>
    %639 = arith.addf %636, %638 : vector<8x128xf32>
    %640 = vector.extract_strided_slice %632 {offsets = [0, 256], sizes = [8, 128], strides = [1, 1]} : vector<8x384xf32> to vector<8x128xf32>
    %641 = math.tanh %639 : vector<8x128xf32>
    %642 = arith.mulf %640, %641 : vector<8x128xf32>
    %c6_298 = arith.constant 6 : index
    %c0_299 = arith.constant 0 : index
    %c0_300 = arith.constant 0 : index
    %643 = vector.load %arg12[%c6_298, %c0_299, %c0_300] : memref<8x8x128xf32, #tpu.memory_space<vmem>>, vector<1x8x128xf32>
    %644 = vector.shape_cast %643 : vector<1x8x128xf32> to vector<8x128xf32>
    %645 = vector.shape_cast %642 : vector<8x128xf32> to vector<1x8x128xf32>
    tpu.vector_store %arg12[%c6_298, %c0_299, %c0_300], %645 {strides = array<i32>} : memref<8x8x128xf32, #tpu.memory_space<vmem>>, vector<1x8x128xf32>,
    %c7_301 = arith.constant 7 : index
    %c0_302 = arith.constant 0 : index
    %c0_303 = arith.constant 0 : index
    %646 = vector.load %arg13[%c7_301, %c0_302, %c0_303] : memref<8x8x512xf32, #tpu.memory_space<vmem>>, vector<1x8x512xf32>
    %647 = vector.shape_cast %646 : vector<1x8x512xf32> to vector<8x512xf32>
    %648 = arith.truncf %642 : vector<8x128xf32> to vector<8x128xbf16>
    %c2_304 = arith.constant 2 : index
    %c0_305 = arith.constant 0 : index
    %c0_306 = arith.constant 0 : index
    %649 = vector.load %arg2[%c2_304, %c0_305, %c0_306] : memref<3x128x512xbf16, #tpu.memory_space<vmem>>, vector<1x128x512xbf16>
    %650 = vector.shape_cast %649 : vector<1x128x512xbf16> to vector<128x512xbf16>
    %cst_307 = arith.constant dense<0.000000e+00> : vector<8x512xf32>
    %651 = tpu.matmul %648, %650, %cst_307 {dimension_numbers = #tpu.dot_dimension_numbers<[1], [0], [0], [1], [0, 0, 1, 1], [], []>} : vector<8x128xbf16>, vector<128x512xbf16>, vector<8x512xf32> -> vector<8x512xf32>
    %652 = arith.addf %647, %651 : vector<8x512xf32>
    %653 = vector.extract_strided_slice %652 {offsets = [0, 0], sizes = [8, 384], strides = [1, 1]} : vector<8x512xf32> to vector<8x384xf32>
    %654 = arith.negf %653 : vector<8x384xf32>
    %655 = math.exp %654 : vector<8x384xf32>
    %cst_308 = arith.constant 1.000000e+00 : f32
    %656 = vector.broadcast %cst_308 : f32 to vector<8x384xf32>
    %657 = arith.addf %656, %655 : vector<8x384xf32>
    %658 = arith.divf %656, %657 : vector<8x384xf32>
    %659 = vector.extract_strided_slice %652 {offsets = [0, 384], sizes = [8, 128], strides = [1, 1]} : vector<8x512xf32> to vector<8x128xf32>
    %660 = math.tanh %659 : vector<8x128xf32>
    %661 = vector.extract_strided_slice %658 {offsets = [0, 128], sizes = [8, 128], strides = [1, 1]} : vector<8x384xf32> to vector<8x128xf32>
    %662 = arith.mulf %661, %639 : vector<8x128xf32>
    %663 = vector.extract_strided_slice %658 {offsets = [0, 0], sizes = [8, 128], strides = [1, 1]} : vector<8x384xf32> to vector<8x128xf32>
    %664 = arith.mulf %663, %660 : vector<8x128xf32>
    %665 = arith.addf %662, %664 : vector<8x128xf32>
    %666 = vector.extract_strided_slice %658 {offsets = [0, 256], sizes = [8, 128], strides = [1, 1]} : vector<8x384xf32> to vector<8x128xf32>
    %667 = math.tanh %665 : vector<8x128xf32>
    %668 = arith.mulf %666, %667 : vector<8x128xf32>
    %c7_309 = arith.constant 7 : index
    %c0_310 = arith.constant 0 : index
    %c0_311 = arith.constant 0 : index
    %669 = vector.load %arg12[%c7_309, %c0_310, %c0_311] : memref<8x8x128xf32, #tpu.memory_space<vmem>>, vector<1x8x128xf32>
    %670 = vector.shape_cast %669 : vector<1x8x128xf32> to vector<8x128xf32>
    %671 = vector.shape_cast %668 : vector<8x128xf32> to vector<1x8x128xf32>
    tpu.vector_store %arg12[%c7_309, %c0_310, %c0_311], %671 {strides = array<i32>} : memref<8x8x128xf32, #tpu.memory_space<vmem>>, vector<1x8x128xf32>,
    %c0_312 = arith.constant 0 : index
    %c0_313 = arith.constant 0 : index
    %c0_314 = arith.constant 0 : index
    %672 = vector.load %arg12[%c0_312, %c0_313, %c0_314] : memref<8x8x128xf32, #tpu.memory_space<vmem>>, vector<8x8x128xf32>
    %c0_315 = arith.constant 0 : index
    %c0_316 = arith.constant 0 : index
    %673 = vector.load %arg6[%c0_315, %c0_316] : memref<128x512xbf16, #tpu.memory_space<vmem>>, vector<128x512xbf16>
    %c0_317 = arith.constant 0 : index
    %c0_318 = arith.constant 0 : index
    %674 = vector.load %arg8[%c0_317, %c0_318] : memref<1x512xf32, #tpu.memory_space<vmem>>, vector<1x512xf32>
    %675 = vector.shape_cast %672 : vector<8x8x128xf32> to vector<64x128xf32>
    %676 = arith.truncf %675 : vector<64x128xf32> to vector<64x128xbf16>
    %cst_319 = arith.constant dense<0.000000e+00> : vector<64x512xf32>
    %677 = tpu.matmul %676, %673, %cst_319 {dimension_numbers = #tpu.dot_dimension_numbers<[1], [0], [0], [1], [0, 0, 1, 1], [], []>} : vector<64x128xbf16>, vector<128x512xbf16>, vector<64x512xf32> -> vector<64x512xf32>
    %678 = vector.broadcast %674 : vector<1x512xf32> to vector<64x512xf32>
    %679 = arith.addf %677, %678 : vector<64x512xf32>
    %680 = vector.shape_cast %679 : vector<64x512xf32> to vector<8x8x512xf32>
    %c0_320 = arith.constant 0 : index
    %c0_321 = arith.constant 0 : index
    %c0_322 = arith.constant 0 : index
    %681 = vector.load %arg13[%c0_320, %c0_321, %c0_322] : memref<8x8x512xf32, #tpu.memory_space<vmem>>, vector<8x8x512xf32>
    tpu.vector_store %arg13[%c0_320, %c0_321, %c0_322], %680 {strides = array<i32>} : memref<8x8x512xf32, #tpu.memory_space<vmem>>, vector<8x8x512xf32>,
    %c0_323 = arith.constant 0 : index
    %c0_324 = arith.constant 0 : index
    %682 = vector.load %arg9[%c0_323, %c0_324] : memref<8x128xf32, #tpu.memory_space<vmem>>, vector<8x128xf32>
    %c0_325 = arith.constant 0 : index
    %c0_326 = arith.constant 0 : index
    %683 = vector.load %arg10[%c0_325, %c0_326] : memref<8x128xf32, #tpu.memory_space<vmem>>, vector<8x128xf32>
    %c0_327 = arith.constant 0 : index
    %c0_328 = arith.constant 0 : index
    %c0_329 = arith.constant 0 : index
    %684 = vector.load %arg13[%c0_327, %c0_328, %c0_329] : memref<8x8x512xf32, #tpu.memory_space<vmem>>, vector<1x8x512xf32>
    %685 = vector.shape_cast %684 : vector<1x8x512xf32> to vector<8x512xf32>
    %686 = arith.truncf %682 : vector<8x128xf32> to vector<8x128xbf16>
    %c0_330 = arith.constant 0 : index
    %c0_331 = arith.constant 0 : index
    %687 = vector.load %arg7[%c0_330, %c0_331] : memref<128x512xbf16, #tpu.memory_space<vmem>>, vector<128x512xbf16>
    %cst_332 = arith.constant dense<0.000000e+00> : vector<8x512xf32>
    %688 = tpu.matmul %686, %687, %cst_332 {dimension_numbers = #tpu.dot_dimension_numbers<[1], [0], [0], [1], [0, 0, 1, 1], [], []>} : vector<8x128xbf16>, vector<128x512xbf16>, vector<8x512xf32> -> vector<8x512xf32>
    %689 = arith.addf %685, %688 : vector<8x512xf32>
    %690 = vector.extract_strided_slice %689 {offsets = [0, 0], sizes = [8, 384], strides = [1, 1]} : vector<8x512xf32> to vector<8x384xf32>
    %691 = arith.negf %690 : vector<8x384xf32>
    %692 = math.exp %691 : vector<8x384xf32>
    %cst_333 = arith.constant 1.000000e+00 : f32
    %693 = vector.broadcast %cst_333 : f32 to vector<8x384xf32>
    %694 = arith.addf %693, %692 : vector<8x384xf32>
    %695 = arith.divf %693, %694 : vector<8x384xf32>
    %696 = vector.extract_strided_slice %689 {offsets = [0, 384], sizes = [8, 128], strides = [1, 1]} : vector<8x512xf32> to vector<8x128xf32>
    %697 = math.tanh %696 : vector<8x128xf32>
    %698 = vector.extract_strided_slice %695 {offsets = [0, 128], sizes = [8, 128], strides = [1, 1]} : vector<8x384xf32> to vector<8x128xf32>
    %699 = arith.mulf %698, %683 : vector<8x128xf32>
    %700 = vector.extract_strided_slice %695 {offsets = [0, 0], sizes = [8, 128], strides = [1, 1]} : vector<8x384xf32> to vector<8x128xf32>
    %701 = arith.mulf %700, %697 : vector<8x128xf32>
    %702 = arith.addf %699, %701 : vector<8x128xf32>
    %703 = vector.extract_strided_slice %695 {offsets = [0, 256], sizes = [8, 128], strides = [1, 1]} : vector<8x384xf32> to vector<8x128xf32>
    %704 = math.tanh %702 : vector<8x128xf32>
    %705 = arith.mulf %703, %704 : vector<8x128xf32>
    %c1_334 = arith.constant 1 : index
    %c0_335 = arith.constant 0 : index
    %c0_336 = arith.constant 0 : index
    %706 = vector.load %arg13[%c1_334, %c0_335, %c0_336] : memref<8x8x512xf32, #tpu.memory_space<vmem>>, vector<1x8x512xf32>
    %707 = vector.shape_cast %706 : vector<1x8x512xf32> to vector<8x512xf32>
    %708 = arith.truncf %705 : vector<8x128xf32> to vector<8x128xbf16>
    %c0_337 = arith.constant 0 : index
    %c0_338 = arith.constant 0 : index
    %709 = vector.load %arg7[%c0_337, %c0_338] : memref<128x512xbf16, #tpu.memory_space<vmem>>, vector<128x512xbf16>
    %cst_339 = arith.constant dense<0.000000e+00> : vector<8x512xf32>
    %710 = tpu.matmul %708, %709, %cst_339 {dimension_numbers = #tpu.dot_dimension_numbers<[1], [0], [0], [1], [0, 0, 1, 1], [], []>} : vector<8x128xbf16>, vector<128x512xbf16>, vector<8x512xf32> -> vector<8x512xf32>
    %711 = arith.addf %707, %710 : vector<8x512xf32>
    %712 = vector.extract_strided_slice %711 {offsets = [0, 0], sizes = [8, 384], strides = [1, 1]} : vector<8x512xf32> to vector<8x384xf32>
    %713 = arith.negf %712 : vector<8x384xf32>
    %714 = math.exp %713 : vector<8x384xf32>
    %cst_340 = arith.constant 1.000000e+00 : f32
    %715 = vector.broadcast %cst_340 : f32 to vector<8x384xf32>
    %716 = arith.addf %715, %714 : vector<8x384xf32>
    %717 = arith.divf %715, %716 : vector<8x384xf32>
    %718 = vector.extract_strided_slice %711 {offsets = [0, 384], sizes = [8, 128], strides = [1, 1]} : vector<8x512xf32> to vector<8x128xf32>
    %719 = math.tanh %718 : vector<8x128xf32>
    %720 = vector.extract_strided_slice %717 {offsets = [0, 128], sizes = [8, 128], strides = [1, 1]} : vector<8x384xf32> to vector<8x128xf32>
    %721 = arith.mulf %720, %702 : vector<8x128xf32>
    %722 = vector.extract_strided_slice %717 {offsets = [0, 0], sizes = [8, 128], strides = [1, 1]} : vector<8x384xf32> to vector<8x128xf32>
    %723 = arith.mulf %722, %719 : vector<8x128xf32>
    %724 = arith.addf %721, %723 : vector<8x128xf32>
    %725 = vector.extract_strided_slice %717 {offsets = [0, 256], sizes = [8, 128], strides = [1, 1]} : vector<8x384xf32> to vector<8x128xf32>
    %726 = math.tanh %724 : vector<8x128xf32>
    %727 = arith.mulf %725, %726 : vector<8x128xf32>
    %c2_341 = arith.constant 2 : index
    %c0_342 = arith.constant 0 : index
    %c0_343 = arith.constant 0 : index
    %728 = vector.load %arg13[%c2_341, %c0_342, %c0_343] : memref<8x8x512xf32, #tpu.memory_space<vmem>>, vector<1x8x512xf32>
    %729 = vector.shape_cast %728 : vector<1x8x512xf32> to vector<8x512xf32>
    %730 = arith.truncf %727 : vector<8x128xf32> to vector<8x128xbf16>
    %c0_344 = arith.constant 0 : index
    %c0_345 = arith.constant 0 : index
    %731 = vector.load %arg7[%c0_344, %c0_345] : memref<128x512xbf16, #tpu.memory_space<vmem>>, vector<128x512xbf16>
    %cst_346 = arith.constant dense<0.000000e+00> : vector<8x512xf32>
    %732 = tpu.matmul %730, %731, %cst_346 {dimension_numbers = #tpu.dot_dimension_numbers<[1], [0], [0], [1], [0, 0, 1, 1], [], []>} : vector<8x128xbf16>, vector<128x512xbf16>, vector<8x512xf32> -> vector<8x512xf32>
    %733 = arith.addf %729, %732 : vector<8x512xf32>
    %734 = vector.extract_strided_slice %733 {offsets = [0, 0], sizes = [8, 384], strides = [1, 1]} : vector<8x512xf32> to vector<8x384xf32>
    %735 = arith.negf %734 : vector<8x384xf32>
    %736 = math.exp %735 : vector<8x384xf32>
    %cst_347 = arith.constant 1.000000e+00 : f32
    %737 = vector.broadcast %cst_347 : f32 to vector<8x384xf32>
    %738 = arith.addf %737, %736 : vector<8x384xf32>
    %739 = arith.divf %737, %738 : vector<8x384xf32>
    %740 = vector.extract_strided_slice %733 {offsets = [0, 384], sizes = [8, 128], strides = [1, 1]} : vector<8x512xf32> to vector<8x128xf32>
    %741 = math.tanh %740 : vector<8x128xf32>
    %742 = vector.extract_strided_slice %739 {offsets = [0, 128], sizes = [8, 128], strides = [1, 1]} : vector<8x384xf32> to vector<8x128xf32>
    %743 = arith.mulf %742, %724 : vector<8x128xf32>
    %744 = vector.extract_strided_slice %739 {offsets = [0, 0], sizes = [8, 128], strides = [1, 1]} : vector<8x384xf32> to vector<8x128xf32>
    %745 = arith.mulf %744, %741 : vector<8x128xf32>
    %746 = arith.addf %743, %745 : vector<8x128xf32>
    %747 = vector.extract_strided_slice %739 {offsets = [0, 256], sizes = [8, 128], strides = [1, 1]} : vector<8x384xf32> to vector<8x128xf32>
    %748 = math.tanh %746 : vector<8x128xf32>
    %749 = arith.mulf %747, %748 : vector<8x128xf32>
    %c3_348 = arith.constant 3 : index
    %c0_349 = arith.constant 0 : index
    %c0_350 = arith.constant 0 : index
    %750 = vector.load %arg13[%c3_348, %c0_349, %c0_350] : memref<8x8x512xf32, #tpu.memory_space<vmem>>, vector<1x8x512xf32>
    %751 = vector.shape_cast %750 : vector<1x8x512xf32> to vector<8x512xf32>
    %752 = arith.truncf %749 : vector<8x128xf32> to vector<8x128xbf16>
    %c0_351 = arith.constant 0 : index
    %c0_352 = arith.constant 0 : index
    %753 = vector.load %arg7[%c0_351, %c0_352] : memref<128x512xbf16, #tpu.memory_space<vmem>>, vector<128x512xbf16>
    %cst_353 = arith.constant dense<0.000000e+00> : vector<8x512xf32>
    %754 = tpu.matmul %752, %753, %cst_353 {dimension_numbers = #tpu.dot_dimension_numbers<[1], [0], [0], [1], [0, 0, 1, 1], [], []>} : vector<8x128xbf16>, vector<128x512xbf16>, vector<8x512xf32> -> vector<8x512xf32>
    %755 = arith.addf %751, %754 : vector<8x512xf32>
    %756 = vector.extract_strided_slice %755 {offsets = [0, 0], sizes = [8, 384], strides = [1, 1]} : vector<8x512xf32> to vector<8x384xf32>
    %757 = arith.negf %756 : vector<8x384xf32>
    %758 = math.exp %757 : vector<8x384xf32>
    %cst_354 = arith.constant 1.000000e+00 : f32
    %759 = vector.broadcast %cst_354 : f32 to vector<8x384xf32>
    %760 = arith.addf %759, %758 : vector<8x384xf32>
    %761 = arith.divf %759, %760 : vector<8x384xf32>
    %762 = vector.extract_strided_slice %755 {offsets = [0, 384], sizes = [8, 128], strides = [1, 1]} : vector<8x512xf32> to vector<8x128xf32>
    %763 = math.tanh %762 : vector<8x128xf32>
    %764 = vector.extract_strided_slice %761 {offsets = [0, 128], sizes = [8, 128], strides = [1, 1]} : vector<8x384xf32> to vector<8x128xf32>
    %765 = arith.mulf %764, %746 : vector<8x128xf32>
    %766 = vector.extract_strided_slice %761 {offsets = [0, 0], sizes = [8, 128], strides = [1, 1]} : vector<8x384xf32> to vector<8x128xf32>
    %767 = arith.mulf %766, %763 : vector<8x128xf32>
    %768 = arith.addf %765, %767 : vector<8x128xf32>
    %769 = vector.extract_strided_slice %761 {offsets = [0, 256], sizes = [8, 128], strides = [1, 1]} : vector<8x384xf32> to vector<8x128xf32>
    %770 = math.tanh %768 : vector<8x128xf32>
    %771 = arith.mulf %769, %770 : vector<8x128xf32>
    %c4_355 = arith.constant 4 : index
    %c0_356 = arith.constant 0 : index
    %c0_357 = arith.constant 0 : index
    %772 = vector.load %arg13[%c4_355, %c0_356, %c0_357] : memref<8x8x512xf32, #tpu.memory_space<vmem>>, vector<1x8x512xf32>
    %773 = vector.shape_cast %772 : vector<1x8x512xf32> to vector<8x512xf32>
    %774 = arith.truncf %771 : vector<8x128xf32> to vector<8x128xbf16>
    %c0_358 = arith.constant 0 : index
    %c0_359 = arith.constant 0 : index
    %775 = vector.load %arg7[%c0_358, %c0_359] : memref<128x512xbf16, #tpu.memory_space<vmem>>, vector<128x512xbf16>
    %cst_360 = arith.constant dense<0.000000e+00> : vector<8x512xf32>
    %776 = tpu.matmul %774, %775, %cst_360 {dimension_numbers = #tpu.dot_dimension_numbers<[1], [0], [0], [1], [0, 0, 1, 1], [], []>} : vector<8x128xbf16>, vector<128x512xbf16>, vector<8x512xf32> -> vector<8x512xf32>
    %777 = arith.addf %773, %776 : vector<8x512xf32>
    %778 = vector.extract_strided_slice %777 {offsets = [0, 0], sizes = [8, 384], strides = [1, 1]} : vector<8x512xf32> to vector<8x384xf32>
    %779 = arith.negf %778 : vector<8x384xf32>
    %780 = math.exp %779 : vector<8x384xf32>
    %cst_361 = arith.constant 1.000000e+00 : f32
    %781 = vector.broadcast %cst_361 : f32 to vector<8x384xf32>
    %782 = arith.addf %781, %780 : vector<8x384xf32>
    %783 = arith.divf %781, %782 : vector<8x384xf32>
    %784 = vector.extract_strided_slice %777 {offsets = [0, 384], sizes = [8, 128], strides = [1, 1]} : vector<8x512xf32> to vector<8x128xf32>
    %785 = math.tanh %784 : vector<8x128xf32>
    %786 = vector.extract_strided_slice %783 {offsets = [0, 128], sizes = [8, 128], strides = [1, 1]} : vector<8x384xf32> to vector<8x128xf32>
    %787 = arith.mulf %786, %768 : vector<8x128xf32>
    %788 = vector.extract_strided_slice %783 {offsets = [0, 0], sizes = [8, 128], strides = [1, 1]} : vector<8x384xf32> to vector<8x128xf32>
    %789 = arith.mulf %788, %785 : vector<8x128xf32>
    %790 = arith.addf %787, %789 : vector<8x128xf32>
    %791 = vector.extract_strided_slice %783 {offsets = [0, 256], sizes = [8, 128], strides = [1, 1]} : vector<8x384xf32> to vector<8x128xf32>
    %792 = math.tanh %790 : vector<8x128xf32>
    %793 = arith.mulf %791, %792 : vector<8x128xf32>
    %c5_362 = arith.constant 5 : index
    %c0_363 = arith.constant 0 : index
    %c0_364 = arith.constant 0 : index
    %794 = vector.load %arg13[%c5_362, %c0_363, %c0_364] : memref<8x8x512xf32, #tpu.memory_space<vmem>>, vector<1x8x512xf32>
    %795 = vector.shape_cast %794 : vector<1x8x512xf32> to vector<8x512xf32>
    %796 = arith.truncf %793 : vector<8x128xf32> to vector<8x128xbf16>
    %c0_365 = arith.constant 0 : index
    %c0_366 = arith.constant 0 : index
    %797 = vector.load %arg7[%c0_365, %c0_366] : memref<128x512xbf16, #tpu.memory_space<vmem>>, vector<128x512xbf16>
    %cst_367 = arith.constant dense<0.000000e+00> : vector<8x512xf32>
    %798 = tpu.matmul %796, %797, %cst_367 {dimension_numbers = #tpu.dot_dimension_numbers<[1], [0], [0], [1], [0, 0, 1, 1], [], []>} : vector<8x128xbf16>, vector<128x512xbf16>, vector<8x512xf32> -> vector<8x512xf32>
    %799 = arith.addf %795, %798 : vector<8x512xf32>
    %800 = vector.extract_strided_slice %799 {offsets = [0, 0], sizes = [8, 384], strides = [1, 1]} : vector<8x512xf32> to vector<8x384xf32>
    %801 = arith.negf %800 : vector<8x384xf32>
    %802 = math.exp %801 : vector<8x384xf32>
    %cst_368 = arith.constant 1.000000e+00 : f32
    %803 = vector.broadcast %cst_368 : f32 to vector<8x384xf32>
    %804 = arith.addf %803, %802 : vector<8x384xf32>
    %805 = arith.divf %803, %804 : vector<8x384xf32>
    %806 = vector.extract_strided_slice %799 {offsets = [0, 384], sizes = [8, 128], strides = [1, 1]} : vector<8x512xf32> to vector<8x128xf32>
    %807 = math.tanh %806 : vector<8x128xf32>
    %808 = vector.extract_strided_slice %805 {offsets = [0, 128], sizes = [8, 128], strides = [1, 1]} : vector<8x384xf32> to vector<8x128xf32>
    %809 = arith.mulf %808, %790 : vector<8x128xf32>
    %810 = vector.extract_strided_slice %805 {offsets = [0, 0], sizes = [8, 128], strides = [1, 1]} : vector<8x384xf32> to vector<8x128xf32>
    %811 = arith.mulf %810, %807 : vector<8x128xf32>
    %812 = arith.addf %809, %811 : vector<8x128xf32>
    %813 = vector.extract_strided_slice %805 {offsets = [0, 256], sizes = [8, 128], strides = [1, 1]} : vector<8x384xf32> to vector<8x128xf32>
    %814 = math.tanh %812 : vector<8x128xf32>
    %815 = arith.mulf %813, %814 : vector<8x128xf32>
    %c6_369 = arith.constant 6 : index
    %c0_370 = arith.constant 0 : index
    %c0_371 = arith.constant 0 : index
    %816 = vector.load %arg13[%c6_369, %c0_370, %c0_371] : memref<8x8x512xf32, #tpu.memory_space<vmem>>, vector<1x8x512xf32>
    %817 = vector.shape_cast %816 : vector<1x8x512xf32> to vector<8x512xf32>
    %818 = arith.truncf %815 : vector<8x128xf32> to vector<8x128xbf16>
    %c0_372 = arith.constant 0 : index
    %c0_373 = arith.constant 0 : index
    %819 = vector.load %arg7[%c0_372, %c0_373] : memref<128x512xbf16, #tpu.memory_space<vmem>>, vector<128x512xbf16>
    %cst_374 = arith.constant dense<0.000000e+00> : vector<8x512xf32>
    %820 = tpu.matmul %818, %819, %cst_374 {dimension_numbers = #tpu.dot_dimension_numbers<[1], [0], [0], [1], [0, 0, 1, 1], [], []>} : vector<8x128xbf16>, vector<128x512xbf16>, vector<8x512xf32> -> vector<8x512xf32>
    %821 = arith.addf %817, %820 : vector<8x512xf32>
    %822 = vector.extract_strided_slice %821 {offsets = [0, 0], sizes = [8, 384], strides = [1, 1]} : vector<8x512xf32> to vector<8x384xf32>
    %823 = arith.negf %822 : vector<8x384xf32>
    %824 = math.exp %823 : vector<8x384xf32>
    %cst_375 = arith.constant 1.000000e+00 : f32
    %825 = vector.broadcast %cst_375 : f32 to vector<8x384xf32>
    %826 = arith.addf %825, %824 : vector<8x384xf32>
    %827 = arith.divf %825, %826 : vector<8x384xf32>
    %828 = vector.extract_strided_slice %821 {offsets = [0, 384], sizes = [8, 128], strides = [1, 1]} : vector<8x512xf32> to vector<8x128xf32>
    %829 = math.tanh %828 : vector<8x128xf32>
    %830 = vector.extract_strided_slice %827 {offsets = [0, 128], sizes = [8, 128], strides = [1, 1]} : vector<8x384xf32> to vector<8x128xf32>
    %831 = arith.mulf %830, %812 : vector<8x128xf32>
    %832 = vector.extract_strided_slice %827 {offsets = [0, 0], sizes = [8, 128], strides = [1, 1]} : vector<8x384xf32> to vector<8x128xf32>
    %833 = arith.mulf %832, %829 : vector<8x128xf32>
    %834 = arith.addf %831, %833 : vector<8x128xf32>
    %835 = vector.extract_strided_slice %827 {offsets = [0, 256], sizes = [8, 128], strides = [1, 1]} : vector<8x384xf32> to vector<8x128xf32>
    %836 = math.tanh %834 : vector<8x128xf32>
    %837 = arith.mulf %835, %836 : vector<8x128xf32>
    %c7_376 = arith.constant 7 : index
    %c0_377 = arith.constant 0 : index
    %c0_378 = arith.constant 0 : index
    %838 = vector.load %arg13[%c7_376, %c0_377, %c0_378] : memref<8x8x512xf32, #tpu.memory_space<vmem>>, vector<1x8x512xf32>
    %839 = vector.shape_cast %838 : vector<1x8x512xf32> to vector<8x512xf32>
    %840 = arith.truncf %837 : vector<8x128xf32> to vector<8x128xbf16>
    %c0_379 = arith.constant 0 : index
    %c0_380 = arith.constant 0 : index
    %841 = vector.load %arg7[%c0_379, %c0_380] : memref<128x512xbf16, #tpu.memory_space<vmem>>, vector<128x512xbf16>
    %cst_381 = arith.constant dense<0.000000e+00> : vector<8x512xf32>
    %842 = tpu.matmul %840, %841, %cst_381 {dimension_numbers = #tpu.dot_dimension_numbers<[1], [0], [0], [1], [0, 0, 1, 1], [], []>} : vector<8x128xbf16>, vector<128x512xbf16>, vector<8x512xf32> -> vector<8x512xf32>
    %843 = arith.addf %839, %842 : vector<8x512xf32>
    %844 = vector.extract_strided_slice %843 {offsets = [0, 0], sizes = [8, 384], strides = [1, 1]} : vector<8x512xf32> to vector<8x384xf32>
    %845 = arith.negf %844 : vector<8x384xf32>
    %846 = math.exp %845 : vector<8x384xf32>
    %cst_382 = arith.constant 1.000000e+00 : f32
    %847 = vector.broadcast %cst_382 : f32 to vector<8x384xf32>
    %848 = arith.addf %847, %846 : vector<8x384xf32>
    %849 = arith.divf %847, %848 : vector<8x384xf32>
    %850 = vector.extract_strided_slice %843 {offsets = [0, 384], sizes = [8, 128], strides = [1, 1]} : vector<8x512xf32> to vector<8x128xf32>
    %851 = math.tanh %850 : vector<8x128xf32>
    %852 = vector.extract_strided_slice %849 {offsets = [0, 128], sizes = [8, 128], strides = [1, 1]} : vector<8x384xf32> to vector<8x128xf32>
    %853 = arith.mulf %852, %834 : vector<8x128xf32>
    %854 = vector.extract_strided_slice %849 {offsets = [0, 0], sizes = [8, 128], strides = [1, 1]} : vector<8x384xf32> to vector<8x128xf32>
    %855 = arith.mulf %854, %851 : vector<8x128xf32>
    %856 = arith.addf %853, %855 : vector<8x128xf32>
    %857 = vector.extract_strided_slice %849 {offsets = [0, 256], sizes = [8, 128], strides = [1, 1]} : vector<8x384xf32> to vector<8x128xf32>
    %858 = math.tanh %856 : vector<8x128xf32>
    %859 = arith.mulf %857, %858 : vector<8x128xf32>
    %c0_383 = arith.constant 0 : index
    %c0_384 = arith.constant 0 : index
    %860 = vector.load %arg11[%c0_383, %c0_384] : memref<8x128xf32, #tpu.memory_space<vmem>>, vector<8x128xf32>
    tpu.vector_store %arg11[%c0_383, %c0_384], %859 {strides = array<i32>} : memref<8x128xf32, #tpu.memory_space<vmem>>, vector<8x128xf32>,
    return
  }
}

</mosaic_0001>

<llo_original>
// kernel: tpu_custom_call.1
$region0: #{tpu_custom_call.1}
  #allocation0 [shape = 'u32[]', space=smem, size = 0x4, offset = 0x4, fixed_abs, tag = 'smem constant byte address 0x4 - core index']
  #allocation1 [shape = 'u32[144,128]{1,0:T(1,128)}', space=vmem, size = 0x12000, scoped, tag = 'internal scratch']
  #allocation2 [shape = 'f32[8,8,128]{2,1,0:T(8,128)}', space=vmem, size = 0x8000, scoped, tag = 'scratch operand']
  #allocation3 [shape = 'f32[8,8,512]{2,1,0:T(8,128)}', space=vmem, size = 0x20000, scoped, tag = 'scratch operand']
  %s0 = inlined_call_operand.hbm [shape: f32[8,8,128], index: 0, kind: input, shape index: {}]
  %s1 = inlined_call_operand.hbm [shape: bf16[3,128,512], index: 1, kind: input, shape index: {}]
  %s2 = inlined_call_operand.hbm [shape: bf16[3,128,512], index: 2, kind: input, shape index: {}]
  %s3 = inlined_call_operand.hbm [shape: f32[3,1,512], index: 3, kind: input, shape index: {}]
  %s4 = inlined_call_operand.hbm [shape: f32[3,8,128], index: 4, kind: input, shape index: {}]
  %s5 = inlined_call_operand.hbm [shape: f32[3,8,128], index: 5, kind: input, shape index: {}]
  %s6 = inlined_call_operand.hbm [shape: bf16[128,512], index: 6, kind: input, shape index: {}]
  %s7 = inlined_call_operand.hbm [shape: bf16[128,512], index: 7, kind: input, shape index: {}]
  %s8 = inlined_call_operand.vmem [shape: f32[1,512], index: 8, kind: input, shape index: {}]
  %s9 = inlined_call_operand.vmem [shape: f32[8,128], index: 9, kind: input, shape index: {}]
  %s10 = inlined_call_operand.vmem [shape: f32[8,128], index: 10, kind: input, shape index: {}]
  %s11 = inlined_call_operand.hbm [shape: f32[8,128], index: 11, kind: output, shape index: {}]
  %s12 = sld [smem:[#allocation0]]
  $region86: #{tpu_custom_call.1} parent=0
    _
  %s14 = ssub.s32 1, %s12
  %s15 = scalar_select 0, %s14, %s12
  $region1: #{tpu_custom_call.1} parent=0
    #allocation4 [shape = 'u8[32768]{0}', space=vmem, size = 0x8000, scoped, tag = 'input window, operand 0, single buffered']
    #allocation5 [shape = 's32[1]{0}', space=sflag, size = 0x4, scoped, tag = 'scoped memory for tpu_custom_call.1']
    #allocation6 [shape = 's32[1]{0}', space=sflag, size = 0x4, scoped, tag = 'scoped memory for tpu_custom_call.1']
    #allocation7 [shape = 'u8[393216]{0}', space=vmem, size = 0x60000, scoped, tag = 'input window, operand 1, single buffered']
    #allocation8 [shape = 's32[1]{0}', space=sflag, size = 0x4, scoped, tag = 'scoped memory for tpu_custom_call.1']
    #allocation9 [shape = 'u8[393216]{0}', space=vmem, size = 0x60000, scoped, tag = 'input window, operand 2, single buffered']
    #allocation10 [shape = 'u8[6144]{0}', space=vmem, size = 0x1800, scoped, tag = 'input window, operand 3, single buffered']
    #allocation11 [shape = 's32[1]{0}', space=sflag, size = 0x4, scoped, tag = 'scoped memory for tpu_custom_call.1']
    #allocation12 [shape = 'u8[12288]{0}', space=vmem, size = 0x3000, scoped, tag = 'input window, operand 4, single buffered']
    #allocation13 [shape = 'u8[12288]{0}', space=vmem, size = 0x3000, scoped, tag = 'input window, operand 5, single buffered']
    #allocation14 [shape = 's32[1]{0}', space=sflag, size = 0x4, scoped, tag = 'scoped memory for tpu_custom_call.1']
    #allocation15 [shape = 'u8[131072]{0}', space=vmem, size = 0x20000, scoped, tag = 'input window, operand 6, single buffered']
    #allocation16 [shape = 'u8[131072]{0}', space=vmem, size = 0x20000, scoped, tag = 'input window, operand 7, single buffered']
    #allocation17 [shape = 's32[1]{0}', space=sflag, size = 0x4, scoped, tag = 'scoped memory for tpu_custom_call.1']
    #allocation18 [shape = 'u8[4096]{0}', space=vmem, size = 0x1000, scoped, tag = 'output window, operand 0, single buffered']
    %16 = vsyncpa [#allocation5], 0
    %17 = vsyncpa [#allocation8], 0
    %18 = vsyncpa [#allocation11], 0
    %19 = vsyncpa [#allocation14], 0
    %20 = vsyncpa [#allocation17], 0
    %21 = vsyncpa [#allocation6], 0
    // Predicated region
    $region2: #{tpu_custom_call.1} parent=1 // pred_check
      _
    $region3: #{tpu_custom_call.1} parent=1 // pred_check_branch
      %23 = sbr.rel (0) target = $region5
    $region4: #{tpu_custom_call.1} parent=1 // pred_region
      %s25 = ssub.s32 1024, 1024
      %26 = vsyncadd [#allocation5], %s25
      %s27 = sshll.u32 [#allocation4], 4
      %s28 = int_to_ptr.vmem [resolvable:$true] %s27
      %33 = dma.hbm_to_vmem [thread:$0]  %s0, 1024, %s28, [#allocation5], 128, 128, 8
    $region5: #{tpu_custom_call.1} parent=1 // pred_fallthru
      _
    // Predicated region
    $region6: #{tpu_custom_call.1} parent=1 // pred_check
      _
    $region7: #{tpu_custom_call.1} parent=1 // pred_check_branch
      %35 = sbr.rel (0) target = $region9
    $region8: #{tpu_custom_call.1} parent=1 // pred_region
      %s37 = ssub.s32 12288, 12288
      %38 = vsyncadd [#allocation8], %s37
      %s39 = sshll.u32 [#allocation7], 4
      %s40 = int_to_ptr.vmem [resolvable:$true] %s39
      %45 = dma.hbm_to_vmem [thread:$0]  %s1, 12288, %s40, [#allocation8], 256, 256, 16
    $region9: #{tpu_custom_call.1} parent=1 // pred_fallthru
      _
    // Predicated region
    $region10: #{tpu_custom_call.1} parent=1 // pred_check
      _
    $region11: #{tpu_custom_call.1} parent=1 // pred_check_branch
      %47 = sbr.rel (0) target = $region13
    $region12: #{tpu_custom_call.1} parent=1 // pred_region
      %s49 = ssub.s32 12288, 12288
      %50 = vsyncadd [#allocation8], %s49
      %s51 = sshll.u32 [#allocation9], 4
      %s52 = int_to_ptr.vmem [resolvable:$true] %s51
      %57 = dma.hbm_to_vmem [thread:$0]  %s2, 12288, %s52, [#allocation8], 256, 256, 16
    $region13: #{tpu_custom_call.1} parent=1 // pred_fallthru
      _
    // Predicated region
    $region14: #{tpu_custom_call.1} parent=1 // pred_check
      _
    $region15: #{tpu_custom_call.1} parent=1 // pred_check_branch
      %59 = sbr.rel (0) target = $region17
    $region16: #{tpu_custom_call.1} parent=1 // pred_region
      %s61 = ssub.s32 192, 192
      %62 = vsyncadd [#allocation11], %s61
      %s63 = sshll.u32 [#allocation10], 4
      %s64 = int_to_ptr.vmem [resolvable:$true] %s63
      %69 = dma.hbm_to_vmem [thread:$0]  %s3, 192, %s64, [#allocation11], 64, 64, 4
    $region17: #{tpu_custom_call.1} parent=1 // pred_fallthru
      _
    // Predicated region
    $region18: #{tpu_custom_call.1} parent=1 // pred_check
      _
    $region19: #{tpu_custom_call.1} parent=1 // pred_check_branch
      %71 = sbr.rel (0) target = $region21
    $region20: #{tpu_custom_call.1} parent=1 // pred_region
      %s73 = ssub.s32 384, 384
      %74 = vsyncadd [#allocation11], %s73
      %s75 = sshll.u32 [#allocation12], 4
      %s76 = int_to_ptr.vmem [resolvable:$true] %s75
      %81 = dma.hbm_to_vmem [thread:$0]  %s4, 384, %s76, [#allocation11], 128, 128, 8
    $region21: #{tpu_custom_call.1} parent=1 // pred_fallthru
      _
    // Predicated region
    $region22: #{tpu_custom_call.1} parent=1 // pred_check
      _
    $region23: #{tpu_custom_call.1} parent=1 // pred_check_branch
      %83 = sbr.rel (0) target = $region25
    $region24: #{tpu_custom_call.1} parent=1 // pred_region
      %s85 = ssub.s32 384, 384
      %86 = vsyncadd [#allocation14], %s85
      %s87 = sshll.u32 [#allocation13], 4
      %s88 = int_to_ptr.vmem [resolvable:$true] %s87
      %93 = dma.hbm_to_vmem [thread:$0]  %s5, 384, %s88, [#allocation14], 128, 128, 8
    $region25: #{tpu_custom_call.1} parent=1 // pred_fallthru
      _
    // Predicated region
    $region26: #{tpu_custom_call.1} parent=1 // pred_check
      _
    $region27: #{tpu_custom_call.1} parent=1 // pred_check_branch
      %95 = sbr.rel (0) target = $region29
    $region28: #{tpu_custom_call.1} parent=1 // pred_region
      %s97 = ssub.s32 4096, 4096
      %98 = vsyncadd [#allocation14], %s97
      %s99 = sshll.u32 [#allocation15], 4
      %s100 = int_to_ptr.vmem [resolvable:$true] %s99
      %105 = dma.hbm_to_vmem [thread:$0]  %s6, 4096, %s100, [#allocation14], 256, 256, 16
    $region29: #{tpu_custom_call.1} parent=1 // pred_fallthru
      _
    // Predicated region
    $region30: #{tpu_custom_call.1} parent=1 // pred_check
      _
    $region31: #{tpu_custom_call.1} parent=1 // pred_check_branch
      %107 = sbr.rel (0) target = $region33
    $region32: #{tpu_custom_call.1} parent=1 // pred_region
      %s109 = ssub.s32 4096, 4096
      %110 = vsyncadd [#allocation17], %s109
      %s111 = sshll.u32 [#allocation16], 4
      %s112 = int_to_ptr.vmem [resolvable:$true] %s111
      %117 = dma.hbm_to_vmem [thread:$0]  %s7, 4096, %s112, [#allocation17], 256, 256, 16
    $region33: #{tpu_custom_call.1} parent=1 // pred_fallthru
      _
    // Predicated region
    $region34: #{tpu_custom_call.1} parent=1 // pred_check
      _
    $region35: #{tpu_custom_call.1} parent=1 // pred_check_branch
      %119 = sbr.rel (0) target = $region37
    $region36: #{tpu_custom_call.1} parent=1 // pred_region
      _
    $region37: #{tpu_custom_call.1} parent=1 // pred_fallthru
      _
    // Predicated region
    $region38: #{tpu_custom_call.1} parent=1 // pred_check
      _
    $region39: #{tpu_custom_call.1} parent=1 // pred_check_branch
      %121 = sbr.rel (0) target = $region41
    $region40: #{tpu_custom_call.1} parent=1 // pred_region
      _
    $region41: #{tpu_custom_call.1} parent=1 // pred_fallthru
      _
    // Predicated region
    $region42: #{tpu_custom_call.1} parent=1 // pred_check
      _
    $region43: #{tpu_custom_call.1} parent=1 // pred_check_branch
      %123 = sbr.rel (0) target = $region45
    $region44: #{tpu_custom_call.1} parent=1 // pred_region
      _
    $region45: #{tpu_custom_call.1} parent=1 // pred_fallthru
      _
    // Predicated region
    $region46: #{tpu_custom_call.1} parent=1 // pred_check
      _
    $region47: #{tpu_custom_call.1} parent=1 // pred_check_branch
      %125 = sbr.rel (0) target = $region49
    $region48: #{tpu_custom_call.1} parent=1 // pred_region
      %126 = dma.done [#allocation5], 1024
    $region49: #{tpu_custom_call.1} parent=1 // pred_fallthru
      _
    // Predicated region
    $region50: #{tpu_custom_call.1} parent=1 // pred_check
      _
    $region51: #{tpu_custom_call.1} parent=1 // pred_check_branch
      %128 = sbr.rel (0) target = $region53
    $region52: #{tpu_custom_call.1} parent=1 // pred_region
      %129 = dma.done [#allocation8], 12288
    $region53: #{tpu_custom_call.1} parent=1 // pred_fallthru
      _
    // Predicated region
    $region54: #{tpu_custom_call.1} parent=1 // pred_check
      _
    $region55: #{tpu_custom_call.1} parent=1 // pred_check_branch
      %131 = sbr.rel (0) target = $region57
    $region56: #{tpu_custom_call.1} parent=1 // pred_region
      %132 = dma.done [#allocation8], 12288
    $region57: #{tpu_custom_call.1} parent=1 // pred_fallthru
      _
    // Predicated region
    $region58: #{tpu_custom_call.1} parent=1 // pred_check
      _
    $region59: #{tpu_custom_call.1} parent=1 // pred_check_branch
      %134 = sbr.rel (0) target = $region61
    $region60: #{tpu_custom_call.1} parent=1 // pred_region
      %135 = dma.done [#allocation11], 192
    $region61: #{tpu_custom_call.1} parent=1 // pred_fallthru
      _
    // Predicated region
    $region62: #{tpu_custom_call.1} parent=1 // pred_check
      _
    $region63: #{tpu_custom_call.1} parent=1 // pred_check_branch
      %137 = sbr.rel (0) target = $region65
    $region64: #{tpu_custom_call.1} parent=1 // pred_region
      %138 = dma.done [#allocation11], 384
    $region65: #{tpu_custom_call.1} parent=1 // pred_fallthru
      _
    // Predicated region
    $region66: #{tpu_custom_call.1} parent=1 // pred_check
      _
    $region67: #{tpu_custom_call.1} parent=1 // pred_check_branch
      %140 = sbr.rel (0) target = $region69
    $region68: #{tpu_custom_call.1} parent=1 // pred_region
      %141 = dma.done [#allocation14], 384
    $region69: #{tpu_custom_call.1} parent=1 // pred_fallthru
      _
    // Predicated region
    $region70: #{tpu_custom_call.1} parent=1 // pred_check
      _
    $region71: #{tpu_custom_call.1} parent=1 // pred_check_branch
      %143 = sbr.rel (0) target = $region73
    $region72: #{tpu_custom_call.1} parent=1 // pred_region
      %144 = dma.done [#allocation14], 4096
    $region73: #{tpu_custom_call.1} parent=1 // pred_fallthru
      _
    // Predicated region
    $region74: #{tpu_custom_call.1} parent=1 // pred_check
      _
    $region75: #{tpu_custom_call.1} parent=1 // pred_check_branch
      %146 = sbr.rel (0) target = $region77
    $region76: #{tpu_custom_call.1} parent=1 // pred_region
      %147 = dma.done [#allocation17], 4096
    $region77: #{tpu_custom_call.1} parent=1 // pred_fallthru
      _
    %v149 = vld [vmem:[#allocation4] sm:$0xff]
    %v150 = vld [vmem:[#allocation4 + $0x8] sm:$0xff]
    %v151 = vld [vmem:[#allocation4 + $0x10] sm:$0xff]
    %v152 = vld [vmem:[#allocation4 + $0x18] sm:$0xff]
    %v153 = vld [vmem:[#allocation4 + $0x20] sm:$0xff]
    %v154 = vld [vmem:[#allocation4 + $0x28] sm:$0xff]
    %v155 = vld [vmem:[#allocation4 + $0x30] sm:$0xff]
    %v156 = vld [vmem:[#allocation4 + $0x38] sm:$0xff]
    %v157 = vld [vmem:[#allocation7] sm:$0xff]
    %v158 = vld [vmem:[#allocation7 + $0x8] sm:$0xff]
    %v159 = vld [vmem:[#allocation7 + $0x10] sm:$0xff]
    %v160 = vld [vmem:[#allocation7 + $0x18] sm:$0xff]
    %v161 = vld [vmem:[#allocation7 + $0x20] sm:$0xff]
    %v162 = vld [vmem:[#allocation7 + $0x28] sm:$0xff]
    %v163 = vld [vmem:[#allocation7 + $0x30] sm:$0xff]
    %v164 = vld [vmem:[#allocation7 + $0x38] sm:$0xff]
    %v165 = vld [vmem:[#allocation7 + $0x40] sm:$0xff]
    %v166 = vld [vmem:[#allocation7 + $0x48] sm:$0xff]
    %v167 = vld [vmem:[#allocation7 + $0x50] sm:$0xff]
    %v168 = vld [vmem:[#allocation7 + $0x58] sm:$0xff]
    %v169 = vld [vmem:[#allocation7 + $0x60] sm:$0xff]
    %v170 = vld [vmem:[#allocation7 + $0x68] sm:$0xff]
    %v171 = vld [vmem:[#allocation7 + $0x70] sm:$0xff]
    %v172 = vld [vmem:[#allocation7 + $0x78] sm:$0xff]
    %v173 = vld [vmem:[#allocation7 + $0x80] sm:$0xff]
    %v174 = vld [vmem:[#allocation7 + $0x88] sm:$0xff]
    %v175 = vld [vmem:[#allocation7 + $0x90] sm:$0xff]
    %v176 = vld [vmem:[#allocation7 + $0x98] sm:$0xff]
    %v177 = vld [vmem:[#allocation7 + $0xa0] sm:$0xff]
    %v178 = vld [vmem:[#allocation7 + $0xa8] sm:$0xff]
    %v179 = vld [vmem:[#allocation7 + $0xb0] sm:$0xff]
    %v180 = vld [vmem:[#allocation7 + $0xb8] sm:$0xff]
    %v181 = vld [vmem:[#allocation7 + $0xc0] sm:$0xff]
    %v182 = vld [vmem:[#allocation7 + $0xc8] sm:$0xff]
    %v183 = vld [vmem:[#allocation7 + $0xd0] sm:$0xff]
    %v184 = vld [vmem:[#allocation7 + $0xd8] sm:$0xff]
    %v185 = vld [vmem:[#allocation7 + $0xe0] sm:$0xff]
    %v186 = vld [vmem:[#allocation7 + $0xe8] sm:$0xff]
    %v187 = vld [vmem:[#allocation7 + $0xf0] sm:$0xff]
    %v188 = vld [vmem:[#allocation7 + $0xf8] sm:$0xff]
    %v189 = vld [vmem:[#allocation10] sm:$0xf]
    %v190 = vpack.c.bf16 %v150, %v149
    %v191 = vpack.c.bf16 %v152, %v151
    %v192 = vpack.c.bf16 %v154, %v153
    %v193 = vpack.c.bf16 %v156, %v155
    %v195 = vlaneseq
    %v196 = vshrl.u32 %v195, 7
    %v197 = vsub.s32 0, %v196
    %v198 = vrot.slane %v189, %v197
    %v199 = vlaneseq
    %v200 = vshrl.u32 %v199, 7
    %v201 = vsub.s32 1, %v200
    %v202 = vrot.slane %v189, %v201
    %v203 = vlaneseq
    %v204 = vshrl.u32 %v203, 7
    %v205 = vsub.s32 2, %v204
    %v206 = vrot.slane %v189, %v205
    %v207 = vlaneseq
    %v208 = vshrl.u32 %v207, 7
    %v209 = vsub.s32 3, %v208
    %v210 = vrot.slane %v189, %v209
    %v247 = vunpack.c.l.b16 %v157
    %v248 = vunpack.c.h.b16 %v157
    %v249 = vunpack.c.l.b16 %v158
    %v250 = vunpack.c.h.b16 %v158
    %v251 = vunpack.c.l.b16 %v159
    %v252 = vunpack.c.h.b16 %v159
    %v253 = vunpack.c.l.b16 %v160
    %v254 = vunpack.c.h.b16 %v160
    %v255 = vunpack.c.l.b16 %v161
    %v256 = vunpack.c.h.b16 %v161
    %v257 = vunpack.c.l.b16 %v162
    %v258 = vunpack.c.h.b16 %v162
    %v259 = vunpack.c.l.b16 %v163
    %v260 = vunpack.c.h.b16 %v163
    %v261 = vunpack.c.l.b16 %v164
    %v262 = vunpack.c.h.b16 %v164
    %v263 = vunpack.c.l.b16 %v165
    %v264 = vunpack.c.h.b16 %v165
    %v265 = vunpack.c.l.b16 %v166
    %v266 = vunpack.c.h.b16 %v166
    %v267 = vunpack.c.l.b16 %v167
    %v268 = vunpack.c.h.b16 %v167
    %v269 = vunpack.c.l.b16 %v168
    %v270 = vunpack.c.h.b16 %v168
    %v271 = vunpack.c.l.b16 %v169
    %v272 = vunpack.c.h.b16 %v169
    %v273 = vunpack.c.l.b16 %v170
    %v274 = vunpack.c.h.b16 %v170
    %v275 = vunpack.c.l.b16 %v171
    %v276 = vunpack.c.h.b16 %v171
    %v277 = vunpack.c.l.b16 %v172
    %v278 = vunpack.c.h.b16 %v172
    %v279 = vunpack.c.l.b16 %v173
    %v280 = vunpack.c.h.b16 %v173
    %v281 = vunpack.c.l.b16 %v174
    %v282 = vunpack.c.h.b16 %v174
    %v283 = vunpack.c.l.b16 %v175
    %v284 = vunpack.c.h.b16 %v175
    %v285 = vunpack.c.l.b16 %v176
    %v286 = vunpack.c.h.b16 %v176
    %v287 = vunpack.c.l.b16 %v177
    %v288 = vunpack.c.h.b16 %v177
    %v289 = vunpack.c.l.b16 %v178
    %v290 = vunpack.c.h.b16 %v178
    %v291 = vunpack.c.l.b16 %v179
    %v292 = vunpack.c.h.b16 %v179
    %v293 = vunpack.c.l.b16 %v180
    %v294 = vunpack.c.h.b16 %v180
    %v295 = vunpack.c.l.b16 %v181
    %v296 = vunpack.c.h.b16 %v181
    %v297 = vunpack.c.l.b16 %v182
    %v298 = vunpack.c.h.b16 %v182
    %v299 = vunpack.c.l.b16 %v183
    %v300 = vunpack.c.h.b16 %v183
    %v301 = vunpack.c.l.b16 %v184
    %v302 = vunpack.c.h.b16 %v184
    %v303 = vunpack.c.l.b16 %v185
    %v304 = vunpack.c.h.b16 %v185
    %v305 = vunpack.c.l.b16 %v186
    %v306 = vunpack.c.h.b16 %v186
    %v307 = vunpack.c.l.b16 %v187
    %v308 = vunpack.c.h.b16 %v187
    %v309 = vunpack.c.l.b16 %v188
    %v310 = vunpack.c.h.b16 %v188
    %v311 = vpack.c.b16 %v251, %v247
    %v312 = vpack.c.b16 %v252, %v248
    %v313 = vpack.c.b16 %v253, %v249
    %v314 = vpack.c.b16 %v254, %v250
    %v315 = vpack.c.b16 %v259, %v255
    %v316 = vpack.c.b16 %v260, %v256
    %v317 = vpack.c.b16 %v261, %v257
    %v318 = vpack.c.b16 %v262, %v258
    %v319 = vpack.c.b16 %v267, %v263
    %v320 = vpack.c.b16 %v268, %v264
    %v321 = vpack.c.b16 %v269, %v265
    %v322 = vpack.c.b16 %v270, %v266
    %v323 = vpack.c.b16 %v275, %v271
    %v324 = vpack.c.b16 %v276, %v272
    %v325 = vpack.c.b16 %v277, %v273
    %v326 = vpack.c.b16 %v278, %v274
    %v327 = vpack.c.b16 %v283, %v279
    %v328 = vpack.c.b16 %v284, %v280
    %v329 = vpack.c.b16 %v285, %v281
    %v330 = vpack.c.b16 %v286, %v282
    %v331 = vpack.c.b16 %v291, %v287
    %v332 = vpack.c.b16 %v292, %v288
    %v333 = vpack.c.b16 %v293, %v289
    %v334 = vpack.c.b16 %v294, %v290
    %v335 = vpack.c.b16 %v299, %v295
    %v336 = vpack.c.b16 %v300, %v296
    %v337 = vpack.c.b16 %v301, %v297
    %v338 = vpack.c.b16 %v302, %v298
    %v339 = vpack.c.b16 %v307, %v303
    %v340 = vpack.c.b16 %v308, %v304
    %v341 = vpack.c.b16 %v309, %v305
    %v342 = vpack.c.b16 %v310, %v306
    %375 = vmatprep.subr.bf16.mxu0 %v312
    %376 = vmatpush1.bf16.msra.mxu0 %v311
    %377 = vmatprep.subr.bf16.mxu0 %v316
    %378 = vmatpush1.bf16.msra.mxu0 %v315
    %379 = vmatprep.subr.bf16.mxu0 %v320
    %380 = vmatpush1.bf16.msra.mxu0 %v319
    %381 = vmatprep.subr.bf16.mxu0 %v324
    %382 = vmatpush1.bf16.msra.mxu0 %v323
    %383 = vmatprep.subr.bf16.mxu0 %v328
    %384 = vmatpush1.bf16.msra.mxu0 %v327
    %385 = vmatprep.subr.bf16.mxu0 %v332
    %386 = vmatpush1.bf16.msra.mxu0 %v331
    %387 = vmatprep.subr.bf16.mxu0 %v336
    %388 = vmatpush1.bf16.msra.mxu0 %v335
    %389 = vmatprep.subr.bf16.mxu0 %v340
    %390 = vmatpush1.bf16.msra.mxu0 %v339
    %391 = vmatprep.subr.bf16.mxu0 0
    %392 = vmatpush1.bf16.msra.mxu0 0
    %393 = vmatprep.subr.bf16.mxu0 0
    %394 = vmatpush1.bf16.msra.mxu0 0
    %395 = vmatprep.subr.bf16.mxu0 0
    %396 = vmatpush1.bf16.msra.mxu0 0
    %397 = vmatprep.subr.bf16.mxu0 0
    %398 = vmatpush1.bf16.msra.mxu0 0
    %399 = vmatprep.subr.bf16.mxu0 0
    %400 = vmatpush1.bf16.msra.mxu0 0
    %401 = vmatprep.subr.bf16.mxu0 0
    %402 = vmatpush1.bf16.msra.mxu0 0
    %403 = vmatprep.subr.bf16.mxu0 0
    %404 = vmatpush1.bf16.msra.mxu0 0
    %405 = vmatprep.subr.bf16.mxu0 0
    %406 = vmatpush1.bf16.msra.mxu0 0
    %407 = vmatprep.mubr.bf16.mxu0 0
    %408 = vmatmul.mubr.bf16.gmra.mrb[0].mxu0 %v190
    %v409 = vpop.f32.mrb[0].mxu0
    %v410 = vadd.f32 %v198, %v409
    %v411 = vpop.f32.mrb[0].mxu0
    %v412 = vadd.f32 %v202, %v411
    %v413 = vpop.f32.mrb[0].mxu0
    %v414 = vadd.f32 %v198, %v413
    %v415 = vpop.f32.mrb[0].mxu0
    %v416 = vadd.f32 %v202, %v415
    %417 = vmatprep.mubr.bf16.mxu0 0
    %418 = vmatmul.mubr.bf16.gmra.mrb[0].mxu0 %v191
    %v419 = vpop.f32.mrb[0].mxu0
    %v420 = vadd.f32 %v198, %v419
    %v421 = vpop.f32.mrb[0].mxu0
    %v422 = vadd.f32 %v202, %v421
    %v423 = vpop.f32.mrb[0].mxu0
    %v424 = vadd.f32 %v198, %v423
    %v425 = vpop.f32.mrb[0].mxu0
    %v426 = vadd.f32 %v202, %v425
    %427 = vmatprep.mubr.bf16.mxu0 0
    %428 = vmatmul.mubr.bf16.gmra.mrb[0].mxu0 %v192
    %v429 = vpop.f32.mrb[0].mxu0
    %v430 = vadd.f32 %v198, %v429
    %v431 = vpop.f32.mrb[0].mxu0
    %v432 = vadd.f32 %v202, %v431
    %v433 = vpop.f32.mrb[0].mxu0
    %v434 = vadd.f32 %v198, %v433
    %v435 = vpop.f32.mrb[0].mxu0
    %v436 = vadd.f32 %v202, %v435
    %437 = vmatprep.mubr.bf16.mxu0 0
    %438 = vmatmul.mubr.bf16.gmra.mrb[0].mxu0 %v193
    %v439 = vpop.f32.mrb[0].mxu0
    %v440 = vadd.f32 %v198, %v439
    %v441 = vpop.f32.mrb[0].mxu0
    %v442 = vadd.f32 %v202, %v441
    %v443 = vpop.f32.mrb[0].mxu0
    %v444 = vadd.f32 %v198, %v443
    %v445 = vpop.f32.mrb[0].mxu0
    %v446 = vadd.f32 %v202, %v445
    %447 = vdwg.mxu0
    %448 = vmatprep.subr.bf16.mxu0 %v314
    %449 = vmatpush1.bf16.msra.mxu0 %v313
    %450 = vmatprep.subr.bf16.mxu0 %v318
    %451 = vmatpush1.bf16.msra.mxu0 %v317
    %452 = vmatprep.subr.bf16.mxu0 %v322
    %453 = vmatpush1.bf16.msra.mxu0 %v321
    %454 = vmatprep.subr.bf16.mxu0 %v326
    %455 = vmatpush1.bf16.msra.mxu0 %v325
    %456 = vmatprep.subr.bf16.mxu0 %v330
    %457 = vmatpush1.bf16.msra.mxu0 %v329
    %458 = vmatprep.subr.bf16.mxu0 %v334
    %459 = vmatpush1.bf16.msra.mxu0 %v333
    %460 = vmatprep.subr.bf16.mxu0 %v338
    %461 = vmatpush1.bf16.msra.mxu0 %v337
    %462 = vmatprep.subr.bf16.mxu0 %v342
    %463 = vmatpush1.bf16.msra.mxu0 %v341
    %464 = vmatprep.subr.bf16.mxu0 0
    %465 = vmatpush1.bf16.msra.mxu0 0
    %466 = vmatprep.subr.bf16.mxu0 0
    %467 = vmatpush1.bf16.msra.mxu0 0
    %468 = vmatprep.subr.bf16.mxu0 0
    %469 = vmatpush1.bf16.msra.mxu0 0
    %470 = vmatprep.subr.bf16.mxu0 0
    %471 = vmatpush1.bf16.msra.mxu0 0
    %472 = vmatprep.subr.bf16.mxu0 0
    %473 = vmatpush1.bf16.msra.mxu0 0
    %474 = vmatprep.subr.bf16.mxu0 0
    %475 = vmatpush1.bf16.msra.mxu0 0
    %476 = vmatprep.subr.bf16.mxu0 0
    %477 = vmatpush1.bf16.msra.mxu0 0
    %478 = vmatprep.subr.bf16.mxu0 0
    %479 = vmatpush1.bf16.msra.mxu0 0
    %480 = vmatprep.mubr.bf16.mxu0 0
    %481 = vmatmul.mubr.bf16.gmra.mrb[0].mxu0 %v190
    %v482 = vpop.f32.mrb[0].mxu0
    %v483 = vadd.f32 %v206, %v482
    %v484 = vpop.f32.mrb[0].mxu0
    %v485 = vadd.f32 %v210, %v484
    %v486 = vpop.f32.mrb[0].mxu0
    %v487 = vadd.f32 %v206, %v486
    %v488 = vpop.f32.mrb[0].mxu0
    %v489 = vadd.f32 %v210, %v488
    %490 = vmatprep.mubr.bf16.mxu0 0
    %491 = vmatmul.mubr.bf16.gmra.mrb[0].mxu0 %v191
    %v492 = vpop.f32.mrb[0].mxu0
    %v493 = vadd.f32 %v206, %v492
    %v494 = vpop.f32.mrb[0].mxu0
    %v495 = vadd.f32 %v210, %v494
    %v496 = vpop.f32.mrb[0].mxu0
    %v497 = vadd.f32 %v206, %v496
    %v498 = vpop.f32.mrb[0].mxu0
    %v499 = vadd.f32 %v210, %v498
    %500 = vmatprep.mubr.bf16.mxu0 0
    %501 = vmatmul.mubr.bf16.gmra.mrb[0].mxu0 %v192
    %v502 = vpop.f32.mrb[0].mxu0
    %v503 = vadd.f32 %v206, %v502
    %v504 = vpop.f32.mrb[0].mxu0
    %v505 = vadd.f32 %v210, %v504
    %v506 = vpop.f32.mrb[0].mxu0
    %v507 = vadd.f32 %v206, %v506
    %v508 = vpop.f32.mrb[0].mxu0
    %v509 = vadd.f32 %v210, %v508
    %510 = vmatprep.mubr.bf16.mxu0 0
    %511 = vmatmul.mubr.bf16.gmra.mrb[0].mxu0 %v193
    %v512 = vpop.f32.mrb[0].mxu0
    %v513 = vadd.f32 %v206, %v512
    %v514 = vpop.f32.mrb[0].mxu0
    %v515 = vadd.f32 %v210, %v514
    %v516 = vpop.f32.mrb[0].mxu0
    %v517 = vadd.f32 %v206, %v516
    %v518 = vpop.f32.mrb[0].mxu0
    %v519 = vadd.f32 %v210, %v518
    %520 = vdwg.mxu0
    %521 = vst [vmem:[#allocation3] sm:$0xff] %v410
    %522 = vst [vmem:[#allocation3 + $0x8] sm:$0xff] %v412
    %523 = vst [vmem:[#allocation3 + $0x10] sm:$0xff] %v483
    %524 = vst [vmem:[#allocation3 + $0x18] sm:$0xff] %v485
    %525 = vst [vmem:[#allocation3 + $0x20] sm:$0xff] %v414
    %526 = vst [vmem:[#allocation3 + $0x28] sm:$0xff] %v416
    %527 = vst [vmem:[#allocation3 + $0x30] sm:$0xff] %v487
    %528 = vst [vmem:[#allocation3 + $0x38] sm:$0xff] %v489
    %529 = vst [vmem:[#allocation3 + $0x40] sm:$0xff] %v420
    %530 = vst [vmem:[#allocation3 + $0x48] sm:$0xff] %v422
    %531 = vst [vmem:[#allocation3 + $0x50] sm:$0xff] %v493
    %532 = vst [vmem:[#allocation3 + $0x58] sm:$0xff] %v495
    %533 = vst [vmem:[#allocation3 + $0x60] sm:$0xff] %v424
    %534 = vst [vmem:[#allocation3 + $0x68] sm:$0xff] %v426
    %535 = vst [vmem:[#allocation3 + $0x70] sm:$0xff] %v497
    %536 = vst [vmem:[#allocation3 + $0x78] sm:$0xff] %v499
    %537 = vst [vmem:[#allocation3 + $0x80] sm:$0xff] %v430
    %538 = vst [vmem:[#allocation3 + $0x88] sm:$0xff] %v432
    %539 = vst [vmem:[#allocation3 + $0x90] sm:$0xff] %v503
    %540 = vst [vmem:[#allocation3 + $0x98] sm:$0xff] %v505
    %541 = vst [vmem:[#allocation3 + $0xa0] sm:$0xff] %v434
    %542 = vst [vmem:[#allocation3 + $0xa8] sm:$0xff] %v436
    %543 = vst [vmem:[#allocation3 + $0xb0] sm:$0xff] %v507
    %544 = vst [vmem:[#allocation3 + $0xb8] sm:$0xff] %v509
    %545 = vst [vmem:[#allocation3 + $0xc0] sm:$0xff] %v440
    %546 = vst [vmem:[#allocation3 + $0xc8] sm:$0xff] %v442
    %547 = vst [vmem:[#allocation3 + $0xd0] sm:$0xff] %v513
    %548 = vst [vmem:[#allocation3 + $0xd8] sm:$0xff] %v515
    %549 = vst [vmem:[#allocation3 + $0xe0] sm:$0xff] %v444
    %550 = vst [vmem:[#allocation3 + $0xe8] sm:$0xff] %v446
    %551 = vst [vmem:[#allocation3 + $0xf0] sm:$0xff] %v517
    %552 = vst [vmem:[#allocation3 + $0xf8] sm:$0xff] %v519
    %v553 = vld [vmem:[#allocation12] sm:$0xff]
    %v554 = vld [vmem:[#allocation13] sm:$0xff]
    %v555 = vld [vmem:[#allocation3] sm:$0xff]
    %v556 = vld [vmem:[#allocation3 + $0x8] sm:$0xff]
    %v557 = vld [vmem:[#allocation3 + $0x10] sm:$0xff]
    %v558 = vld [vmem:[#allocation3 + $0x18] sm:$0xff]
    %v559 = vpack.c.bf16 %v553, %v553
    %v560 = vld [vmem:[#allocation9] sm:$0xff]
    %v561 = vld [vmem:[#allocation9 + $0x8] sm:$0xff]
    %v562 = vld [vmem:[#allocation9 + $0x10] sm:$0xff]
    %v563 = vld [vmem:[#allocation9 + $0x18] sm:$0xff]
    %v564 = vld [vmem:[#allocation9 + $0x20] sm:$0xff]
    %v565 = vld [vmem:[#allocation9 + $0x28] sm:$0xff]
    %v566 = vld [vmem:[#allocation9 + $0x30] sm:$0xff]
    %v567 = vld [vmem:[#allocation9 + $0x38] sm:$0xff]
    %v568 = vld [vmem:[#allocation9 + $0x40] sm:$0xff]
    %v569 = vld [vmem:[#allocation9 + $0x48] sm:$0xff]
    %v570 = vld [vmem:[#allocation9 + $0x50] sm:$0xff]
    %v571 = vld [vmem:[#allocation9 + $0x58] sm:$0xff]
    %v572 = vld [vmem:[#allocation9 + $0x60] sm:$0xff]
    %v573 = vld [vmem:[#allocation9 + $0x68] sm:$0xff]
    %v574 = vld [vmem:[#allocation9 + $0x70] sm:$0xff]
    %v575 = vld [vmem:[#allocation9 + $0x78] sm:$0xff]
    %v576 = vld [vmem:[#allocation9 + $0x80] sm:$0xff]
    %v577 = vld [vmem:[#allocation9 + $0x88] sm:$0xff]
    %v578 = vld [vmem:[#allocation9 + $0x90] sm:$0xff]
    %v579 = vld [vmem:[#allocation9 + $0x98] sm:$0xff]
    %v580 = vld [vmem:[#allocation9 + $0xa0] sm:$0xff]
    %v581 = vld [vmem:[#allocation9 + $0xa8] sm:$0xff]
    %v582 = vld [vmem:[#allocation9 + $0xb0] sm:$0xff]
    %v583 = vld [vmem:[#allocation9 + $0xb8] sm:$0xff]
    %v584 = vld [vmem:[#allocation9 + $0xc0] sm:$0xff]
    %v585 = vld [vmem:[#allocation9 + $0xc8] sm:$0xff]
    %v586 = vld [vmem:[#allocation9 + $0xd0] sm:$0xff]
    %v587 = vld [vmem:[#allocation9 + $0xd8] sm:$0xff]
    %v588 = vld [vmem:[#allocation9 + $0xe0] sm:$0xff]
    %v589 = vld [vmem:[#allocation9 + $0xe8] sm:$0xff]
    %v590 = vld [vmem:[#allocation9 + $0xf0] sm:$0xff]
    %v591 = vld [vmem:[#allocation9 + $0xf8] sm:$0xff]
    %v624 = vunpack.c.l.b16 %v560
    %v625 = vunpack.c.h.b16 %v560
    %v626 = vunpack.c.l.b16 %v561
    %v627 = vunpack.c.h.b16 %v561
    %v628 = vunpack.c.l.b16 %v562
    %v629 = vunpack.c.h.b16 %v562
    %v630 = vunpack.c.l.b16 %v563
    %v631 = vunpack.c.h.b16 %v563
    %v632 = vunpack.c.l.b16 %v564
    %v633 = vunpack.c.h.b16 %v564
    %v634 = vunpack.c.l.b16 %v565
    %v635 = vunpack.c.h.b16 %v565
    %v636 = vunpack.c.l.b16 %v566
    %v637 = vunpack.c.h.b16 %v566
    %v638 = vunpack.c.l.b16 %v567
    %v639 = vunpack.c.h.b16 %v567
    %v640 = vunpack.c.l.b16 %v568
    %v641 = vunpack.c.h.b16 %v568
    %v642 = vunpack.c.l.b16 %v569
    %v643 = vunpack.c.h.b16 %v569
    %v644 = vunpack.c.l.b16 %v570
    %v645 = vunpack.c.h.b16 %v570
    %v646 = vunpack.c.l.b16 %v571
    %v647 = vunpack.c.h.b16 %v571
    %v648 = vunpack.c.l.b16 %v572
    %v649 = vunpack.c.h.b16 %v572
    %v650 = vunpack.c.l.b16 %v573
    %v651 = vunpack.c.h.b16 %v573
    %v652 = vunpack.c.l.b16 %v574
    %v653 = vunpack.c.h.b16 %v574
    %v654 = vunpack.c.l.b16 %v575
    %v655 = vunpack.c.h.b16 %v575
    %v656 = vunpack.c.l.b16 %v576
    %v657 = vunpack.c.h.b16 %v576
    %v658 = vunpack.c.l.b16 %v577
    %v659 = vunpack.c.h.b16 %v577
    %v660 = vunpack.c.l.b16 %v578
    %v661 = vunpack.c.h.b16 %v578
    %v662 = vunpack.c.l.b16 %v579
    %v663 = vunpack.c.h.b16 %v579
    %v664 = vunpack.c.l.b16 %v580
    %v665 = vunpack.c.h.b16 %v580
    %v666 = vunpack.c.l.b16 %v581
    %v667 = vunpack.c.h.b16 %v581
    %v668 = vunpack.c.l.b16 %v582
    %v669 = vunpack.c.h.b16 %v582
    %v670 = vunpack.c.l.b16 %v583
    %v671 = vunpack.c.h.b16 %v583
    %v672 = vunpack.c.l.b16 %v584
    %v673 = vunpack.c.h.b16 %v584
    %v674 = vunpack.c.l.b16 %v585
    %v675 = vunpack.c.h.b16 %v585
    %v676 = vunpack.c.l.b16 %v586
    %v677 = vunpack.c.h.b16 %v586
    %v678 = vunpack.c.l.b16 %v587
    %v679 = vunpack.c.h.b16 %v587
    %v680 = vunpack.c.l.b16 %v588
    %v681 = vunpack.c.h.b16 %v588
    %v682 = vunpack.c.l.b16 %v589
    %v683 = vunpack.c.h.b16 %v589
    %v684 = vunpack.c.l.b16 %v590
    %v685 = vunpack.c.h.b16 %v590
    %v686 = vunpack.c.l.b16 %v591
    %v687 = vunpack.c.h.b16 %v591
    %v688 = vpack.c.b16 %v628, %v624
    %v689 = vpack.c.b16 %v629, %v625
    %v690 = vpack.c.b16 %v630, %v626
    %v691 = vpack.c.b16 %v631, %v627
    %v692 = vpack.c.b16 %v636, %v632
    %v693 = vpack.c.b16 %v637, %v633
    %v694 = vpack.c.b16 %v638, %v634
    %v695 = vpack.c.b16 %v639, %v635
    %v696 = vpack.c.b16 %v644, %v640
    %v697 = vpack.c.b16 %v645, %v641
    %v698 = vpack.c.b16 %v646, %v642
    %v699 = vpack.c.b16 %v647, %v643
    %v700 = vpack.c.b16 %v652, %v648
    %v701 = vpack.c.b16 %v653, %v649
    %v702 = vpack.c.b16 %v654, %v650
    %v703 = vpack.c.b16 %v655, %v651
    %v704 = vpack.c.b16 %v660, %v656
    %v705 = vpack.c.b16 %v661, %v657
    %v706 = vpack.c.b16 %v662, %v658
    %v707 = vpack.c.b16 %v663, %v659
    %v708 = vpack.c.b16 %v668, %v664
    %v709 = vpack.c.b16 %v669, %v665
    %v710 = vpack.c.b16 %v670, %v666
    %v711 = vpack.c.b16 %v671, %v667
    %v712 = vpack.c.b16 %v676, %v672
    %v713 = vpack.c.b16 %v677, %v673
    %v714 = vpack.c.b16 %v678, %v674
    %v715 = vpack.c.b16 %v679, %v675
    %v716 = vpack.c.b16 %v684, %v680
    %v717 = vpack.c.b16 %v685, %v681
    %v718 = vpack.c.b16 %v686, %v682
    %v719 = vpack.c.b16 %v687, %v683
    %752 = vmatprep.subr.bf16.mxu0 %v689
    %753 = vmatpush1.bf16.msra.mxu0 %v688
    %754 = vmatprep.subr.bf16.mxu0 %v693
    %755 = vmatpush1.bf16.msra.mxu0 %v692
    %756 = vmatprep.subr.bf16.mxu0 %v697
    %757 = vmatpush1.bf16.msra.mxu0 %v696
    %758 = vmatprep.subr.bf16.mxu0 %v701
    %759 = vmatpush1.bf16.msra.mxu0 %v700
    %760 = vmatprep.subr.bf16.mxu0 %v705
    %761 = vmatpush1.bf16.msra.mxu0 %v704
    %762 = vmatprep.subr.bf16.mxu0 %v709
    %763 = vmatpush1.bf16.msra.mxu0 %v708
    %764 = vmatprep.subr.bf16.mxu0 %v713
    %765 = vmatpush1.bf16.msra.mxu0 %v712
    %766 = vmatprep.subr.bf16.mxu0 %v717
    %767 = vmatpush1.bf16.msra.mxu0 %v716
    %768 = vmatprep.subr.bf16.mxu0 0
    %769 = vmatpush1.bf16.msra.mxu0 0
    %770 = vmatprep.subr.bf16.mxu0 0
    %771 = vmatpush1.bf16.msra.mxu0 0
    %772 = vmatprep.subr.bf16.mxu0 0
    %773 = vmatpush1.bf16.msra.mxu0 0
    %774 = vmatprep.subr.bf16.mxu0 0
    %775 = vmatpush1.bf16.msra.mxu0 0
    %776 = vmatprep.subr.bf16.mxu0 0
    %777 = vmatpush1.bf16.msra.mxu0 0
    %778 = vmatprep.subr.bf16.mxu0 0
    %779 = vmatpush1.bf16.msra.mxu0 0
    %780 = vmatprep.subr.bf16.mxu0 0
    %781 = vmatpush1.bf16.msra.mxu0 0
    %782 = vmatprep.subr.bf16.mxu0 0
    %783 = vmatpush1.bf16.msra.mxu0 0
    %784 = vmatprep.mubr.bf16.mxu0 0
    %785 = vmatmul.mubr.bf16.gmra.mrb[0].mxu0 %v559
    %v786 = vpop.f32.mrb[0].mxu0
    %v787 = vadd.f32 0.0, %v786
    %v788 = vpop.f32.mrb[0].mxu0
    %v789 = vadd.f32 0.0, %v788
    %v790 = vpop.f32.mrb[0].mxu0
    %v791 = vpop.f32.mrb[0].mxu0
    %792 = vdwg.mxu0
    %793 = vmatprep.subr.bf16.mxu0 %v691
    %794 = vmatpush1.bf16.msra.mxu0 %v690
    %795 = vmatprep.subr.bf16.mxu0 %v695
    %796 = vmatpush1.bf16.msra.mxu0 %v694
    %797 = vmatprep.subr.bf16.mxu0 %v699
    %798 = vmatpush1.bf16.msra.mxu0 %v698
    %799 = vmatprep.subr.bf16.mxu0 %v703
    %800 = vmatpush1.bf16.msra.mxu0 %v702
    %801 = vmatprep.subr.bf16.mxu0 %v707
    %802 = vmatpush1.bf16.msra.mxu0 %v706
    %803 = vmatprep.subr.bf16.mxu0 %v711
    %804 = vmatpush1.bf16.msra.mxu0 %v710
    %805 = vmatprep.subr.bf16.mxu0 %v715
    %806 = vmatpush1.bf16.msra.mxu0 %v714
    %807 = vmatprep.subr.bf16.mxu0 %v719
    %808 = vmatpush1.bf16.msra.mxu0 %v718
    %809 = vmatprep.subr.bf16.mxu0 0
    %810 = vmatpush1.bf16.msra.mxu0 0
    %811 = vmatprep.subr.bf16.mxu0 0
    %812 = vmatpush1.bf16.msra.mxu0 0
    %813 = vmatprep.subr.bf16.mxu0 0
    %814 = vmatpush1.bf16.msra.mxu0 0
    %815 = vmatprep.subr.bf16.mxu0 0
    %816 = vmatpush1.bf16.msra.mxu0 0
    %817 = vmatprep.subr.bf16.mxu0 0
    %818 = vmatpush1.bf16.msra.mxu0 0
    %819 = vmatprep.subr.bf16.mxu0 0
    %820 = vmatpush1.bf16.msra.mxu0 0
    %821 = vmatprep.subr.bf16.mxu0 0
    %822 = vmatpush1.bf16.msra.mxu0 0
    %823 = vmatprep.subr.bf16.mxu0 0
    %824 = vmatpush1.bf16.msra.mxu0 0
    %825 = vmatprep.mubr.bf16.mxu0 0
    %826 = vmatmul.mubr.bf16.gmra.mrb[0].mxu0 %v559
    %v827 = vpop.f32.mrb[0].mxu0
    %v828 = vadd.f32 0.0, %v827
    %v829 = vpop.f32.mrb[0].mxu0
    %v830 = vadd.f32 0.0, %v829
    %v831 = vpop.f32.mrb[0].mxu0
    %v832 = vpop.f32.mrb[0].mxu0
    %833 = vdwg.mxu0
    %v834 = vadd.f32 %v555, %v787
    %v835 = vadd.f32 %v556, %v789
    %v836 = vadd.f32 %v557, %v828
    %v837 = vadd.f32 %v558, %v830
    %v838 = vxor.u32 %v834, 2147483648
    %v839 = vxor.u32 %v835, 2147483648
    %v840 = vxor.u32 %v836, 2147483648
    %v841 = vmul.f32 %v838, 1.442695
    %v842 = vpow.pop %v841
    %v843 = vmul.f32 %v839, 1.442695
    %v844 = vpow.pop %v843
    %v845 = vmul.f32 %v840, 1.442695
    %v846 = vpow.pop %v845
    %v847 = vadd.f32 %v842, 1.0
    %v848 = vadd.f32 %v844, 1.0
    %v849 = vadd.f32 %v846, 1.0
    %v850 = vrcp.pop %v847
    %v851 = vmul.f32 1.0, %v850
    %v852 = vrcp.pop %v848
    %v853 = vmul.f32 1.0, %v852
    %v854 = vrcp.pop %v849
    %v855 = vmul.f32 1.0, %v854
    %v856 = vtanh.pop %v837
    %v857 = vmul.f32 %v853, %v554
    %v858 = vmul.f32 %v851, %v856
    %v859 = vadd.f32 %v857, %v858
    %v860 = vtanh.pop %v859
    %v861 = vmul.f32 %v855, %v860
    %862 = vst [vmem:[#allocation2] sm:$0xff] %v861
    %s863 = scalar_lea.vmem [#allocation3], 32
    %v864 = vld [vmem:[%s863] sm:$0xff]
    %v865 = vld [vmem:[%s863 + $0x8] sm:$0xff]
    %v866 = vld [vmem:[%s863 + $0x10] sm:$0xff]
    %v867 = vld [vmem:[%s863 + $0x18] sm:$0xff]
    %v868 = vpack.c.bf16 %v861, %v861
    %v869 = vld [vmem:[#allocation9] sm:$0xff]
    %v870 = vld [vmem:[#allocation9 + $0x8] sm:$0xff]
    %v871 = vld [vmem:[#allocation9 + $0x10] sm:$0xff]
    %v872 = vld [vmem:[#allocation9 + $0x18] sm:$0xff]
    %v873 = vld [vmem:[#allocation9 + $0x20] sm:$0xff]
    %v874 = vld [vmem:[#allocation9 + $0x28] sm:$0xff]
    %v875 = vld [vmem:[#allocation9 + $0x30] sm:$0xff]
    %v876 = vld [vmem:[#allocation9 + $0x38] sm:$0xff]
    %v877 = vld [vmem:[#allocation9 + $0x40] sm:$0xff]
    %v878 = vld [vmem:[#allocation9 + $0x48] sm:$0xff]
    %v879 = vld [vmem:[#allocation9 + $0x50] sm:$0xff]
    %v880 = vld [vmem:[#allocation9 + $0x58] sm:$0xff]
    %v881 = vld [vmem:[#allocation9 + $0x60] sm:$0xff]
    %v882 = vld [vmem:[#allocation9 + $0x68] sm:$0xff]
    %v883 = vld [vmem:[#allocation9 + $0x70] sm:$0xff]
    %v884 = vld [vmem:[#allocation9 + $0x78] sm:$0xff]
    %v885 = vld [vmem:[#allocation9 + $0x80] sm:$0xff]
    %v886 = vld [vmem:[#allocation9 + $0x88] sm:$0xff]
    %v887 = vld [vmem:[#allocation9 + $0x90] sm:$0xff]
    %v888 = vld [vmem:[#allocation9 + $0x98] sm:$0xff]
    %v889 = vld [vmem:[#allocation9 + $0xa0] sm:$0xff]
    %v890 = vld [vmem:[#allocation9 + $0xa8] sm:$0xff]
    %v891 = vld [vmem:[#allocation9 + $0xb0] sm:$0xff]
    %v892 = vld [vmem:[#allocation9 + $0xb8] sm:$0xff]
    %v893 = vld [vmem:[#allocation9 + $0xc0] sm:$0xff]
    %v894 = vld [vmem:[#allocation9 + $0xc8] sm:$0xff]
    %v895 = vld [vmem:[#allocation9 + $0xd0] sm:$0xff]
    %v896 = vld [vmem:[#allocation9 + $0xd8] sm:$0xff]
    %v897 = vld [vmem:[#allocation9 + $0xe0] sm:$0xff]
    %v898 = vld [vmem:[#allocation9 + $0xe8] sm:$0xff]
    %v899 = vld [vmem:[#allocation9 + $0xf0] sm:$0xff]
    %v900 = vld [vmem:[#allocation9 + $0xf8] sm:$0xff]
    %v933 = vunpack.c.l.b16 %v869
    %v934 = vunpack.c.h.b16 %v869
    %v935 = vunpack.c.l.b16 %v870
    %v936 = vunpack.c.h.b16 %v870
    %v937 = vunpack.c.l.b16 %v871
    %v938 = vunpack.c.h.b16 %v871
    %v939 = vunpack.c.l.b16 %v872
    %v940 = vunpack.c.h.b16 %v872
    %v941 = vunpack.c.l.b16 %v873
    %v942 = vunpack.c.h.b16 %v873
    %v943 = vunpack.c.l.b16 %v874
    %v944 = vunpack.c.h.b16 %v874
    %v945 = vunpack.c.l.b16 %v875
    %v946 = vunpack.c.h.b16 %v875
    %v947 = vunpack.c.l.b16 %v876
    %v948 = vunpack.c.h.b16 %v876
    %v949 = vunpack.c.l.b16 %v877
    %v950 = vunpack.c.h.b16 %v877
    %v951 = vunpack.c.l.b16 %v878
    %v952 = vunpack.c.h.b16 %v878
    %v953 = vunpack.c.l.b16 %v879
    %v954 = vunpack.c.h.b16 %v879
    %v955 = vunpack.c.l.b16 %v880
    %v956 = vunpack.c.h.b16 %v880
    %v957 = vunpack.c.l.b16 %v881
    %v958 = vunpack.c.h.b16 %v881
    %v959 = vunpack.c.l.b16 %v882
    %v960 = vunpack.c.h.b16 %v882
    %v961 = vunpack.c.l.b16 %v883
    %v962 = vunpack.c.h.b16 %v883
    %v963 = vunpack.c.l.b16 %v884
    %v964 = vunpack.c.h.b16 %v884
    %v965 = vunpack.c.l.b16 %v885
    %v966 = vunpack.c.h.b16 %v885
    %v967 = vunpack.c.l.b16 %v886
    %v968 = vunpack.c.h.b16 %v886
    %v969 = vunpack.c.l.b16 %v887
    %v970 = vunpack.c.h.b16 %v887
    %v971 = vunpack.c.l.b16 %v888
    %v972 = vunpack.c.h.b16 %v888
    %v973 = vunpack.c.l.b16 %v889
    %v974 = vunpack.c.h.b16 %v889
    %v975 = vunpack.c.l.b16 %v890
    %v976 = vunpack.c.h.b16 %v890
    %v977 = vunpack.c.l.b16 %v891
    %v978 = vunpack.c.h.b16 %v891
    %v979 = vunpack.c.l.b16 %v892
    %v980 = vunpack.c.h.b16 %v892
    %v981 = vunpack.c.l.b16 %v893
    %v982 = vunpack.c.h.b16 %v893
    %v983 = vunpack.c.l.b16 %v894
    %v984 = vunpack.c.h.b16 %v894
    %v985 = vunpack.c.l.b16 %v895
    %v986 = vunpack.c.h.b16 %v895
    %v987 = vunpack.c.l.b16 %v896
    %v988 = vunpack.c.h.b16 %v896
    %v989 = vunpack.c.l.b16 %v897
    %v990 = vunpack.c.h.b16 %v897
    %v991 = vunpack.c.l.b16 %v898
    %v992 = vunpack.c.h.b16 %v898
    %v993 = vunpack.c.l.b16 %v899
    %v994 = vunpack.c.h.b16 %v899
    %v995 = vunpack.c.l.b16 %v900
    %v996 = vunpack.c.h.b16 %v900
    %v997 = vpack.c.b16 %v937, %v933
    %v998 = vpack.c.b16 %v938, %v934
    %v999 = vpack.c.b16 %v939, %v935
    %v1000 = vpack.c.b16 %v940, %v936
    %v1001 = vpack.c.b16 %v945, %v941
    %v1002 = vpack.c.b16 %v946, %v942
    %v1003 = vpack.c.b16 %v947, %v943
    %v1004 = vpack.c.b16 %v948, %v944
    %v1005 = vpack.c.b16 %v953, %v949
    %v1006 = vpack.c.b16 %v954, %v950
    %v1007 = vpack.c.b16 %v955, %v951
    %v1008 = vpack.c.b16 %v956, %v952
    %v1009 = vpack.c.b16 %v961, %v957
    %v1010 = vpack.c.b16 %v962, %v958
    %v1011 = vpack.c.b16 %v963, %v959
    %v1012 = vpack.c.b16 %v964, %v960
    %v1013 = vpack.c.b16 %v969, %v965
    %v1014 = vpack.c.b16 %v970, %v966
    %v1015 = vpack.c.b16 %v971, %v967
    %v1016 = vpack.c.b16 %v972, %v968
    %v1017 = vpack.c.b16 %v977, %v973
    %v1018 = vpack.c.b16 %v978, %v974
    %v1019 = vpack.c.b16 %v979, %v975
    %v1020 = vpack.c.b16 %v980, %v976
    %v1021 = vpack.c.b16 %v985, %v981
    %v1022 = vpack.c.b16 %v986, %v982
    %v1023 = vpack.c.b16 %v987, %v983
    %v1024 = vpack.c.b16 %v988, %v984
    %v1025 = vpack.c.b16 %v993, %v989
    %v1026 = vpack.c.b16 %v994, %v990
    %v1027 = vpack.c.b16 %v995, %v991
    %v1028 = vpack.c.b16 %v996, %v992
    %1061 = vmatprep.subr.bf16.mxu0 %v998
    %1062 = vmatpush1.bf16.msra.mxu0 %v997
    %1063 = vmatprep.subr.bf16.mxu0 %v1002
    %1064 = vmatpush1.bf16.msra.mxu0 %v1001
    %1065 = vmatprep.subr.bf16.mxu0 %v1006
    %1066 = vmatpush1.bf16.msra.mxu0 %v1005
    %1067 = vmatprep.subr.bf16.mxu0 %v1010
    %1068 = vmatpush1.bf16.msra.mxu0 %v1009
    %1069 = vmatprep.subr.bf16.mxu0 %v1014
    %1070 = vmatpush1.bf16.msra.mxu0 %v1013
    %1071 = vmatprep.subr.bf16.mxu0 %v1018
    %1072 = vmatpush1.bf16.msra.mxu0 %v1017
    %1073 = vmatprep.subr.bf16.mxu0 %v1022
    %1074 = vmatpush1.bf16.msra.mxu0 %v1021
    %1075 = vmatprep.subr.bf16.mxu0 %v1026
    %1076 = vmatpush1.bf16.msra.mxu0 %v1025
    %1077 = vmatprep.subr.bf16.mxu0 0
    %1078 = vmatpush1.bf16.msra.mxu0 0
    %1079 = vmatprep.subr.bf16.mxu0 0
    %1080 = vmatpush1.bf16.msra.mxu0 0
    %1081 = vmatprep.subr.bf16.mxu0 0
    %1082 = vmatpush1.bf16.msra.mxu0 0
    %1083 = vmatprep.subr.bf16.mxu0 0
    %1084 = vmatpush1.bf16.msra.mxu0 0
    %1085 = vmatprep.subr.bf16.mxu0 0
    %1086 = vmatpush1.bf16.msra.mxu0 0
    %1087 = vmatprep.subr.bf16.mxu0 0
    %1088 = vmatpush1.bf16.msra.mxu0 0
    %1089 = vmatprep.subr.bf16.mxu0 0
    %1090 = vmatpush1.bf16.msra.mxu0 0
    %1091 = vmatprep.subr.bf16.mxu0 0
    %1092 = vmatpush1.bf16.msra.mxu0 0
    %1093 = vmatprep.mubr.bf16.mxu0 0
    %1094 = vmatmul.mubr.bf16.gmra.mrb[0].mxu0 %v868
    %v1095 = vpop.f32.mrb[0].mxu0
    %v1096 = vadd.f32 0.0, %v1095
    %v1097 = vpop.f32.mrb[0].mxu0
    %v1098 = vadd.f32 0.0, %v1097
    %v1099 = vpop.f32.mrb[0].mxu0
    %v1100 = vpop.f32.mrb[0].mxu0
    %1101 = vdwg.mxu0
    %1102 = vmatprep.subr.bf16.mxu0 %v1000
    %1103 = vmatpush1.bf16.msra.mxu0 %v999
    %1104 = vmatprep.subr.bf16.mxu0 %v1004
    %1105 = vmatpush1.bf16.msra.mxu0 %v1003
    %1106 = vmatprep.subr.bf16.mxu0 %v1008
    %1107 = vmatpush1.bf16.msra.mxu0 %v1007
    %1108 = vmatprep.subr.bf16.mxu0 %v1012
    %1109 = vmatpush1.bf16.msra.mxu0 %v1011
    %1110 = vmatprep.subr.bf16.mxu0 %v1016
    %1111 = vmatpush1.bf16.msra.mxu0 %v1015
    %1112 = vmatprep.subr.bf16.mxu0 %v1020
    %1113 = vmatpush1.bf16.msra.mxu0 %v1019
    %1114 = vmatprep.subr.bf16.mxu0 %v1024
    %1115 = vmatpush1.bf16.msra.mxu0 %v1023
    %1116 = vmatprep.subr.bf16.mxu0 %v1028
    %1117 = vmatpush1.bf16.msra.mxu0 %v1027
    %1118 = vmatprep.subr.bf16.mxu0 0
    %1119 = vmatpush1.bf16.msra.mxu0 0
    %1120 = vmatprep.subr.bf16.mxu0 0
    %1121 = vmatpush1.bf16.msra.mxu0 0
    %1122 = vmatprep.subr.bf16.mxu0 0
    %1123 = vmatpush1.bf16.msra.mxu0 0
    %1124 = vmatprep.subr.bf16.mxu0 0
    %1125 = vmatpush1.bf16.msra.mxu0 0
    %1126 = vmatprep.subr.bf16.mxu0 0
    %1127 = vmatpush1.bf16.msra.mxu0 0
    %1128 = vmatprep.subr.bf16.mxu0 0
    %1129 = vmatpush1.bf16.msra.mxu0 0
    %1130 = vmatprep.subr.bf16.mxu0 0
    %1131 = vmatpush1.bf16.msra.mxu0 0
    %1132 = vmatprep.subr.bf16.mxu0 0
    %1133 = vmatpush1.bf16.msra.mxu0 0
    %1134 = vmatprep.mubr.bf16.mxu0 0
    %1135 = vmatmul.mubr.bf16.gmra.mrb[0].mxu0 %v868
    %v1136 = vpop.f32.mrb[0].mxu0
    %v1137 = vadd.f32 0.0, %v1136
    %v1138 = vpop.f32.mrb[0].mxu0
    %v1139 = vadd.f32 0.0, %v1138
    %v1140 = vpop.f32.mrb[0].mxu0
    %v1141 = vpop.f32.mrb[0].mxu0
    %1142 = vdwg.mxu0
    %v1143 = vadd.f32 %v864, %v1096
    %v1144 = vadd.f32 %v865, %v1098
    %v1145 = vadd.f32 %v866, %v1137
    %v1146 = vadd.f32 %v867, %v1139
    %v1147 = vxor.u32 %v1143, 2147483648
    %v1148 = vxor.u32 %v1144, 2147483648
    %v1149 = vxor.u32 %v1145, 2147483648
    %v1150 = vmul.f32 %v1147, 1.442695
    %v1151 = vpow.pop %v1150
    %v1152 = vmul.f32 %v1148, 1.442695
    %v1153 = vpow.pop %v1152
    %v1154 = vmul.f32 %v1149, 1.442695
    %v1155 = vpow.pop %v1154
    %v1156 = vadd.f32 %v1151, 1.0
    %v1157 = vadd.f32 %v1153, 1.0
    %v1158 = vadd.f32 %v1155, 1.0
    %v1159 = vrcp.pop %v1156
    %v1160 = vmul.f32 1.0, %v1159
    %v1161 = vrcp.pop %v1157
    %v1162 = vmul.f32 1.0, %v1161
    %v1163 = vrcp.pop %v1158
    %v1164 = vmul.f32 1.0, %v1163
    %v1165 = vtanh.pop %v1146
    %v1166 = vmul.f32 %v1162, %v859
    %v1167 = vmul.f32 %v1160, %v1165
    %v1168 = vadd.f32 %v1166, %v1167
    %v1169 = vtanh.pop %v1168
    %v1170 = vmul.f32 %v1164, %v1169
    %s1171 = scalar_lea.vmem [#allocation2], 8
    %1172 = vst [vmem:[%s1171] sm:$0xff] %v1170
    %s1173 = scalar_lea.vmem [#allocation3], 64
    %v1174 = vld [vmem:[%s1173] sm:$0xff]
    %v1175 = vld [vmem:[%s1173 + $0x8] sm:$0xff]
    %v1176 = vld [vmem:[%s1173 + $0x10] sm:$0xff]
    %v1177 = vld [vmem:[%s1173 + $0x18] sm:$0xff]
    %v1178 = vpack.c.bf16 %v1170, %v1170
    %v1179 = vld [vmem:[#allocation9] sm:$0xff]
    %v1180 = vld [vmem:[#allocation9 + $0x8] sm:$0xff]
    %v1181 = vld [vmem:[#allocation9 + $0x10] sm:$0xff]
    %v1182 = vld [vmem:[#allocation9 + $0x18] sm:$0xff]
    %v1183 = vld [vmem:[#allocation9 + $0x20] sm:$0xff]
    %v1184 = vld [vmem:[#allocation9 + $0x28] sm:$0xff]
    %v1185 = vld [vmem:[#allocation9 + $0x30] sm:$0xff]
    %v1186 = vld [vmem:[#allocation9 + $0x38] sm:$0xff]
    %v1187 = vld [vmem:[#allocation9 + $0x40] sm:$0xff]
    %v1188 = vld [vmem:[#allocation9 + $0x48] sm:$0xff]
    %v1189 = vld [vmem:[#allocation9 + $0x50] sm:$0xff]
    %v1190 = vld [vmem:[#allocation9 + $0x58] sm:$0xff]
    %v1191 = vld [vmem:[#allocation9 + $0x60] sm:$0xff]
    %v1192 = vld [vmem:[#allocation9 + $0x68] sm:$0xff]
    %v1193 = vld [vmem:[#allocation9 + $0x70] sm:$0xff]
    %v1194 = vld [vmem:[#allocation9 + $0x78] sm:$0xff]
    %v1195 = vld [vmem:[#allocation9 + $0x80] sm:$0xff]
    %v1196 = vld [vmem:[#allocation9 + $0x88] sm:$0xff]
    %v1197 = vld [vmem:[#allocation9 + $0x90] sm:$0xff]
    %v1198 = vld [vmem:[#allocation9 + $0x98] sm:$0xff]
    %v1199 = vld [vmem:[#allocation9 + $0xa0] sm:$0xff]
    %v1200 = vld [vmem:[#allocation9 + $0xa8] sm:$0xff]
    %v1201 = vld [vmem:[#allocation9 + $0xb0] sm:$0xff]
    %v1202 = vld [vmem:[#allocation9 + $0xb8] sm:$0xff]
    %v1203 = vld [vmem:[#allocation9 + $0xc0] sm:$0xff]
    %v1204 = vld [vmem:[#allocation9 + $0xc8] sm:$0xff]
    %v1205 = vld [vmem:[#allocation9 + $0xd0] sm:$0xff]
    %v1206 = vld [vmem:[#allocation9 + $0xd8] sm:$0xff]
    %v1207 = vld [vmem:[#allocation9 + $0xe0] sm:$0xff]
    %v1208 = vld [vmem:[#allocation9 + $0xe8] sm:$0xff]
    %v1209 = vld [vmem:[#allocation9 + $0xf0] sm:$0xff]
    %v1210 = vld [vmem:[#allocation9 + $0xf8] sm:$0xff]
    %v1243 = vunpack.c.l.b16 %v1179
    %v1244 = vunpack.c.h.b16 %v1179
    %v1245 = vunpack.c.l.b16 %v1180
    %v1246 = vunpack.c.h.b16 %v1180
    %v1247 = vunpack.c.l.b16 %v1181
    %v1248 = vunpack.c.h.b16 %v1181
    %v1249 = vunpack.c.l.b16 %v1182
    %v1250 = vunpack.c.h.b16 %v1182
    %v1251 = vunpack.c.l.b16 %v1183
    %v1252 = vunpack.c.h.b16 %v1183
    %v1253 = vunpack.c.l.b16 %v1184
    %v1254 = vunpack.c.h.b16 %v1184
    %v1255 = vunpack.c.l.b16 %v1185
    %v1256 = vunpack.c.h.b16 %v1185
    %v1257 = vunpack.c.l.b16 %v1186
    %v1258 = vunpack.c.h.b16 %v1186
    %v1259 = vunpack.c.l.b16 %v1187
    %v1260 = vunpack.c.h.b16 %v1187
    %v1261 = vunpack.c.l.b16 %v1188
    %v1262 = vunpack.c.h.b16 %v1188
    %v1263 = vunpack.c.l.b16 %v1189
    %v1264 = vunpack.c.h.b16 %v1189
    %v1265 = vunpack.c.l.b16 %v1190
    %v1266 = vunpack.c.h.b16 %v1190
    %v1267 = vunpack.c.l.b16 %v1191
    %v1268 = vunpack.c.h.b16 %v1191
    %v1269 = vunpack.c.l.b16 %v1192
    %v1270 = vunpack.c.h.b16 %v1192
    %v1271 = vunpack.c.l.b16 %v1193
    %v1272 = vunpack.c.h.b16 %v1193
    %v1273 = vunpack.c.l.b16 %v1194
    %v1274 = vunpack.c.h.b16 %v1194
    %v1275 = vunpack.c.l.b16 %v1195
    %v1276 = vunpack.c.h.b16 %v1195
    %v1277 = vunpack.c.l.b16 %v1196
    %v1278 = vunpack.c.h.b16 %v1196
    %v1279 = vunpack.c.l.b16 %v1197
    %v1280 = vunpack.c.h.b16 %v1197
    %v1281 = vunpack.c.l.b16 %v1198
    %v1282 = vunpack.c.h.b16 %v1198
    %v1283 = vunpack.c.l.b16 %v1199
    %v1284 = vunpack.c.h.b16 %v1199
    %v1285 = vunpack.c.l.b16 %v1200
    %v1286 = vunpack.c.h.b16 %v1200
    %v1287 = vunpack.c.l.b16 %v1201
    %v1288 = vunpack.c.h.b16 %v1201
    %v1289 = vunpack.c.l.b16 %v1202
    %v1290 = vunpack.c.h.b16 %v1202
    %v1291 = vunpack.c.l.b16 %v1203
    %v1292 = vunpack.c.h.b16 %v1203
    %v1293 = vunpack.c.l.b16 %v1204
    %v1294 = vunpack.c.h.b16 %v1204
    %v1295 = vunpack.c.l.b16 %v1205
    %v1296 = vunpack.c.h.b16 %v1205
    %v1297 = vunpack.c.l.b16 %v1206
    %v1298 = vunpack.c.h.b16 %v1206
    %v1299 = vunpack.c.l.b16 %v1207
    %v1300 = vunpack.c.h.b16 %v1207
    %v1301 = vunpack.c.l.b16 %v1208
    %v1302 = vunpack.c.h.b16 %v1208
    %v1303 = vunpack.c.l.b16 %v1209
    %v1304 = vunpack.c.h.b16 %v1209
    %v1305 = vunpack.c.l.b16 %v1210
    %v1306 = vunpack.c.h.b16 %v1210
    %v1307 = vpack.c.b16 %v1247, %v1243
    %v1308 = vpack.c.b16 %v1248, %v1244
    %v1309 = vpack.c.b16 %v1249, %v1245
    %v1310 = vpack.c.b16 %v1250, %v1246
    %v1311 = vpack.c.b16 %v1255, %v1251
    %v1312 = vpack.c.b16 %v1256, %v1252
    %v1313 = vpack.c.b16 %v1257, %v1253
    %v1314 = vpack.c.b16 %v1258, %v1254
    %v1315 = vpack.c.b16 %v1263, %v1259
    %v1316 = vpack.c.b16 %v1264, %v1260
    %v1317 = vpack.c.b16 %v1265, %v1261
    %v1318 = vpack.c.b16 %v1266, %v1262
    %v1319 = vpack.c.b16 %v1271, %v1267
    %v1320 = vpack.c.b16 %v1272, %v1268
    %v1321 = vpack.c.b16 %v1273, %v1269
    %v1322 = vpack.c.b16 %v1274, %v1270
    %v1323 = vpack.c.b16 %v1279, %v1275
    %v1324 = vpack.c.b16 %v1280, %v1276
    %v1325 = vpack.c.b16 %v1281, %v1277
    %v1326 = vpack.c.b16 %v1282, %v1278
    %v1327 = vpack.c.b16 %v1287, %v1283
    %v1328 = vpack.c.b16 %v1288, %v1284
    %v1329 = vpack.c.b16 %v1289, %v1285
    %v1330 = vpack.c.b16 %v1290, %v1286
    %v1331 = vpack.c.b16 %v1295, %v1291
    %v1332 = vpack.c.b16 %v1296, %v1292
    %v1333 = vpack.c.b16 %v1297, %v1293
    %v1334 = vpack.c.b16 %v1298, %v1294
    %v1335 = vpack.c.b16 %v1303, %v1299
    %v1336 = vpack.c.b16 %v1304, %v1300
    %v1337 = vpack.c.b16 %v1305, %v1301
    %v1338 = vpack.c.b16 %v1306, %v1302
    %1371 = vmatprep.subr.bf16.mxu0 %v1308
    %1372 = vmatpush1.bf16.msra.mxu0 %v1307
    %1373 = vmatprep.subr.bf16.mxu0 %v1312
    %1374 = vmatpush1.bf16.msra.mxu0 %v1311
    %1375 = vmatprep.subr.bf16.mxu0 %v1316
    %1376 = vmatpush1.bf16.msra.mxu0 %v1315
    %1377 = vmatprep.subr.bf16.mxu0 %v1320
    %1378 = vmatpush1.bf16.msra.mxu0 %v1319
    %1379 = vmatprep.subr.bf16.mxu0 %v1324
    %1380 = vmatpush1.bf16.msra.mxu0 %v1323
    %1381 = vmatprep.subr.bf16.mxu0 %v1328
    %1382 = vmatpush1.bf16.msra.mxu0 %v1327
    %1383 = vmatprep.subr.bf16.mxu0 %v1332
    %1384 = vmatpush1.bf16.msra.mxu0 %v1331
    %1385 = vmatprep.subr.bf16.mxu0 %v1336
    %1386 = vmatpush1.bf16.msra.mxu0 %v1335
    %1387 = vmatprep.subr.bf16.mxu0 0
    %1388 = vmatpush1.bf16.msra.mxu0 0
    %1389 = vmatprep.subr.bf16.mxu0 0
    %1390 = vmatpush1.bf16.msra.mxu0 0
    %1391 = vmatprep.subr.bf16.mxu0 0
    %1392 = vmatpush1.bf16.msra.mxu0 0
    %1393 = vmatprep.subr.bf16.mxu0 0
    %1394 = vmatpush1.bf16.msra.mxu0 0
    %1395 = vmatprep.subr.bf16.mxu0 0
    %1396 = vmatpush1.bf16.msra.mxu0 0
    %1397 = vmatprep.subr.bf16.mxu0 0
    %1398 = vmatpush1.bf16.msra.mxu0 0
    %1399 = vmatprep.subr.bf16.mxu0 0
    %1400 = vmatpush1.bf16.msra.mxu0 0
    %1401 = vmatprep.subr.bf16.mxu0 0
    %1402 = vmatpush1.bf16.msra.mxu0 0
    %1403 = vmatprep.mubr.bf16.mxu0 0
    %1404 = vmatmul.mubr.bf16.gmra.mrb[0].mxu0 %v1178
    %v1405 = vpop.f32.mrb[0].mxu0
    %v1406 = vadd.f32 0.0, %v1405
    %v1407 = vpop.f32.mrb[0].mxu0
    %v1408 = vadd.f32 0.0, %v1407
    %v1409 = vpop.f32.mrb[0].mxu0
    %v1410 = vpop.f32.mrb[0].mxu0
    %1411 = vdwg.mxu0
    %1412 = vmatprep.subr.bf16.mxu0 %v1310
    %1413 = vmatpush1.bf16.msra.mxu0 %v1309
    %1414 = vmatprep.subr.bf16.mxu0 %v1314
    %1415 = vmatpush1.bf16.msra.mxu0 %v1313
    %1416 = vmatprep.subr.bf16.mxu0 %v1318
    %1417 = vmatpush1.bf16.msra.mxu0 %v1317
    %1418 = vmatprep.subr.bf16.mxu0 %v1322
    %1419 = vmatpush1.bf16.msra.mxu0 %v1321
    %1420 = vmatprep.subr.bf16.mxu0 %v1326
    %1421 = vmatpush1.bf16.msra.mxu0 %v1325
    %1422 = vmatprep.subr.bf16.mxu0 %v1330
    %1423 = vmatpush1.bf16.msra.mxu0 %v1329
    %1424 = vmatprep.subr.bf16.mxu0 %v1334
    %1425 = vmatpush1.bf16.msra.mxu0 %v1333
    %1426 = vmatprep.subr.bf16.mxu0 %v1338
    %1427 = vmatpush1.bf16.msra.mxu0 %v1337
    %1428 = vmatprep.subr.bf16.mxu0 0
    %1429 = vmatpush1.bf16.msra.mxu0 0
    %1430 = vmatprep.subr.bf16.mxu0 0
    %1431 = vmatpush1.bf16.msra.mxu0 0
    %1432 = vmatprep.subr.bf16.mxu0 0
    %1433 = vmatpush1.bf16.msra.mxu0 0
    %1434 = vmatprep.subr.bf16.mxu0 0
    %1435 = vmatpush1.bf16.msra.mxu0 0
    %1436 = vmatprep.subr.bf16.mxu0 0
    %1437 = vmatpush1.bf16.msra.mxu0 0
    %1438 = vmatprep.subr.bf16.mxu0 0
    %1439 = vmatpush1.bf16.msra.mxu0 0
    %1440 = vmatprep.subr.bf16.mxu0 0
    %1441 = vmatpush1.bf16.msra.mxu0 0
    %1442 = vmatprep.subr.bf16.mxu0 0
    %1443 = vmatpush1.bf16.msra.mxu0 0
    %1444 = vmatprep.mubr.bf16.mxu0 0
    %1445 = vmatmul.mubr.bf16.gmra.mrb[0].mxu0 %v1178
    %v1446 = vpop.f32.mrb[0].mxu0
    %v1447 = vadd.f32 0.0, %v1446
    %v1448 = vpop.f32.mrb[0].mxu0
    %v1449 = vadd.f32 0.0, %v1448
    %v1450 = vpop.f32.mrb[0].mxu0
    %v1451 = vpop.f32.mrb[0].mxu0
    %1452 = vdwg.mxu0
    %v1453 = vadd.f32 %v1174, %v1406
    %v1454 = vadd.f32 %v1175, %v1408
    %v1455 = vadd.f32 %v1176, %v1447
    %v1456 = vadd.f32 %v1177, %v1449
    %v1457 = vxor.u32 %v1453, 2147483648
    %v1458 = vxor.u32 %v1454, 2147483648
    %v1459 = vxor.u32 %v1455, 2147483648
    %v1460 = vmul.f32 %v1457, 1.442695
    %v1461 = vpow.pop %v1460
    %v1462 = vmul.f32 %v1458, 1.442695
    %v1463 = vpow.pop %v1462
    %v1464 = vmul.f32 %v1459, 1.442695
    %v1465 = vpow.pop %v1464
    %v1466 = vadd.f32 %v1461, 1.0
    %v1467 = vadd.f32 %v1463, 1.0
    %v1468 = vadd.f32 %v1465, 1.0
    %v1469 = vrcp.pop %v1466
    %v1470 = vmul.f32 1.0, %v1469
    %v1471 = vrcp.pop %v1467
    %v1472 = vmul.f32 1.0, %v1471
    %v1473 = vrcp.pop %v1468
    %v1474 = vmul.f32 1.0, %v1473
    %v1475 = vtanh.pop %v1456
    %v1476 = vmul.f32 %v1472, %v1168
    %v1477 = vmul.f32 %v1470, %v1475
    %v1478 = vadd.f32 %v1476, %v1477
    %v1479 = vtanh.pop %v1478
    %v1480 = vmul.f32 %v1474, %v1479
    %s1481 = scalar_lea.vmem [#allocation2], 16
    %1482 = vst [vmem:[%s1481] sm:$0xff] %v1480
    %s1483 = scalar_lea.vmem [#allocation3], 96
    %v1484 = vld [vmem:[%s1483] sm:$0xff]
    %v1485 = vld [vmem:[%s1483 + $0x8] sm:$0xff]
    %v1486 = vld [vmem:[%s1483 + $0x10] sm:$0xff]
    %v1487 = vld [vmem:[%s1483 + $0x18] sm:$0xff]
    %v1488 = vpack.c.bf16 %v1480, %v1480
    %v1489 = vld [vmem:[#allocation9] sm:$0xff]
    %v1490 = vld [vmem:[#allocation9 + $0x8] sm:$0xff]
    %v1491 = vld [vmem:[#allocation9 + $0x10] sm:$0xff]
    %v1492 = vld [vmem:[#allocation9 + $0x18] sm:$0xff]
    %v1493 = vld [vmem:[#allocation9 + $0x20] sm:$0xff]
    %v1494 = vld [vmem:[#allocation9 + $0x28] sm:$0xff]
    %v1495 = vld [vmem:[#allocation9 + $0x30] sm:$0xff]
    %v1496 = vld [vmem:[#allocation9 + $0x38] sm:$0xff]
    %v1497 = vld [vmem:[#allocation9 + $0x40] sm:$0xff]
    %v1498 = vld [vmem:[#allocation9 + $0x48] sm:$0xff]
    %v1499 = vld [vmem:[#allocation9 + $0x50] sm:$0xff]
    %v1500 = vld [vmem:[#allocation9 + $0x58] sm:$0xff]
    %v1501 = vld [vmem:[#allocation9 + $0x60] sm:$0xff]
    %v1502 = vld [vmem:[#allocation9 + $0x68] sm:$0xff]
    %v1503 = vld [vmem:[#allocation9 + $0x70] sm:$0xff]
    %v1504 = vld [vmem:[#allocation9 + $0x78] sm:$0xff]
    %v1505 = vld [vmem:[#allocation9 + $0x80] sm:$0xff]
    %v1506 = vld [vmem:[#allocation9 + $0x88] sm:$0xff]
    %v1507 = vld [vmem:[#allocation9 + $0x90] sm:$0xff]
    %v1508 = vld [vmem:[#allocation9 + $0x98] sm:$0xff]
    %v1509 = vld [vmem:[#allocation9 + $0xa0] sm:$0xff]
    %v1510 = vld [vmem:[#allocation9 + $0xa8] sm:$0xff]
    %v1511 = vld [vmem:[#allocation9 + $0xb0] sm:$0xff]
    %v1512 = vld [vmem:[#allocation9 + $0xb8] sm:$0xff]
    %v1513 = vld [vmem:[#allocation9 + $0xc0] sm:$0xff]
    %v1514 = vld [vmem:[#allocation9 + $0xc8] sm:$0xff]
    %v1515 = vld [vmem:[#allocation9 + $0xd0] sm:$0xff]
    %v1516 = vld [vmem:[#allocation9 + $0xd8] sm:$0xff]
    %v1517 = vld [vmem:[#allocation9 + $0xe0] sm:$0xff]
    %v1518 = vld [vmem:[#allocation9 + $0xe8] sm:$0xff]
    %v1519 = vld [vmem:[#allocation9 + $0xf0] sm:$0xff]
    %v1520 = vld [vmem:[#allocation9 + $0xf8] sm:$0xff]
    %v1553 = vunpack.c.l.b16 %v1489
    %v1554 = vunpack.c.h.b16 %v1489
    %v1555 = vunpack.c.l.b16 %v1490
    %v1556 = vunpack.c.h.b16 %v1490
    %v1557 = vunpack.c.l.b16 %v1491
    %v1558 = vunpack.c.h.b16 %v1491
    %v1559 = vunpack.c.l.b16 %v1492
    %v1560 = vunpack.c.h.b16 %v1492
    %v1561 = vunpack.c.l.b16 %v1493
    %v1562 = vunpack.c.h.b16 %v1493
    %v1563 = vunpack.c.l.b16 %v1494
    %v1564 = vunpack.c.h.b16 %v1494
    %v1565 = vunpack.c.l.b16 %v1495
    %v1566 = vunpack.c.h.b16 %v1495
    %v1567 = vunpack.c.l.b16 %v1496
    %v1568 = vunpack.c.h.b16 %v1496
    %v1569 = vunpack.c.l.b16 %v1497
    %v1570 = vunpack.c.h.b16 %v1497
    %v1571 = vunpack.c.l.b16 %v1498
    %v1572 = vunpack.c.h.b16 %v1498
    %v1573 = vunpack.c.l.b16 %v1499
    %v1574 = vunpack.c.h.b16 %v1499
    %v1575 = vunpack.c.l.b16 %v1500
    %v1576 = vunpack.c.h.b16 %v1500
    %v1577 = vunpack.c.l.b16 %v1501
    %v1578 = vunpack.c.h.b16 %v1501
    %v1579 = vunpack.c.l.b16 %v1502
    %v1580 = vunpack.c.h.b16 %v1502
    %v1581 = vunpack.c.l.b16 %v1503
    %v1582 = vunpack.c.h.b16 %v1503
    %v1583 = vunpack.c.l.b16 %v1504
    %v1584 = vunpack.c.h.b16 %v1504
    %v1585 = vunpack.c.l.b16 %v1505
    %v1586 = vunpack.c.h.b16 %v1505
    %v1587 = vunpack.c.l.b16 %v1506
    %v1588 = vunpack.c.h.b16 %v1506
    %v1589 = vunpack.c.l.b16 %v1507
    %v1590 = vunpack.c.h.b16 %v1507
    %v1591 = vunpack.c.l.b16 %v1508
    %v1592 = vunpack.c.h.b16 %v1508
    %v1593 = vunpack.c.l.b16 %v1509
    %v1594 = vunpack.c.h.b16 %v1509
    %v1595 = vunpack.c.l.b16 %v1510
    %v1596 = vunpack.c.h.b16 %v1510
    %v1597 = vunpack.c.l.b16 %v1511
    %v1598 = vunpack.c.h.b16 %v1511
    %v1599 = vunpack.c.l.b16 %v1512
    %v1600 = vunpack.c.h.b16 %v1512
    %v1601 = vunpack.c.l.b16 %v1513
    %v1602 = vunpack.c.h.b16 %v1513
    %v1603 = vunpack.c.l.b16 %v1514
    %v1604 = vunpack.c.h.b16 %v1514
    %v1605 = vunpack.c.l.b16 %v1515
    %v1606 = vunpack.c.h.b16 %v1515
    %v1607 = vunpack.c.l.b16 %v1516
    %v1608 = vunpack.c.h.b16 %v1516
    %v1609 = vunpack.c.l.b16 %v1517
    %v1610 = vunpack.c.h.b16 %v1517
    %v1611 = vunpack.c.l.b16 %v1518
    %v1612 = vunpack.c.h.b16 %v1518
    %v1613 = vunpack.c.l.b16 %v1519
    %v1614 = vunpack.c.h.b16 %v1519
    %v1615 = vunpack.c.l.b16 %v1520
    %v1616 = vunpack.c.h.b16 %v1520
    %v1617 = vpack.c.b16 %v1557, %v1553
    %v1618 = vpack.c.b16 %v1558, %v1554
    %v1619 = vpack.c.b16 %v1559, %v1555
    %v1620 = vpack.c.b16 %v1560, %v1556
    %v1621 = vpack.c.b16 %v1565, %v1561
    %v1622 = vpack.c.b16 %v1566, %v1562
    %v1623 = vpack.c.b16 %v1567, %v1563
    %v1624 = vpack.c.b16 %v1568, %v1564
    %v1625 = vpack.c.b16 %v1573, %v1569
    %v1626 = vpack.c.b16 %v1574, %v1570
    %v1627 = vpack.c.b16 %v1575, %v1571
    %v1628 = vpack.c.b16 %v1576, %v1572
    %v1629 = vpack.c.b16 %v1581, %v1577
    %v1630 = vpack.c.b16 %v1582, %v1578
    %v1631 = vpack.c.b16 %v1583, %v1579
    %v1632 = vpack.c.b16 %v1584, %v1580
    %v1633 = vpack.c.b16 %v1589, %v1585
    %v1634 = vpack.c.b16 %v1590, %v1586
    %v1635 = vpack.c.b16 %v1591, %v1587
    %v1636 = vpack.c.b16 %v1592, %v1588
    %v1637 = vpack.c.b16 %v1597, %v1593
    %v1638 = vpack.c.b16 %v1598, %v1594
    %v1639 = vpack.c.b16 %v1599, %v1595
    %v1640 = vpack.c.b16 %v1600, %v1596
    %v1641 = vpack.c.b16 %v1605, %v1601
    %v1642 = vpack.c.b16 %v1606, %v1602
    %v1643 = vpack.c.b16 %v1607, %v1603
    %v1644 = vpack.c.b16 %v1608, %v1604
    %v1645 = vpack.c.b16 %v1613, %v1609
    %v1646 = vpack.c.b16 %v1614, %v1610
    %v1647 = vpack.c.b16 %v1615, %v1611
    %v1648 = vpack.c.b16 %v1616, %v1612
    %1681 = vmatprep.subr.bf16.mxu0 %v1618
    %1682 = vmatpush1.bf16.msra.mxu0 %v1617
    %1683 = vmatprep.subr.bf16.mxu0 %v1622
    %1684 = vmatpush1.bf16.msra.mxu0 %v1621
    %1685 = vmatprep.subr.bf16.mxu0 %v1626
    %1686 = vmatpush1.bf16.msra.mxu0 %v1625
    %1687 = vmatprep.subr.bf16.mxu0 %v1630
    %1688 = vmatpush1.bf16.msra.mxu0 %v1629
    %1689 = vmatprep.subr.bf16.mxu0 %v1634
    %1690 = vmatpush1.bf16.msra.mxu0 %v1633
    %1691 = vmatprep.subr.bf16.mxu0 %v1638
    %1692 = vmatpush1.bf16.msra.mxu0 %v1637
    %1693 = vmatprep.subr.bf16.mxu0 %v1642
    %1694 = vmatpush1.bf16.msra.mxu0 %v1641
    %1695 = vmatprep.subr.bf16.mxu0 %v1646
    %1696 = vmatpush1.bf16.msra.mxu0 %v1645
    %1697 = vmatprep.subr.bf16.mxu0 0
    %1698 = vmatpush1.bf16.msra.mxu0 0
    %1699 = vmatprep.subr.bf16.mxu0 0
    %1700 = vmatpush1.bf16.msra.mxu0 0
    %1701 = vmatprep.subr.bf16.mxu0 0
    %1702 = vmatpush1.bf16.msra.mxu0 0
    %1703 = vmatprep.subr.bf16.mxu0 0
    %1704 = vmatpush1.bf16.msra.mxu0 0
    %1705 = vmatprep.subr.bf16.mxu0 0
    %1706 = vmatpush1.bf16.msra.mxu0 0
    %1707 = vmatprep.subr.bf16.mxu0 0
    %1708 = vmatpush1.bf16.msra.mxu0 0
    %1709 = vmatprep.subr.bf16.mxu0 0
    %1710 = vmatpush1.bf16.msra.mxu0 0
    %1711 = vmatprep.subr.bf16.mxu0 0
    %1712 = vmatpush1.bf16.msra.mxu0 0
    %1713 = vmatprep.mubr.bf16.mxu0 0
    %1714 = vmatmul.mubr.bf16.gmra.mrb[0].mxu0 %v1488
    %v1715 = vpop.f32.mrb[0].mxu0
    %v1716 = vadd.f32 0.0, %v1715
    %v1717 = vpop.f32.mrb[0].mxu0
    %v1718 = vadd.f32 0.0, %v1717
    %v1719 = vpop.f32.mrb[0].mxu0
    %v1720 = vpop.f32.mrb[0].mxu0
    %1721 = vdwg.mxu0
    %1722 = vmatprep.subr.bf16.mxu0 %v1620
    %1723 = vmatpush1.bf16.msra.mxu0 %v1619
    %1724 = vmatprep.subr.bf16.mxu0 %v1624
    %1725 = vmatpush1.bf16.msra.mxu0 %v1623
    %1726 = vmatprep.subr.bf16.mxu0 %v1628
    %1727 = vmatpush1.bf16.msra.mxu0 %v1627
    %1728 = vmatprep.subr.bf16.mxu0 %v1632
    %1729 = vmatpush1.bf16.msra.mxu0 %v1631
    %1730 = vmatprep.subr.bf16.mxu0 %v1636
    %1731 = vmatpush1.bf16.msra.mxu0 %v1635
    %1732 = vmatprep.subr.bf16.mxu0 %v1640
    %1733 = vmatpush1.bf16.msra.mxu0 %v1639
    %1734 = vmatprep.subr.bf16.mxu0 %v1644
    %1735 = vmatpush1.bf16.msra.mxu0 %v1643
    %1736 = vmatprep.subr.bf16.mxu0 %v1648
    %1737 = vmatpush1.bf16.msra.mxu0 %v1647
    %1738 = vmatprep.subr.bf16.mxu0 0
    %1739 = vmatpush1.bf16.msra.mxu0 0
    %1740 = vmatprep.subr.bf16.mxu0 0
    %1741 = vmatpush1.bf16.msra.mxu0 0
    %1742 = vmatprep.subr.bf16.mxu0 0
    %1743 = vmatpush1.bf16.msra.mxu0 0
    %1744 = vmatprep.subr.bf16.mxu0 0
    %1745 = vmatpush1.bf16.msra.mxu0 0
    %1746 = vmatprep.subr.bf16.mxu0 0
    %1747 = vmatpush1.bf16.msra.mxu0 0
    %1748 = vmatprep.subr.bf16.mxu0 0
    %1749 = vmatpush1.bf16.msra.mxu0 0
    %1750 = vmatprep.subr.bf16.mxu0 0
    %1751 = vmatpush1.bf16.msra.mxu0 0
    %1752 = vmatprep.subr.bf16.mxu0 0
    %1753 = vmatpush1.bf16.msra.mxu0 0
    %1754 = vmatprep.mubr.bf16.mxu0 0
    %1755 = vmatmul.mubr.bf16.gmra.mrb[0].mxu0 %v1488
    %v1756 = vpop.f32.mrb[0].mxu0
    %v1757 = vadd.f32 0.0, %v1756
    %v1758 = vpop.f32.mrb[0].mxu0
    %v1759 = vadd.f32 0.0, %v1758
    %v1760 = vpop.f32.mrb[0].mxu0
    %v1761 = vpop.f32.mrb[0].mxu0
    %1762 = vdwg.mxu0
    %v1763 = vadd.f32 %v1484, %v1716
    %v1764 = vadd.f32 %v1485, %v1718
    %v1765 = vadd.f32 %v1486, %v1757
    %v1766 = vadd.f32 %v1487, %v1759
    %v1767 = vxor.u32 %v1763, 2147483648
    %v1768 = vxor.u32 %v1764, 2147483648
    %v1769 = vxor.u32 %v1765, 2147483648
    %v1770 = vmul.f32 %v1767, 1.442695
    %v1771 = vpow.pop %v1770
    %v1772 = vmul.f32 %v1768, 1.442695
    %v1773 = vpow.pop %v1772
    %v1774 = vmul.f32 %v1769, 1.442695
    %v1775 = vpow.pop %v1774
    %v1776 = vadd.f32 %v1771, 1.0
    %v1777 = vadd.f32 %v1773, 1.0
    %v1778 = vadd.f32 %v1775, 1.0
    %v1779 = vrcp.pop %v1776
    %v1780 = vmul.f32 1.0, %v1779
    %v1781 = vrcp.pop %v1777
    %v1782 = vmul.f32 1.0, %v1781
    %v1783 = vrcp.pop %v1778
    %v1784 = vmul.f32 1.0, %v1783
    %v1785 = vtanh.pop %v1766
    %v1786 = vmul.f32 %v1782, %v1478
    %v1787 = vmul.f32 %v1780, %v1785
    %v1788 = vadd.f32 %v1786, %v1787
    %v1789 = vtanh.pop %v1788
    %v1790 = vmul.f32 %v1784, %v1789
    %s1791 = scalar_lea.vmem [#allocation2], 24
    %1792 = vst [vmem:[%s1791] sm:$0xff] %v1790
    %s1793 = scalar_lea.vmem [#allocation3], 128
    %v1794 = vld [vmem:[%s1793] sm:$0xff]
    %v1795 = vld [vmem:[%s1793 + $0x8] sm:$0xff]
    %v1796 = vld [vmem:[%s1793 + $0x10] sm:$0xff]
    %v1797 = vld [vmem:[%s1793 + $0x18] sm:$0xff]
    %v1798 = vpack.c.bf16 %v1790, %v1790
    %v1799 = vld [vmem:[#allocation9] sm:$0xff]
    %v1800 = vld [vmem:[#allocation9 + $0x8] sm:$0xff]
    %v1801 = vld [vmem:[#allocation9 + $0x10] sm:$0xff]
    %v1802 = vld [vmem:[#allocation9 + $0x18] sm:$0xff]
    %v1803 = vld [vmem:[#allocation9 + $0x20] sm:$0xff]
    %v1804 = vld [vmem:[#allocation9 + $0x28] sm:$0xff]
    %v1805 = vld [vmem:[#allocation9 + $0x30] sm:$0xff]
    %v1806 = vld [vmem:[#allocation9 + $0x38] sm:$0xff]
    %v1807 = vld [vmem:[#allocation9 + $0x40] sm:$0xff]
    %v1808 = vld [vmem:[#allocation9 + $0x48] sm:$0xff]
    %v1809 = vld [vmem:[#allocation9 + $0x50] sm:$0xff]
    %v1810 = vld [vmem:[#allocation9 + $0x58] sm:$0xff]
    %v1811 = vld [vmem:[#allocation9 + $0x60] sm:$0xff]
    %v1812 = vld [vmem:[#allocation9 + $0x68] sm:$0xff]
    %v1813 = vld [vmem:[#allocation9 + $0x70] sm:$0xff]
    %v1814 = vld [vmem:[#allocation9 + $0x78] sm:$0xff]
    %v1815 = vld [vmem:[#allocation9 + $0x80] sm:$0xff]
    %v1816 = vld [vmem:[#allocation9 + $0x88] sm:$0xff]
    %v1817 = vld [vmem:[#allocation9 + $0x90] sm:$0xff]
    %v1818 = vld [vmem:[#allocation9 + $0x98] sm:$0xff]
    %v1819 = vld [vmem:[#allocation9 + $0xa0] sm:$0xff]
    %v1820 = vld [vmem:[#allocation9 + $0xa8] sm:$0xff]
    %v1821 = vld [vmem:[#allocation9 + $0xb0] sm:$0xff]
    %v1822 = vld [vmem:[#allocation9 + $0xb8] sm:$0xff]
    %v1823 = vld [vmem:[#allocation9 + $0xc0] sm:$0xff]
    %v1824 = vld [vmem:[#allocation9 + $0xc8] sm:$0xff]
    %v1825 = vld [vmem:[#allocation9 + $0xd0] sm:$0xff]
    %v1826 = vld [vmem:[#allocation9 + $0xd8] sm:$0xff]
    %v1827 = vld [vmem:[#allocation9 + $0xe0] sm:$0xff]
    %v1828 = vld [vmem:[#allocation9 + $0xe8] sm:$0xff]
    %v1829 = vld [vmem:[#allocation9 + $0xf0] sm:$0xff]
    %v1830 = vld [vmem:[#allocation9 + $0xf8] sm:$0xff]
    %v1863 = vunpack.c.l.b16 %v1799
    %v1864 = vunpack.c.h.b16 %v1799
    %v1865 = vunpack.c.l.b16 %v1800
    %v1866 = vunpack.c.h.b16 %v1800
    %v1867 = vunpack.c.l.b16 %v1801
    %v1868 = vunpack.c.h.b16 %v1801
    %v1869 = vunpack.c.l.b16 %v1802
    %v1870 = vunpack.c.h.b16 %v1802
    %v1871 = vunpack.c.l.b16 %v1803
    %v1872 = vunpack.c.h.b16 %v1803
    %v1873 = vunpack.c.l.b16 %v1804
    %v1874 = vunpack.c.h.b16 %v1804
    %v1875 = vunpack.c.l.b16 %v1805
    %v1876 = vunpack.c.h.b16 %v1805
    %v1877 = vunpack.c.l.b16 %v1806
    %v1878 = vunpack.c.h.b16 %v1806
    %v1879 = vunpack.c.l.b16 %v1807
    %v1880 = vunpack.c.h.b16 %v1807
    %v1881 = vunpack.c.l.b16 %v1808
    %v1882 = vunpack.c.h.b16 %v1808
    %v1883 = vunpack.c.l.b16 %v1809
    %v1884 = vunpack.c.h.b16 %v1809
    %v1885 = vunpack.c.l.b16 %v1810
    %v1886 = vunpack.c.h.b16 %v1810
    %v1887 = vunpack.c.l.b16 %v1811
    %v1888 = vunpack.c.h.b16 %v1811
    %v1889 = vunpack.c.l.b16 %v1812
    %v1890 = vunpack.c.h.b16 %v1812
    %v1891 = vunpack.c.l.b16 %v1813
    %v1892 = vunpack.c.h.b16 %v1813
    %v1893 = vunpack.c.l.b16 %v1814
    %v1894 = vunpack.c.h.b16 %v1814
    %v1895 = vunpack.c.l.b16 %v1815
    %v1896 = vunpack.c.h.b16 %v1815
    %v1897 = vunpack.c.l.b16 %v1816
    %v1898 = vunpack.c.h.b16 %v1816
    %v1899 = vunpack.c.l.b16 %v1817
    %v1900 = vunpack.c.h.b16 %v1817
    %v1901 = vunpack.c.l.b16 %v1818
    %v1902 = vunpack.c.h.b16 %v1818
    %v1903 = vunpack.c.l.b16 %v1819
    %v1904 = vunpack.c.h.b16 %v1819
    %v1905 = vunpack.c.l.b16 %v1820
    %v1906 = vunpack.c.h.b16 %v1820
    %v1907 = vunpack.c.l.b16 %v1821
    %v1908 = vunpack.c.h.b16 %v1821
    %v1909 = vunpack.c.l.b16 %v1822
    %v1910 = vunpack.c.h.b16 %v1822
    %v1911 = vunpack.c.l.b16 %v1823
    %v1912 = vunpack.c.h.b16 %v1823
    %v1913 = vunpack.c.l.b16 %v1824
    %v1914 = vunpack.c.h.b16 %v1824
    %v1915 = vunpack.c.l.b16 %v1825
    %v1916 = vunpack.c.h.b16 %v1825
    %v1917 = vunpack.c.l.b16 %v1826
    %v1918 = vunpack.c.h.b16 %v1826
    %v1919 = vunpack.c.l.b16 %v1827
    %v1920 = vunpack.c.h.b16 %v1827
    %v1921 = vunpack.c.l.b16 %v1828
    %v1922 = vunpack.c.h.b16 %v1828
    %v1923 = vunpack.c.l.b16 %v1829
    %v1924 = vunpack.c.h.b16 %v1829
    %v1925 = vunpack.c.l.b16 %v1830
    %v1926 = vunpack.c.h.b16 %v1830
    %v1927 = vpack.c.b16 %v1867, %v1863
    %v1928 = vpack.c.b16 %v1868, %v1864
    %v1929 = vpack.c.b16 %v1869, %v1865
    %v1930 = vpack.c.b16 %v1870, %v1866
    %v1931 = vpack.c.b16 %v1875, %v1871
    %v1932 = vpack.c.b16 %v1876, %v1872
    %v1933 = vpack.c.b16 %v1877, %v1873
    %v1934 = vpack.c.b16 %v1878, %v1874
    %v1935 = vpack.c.b16 %v1883, %v1879
    %v1936 = vpack.c.b16 %v1884, %v1880
    %v1937 = vpack.c.b16 %v1885, %v1881
    %v1938 = vpack.c.b16 %v1886, %v1882
    %v1939 = vpack.c.b16 %v1891, %v1887
    %v1940 = vpack.c.b16 %v1892, %v1888
    %v1941 = vpack.c.b16 %v1893, %v1889
    %v1942 = vpack.c.b16 %v1894, %v1890
    %v1943 = vpack.c.b16 %v1899, %v1895
    %v1944 = vpack.c.b16 %v1900, %v1896
    %v1945 = vpack.c.b16 %v1901, %v1897
    %v1946 = vpack.c.b16 %v1902, %v1898
    %v1947 = vpack.c.b16 %v1907, %v1903
    %v1948 = vpack.c.b16 %v1908, %v1904
    %v1949 = vpack.c.b16 %v1909, %v1905
    %v1950 = vpack.c.b16 %v1910, %v1906
    %v1951 = vpack.c.b16 %v1915, %v1911
    %v1952 = vpack.c.b16 %v1916, %v1912
    %v1953 = vpack.c.b16 %v1917, %v1913
    %v1954 = vpack.c.b16 %v1918, %v1914
    %v1955 = vpack.c.b16 %v1923, %v1919
    %v1956 = vpack.c.b16 %v1924, %v1920
    %v1957 = vpack.c.b16 %v1925, %v1921
    %v1958 = vpack.c.b16 %v1926, %v1922
    %1991 = vmatprep.subr.bf16.mxu0 %v1928
    %1992 = vmatpush1.bf16.msra.mxu0 %v1927
    %1993 = vmatprep.subr.bf16.mxu0 %v1932
    %1994 = vmatpush1.bf16.msra.mxu0 %v1931
    %1995 = vmatprep.subr.bf16.mxu0 %v1936
    %1996 = vmatpush1.bf16.msra.mxu0 %v1935
    %1997 = vmatprep.subr.bf16.mxu0 %v1940
    %1998 = vmatpush1.bf16.msra.mxu0 %v1939
    %1999 = vmatprep.subr.bf16.mxu0 %v1944
    %2000 = vmatpush1.bf16.msra.mxu0 %v1943
    %2001 = vmatprep.subr.bf16.mxu0 %v1948
    %2002 = vmatpush1.bf16.msra.mxu0 %v1947
    %2003 = vmatprep.subr.bf16.mxu0 %v1952
    %2004 = vmatpush1.bf16.msra.mxu0 %v1951
    %2005 = vmatprep.subr.bf16.mxu0 %v1956
    %2006 = vmatpush1.bf16.msra.mxu0 %v1955
    %2007 = vmatprep.subr.bf16.mxu0 0
    %2008 = vmatpush1.bf16.msra.mxu0 0
    %2009 = vmatprep.subr.bf16.mxu0 0
    %2010 = vmatpush1.bf16.msra.mxu0 0
    %2011 = vmatprep.subr.bf16.mxu0 0
    %2012 = vmatpush1.bf16.msra.mxu0 0
    %2013 = vmatprep.subr.bf16.mxu0 0
    %2014 = vmatpush1.bf16.msra.mxu0 0
    %2015 = vmatprep.subr.bf16.mxu0 0
    %2016 = vmatpush1.bf16.msra.mxu0 0
    %2017 = vmatprep.subr.bf16.mxu0 0
    %2018 = vmatpush1.bf16.msra.mxu0 0
    %2019 = vmatprep.subr.bf16.mxu0 0
    %2020 = vmatpush1.bf16.msra.mxu0 0
    %2021 = vmatprep.subr.bf16.mxu0 0
    %2022 = vmatpush1.bf16.msra.mxu0 0
    %2023 = vmatprep.mubr.bf16.mxu0 0
    %2024 = vmatmul.mubr.bf16.gmra.mrb[0].mxu0 %v1798
    %v2025 = vpop.f32.mrb[0].mxu0
    %v2026 = vadd.f32 0.0, %v2025
    %v2027 = vpop.f32.mrb[0].mxu0
    %v2028 = vadd.f32 0.0, %v2027
    %v2029 = vpop.f32.mrb[0].mxu0
    %v2030 = vpop.f32.mrb[0].mxu0
    %2031 = vdwg.mxu0
    %2032 = vmatprep.subr.bf16.mxu0 %v1930
    %2033 = vmatpush1.bf16.msra.mxu0 %v1929
    %2034 = vmatprep.subr.bf16.mxu0 %v1934
    %2035 = vmatpush1.bf16.msra.mxu0 %v1933
    %2036 = vmatprep.subr.bf16.mxu0 %v1938
    %2037 = vmatpush1.bf16.msra.mxu0 %v1937
    %2038 = vmatprep.subr.bf16.mxu0 %v1942
    %2039 = vmatpush1.bf16.msra.mxu0 %v1941
    %2040 = vmatprep.subr.bf16.mxu0 %v1946
    %2041 = vmatpush1.bf16.msra.mxu0 %v1945
    %2042 = vmatprep.subr.bf16.mxu0 %v1950
    %2043 = vmatpush1.bf16.msra.mxu0 %v1949
    %2044 = vmatprep.subr.bf16.mxu0 %v1954
    %2045 = vmatpush1.bf16.msra.mxu0 %v1953
    %2046 = vmatprep.subr.bf16.mxu0 %v1958
    %2047 = vmatpush1.bf16.msra.mxu0 %v1957
    %2048 = vmatprep.subr.bf16.mxu0 0
    %2049 = vmatpush1.bf16.msra.mxu0 0
    %2050 = vmatprep.subr.bf16.mxu0 0
    %2051 = vmatpush1.bf16.msra.mxu0 0
    %2052 = vmatprep.subr.bf16.mxu0 0
    %2053 = vmatpush1.bf16.msra.mxu0 0
    %2054 = vmatprep.subr.bf16.mxu0 0
    %2055 = vmatpush1.bf16.msra.mxu0 0
    %2056 = vmatprep.subr.bf16.mxu0 0
    %2057 = vmatpush1.bf16.msra.mxu0 0
    %2058 = vmatprep.subr.bf16.mxu0 0
    %2059 = vmatpush1.bf16.msra.mxu0 0
    %2060 = vmatprep.subr.bf16.mxu0 0
    %2061 = vmatpush1.bf16.msra.mxu0 0
    %2062 = vmatprep.subr.bf16.mxu0 0
    %2063 = vmatpush1.bf16.msra.mxu0 0
    %2064 = vmatprep.mubr.bf16.mxu0 0
    %2065 = vmatmul.mubr.bf16.gmra.mrb[0].mxu0 %v1798
    %v2066 = vpop.f32.mrb[0].mxu0
    %v2067 = vadd.f32 0.0, %v2066
    %v2068 = vpop.f32.mrb[0].mxu0
    %v2069 = vadd.f32 0.0, %v2068
    %v2070 = vpop.f32.mrb[0].mxu0
    %v2071 = vpop.f32.mrb[0].mxu0
    %2072 = vdwg.mxu0
    %v2073 = vadd.f32 %v1794, %v2026
    %v2074 = vadd.f32 %v1795, %v2028
    %v2075 = vadd.f32 %v1796, %v2067
    %v2076 = vadd.f32 %v1797, %v2069
    %v2077 = vxor.u32 %v2073, 2147483648
    %v2078 = vxor.u32 %v2074, 2147483648
    %v2079 = vxor.u32 %v2075, 2147483648
    %v2080 = vmul.f32 %v2077, 1.442695
    %v2081 = vpow.pop %v2080
    %v2082 = vmul.f32 %v2078, 1.442695
    %v2083 = vpow.pop %v2082
    %v2084 = vmul.f32 %v2079, 1.442695
    %v2085 = vpow.pop %v2084
    %v2086 = vadd.f32 %v2081, 1.0
    %v2087 = vadd.f32 %v2083, 1.0
    %v2088 = vadd.f32 %v2085, 1.0
    %v2089 = vrcp.pop %v2086
    %v2090 = vmul.f32 1.0, %v2089
    %v2091 = vrcp.pop %v2087
    %v2092 = vmul.f32 1.0, %v2091
    %v2093 = vrcp.pop %v2088
    %v2094 = vmul.f32 1.0, %v2093
    %v2095 = vtanh.pop %v2076
    %v2096 = vmul.f32 %v2092, %v1788
    %v2097 = vmul.f32 %v2090, %v2095
    %v2098 = vadd.f32 %v2096, %v2097
    %v2099 = vtanh.pop %v2098
    %v2100 = vmul.f32 %v2094, %v2099
    %s2101 = scalar_lea.vmem [#allocation2], 32
    %2102 = vst [vmem:[%s2101] sm:$0xff] %v2100
    %s2103 = scalar_lea.vmem [#allocation3], 160
    %v2104 = vld [vmem:[%s2103] sm:$0xff]
    %v2105 = vld [vmem:[%s2103 + $0x8] sm:$0xff]
    %v2106 = vld [vmem:[%s2103 + $0x10] sm:$0xff]
    %v2107 = vld [vmem:[%s2103 + $0x18] sm:$0xff]
    %v2108 = vpack.c.bf16 %v2100, %v2100
    %v2109 = vld [vmem:[#allocation9] sm:$0xff]
    %v2110 = vld [vmem:[#allocation9 + $0x8] sm:$0xff]
    %v2111 = vld [vmem:[#allocation9 + $0x10] sm:$0xff]
    %v2112 = vld [vmem:[#allocation9 + $0x18] sm:$0xff]
    %v2113 = vld [vmem:[#allocation9 + $0x20] sm:$0xff]
    %v2114 = vld [vmem:[#allocation9 + $0x28] sm:$0xff]
    %v2115 = vld [vmem:[#allocation9 + $0x30] sm:$0xff]
    %v2116 = vld [vmem:[#allocation9 + $0x38] sm:$0xff]
    %v2117 = vld [vmem:[#allocation9 + $0x40] sm:$0xff]
    %v2118 = vld [vmem:[#allocation9 + $0x48] sm:$0xff]
    %v2119 = vld [vmem:[#allocation9 + $0x50] sm:$0xff]
    %v2120 = vld [vmem:[#allocation9 + $0x58] sm:$0xff]
    %v2121 = vld [vmem:[#allocation9 + $0x60] sm:$0xff]
    %v2122 = vld [vmem:[#allocation9 + $0x68] sm:$0xff]
    %v2123 = vld [vmem:[#allocation9 + $0x70] sm:$0xff]
    %v2124 = vld [vmem:[#allocation9 + $0x78] sm:$0xff]
    %v2125 = vld [vmem:[#allocation9 + $0x80] sm:$0xff]
    %v2126 = vld [vmem:[#allocation9 + $0x88] sm:$0xff]
    %v2127 = vld [vmem:[#allocation9 + $0x90] sm:$0xff]
    %v2128 = vld [vmem:[#allocation9 + $0x98] sm:$0xff]
    %v2129 = vld [vmem:[#allocation9 + $0xa0] sm:$0xff]
    %v2130 = vld [vmem:[#allocation9 + $0xa8] sm:$0xff]
    %v2131 = vld [vmem:[#allocation9 + $0xb0] sm:$0xff]
    %v2132 = vld [vmem:[#allocation9 + $0xb8] sm:$0xff]
    %v2133 = vld [vmem:[#allocation9 + $0xc0] sm:$0xff]
    %v2134 = vld [vmem:[#allocation9 + $0xc8] sm:$0xff]
    %v2135 = vld [vmem:[#allocation9 + $0xd0] sm:$0xff]
    %v2136 = vld [vmem:[#allocation9 + $0xd8] sm:$0xff]
    %v2137 = vld [vmem:[#allocation9 + $0xe0] sm:$0xff]
    %v2138 = vld [vmem:[#allocation9 + $0xe8] sm:$0xff]
    %v2139 = vld [vmem:[#allocation9 + $0xf0] sm:$0xff]
    %v2140 = vld [vmem:[#allocation9 + $0xf8] sm:$0xff]
    %v2173 = vunpack.c.l.b16 %v2109
    %v2174 = vunpack.c.h.b16 %v2109
    %v2175 = vunpack.c.l.b16 %v2110
    %v2176 = vunpack.c.h.b16 %v2110
    %v2177 = vunpack.c.l.b16 %v2111
    %v2178 = vunpack.c.h.b16 %v2111
    %v2179 = vunpack.c.l.b16 %v2112
    %v2180 = vunpack.c.h.b16 %v2112
    %v2181 = vunpack.c.l.b16 %v2113
    %v2182 = vunpack.c.h.b16 %v2113
    %v2183 = vunpack.c.l.b16 %v2114
    %v2184 = vunpack.c.h.b16 %v2114
    %v2185 = vunpack.c.l.b16 %v2115
    %v2186 = vunpack.c.h.b16 %v2115
    %v2187 = vunpack.c.l.b16 %v2116
    %v2188 = vunpack.c.h.b16 %v2116
    %v2189 = vunpack.c.l.b16 %v2117
    %v2190 = vunpack.c.h.b16 %v2117
    %v2191 = vunpack.c.l.b16 %v2118
    %v2192 = vunpack.c.h.b16 %v2118
    %v2193 = vunpack.c.l.b16 %v2119
    %v2194 = vunpack.c.h.b16 %v2119
    %v2195 = vunpack.c.l.b16 %v2120
    %v2196 = vunpack.c.h.b16 %v2120
    %v2197 = vunpack.c.l.b16 %v2121
    %v2198 = vunpack.c.h.b16 %v2121
    %v2199 = vunpack.c.l.b16 %v2122
    %v2200 = vunpack.c.h.b16 %v2122
    %v2201 = vunpack.c.l.b16 %v2123
    %v2202 = vunpack.c.h.b16 %v2123
    %v2203 = vunpack.c.l.b16 %v2124
    %v2204 = vunpack.c.h.b16 %v2124
    %v2205 = vunpack.c.l.b16 %v2125
    %v2206 = vunpack.c.h.b16 %v2125
    %v2207 = vunpack.c.l.b16 %v2126
    %v2208 = vunpack.c.h.b16 %v2126
    %v2209 = vunpack.c.l.b16 %v2127
    %v2210 = vunpack.c.h.b16 %v2127
    %v2211 = vunpack.c.l.b16 %v2128
    %v2212 = vunpack.c.h.b16 %v2128
    %v2213 = vunpack.c.l.b16 %v2129
    %v2214 = vunpack.c.h.b16 %v2129
    %v2215 = vunpack.c.l.b16 %v2130
    %v2216 = vunpack.c.h.b16 %v2130
    %v2217 = vunpack.c.l.b16 %v2131
    %v2218 = vunpack.c.h.b16 %v2131
    %v2219 = vunpack.c.l.b16 %v2132
    %v2220 = vunpack.c.h.b16 %v2132
    %v2221 = vunpack.c.l.b16 %v2133
    %v2222 = vunpack.c.h.b16 %v2133
    %v2223 = vunpack.c.l.b16 %v2134
    %v2224 = vunpack.c.h.b16 %v2134
    %v2225 = vunpack.c.l.b16 %v2135
    %v2226 = vunpack.c.h.b16 %v2135
    %v2227 = vunpack.c.l.b16 %v2136
    %v2228 = vunpack.c.h.b16 %v2136
    %v2229 = vunpack.c.l.b16 %v2137
    %v2230 = vunpack.c.h.b16 %v2137
    %v2231 = vunpack.c.l.b16 %v2138
    %v2232 = vunpack.c.h.b16 %v2138
    %v2233 = vunpack.c.l.b16 %v2139
    %v2234 = vunpack.c.h.b16 %v2139
    %v2235 = vunpack.c.l.b16 %v2140
    %v2236 = vunpack.c.h.b16 %v2140
    %v2237 = vpack.c.b16 %v2177, %v2173
    %v2238 = vpack.c.b16 %v2178, %v2174
    %v2239 = vpack.c.b16 %v2179, %v2175
    %v2240 = vpack.c.b16 %v2180, %v2176
    %v2241 = vpack.c.b16 %v2185, %v2181
    %v2242 = vpack.c.b16 %v2186, %v2182
    %v2243 = vpack.c.b16 %v2187, %v2183
    %v2244 = vpack.c.b16 %v2188, %v2184
    %v2245 = vpack.c.b16 %v2193, %v2189
    %v2246 = vpack.c.b16 %v2194, %v2190
    %v2247 = vpack.c.b16 %v2195, %v2191
    %v2248 = vpack.c.b16 %v2196, %v2192
    %v2249 = vpack.c.b16 %v2201, %v2197
    %v2250 = vpack.c.b16 %v2202, %v2198
    %v2251 = vpack.c.b16 %v2203, %v2199
    %v2252 = vpack.c.b16 %v2204, %v2200
    %v2253 = vpack.c.b16 %v2209, %v2205
    %v2254 = vpack.c.b16 %v2210, %v2206
    %v2255 = vpack.c.b16 %v2211, %v2207
    %v2256 = vpack.c.b16 %v2212, %v2208
    %v2257 = vpack.c.b16 %v2217, %v2213
    %v2258 = vpack.c.b16 %v2218, %v2214
    %v2259 = vpack.c.b16 %v2219, %v2215
    %v2260 = vpack.c.b16 %v2220, %v2216
    %v2261 = vpack.c.b16 %v2225, %v2221
    %v2262 = vpack.c.b16 %v2226, %v2222
    %v2263 = vpack.c.b16 %v2227, %v2223
    %v2264 = vpack.c.b16 %v2228, %v2224
    %v2265 = vpack.c.b16 %v2233, %v2229
    %v2266 = vpack.c.b16 %v2234, %v2230
    %v2267 = vpack.c.b16 %v2235, %v2231
    %v2268 = vpack.c.b16 %v2236, %v2232
    %2301 = vmatprep.subr.bf16.mxu0 %v2238
    %2302 = vmatpush1.bf16.msra.mxu0 %v2237
    %2303 = vmatprep.subr.bf16.mxu0 %v2242
    %2304 = vmatpush1.bf16.msra.mxu0 %v2241
    %2305 = vmatprep.subr.bf16.mxu0 %v2246
    %2306 = vmatpush1.bf16.msra.mxu0 %v2245
    %2307 = vmatprep.subr.bf16.mxu0 %v2250
    %2308 = vmatpush1.bf16.msra.mxu0 %v2249
    %2309 = vmatprep.subr.bf16.mxu0 %v2254
    %2310 = vmatpush1.bf16.msra.mxu0 %v2253
    %2311 = vmatprep.subr.bf16.mxu0 %v2258
    %2312 = vmatpush1.bf16.msra.mxu0 %v2257
    %2313 = vmatprep.subr.bf16.mxu0 %v2262
    %2314 = vmatpush1.bf16.msra.mxu0 %v2261
    %2315 = vmatprep.subr.bf16.mxu0 %v2266
    %2316 = vmatpush1.bf16.msra.mxu0 %v2265
    %2317 = vmatprep.subr.bf16.mxu0 0
    %2318 = vmatpush1.bf16.msra.mxu0 0
    %2319 = vmatprep.subr.bf16.mxu0 0
    %2320 = vmatpush1.bf16.msra.mxu0 0
    %2321 = vmatprep.subr.bf16.mxu0 0
    %2322 = vmatpush1.bf16.msra.mxu0 0
    %2323 = vmatprep.subr.bf16.mxu0 0
    %2324 = vmatpush1.bf16.msra.mxu0 0
    %2325 = vmatprep.subr.bf16.mxu0 0
    %2326 = vmatpush1.bf16.msra.mxu0 0
    %2327 = vmatprep.subr.bf16.mxu0 0
    %2328 = vmatpush1.bf16.msra.mxu0 0
    %2329 = vmatprep.subr.bf16.mxu0 0
    %2330 = vmatpush1.bf16.msra.mxu0 0
    %2331 = vmatprep.subr.bf16.mxu0 0
    %2332 = vmatpush1.bf16.msra.mxu0 0
    %2333 = vmatprep.mubr.bf16.mxu0 0
    %2334 = vmatmul.mubr.bf16.gmra.mrb[0].mxu0 %v2108
    %v2335 = vpop.f32.mrb[0].mxu0
    %v2336 = vadd.f32 0.0, %v2335
    %v2337 = vpop.f32.mrb[0].mxu0
    %v2338 = vadd.f32 0.0, %v2337
    %v2339 = vpop.f32.mrb[0].mxu0
    %v2340 = vpop.f32.mrb[0].mxu0
    %2341 = vdwg.mxu0
    %2342 = vmatprep.subr.bf16.mxu0 %v2240
    %2343 = vmatpush1.bf16.msra.mxu0 %v2239
    %2344 = vmatprep.subr.bf16.mxu0 %v2244
    %2345 = vmatpush1.bf16.msra.mxu0 %v2243
    %2346 = vmatprep.subr.bf16.mxu0 %v2248
    %2347 = vmatpush1.bf16.msra.mxu0 %v2247
    %2348 = vmatprep.subr.bf16.mxu0 %v2252
    %2349 = vmatpush1.bf16.msra.mxu0 %v2251
    %2350 = vmatprep.subr.bf16.mxu0 %v2256
    %2351 = vmatpush1.bf16.msra.mxu0 %v2255
    %2352 = vmatprep.subr.bf16.mxu0 %v2260
    %2353 = vmatpush1.bf16.msra.mxu0 %v2259
    %2354 = vmatprep.subr.bf16.mxu0 %v2264
    %2355 = vmatpush1.bf16.msra.mxu0 %v2263
    %2356 = vmatprep.subr.bf16.mxu0 %v2268
    %2357 = vmatpush1.bf16.msra.mxu0 %v2267
    %2358 = vmatprep.subr.bf16.mxu0 0
    %2359 = vmatpush1.bf16.msra.mxu0 0
    %2360 = vmatprep.subr.bf16.mxu0 0
    %2361 = vmatpush1.bf16.msra.mxu0 0
    %2362 = vmatprep.subr.bf16.mxu0 0
    %2363 = vmatpush1.bf16.msra.mxu0 0
    %2364 = vmatprep.subr.bf16.mxu0 0
    %2365 = vmatpush1.bf16.msra.mxu0 0
    %2366 = vmatprep.subr.bf16.mxu0 0
    %2367 = vmatpush1.bf16.msra.mxu0 0
    %2368 = vmatprep.subr.bf16.mxu0 0
    %2369 = vmatpush1.bf16.msra.mxu0 0
    %2370 = vmatprep.subr.bf16.mxu0 0
    %2371 = vmatpush1.bf16.msra.mxu0 0
    %2372 = vmatprep.subr.bf16.mxu0 0
    %2373 = vmatpush1.bf16.msra.mxu0 0
    %2374 = vmatprep.mubr.bf16.mxu0 0
    %2375 = vmatmul.mubr.bf16.gmra.mrb[0].mxu0 %v2108
    %v2376 = vpop.f32.mrb[0].mxu0
    %v2377 = vadd.f32 0.0, %v2376
    %v2378 = vpop.f32.mrb[0].mxu0
    %v2379 = vadd.f32 0.0, %v2378
    %v2380 = vpop.f32.mrb[0].mxu0
    %v2381 = vpop.f32.mrb[0].mxu0
    %2382 = vdwg.mxu0
    %v2383 = vadd.f32 %v2104, %v2336
    %v2384 = vadd.f32 %v2105, %v2338
    %v2385 = vadd.f32 %v2106, %v2377
    %v2386 = vadd.f32 %v2107, %v2379
    %v2387 = vxor.u32 %v2383, 2147483648
    %v2388 = vxor.u32 %v2384, 2147483648
    %v2389 = vxor.u32 %v2385, 2147483648
    %v2390 = vmul.f32 %v2387, 1.442695
    %v2391 = vpow.pop %v2390
    %v2392 = vmul.f32 %v2388, 1.442695
    %v2393 = vpow.pop %v2392
    %v2394 = vmul.f32 %v2389, 1.442695
    %v2395 = vpow.pop %v2394
    %v2396 = vadd.f32 %v2391, 1.0
    %v2397 = vadd.f32 %v2393, 1.0
    %v2398 = vadd.f32 %v2395, 1.0
    %v2399 = vrcp.pop %v2396
    %v2400 = vmul.f32 1.0, %v2399
    %v2401 = vrcp.pop %v2397
    %v2402 = vmul.f32 1.0, %v2401
    %v2403 = vrcp.pop %v2398
    %v2404 = vmul.f32 1.0, %v2403
    %v2405 = vtanh.pop %v2386
    %v2406 = vmul.f32 %v2402, %v2098
    %v2407 = vmul.f32 %v2400, %v2405
    %v2408 = vadd.f32 %v2406, %v2407
    %v2409 = vtanh.pop %v2408
    %v2410 = vmul.f32 %v2404, %v2409
    %s2411 = scalar_lea.vmem [#allocation2], 40
    %2412 = vst [vmem:[%s2411] sm:$0xff] %v2410
    %s2413 = scalar_lea.vmem [#allocation3], 192
    %v2414 = vld [vmem:[%s2413] sm:$0xff]
    %v2415 = vld [vmem:[%s2413 + $0x8] sm:$0xff]
    %v2416 = vld [vmem:[%s2413 + $0x10] sm:$0xff]
    %v2417 = vld [vmem:[%s2413 + $0x18] sm:$0xff]
    %v2418 = vpack.c.bf16 %v2410, %v2410
    %v2419 = vld [vmem:[#allocation9] sm:$0xff]
    %v2420 = vld [vmem:[#allocation9 + $0x8] sm:$0xff]
    %v2421 = vld [vmem:[#allocation9 + $0x10] sm:$0xff]
    %v2422 = vld [vmem:[#allocation9 + $0x18] sm:$0xff]
    %v2423 = vld [vmem:[#allocation9 + $0x20] sm:$0xff]
    %v2424 = vld [vmem:[#allocation9 + $0x28] sm:$0xff]
    %v2425 = vld [vmem:[#allocation9 + $0x30] sm:$0xff]
    %v2426 = vld [vmem:[#allocation9 + $0x38] sm:$0xff]
    %v2427 = vld [vmem:[#allocation9 + $0x40] sm:$0xff]
    %v2428 = vld [vmem:[#allocation9 + $0x48] sm:$0xff]
    %v2429 = vld [vmem:[#allocation9 + $0x50] sm:$0xff]
    %v2430 = vld [vmem:[#allocation9 + $0x58] sm:$0xff]
    %v2431 = vld [vmem:[#allocation9 + $0x60] sm:$0xff]
    %v2432 = vld [vmem:[#allocation9 + $0x68] sm:$0xff]
    %v2433 = vld [vmem:[#allocation9 + $0x70] sm:$0xff]
    %v2434 = vld [vmem:[#allocation9 + $0x78] sm:$0xff]
    %v2435 = vld [vmem:[#allocation9 + $0x80] sm:$0xff]
    %v2436 = vld [vmem:[#allocation9 + $0x88] sm:$0xff]
    %v2437 = vld [vmem:[#allocation9 + $0x90] sm:$0xff]
    %v2438 = vld [vmem:[#allocation9 + $0x98] sm:$0xff]
    %v2439 = vld [vmem:[#allocation9 + $0xa0] sm:$0xff]
    %v2440 = vld [vmem:[#allocation9 + $0xa8] sm:$0xff]
    %v2441 = vld [vmem:[#allocation9 + $0xb0] sm:$0xff]
    %v2442 = vld [vmem:[#allocation9 + $0xb8] sm:$0xff]
    %v2443 = vld [vmem:[#allocation9 + $0xc0] sm:$0xff]
    %v2444 = vld [vmem:[#allocation9 + $0xc8] sm:$0xff]
    %v2445 = vld [vmem:[#allocation9 + $0xd0] sm:$0xff]
    %v2446 = vld [vmem:[#allocation9 + $0xd8] sm:$0xff]
    %v2447 = vld [vmem:[#allocation9 + $0xe0] sm:$0xff]
    %v2448 = vld [vmem:[#allocation9 + $0xe8] sm:$0xff]
    %v2449 = vld [vmem:[#allocation9 + $0xf0] sm:$0xff]
    %v2450 = vld [vmem:[#allocation9 + $0xf8] sm:$0xff]
    %v2483 = vunpack.c.l.b16 %v2419
    %v2484 = vunpack.c.h.b16 %v2419
    %v2485 = vunpack.c.l.b16 %v2420
    %v2486 = vunpack.c.h.b16 %v2420
    %v2487 = vunpack.c.l.b16 %v2421
    %v2488 = vunpack.c.h.b16 %v2421
    %v2489 = vunpack.c.l.b16 %v2422
    %v2490 = vunpack.c.h.b16 %v2422
    %v2491 = vunpack.c.l.b16 %v2423
    %v2492 = vunpack.c.h.b16 %v2423
    %v2493 = vunpack.c.l.b16 %v2424
    %v2494 = vunpack.c.h.b16 %v2424
    %v2495 = vunpack.c.l.b16 %v2425
    %v2496 = vunpack.c.h.b16 %v2425
    %v2497 = vunpack.c.l.b16 %v2426
    %v2498 = vunpack.c.h.b16 %v2426
    %v2499 = vunpack.c.l.b16 %v2427
    %v2500 = vunpack.c.h.b16 %v2427
    %v2501 = vunpack.c.l.b16 %v2428
    %v2502 = vunpack.c.h.b16 %v2428
    %v2503 = vunpack.c.l.b16 %v2429
    %v2504 = vunpack.c.h.b16 %v2429
    %v2505 = vunpack.c.l.b16 %v2430
    %v2506 = vunpack.c.h.b16 %v2430
    %v2507 = vunpack.c.l.b16 %v2431
    %v2508 = vunpack.c.h.b16 %v2431
    %v2509 = vunpack.c.l.b16 %v2432
    %v2510 = vunpack.c.h.b16 %v2432
    %v2511 = vunpack.c.l.b16 %v2433
    %v2512 = vunpack.c.h.b16 %v2433
    %v2513 = vunpack.c.l.b16 %v2434
    %v2514 = vunpack.c.h.b16 %v2434
    %v2515 = vunpack.c.l.b16 %v2435
    %v2516 = vunpack.c.h.b16 %v2435
    %v2517 = vunpack.c.l.b16 %v2436
    %v2518 = vunpack.c.h.b16 %v2436
    %v2519 = vunpack.c.l.b16 %v2437
    %v2520 = vunpack.c.h.b16 %v2437
    %v2521 = vunpack.c.l.b16 %v2438
    %v2522 = vunpack.c.h.b16 %v2438
    %v2523 = vunpack.c.l.b16 %v2439
    %v2524 = vunpack.c.h.b16 %v2439
    %v2525 = vunpack.c.l.b16 %v2440
    %v2526 = vunpack.c.h.b16 %v2440
    %v2527 = vunpack.c.l.b16 %v2441
    %v2528 = vunpack.c.h.b16 %v2441
    %v2529 = vunpack.c.l.b16 %v2442
    %v2530 = vunpack.c.h.b16 %v2442
    %v2531 = vunpack.c.l.b16 %v2443
    %v2532 = vunpack.c.h.b16 %v2443
    %v2533 = vunpack.c.l.b16 %v2444
    %v2534 = vunpack.c.h.b16 %v2444
    %v2535 = vunpack.c.l.b16 %v2445
    %v2536 = vunpack.c.h.b16 %v2445
    %v2537 = vunpack.c.l.b16 %v2446
    %v2538 = vunpack.c.h.b16 %v2446
    %v2539 = vunpack.c.l.b16 %v2447
    %v2540 = vunpack.c.h.b16 %v2447
    %v2541 = vunpack.c.l.b16 %v2448
    %v2542 = vunpack.c.h.b16 %v2448
    %v2543 = vunpack.c.l.b16 %v2449
    %v2544 = vunpack.c.h.b16 %v2449
    %v2545 = vunpack.c.l.b16 %v2450
    %v2546 = vunpack.c.h.b16 %v2450
    %v2547 = vpack.c.b16 %v2487, %v2483
    %v2548 = vpack.c.b16 %v2488, %v2484
    %v2549 = vpack.c.b16 %v2489, %v2485
    %v2550 = vpack.c.b16 %v2490, %v2486
    %v2551 = vpack.c.b16 %v2495, %v2491
    %v2552 = vpack.c.b16 %v2496, %v2492
    %v2553 = vpack.c.b16 %v2497, %v2493
    %v2554 = vpack.c.b16 %v2498, %v2494
    %v2555 = vpack.c.b16 %v2503, %v2499
    %v2556 = vpack.c.b16 %v2504, %v2500
    %v2557 = vpack.c.b16 %v2505, %v2501
    %v2558 = vpack.c.b16 %v2506, %v2502
    %v2559 = vpack.c.b16 %v2511, %v2507
    %v2560 = vpack.c.b16 %v2512, %v2508
    %v2561 = vpack.c.b16 %v2513, %v2509
    %v2562 = vpack.c.b16 %v2514, %v2510
    %v2563 = vpack.c.b16 %v2519, %v2515
    %v2564 = vpack.c.b16 %v2520, %v2516
    %v2565 = vpack.c.b16 %v2521, %v2517
    %v2566 = vpack.c.b16 %v2522, %v2518
    %v2567 = vpack.c.b16 %v2527, %v2523
    %v2568 = vpack.c.b16 %v2528, %v2524
    %v2569 = vpack.c.b16 %v2529, %v2525
    %v2570 = vpack.c.b16 %v2530, %v2526
    %v2571 = vpack.c.b16 %v2535, %v2531
    %v2572 = vpack.c.b16 %v2536, %v2532
    %v2573 = vpack.c.b16 %v2537, %v2533
    %v2574 = vpack.c.b16 %v2538, %v2534
    %v2575 = vpack.c.b16 %v2543, %v2539
    %v2576 = vpack.c.b16 %v2544, %v2540
    %v2577 = vpack.c.b16 %v2545, %v2541
    %v2578 = vpack.c.b16 %v2546, %v2542
    %2611 = vmatprep.subr.bf16.mxu0 %v2548
    %2612 = vmatpush1.bf16.msra.mxu0 %v2547
    %2613 = vmatprep.subr.bf16.mxu0 %v2552
    %2614 = vmatpush1.bf16.msra.mxu0 %v2551
    %2615 = vmatprep.subr.bf16.mxu0 %v2556
    %2616 = vmatpush1.bf16.msra.mxu0 %v2555
    %2617 = vmatprep.subr.bf16.mxu0 %v2560
    %2618 = vmatpush1.bf16.msra.mxu0 %v2559
    %2619 = vmatprep.subr.bf16.mxu0 %v2564
    %2620 = vmatpush1.bf16.msra.mxu0 %v2563
    %2621 = vmatprep.subr.bf16.mxu0 %v2568
    %2622 = vmatpush1.bf16.msra.mxu0 %v2567
    %2623 = vmatprep.subr.bf16.mxu0 %v2572
    %2624 = vmatpush1.bf16.msra.mxu0 %v2571
    %2625 = vmatprep.subr.bf16.mxu0 %v2576
    %2626 = vmatpush1.bf16.msra.mxu0 %v2575
    %2627 = vmatprep.subr.bf16.mxu0 0
    %2628 = vmatpush1.bf16.msra.mxu0 0
    %2629 = vmatprep.subr.bf16.mxu0 0
    %2630 = vmatpush1.bf16.msra.mxu0 0
    %2631 = vmatprep.subr.bf16.mxu0 0
    %2632 = vmatpush1.bf16.msra.mxu0 0
    %2633 = vmatprep.subr.bf16.mxu0 0
    %2634 = vmatpush1.bf16.msra.mxu0 0
    %2635 = vmatprep.subr.bf16.mxu0 0
    %2636 = vmatpush1.bf16.msra.mxu0 0
    %2637 = vmatprep.subr.bf16.mxu0 0
    %2638 = vmatpush1.bf16.msra.mxu0 0
    %2639 = vmatprep.subr.bf16.mxu0 0
    %2640 = vmatpush1.bf16.msra.mxu0 0
    %2641 = vmatprep.subr.bf16.mxu0 0
    %2642 = vmatpush1.bf16.msra.mxu0 0
    %2643 = vmatprep.mubr.bf16.mxu0 0
    %2644 = vmatmul.mubr.bf16.gmra.mrb[0].mxu0 %v2418
    %v2645 = vpop.f32.mrb[0].mxu0
    %v2646 = vadd.f32 0.0, %v2645
    %v2647 = vpop.f32.mrb[0].mxu0
    %v2648 = vadd.f32 0.0, %v2647
    %v2649 = vpop.f32.mrb[0].mxu0
    %v2650 = vpop.f32.mrb[0].mxu0
    %2651 = vdwg.mxu0
    %2652 = vmatprep.subr.bf16.mxu0 %v2550
    %2653 = vmatpush1.bf16.msra.mxu0 %v2549
    %2654 = vmatprep.subr.bf16.mxu0 %v2554
    %2655 = vmatpush1.bf16.msra.mxu0 %v2553
    %2656 = vmatprep.subr.bf16.mxu0 %v2558
    %2657 = vmatpush1.bf16.msra.mxu0 %v2557
    %2658 = vmatprep.subr.bf16.mxu0 %v2562
    %2659 = vmatpush1.bf16.msra.mxu0 %v2561
    %2660 = vmatprep.subr.bf16.mxu0 %v2566
    %2661 = vmatpush1.bf16.msra.mxu0 %v2565
    %2662 = vmatprep.subr.bf16.mxu0 %v2570
    %2663 = vmatpush1.bf16.msra.mxu0 %v2569
    %2664 = vmatprep.subr.bf16.mxu0 %v2574
    %2665 = vmatpush1.bf16.msra.mxu0 %v2573
    %2666 = vmatprep.subr.bf16.mxu0 %v2578
    %2667 = vmatpush1.bf16.msra.mxu0 %v2577
    %2668 = vmatprep.subr.bf16.mxu0 0
    %2669 = vmatpush1.bf16.msra.mxu0 0
    %2670 = vmatprep.subr.bf16.mxu0 0
    %2671 = vmatpush1.bf16.msra.mxu0 0
    %2672 = vmatprep.subr.bf16.mxu0 0
    %2673 = vmatpush1.bf16.msra.mxu0 0
    %2674 = vmatprep.subr.bf16.mxu0 0
    %2675 = vmatpush1.bf16.msra.mxu0 0
    %2676 = vmatprep.subr.bf16.mxu0 0
    %2677 = vmatpush1.bf16.msra.mxu0 0
    %2678 = vmatprep.subr.bf16.mxu0 0
    %2679 = vmatpush1.bf16.msra.mxu0 0
    %2680 = vmatprep.subr.bf16.mxu0 0
    %2681 = vmatpush1.bf16.msra.mxu0 0
    %2682 = vmatprep.subr.bf16.mxu0 0
    %2683 = vmatpush1.bf16.msra.mxu0 0
    %2684 = vmatprep.mubr.bf16.mxu0 0
    %2685 = vmatmul.mubr.bf16.gmra.mrb[0].mxu0 %v2418
    %v2686 = vpop.f32.mrb[0].mxu0
    %v2687 = vadd.f32 0.0, %v2686
    %v2688 = vpop.f32.mrb[0].mxu0
    %v2689 = vadd.f32 0.0, %v2688
    %v2690 = vpop.f32.mrb[0].mxu0
    %v2691 = vpop.f32.mrb[0].mxu0
    %2692 = vdwg.mxu0
    %v2693 = vadd.f32 %v2414, %v2646
    %v2694 = vadd.f32 %v2415, %v2648
    %v2695 = vadd.f32 %v2416, %v2687
    %v2696 = vadd.f32 %v2417, %v2689
    %v2697 = vxor.u32 %v2693, 2147483648
    %v2698 = vxor.u32 %v2694, 2147483648
    %v2699 = vxor.u32 %v2695, 2147483648
    %v2700 = vmul.f32 %v2697, 1.442695
    %v2701 = vpow.pop %v2700
    %v2702 = vmul.f32 %v2698, 1.442695
    %v2703 = vpow.pop %v2702
    %v2704 = vmul.f32 %v2699, 1.442695
    %v2705 = vpow.pop %v2704
    %v2706 = vadd.f32 %v2701, 1.0
    %v2707 = vadd.f32 %v2703, 1.0
    %v2708 = vadd.f32 %v2705, 1.0
    %v2709 = vrcp.pop %v2706
    %v2710 = vmul.f32 1.0, %v2709
    %v2711 = vrcp.pop %v2707
    %v2712 = vmul.f32 1.0, %v2711
    %v2713 = vrcp.pop %v2708
    %v2714 = vmul.f32 1.0, %v2713
    %v2715 = vtanh.pop %v2696
    %v2716 = vmul.f32 %v2712, %v2408
    %v2717 = vmul.f32 %v2710, %v2715
    %v2718 = vadd.f32 %v2716, %v2717
    %v2719 = vtanh.pop %v2718
    %v2720 = vmul.f32 %v2714, %v2719
    %s2721 = scalar_lea.vmem [#allocation2], 48
    %2722 = vst [vmem:[%s2721] sm:$0xff] %v2720
    %s2723 = scalar_lea.vmem [#allocation3], 224
    %v2724 = vld [vmem:[%s2723] sm:$0xff]
    %v2725 = vld [vmem:[%s2723 + $0x8] sm:$0xff]
    %v2726 = vld [vmem:[%s2723 + $0x10] sm:$0xff]
    %v2727 = vld [vmem:[%s2723 + $0x18] sm:$0xff]
    %v2728 = vpack.c.bf16 %v2720, %v2720
    %v2729 = vld [vmem:[#allocation9] sm:$0xff]
    %v2730 = vld [vmem:[#allocation9 + $0x8] sm:$0xff]
    %v2731 = vld [vmem:[#allocation9 + $0x10] sm:$0xff]
    %v2732 = vld [vmem:[#allocation9 + $0x18] sm:$0xff]
    %v2733 = vld [vmem:[#allocation9 + $0x20] sm:$0xff]
    %v2734 = vld [vmem:[#allocation9 + $0x28] sm:$0xff]
    %v2735 = vld [vmem:[#allocation9 + $0x30] sm:$0xff]
    %v2736 = vld [vmem:[#allocation9 + $0x38] sm:$0xff]
    %v2737 = vld [vmem:[#allocation9 + $0x40] sm:$0xff]
    %v2738 = vld [vmem:[#allocation9 + $0x48] sm:$0xff]
    %v2739 = vld [vmem:[#allocation9 + $0x50] sm:$0xff]
    %v2740 = vld [vmem:[#allocation9 + $0x58] sm:$0xff]
    %v2741 = vld [vmem:[#allocation9 + $0x60] sm:$0xff]
    %v2742 = vld [vmem:[#allocation9 + $0x68] sm:$0xff]
    %v2743 = vld [vmem:[#allocation9 + $0x70] sm:$0xff]
    %v2744 = vld [vmem:[#allocation9 + $0x78] sm:$0xff]
    %v2745 = vld [vmem:[#allocation9 + $0x80] sm:$0xff]
    %v2746 = vld [vmem:[#allocation9 + $0x88] sm:$0xff]
    %v2747 = vld [vmem:[#allocation9 + $0x90] sm:$0xff]
    %v2748 = vld [vmem:[#allocation9 + $0x98] sm:$0xff]
    %v2749 = vld [vmem:[#allocation9 + $0xa0] sm:$0xff]
    %v2750 = vld [vmem:[#allocation9 + $0xa8] sm:$0xff]
    %v2751 = vld [vmem:[#allocation9 + $0xb0] sm:$0xff]
    %v2752 = vld [vmem:[#allocation9 + $0xb8] sm:$0xff]
    %v2753 = vld [vmem:[#allocation9 + $0xc0] sm:$0xff]
    %v2754 = vld [vmem:[#allocation9 + $0xc8] sm:$0xff]
    %v2755 = vld [vmem:[#allocation9 + $0xd0] sm:$0xff]
    %v2756 = vld [vmem:[#allocation9 + $0xd8] sm:$0xff]
    %v2757 = vld [vmem:[#allocation9 + $0xe0] sm:$0xff]
    %v2758 = vld [vmem:[#allocation9 + $0xe8] sm:$0xff]
    %v2759 = vld [vmem:[#allocation9 + $0xf0] sm:$0xff]
    %v2760 = vld [vmem:[#allocation9 + $0xf8] sm:$0xff]
    %v2793 = vunpack.c.l.b16 %v2729
    %v2794 = vunpack.c.h.b16 %v2729
    %v2795 = vunpack.c.l.b16 %v2730
    %v2796 = vunpack.c.h.b16 %v2730
    %v2797 = vunpack.c.l.b16 %v2731
    %v2798 = vunpack.c.h.b16 %v2731
    %v2799 = vunpack.c.l.b16 %v2732
    %v2800 = vunpack.c.h.b16 %v2732
    %v2801 = vunpack.c.l.b16 %v2733
    %v2802 = vunpack.c.h.b16 %v2733
    %v2803 = vunpack.c.l.b16 %v2734
    %v2804 = vunpack.c.h.b16 %v2734
    %v2805 = vunpack.c.l.b16 %v2735
    %v2806 = vunpack.c.h.b16 %v2735
    %v2807 = vunpack.c.l.b16 %v2736
    %v2808 = vunpack.c.h.b16 %v2736
    %v2809 = vunpack.c.l.b16 %v2737
    %v2810 = vunpack.c.h.b16 %v2737
    %v2811 = vunpack.c.l.b16 %v2738
    %v2812 = vunpack.c.h.b16 %v2738
    %v2813 = vunpack.c.l.b16 %v2739
    %v2814 = vunpack.c.h.b16 %v2739
    %v2815 = vunpack.c.l.b16 %v2740
    %v2816 = vunpack.c.h.b16 %v2740
    %v2817 = vunpack.c.l.b16 %v2741
    %v2818 = vunpack.c.h.b16 %v2741
    %v2819 = vunpack.c.l.b16 %v2742
    %v2820 = vunpack.c.h.b16 %v2742
    %v2821 = vunpack.c.l.b16 %v2743
    %v2822 = vunpack.c.h.b16 %v2743
    %v2823 = vunpack.c.l.b16 %v2744
    %v2824 = vunpack.c.h.b16 %v2744
    %v2825 = vunpack.c.l.b16 %v2745
    %v2826 = vunpack.c.h.b16 %v2745
    %v2827 = vunpack.c.l.b16 %v2746
    %v2828 = vunpack.c.h.b16 %v2746
    %v2829 = vunpack.c.l.b16 %v2747
    %v2830 = vunpack.c.h.b16 %v2747
    %v2831 = vunpack.c.l.b16 %v2748
    %v2832 = vunpack.c.h.b16 %v2748
    %v2833 = vunpack.c.l.b16 %v2749
    %v2834 = vunpack.c.h.b16 %v2749
    %v2835 = vunpack.c.l.b16 %v2750
    %v2836 = vunpack.c.h.b16 %v2750
    %v2837 = vunpack.c.l.b16 %v2751
    %v2838 = vunpack.c.h.b16 %v2751
    %v2839 = vunpack.c.l.b16 %v2752
    %v2840 = vunpack.c.h.b16 %v2752
    %v2841 = vunpack.c.l.b16 %v2753
    %v2842 = vunpack.c.h.b16 %v2753
    %v2843 = vunpack.c.l.b16 %v2754
    %v2844 = vunpack.c.h.b16 %v2754
    %v2845 = vunpack.c.l.b16 %v2755
    %v2846 = vunpack.c.h.b16 %v2755
    %v2847 = vunpack.c.l.b16 %v2756
    %v2848 = vunpack.c.h.b16 %v2756
    %v2849 = vunpack.c.l.b16 %v2757
    %v2850 = vunpack.c.h.b16 %v2757
    %v2851 = vunpack.c.l.b16 %v2758
    %v2852 = vunpack.c.h.b16 %v2758
    %v2853 = vunpack.c.l.b16 %v2759
    %v2854 = vunpack.c.h.b16 %v2759
    %v2855 = vunpack.c.l.b16 %v2760
    %v2856 = vunpack.c.h.b16 %v2760
    %v2857 = vpack.c.b16 %v2797, %v2793
    %v2858 = vpack.c.b16 %v2798, %v2794
    %v2859 = vpack.c.b16 %v2799, %v2795
    %v2860 = vpack.c.b16 %v2800, %v2796
    %v2861 = vpack.c.b16 %v2805, %v2801
    %v2862 = vpack.c.b16 %v2806, %v2802
    %v2863 = vpack.c.b16 %v2807, %v2803
    %v2864 = vpack.c.b16 %v2808, %v2804
    %v2865 = vpack.c.b16 %v2813, %v2809
    %v2866 = vpack.c.b16 %v2814, %v2810
    %v2867 = vpack.c.b16 %v2815, %v2811
    %v2868 = vpack.c.b16 %v2816, %v2812
    %v2869 = vpack.c.b16 %v2821, %v2817
    %v2870 = vpack.c.b16 %v2822, %v2818
    %v2871 = vpack.c.b16 %v2823, %v2819
    %v2872 = vpack.c.b16 %v2824, %v2820
    %v2873 = vpack.c.b16 %v2829, %v2825
    %v2874 = vpack.c.b16 %v2830, %v2826
    %v2875 = vpack.c.b16 %v2831, %v2827
    %v2876 = vpack.c.b16 %v2832, %v2828
    %v2877 = vpack.c.b16 %v2837, %v2833
    %v2878 = vpack.c.b16 %v2838, %v2834
    %v2879 = vpack.c.b16 %v2839, %v2835
    %v2880 = vpack.c.b16 %v2840, %v2836
    %v2881 = vpack.c.b16 %v2845, %v2841
    %v2882 = vpack.c.b16 %v2846, %v2842
    %v2883 = vpack.c.b16 %v2847, %v2843
    %v2884 = vpack.c.b16 %v2848, %v2844
    %v2885 = vpack.c.b16 %v2853, %v2849
    %v2886 = vpack.c.b16 %v2854, %v2850
    %v2887 = vpack.c.b16 %v2855, %v2851
    %v2888 = vpack.c.b16 %v2856, %v2852
    %2921 = vmatprep.subr.bf16.mxu0 %v2858
    %2922 = vmatpush1.bf16.msra.mxu0 %v2857
    %2923 = vmatprep.subr.bf16.mxu0 %v2862
    %2924 = vmatpush1.bf16.msra.mxu0 %v2861
    %2925 = vmatprep.subr.bf16.mxu0 %v2866
    %2926 = vmatpush1.bf16.msra.mxu0 %v2865
    %2927 = vmatprep.subr.bf16.mxu0 %v2870
    %2928 = vmatpush1.bf16.msra.mxu0 %v2869
    %2929 = vmatprep.subr.bf16.mxu0 %v2874
    %2930 = vmatpush1.bf16.msra.mxu0 %v2873
    %2931 = vmatprep.subr.bf16.mxu0 %v2878
    %2932 = vmatpush1.bf16.msra.mxu0 %v2877
    %2933 = vmatprep.subr.bf16.mxu0 %v2882
    %2934 = vmatpush1.bf16.msra.mxu0 %v2881
    %2935 = vmatprep.subr.bf16.mxu0 %v2886
    %2936 = vmatpush1.bf16.msra.mxu0 %v2885
    %2937 = vmatprep.subr.bf16.mxu0 0
    %2938 = vmatpush1.bf16.msra.mxu0 0
    %2939 = vmatprep.subr.bf16.mxu0 0
    %2940 = vmatpush1.bf16.msra.mxu0 0
    %2941 = vmatprep.subr.bf16.mxu0 0
    %2942 = vmatpush1.bf16.msra.mxu0 0
    %2943 = vmatprep.subr.bf16.mxu0 0
    %2944 = vmatpush1.bf16.msra.mxu0 0
    %2945 = vmatprep.subr.bf16.mxu0 0
    %2946 = vmatpush1.bf16.msra.mxu0 0
    %2947 = vmatprep.subr.bf16.mxu0 0
    %2948 = vmatpush1.bf16.msra.mxu0 0
    %2949 = vmatprep.subr.bf16.mxu0 0
    %2950 = vmatpush1.bf16.msra.mxu0 0
    %2951 = vmatprep.subr.bf16.mxu0 0
    %2952 = vmatpush1.bf16.msra.mxu0 0
    %2953 = vmatprep.mubr.bf16.mxu0 0
    %2954 = vmatmul.mubr.bf16.gmra.mrb[0].mxu0 %v2728
    %v2955 = vpop.f32.mrb[0].mxu0
    %v2956 = vadd.f32 0.0, %v2955
    %v2957 = vpop.f32.mrb[0].mxu0
    %v2958 = vadd.f32 0.0, %v2957
    %v2959 = vpop.f32.mrb[0].mxu0
    %v2960 = vpop.f32.mrb[0].mxu0
    %2961 = vdwg.mxu0
    %2962 = vmatprep.subr.bf16.mxu0 %v2860
    %2963 = vmatpush1.bf16.msra.mxu0 %v2859
    %2964 = vmatprep.subr.bf16.mxu0 %v2864
    %2965 = vmatpush1.bf16.msra.mxu0 %v2863
    %2966 = vmatprep.subr.bf16.mxu0 %v2868
    %2967 = vmatpush1.bf16.msra.mxu0 %v2867
    %2968 = vmatprep.subr.bf16.mxu0 %v2872
    %2969 = vmatpush1.bf16.msra.mxu0 %v2871
    %2970 = vmatprep.subr.bf16.mxu0 %v2876
    %2971 = vmatpush1.bf16.msra.mxu0 %v2875
    %2972 = vmatprep.subr.bf16.mxu0 %v2880
    %2973 = vmatpush1.bf16.msra.mxu0 %v2879
    %2974 = vmatprep.subr.bf16.mxu0 %v2884
    %2975 = vmatpush1.bf16.msra.mxu0 %v2883
    %2976 = vmatprep.subr.bf16.mxu0 %v2888
    %2977 = vmatpush1.bf16.msra.mxu0 %v2887
    %2978 = vmatprep.subr.bf16.mxu0 0
    %2979 = vmatpush1.bf16.msra.mxu0 0
    %2980 = vmatprep.subr.bf16.mxu0 0
    %2981 = vmatpush1.bf16.msra.mxu0 0
    %2982 = vmatprep.subr.bf16.mxu0 0
    %2983 = vmatpush1.bf16.msra.mxu0 0
    %2984 = vmatprep.subr.bf16.mxu0 0
    %2985 = vmatpush1.bf16.msra.mxu0 0
    %2986 = vmatprep.subr.bf16.mxu0 0
    %2987 = vmatpush1.bf16.msra.mxu0 0
    %2988 = vmatprep.subr.bf16.mxu0 0
    %2989 = vmatpush1.bf16.msra.mxu0 0
    %2990 = vmatprep.subr.bf16.mxu0 0
    %2991 = vmatpush1.bf16.msra.mxu0 0
    %2992 = vmatprep.subr.bf16.mxu0 0
    %2993 = vmatpush1.bf16.msra.mxu0 0
    %2994 = vmatprep.mubr.bf16.mxu0 0
    %2995 = vmatmul.mubr.bf16.gmra.mrb[0].mxu0 %v2728
    %v2996 = vpop.f32.mrb[0].mxu0
    %v2997 = vadd.f32 0.0, %v2996
    %v2998 = vpop.f32.mrb[0].mxu0
    %v2999 = vadd.f32 0.0, %v2998
    %v3000 = vpop.f32.mrb[0].mxu0
    %v3001 = vpop.f32.mrb[0].mxu0
    %3002 = vdwg.mxu0
    %v3003 = vadd.f32 %v2724, %v2956
    %v3004 = vadd.f32 %v2725, %v2958
    %v3005 = vadd.f32 %v2726, %v2997
    %v3006 = vadd.f32 %v2727, %v2999
    %v3007 = vxor.u32 %v3003, 2147483648
    %v3008 = vxor.u32 %v3004, 2147483648
    %v3009 = vxor.u32 %v3005, 2147483648
    %v3010 = vmul.f32 %v3007, 1.442695
    %v3011 = vpow.pop %v3010
    %v3012 = vmul.f32 %v3008, 1.442695
    %v3013 = vpow.pop %v3012
    %v3014 = vmul.f32 %v3009, 1.442695
    %v3015 = vpow.pop %v3014
    %v3016 = vadd.f32 %v3011, 1.0
    %v3017 = vadd.f32 %v3013, 1.0
    %v3018 = vadd.f32 %v3015, 1.0
    %v3019 = vrcp.pop %v3016
    %v3020 = vmul.f32 1.0, %v3019
    %v3021 = vrcp.pop %v3017
    %v3022 = vmul.f32 1.0, %v3021
    %v3023 = vrcp.pop %v3018
    %v3024 = vmul.f32 1.0, %v3023
    %v3025 = vtanh.pop %v3006
    %v3026 = vmul.f32 %v3022, %v2718
    %v3027 = vmul.f32 %v3020, %v3025
    %v3028 = vadd.f32 %v3026, %v3027
    %v3029 = vtanh.pop %v3028
    %v3030 = vmul.f32 %v3024, %v3029
    %s3031 = scalar_lea.vmem [#allocation2], 56
    %3032 = vst [vmem:[%s3031] sm:$0xff] %v3030
    %v3033 = vld [vmem:[#allocation2] sm:$0xff]
    %v3034 = vld [vmem:[#allocation2 + $0x8] sm:$0xff]
    %v3035 = vld [vmem:[#allocation2 + $0x10] sm:$0xff]
    %v3036 = vld [vmem:[#allocation2 + $0x18] sm:$0xff]
    %v3037 = vld [vmem:[#allocation2 + $0x20] sm:$0xff]
    %v3038 = vld [vmem:[#allocation2 + $0x28] sm:$0xff]
    %v3039 = vld [vmem:[#allocation2 + $0x30] sm:$0xff]
    %v3040 = vld [vmem:[#allocation2 + $0x38] sm:$0xff]
    %s3041 = scalar_lea.vmem [#allocation7], 256
    %v3042 = vld [vmem:[%s3041] sm:$0xff]
    %v3043 = vld [vmem:[%s3041 + $0x8] sm:$0xff]
    %v3044 = vld [vmem:[%s3041 + $0x10] sm:$0xff]
    %v3045 = vld [vmem:[%s3041 + $0x18] sm:$0xff]
    %v3046 = vld [vmem:[%s3041 + $0x20] sm:$0xff]
    %v3047 = vld [vmem:[%s3041 + $0x28] sm:$0xff]
    %v3048 = vld [vmem:[%s3041 + $0x30] sm:$0xff]
    %v3049 = vld [vmem:[%s3041 + $0x38] sm:$0xff]
    %v3050 = vld [vmem:[%s3041 + $0x40] sm:$0xff]
    %v3051 = vld [vmem:[%s3041 + $0x48] sm:$0xff]
    %v3052 = vld [vmem:[%s3041 + $0x50] sm:$0xff]
    %v3053 = vld [vmem:[%s3041 + $0x58] sm:$0xff]
    %v3054 = vld [vmem:[%s3041 + $0x60] sm:$0xff]
    %v3055 = vld [vmem:[%s3041 + $0x68] sm:$0xff]
    %v3056 = vld [vmem:[%s3041 + $0x70] sm:$0xff]
    %v3057 = vld [vmem:[%s3041 + $0x78] sm:$0xff]
    %v3058 = vld [vmem:[%s3041 + $0x80] sm:$0xff]
    %v3059 = vld [vmem:[%s3041 + $0x88] sm:$0xff]
    %v3060 = vld [vmem:[%s3041 + $0x90] sm:$0xff]
    %v3061 = vld [vmem:[%s3041 + $0x98] sm:$0xff]
    %v3062 = vld [vmem:[%s3041 + $0xa0] sm:$0xff]
    %v3063 = vld [vmem:[%s3041 + $0xa8] sm:$0xff]
    %v3064 = vld [vmem:[%s3041 + $0xb0] sm:$0xff]
    %v3065 = vld [vmem:[%s3041 + $0xb8] sm:$0xff]
    %v3066 = vld [vmem:[%s3041 + $0xc0] sm:$0xff]
    %v3067 = vld [vmem:[%s3041 + $0xc8] sm:$0xff]
    %v3068 = vld [vmem:[%s3041 + $0xd0] sm:$0xff]
    %v3069 = vld [vmem:[%s3041 + $0xd8] sm:$0xff]
    %v3070 = vld [vmem:[%s3041 + $0xe0] sm:$0xff]
    %v3071 = vld [vmem:[%s3041 + $0xe8] sm:$0xff]
    %v3072 = vld [vmem:[%s3041 + $0xf0] sm:$0xff]
    %v3073 = vld [vmem:[%s3041 + $0xf8] sm:$0xff]
    %s3074 = scalar_lea.vmem [#allocation10], 4
    %v3075 = vld [vmem:[%s3074] sm:$0xf]
    %v3076 = vpack.c.bf16 %v3034, %v3033
    %v3077 = vpack.c.bf16 %v3036, %v3035
    %v3078 = vpack.c.bf16 %v3038, %v3037
    %v3079 = vpack.c.bf16 %v3040, %v3039
    %v3081 = vlaneseq
    %v3082 = vshrl.u32 %v3081, 7
    %v3083 = vsub.s32 0, %v3082
    %v3084 = vrot.slane %v3075, %v3083
    %v3085 = vlaneseq
    %v3086 = vshrl.u32 %v3085, 7
    %v3087 = vsub.s32 1, %v3086
    %v3088 = vrot.slane %v3075, %v3087
    %v3089 = vlaneseq
    %v3090 = vshrl.u32 %v3089, 7
    %v3091 = vsub.s32 2, %v3090
    %v3092 = vrot.slane %v3075, %v3091
    %v3093 = vlaneseq
    %v3094 = vshrl.u32 %v3093, 7
    %v3095 = vsub.s32 3, %v3094
    %v3096 = vrot.slane %v3075, %v3095
    %v3133 = vunpack.c.l.b16 %v3042
    %v3134 = vunpack.c.h.b16 %v3042
    %v3135 = vunpack.c.l.b16 %v3043
    %v3136 = vunpack.c.h.b16 %v3043
    %v3137 = vunpack.c.l.b16 %v3044
    %v3138 = vunpack.c.h.b16 %v3044
    %v3139 = vunpack.c.l.b16 %v3045
    %v3140 = vunpack.c.h.b16 %v3045
    %v3141 = vunpack.c.l.b16 %v3046
    %v3142 = vunpack.c.h.b16 %v3046
    %v3143 = vunpack.c.l.b16 %v3047
    %v3144 = vunpack.c.h.b16 %v3047
    %v3145 = vunpack.c.l.b16 %v3048
    %v3146 = vunpack.c.h.b16 %v3048
    %v3147 = vunpack.c.l.b16 %v3049
    %v3148 = vunpack.c.h.b16 %v3049
    %v3149 = vunpack.c.l.b16 %v3050
    %v3150 = vunpack.c.h.b16 %v3050
    %v3151 = vunpack.c.l.b16 %v3051
    %v3152 = vunpack.c.h.b16 %v3051
    %v3153 = vunpack.c.l.b16 %v3052
    %v3154 = vunpack.c.h.b16 %v3052
    %v3155 = vunpack.c.l.b16 %v3053
    %v3156 = vunpack.c.h.b16 %v3053
    %v3157 = vunpack.c.l.b16 %v3054
    %v3158 = vunpack.c.h.b16 %v3054
    %v3159 = vunpack.c.l.b16 %v3055
    %v3160 = vunpack.c.h.b16 %v3055
    %v3161 = vunpack.c.l.b16 %v3056
    %v3162 = vunpack.c.h.b16 %v3056
    %v3163 = vunpack.c.l.b16 %v3057
    %v3164 = vunpack.c.h.b16 %v3057
    %v3165 = vunpack.c.l.b16 %v3058
    %v3166 = vunpack.c.h.b16 %v3058
    %v3167 = vunpack.c.l.b16 %v3059
    %v3168 = vunpack.c.h.b16 %v3059
    %v3169 = vunpack.c.l.b16 %v3060
    %v3170 = vunpack.c.h.b16 %v3060
    %v3171 = vunpack.c.l.b16 %v3061
    %v3172 = vunpack.c.h.b16 %v3061
    %v3173 = vunpack.c.l.b16 %v3062
    %v3174 = vunpack.c.h.b16 %v3062
    %v3175 = vunpack.c.l.b16 %v3063
    %v3176 = vunpack.c.h.b16 %v3063
    %v3177 = vunpack.c.l.b16 %v3064
    %v3178 = vunpack.c.h.b16 %v3064
    %v3179 = vunpack.c.l.b16 %v3065
    %v3180 = vunpack.c.h.b16 %v3065
    %v3181 = vunpack.c.l.b16 %v3066
    %v3182 = vunpack.c.h.b16 %v3066
    %v3183 = vunpack.c.l.b16 %v3067
    %v3184 = vunpack.c.h.b16 %v3067
    %v3185 = vunpack.c.l.b16 %v3068
    %v3186 = vunpack.c.h.b16 %v3068
    %v3187 = vunpack.c.l.b16 %v3069
    %v3188 = vunpack.c.h.b16 %v3069
    %v3189 = vunpack.c.l.b16 %v3070
    %v3190 = vunpack.c.h.b16 %v3070
    %v3191 = vunpack.c.l.b16 %v3071
    %v3192 = vunpack.c.h.b16 %v3071
    %v3193 = vunpack.c.l.b16 %v3072
    %v3194 = vunpack.c.h.b16 %v3072
    %v3195 = vunpack.c.l.b16 %v3073
    %v3196 = vunpack.c.h.b16 %v3073
    %v3197 = vpack.c.b16 %v3137, %v3133
    %v3198 = vpack.c.b16 %v3138, %v3134
    %v3199 = vpack.c.b16 %v3139, %v3135
    %v3200 = vpack.c.b16 %v3140, %v3136
    %v3201 = vpack.c.b16 %v3145, %v3141
    %v3202 = vpack.c.b16 %v3146, %v3142
    %v3203 = vpack.c.b16 %v3147, %v3143
    %v3204 = vpack.c.b16 %v3148, %v3144
    %v3205 = vpack.c.b16 %v3153, %v3149
    %v3206 = vpack.c.b16 %v3154, %v3150
    %v3207 = vpack.c.b16 %v3155, %v3151
    %v3208 = vpack.c.b16 %v3156, %v3152
    %v3209 = vpack.c.b16 %v3161, %v3157
    %v3210 = vpack.c.b16 %v3162, %v3158
    %v3211 = vpack.c.b16 %v3163, %v3159
    %v3212 = vpack.c.b16 %v3164, %v3160
    %v3213 = vpack.c.b16 %v3169, %v3165
    %v3214 = vpack.c.b16 %v3170, %v3166
    %v3215 = vpack.c.b16 %v3171, %v3167
    %v3216 = vpack.c.b16 %v3172, %v3168
    %v3217 = vpack.c.b16 %v3177, %v3173
    %v3218 = vpack.c.b16 %v3178, %v3174
    %v3219 = vpack.c.b16 %v3179, %v3175
    %v3220 = vpack.c.b16 %v3180, %v3176
    %v3221 = vpack.c.b16 %v3185, %v3181
    %v3222 = vpack.c.b16 %v3186, %v3182
    %v3223 = vpack.c.b16 %v3187, %v3183
    %v3224 = vpack.c.b16 %v3188, %v3184
    %v3225 = vpack.c.b16 %v3193, %v3189
    %v3226 = vpack.c.b16 %v3194, %v3190
    %v3227 = vpack.c.b16 %v3195, %v3191
    %v3228 = vpack.c.b16 %v3196, %v3192
    %3261 = vmatprep.subr.bf16.mxu0 %v3198
    %3262 = vmatpush1.bf16.msra.mxu0 %v3197
    %3263 = vmatprep.subr.bf16.mxu0 %v3202
    %3264 = vmatpush1.bf16.msra.mxu0 %v3201
    %3265 = vmatprep.subr.bf16.mxu0 %v3206
    %3266 = vmatpush1.bf16.msra.mxu0 %v3205
    %3267 = vmatprep.subr.bf16.mxu0 %v3210
    %3268 = vmatpush1.bf16.msra.mxu0 %v3209
    %3269 = vmatprep.subr.bf16.mxu0 %v3214
    %3270 = vmatpush1.bf16.msra.mxu0 %v3213
    %3271 = vmatprep.subr.bf16.mxu0 %v3218
    %3272 = vmatpush1.bf16.msra.mxu0 %v3217
    %3273 = vmatprep.subr.bf16.mxu0 %v3222
    %3274 = vmatpush1.bf16.msra.mxu0 %v3221
    %3275 = vmatprep.subr.bf16.mxu0 %v3226
    %3276 = vmatpush1.bf16.msra.mxu0 %v3225
    %3277 = vmatprep.subr.bf16.mxu0 0
    %3278 = vmatpush1.bf16.msra.mxu0 0
    %3279 = vmatprep.subr.bf16.mxu0 0
    %3280 = vmatpush1.bf16.msra.mxu0 0
    %3281 = vmatprep.subr.bf16.mxu0 0
    %3282 = vmatpush1.bf16.msra.mxu0 0
    %3283 = vmatprep.subr.bf16.mxu0 0
    %3284 = vmatpush1.bf16.msra.mxu0 0
    %3285 = vmatprep.subr.bf16.mxu0 0
    %3286 = vmatpush1.bf16.msra.mxu0 0
    %3287 = vmatprep.subr.bf16.mxu0 0
    %3288 = vmatpush1.bf16.msra.mxu0 0
    %3289 = vmatprep.subr.bf16.mxu0 0
    %3290 = vmatpush1.bf16.msra.mxu0 0
    %3291 = vmatprep.subr.bf16.mxu0 0
    %3292 = vmatpush1.bf16.msra.mxu0 0
    %3293 = vmatprep.mubr.bf16.mxu0 0
    %3294 = vmatmul.mubr.bf16.gmra.mrb[0].mxu0 %v3076
    %v3295 = vpop.f32.mrb[0].mxu0
    %v3296 = vadd.f32 %v3084, %v3295
    %v3297 = vpop.f32.mrb[0].mxu0
    %v3298 = vadd.f32 %v3088, %v3297
    %v3299 = vpop.f32.mrb[0].mxu0
    %v3300 = vadd.f32 %v3084, %v3299
    %v3301 = vpop.f32.mrb[0].mxu0
    %v3302 = vadd.f32 %v3088, %v3301
    %3303 = vmatprep.mubr.bf16.mxu0 0
    %3304 = vmatmul.mubr.bf16.gmra.mrb[0].mxu0 %v3077
    %v3305 = vpop.f32.mrb[0].mxu0
    %v3306 = vadd.f32 %v3084, %v3305
    %v3307 = vpop.f32.mrb[0].mxu0
    %v3308 = vadd.f32 %v3088, %v3307
    %v3309 = vpop.f32.mrb[0].mxu0
    %v3310 = vadd.f32 %v3084, %v3309
    %v3311 = vpop.f32.mrb[0].mxu0
    %v3312 = vadd.f32 %v3088, %v3311
    %3313 = vmatprep.mubr.bf16.mxu0 0
    %3314 = vmatmul.mubr.bf16.gmra.mrb[0].mxu0 %v3078
    %v3315 = vpop.f32.mrb[0].mxu0
    %v3316 = vadd.f32 %v3084, %v3315
    %v3317 = vpop.f32.mrb[0].mxu0
    %v3318 = vadd.f32 %v3088, %v3317
    %v3319 = vpop.f32.mrb[0].mxu0
    %v3320 = vadd.f32 %v3084, %v3319
    %v3321 = vpop.f32.mrb[0].mxu0
    %v3322 = vadd.f32 %v3088, %v3321
    %3323 = vmatprep.mubr.bf16.mxu0 0
    %3324 = vmatmul.mubr.bf16.gmra.mrb[0].mxu0 %v3079
    %v3325 = vpop.f32.mrb[0].mxu0
    %v3326 = vadd.f32 %v3084, %v3325
    %v3327 = vpop.f32.mrb[0].mxu0
    %v3328 = vadd.f32 %v3088, %v3327
    %v3329 = vpop.f32.mrb[0].mxu0
    %v3330 = vadd.f32 %v3084, %v3329
    %v3331 = vpop.f32.mrb[0].mxu0
    %v3332 = vadd.f32 %v3088, %v3331
    %3333 = vdwg.mxu0
    %3334 = vmatprep.subr.bf16.mxu0 %v3200
    %3335 = vmatpush1.bf16.msra.mxu0 %v3199
    %3336 = vmatprep.subr.bf16.mxu0 %v3204
    %3337 = vmatpush1.bf16.msra.mxu0 %v3203
    %3338 = vmatprep.subr.bf16.mxu0 %v3208
    %3339 = vmatpush1.bf16.msra.mxu0 %v3207
    %3340 = vmatprep.subr.bf16.mxu0 %v3212
    %3341 = vmatpush1.bf16.msra.mxu0 %v3211
    %3342 = vmatprep.subr.bf16.mxu0 %v3216
    %3343 = vmatpush1.bf16.msra.mxu0 %v3215
    %3344 = vmatprep.subr.bf16.mxu0 %v3220
    %3345 = vmatpush1.bf16.msra.mxu0 %v3219
    %3346 = vmatprep.subr.bf16.mxu0 %v3224
    %3347 = vmatpush1.bf16.msra.mxu0 %v3223
    %3348 = vmatprep.subr.bf16.mxu0 %v3228
    %3349 = vmatpush1.bf16.msra.mxu0 %v3227
    %3350 = vmatprep.subr.bf16.mxu0 0
    %3351 = vmatpush1.bf16.msra.mxu0 0
    %3352 = vmatprep.subr.bf16.mxu0 0
    %3353 = vmatpush1.bf16.msra.mxu0 0
    %3354 = vmatprep.subr.bf16.mxu0 0
    %3355 = vmatpush1.bf16.msra.mxu0 0
    %3356 = vmatprep.subr.bf16.mxu0 0
    %3357 = vmatpush1.bf16.msra.mxu0 0
    %3358 = vmatprep.subr.bf16.mxu0 0
    %3359 = vmatpush1.bf16.msra.mxu0 0
    %3360 = vmatprep.subr.bf16.mxu0 0
    %3361 = vmatpush1.bf16.msra.mxu0 0
    %3362 = vmatprep.subr.bf16.mxu0 0
    %3363 = vmatpush1.bf16.msra.mxu0 0
    %3364 = vmatprep.subr.bf16.mxu0 0
    %3365 = vmatpush1.bf16.msra.mxu0 0
    %3366 = vmatprep.mubr.bf16.mxu0 0
    %3367 = vmatmul.mubr.bf16.gmra.mrb[0].mxu0 %v3076
    %v3368 = vpop.f32.mrb[0].mxu0
    %v3369 = vadd.f32 %v3092, %v3368
    %v3370 = vpop.f32.mrb[0].mxu0
    %v3371 = vadd.f32 %v3096, %v3370
    %v3372 = vpop.f32.mrb[0].mxu0
    %v3373 = vadd.f32 %v3092, %v3372
    %v3374 = vpop.f32.mrb[0].mxu0
    %v3375 = vadd.f32 %v3096, %v3374
    %3376 = vmatprep.mubr.bf16.mxu0 0
    %3377 = vmatmul.mubr.bf16.gmra.mrb[0].mxu0 %v3077
    %v3378 = vpop.f32.mrb[0].mxu0
    %v3379 = vadd.f32 %v3092, %v3378
    %v3380 = vpop.f32.mrb[0].mxu0
    %v3381 = vadd.f32 %v3096, %v3380
    %v3382 = vpop.f32.mrb[0].mxu0
    %v3383 = vadd.f32 %v3092, %v3382
    %v3384 = vpop.f32.mrb[0].mxu0
    %v3385 = vadd.f32 %v3096, %v3384
    %3386 = vmatprep.mubr.bf16.mxu0 0
    %3387 = vmatmul.mubr.bf16.gmra.mrb[0].mxu0 %v3078
    %v3388 = vpop.f32.mrb[0].mxu0
    %v3389 = vadd.f32 %v3092, %v3388
    %v3390 = vpop.f32.mrb[0].mxu0
    %v3391 = vadd.f32 %v3096, %v3390
    %v3392 = vpop.f32.mrb[0].mxu0
    %v3393 = vadd.f32 %v3092, %v3392
    %v3394 = vpop.f32.mrb[0].mxu0
    %v3395 = vadd.f32 %v3096, %v3394
    %3396 = vmatprep.mubr.bf16.mxu0 0
    %3397 = vmatmul.mubr.bf16.gmra.mrb[0].mxu0 %v3079
    %v3398 = vpop.f32.mrb[0].mxu0
    %v3399 = vadd.f32 %v3092, %v3398
    %v3400 = vpop.f32.mrb[0].mxu0
    %v3401 = vadd.f32 %v3096, %v3400
    %v3402 = vpop.f32.mrb[0].mxu0
    %v3403 = vadd.f32 %v3092, %v3402
    %v3404 = vpop.f32.mrb[0].mxu0
    %v3405 = vadd.f32 %v3096, %v3404
    %3406 = vdwg.mxu0
    %3407 = vst [vmem:[#allocation3] sm:$0xff] %v3296
    %3408 = vst [vmem:[#allocation3 + $0x8] sm:$0xff] %v3298
    %3409 = vst [vmem:[#allocation3 + $0x10] sm:$0xff] %v3369
    %3410 = vst [vmem:[#allocation3 + $0x18] sm:$0xff] %v3371
    %3411 = vst [vmem:[#allocation3 + $0x20] sm:$0xff] %v3300
    %3412 = vst [vmem:[#allocation3 + $0x28] sm:$0xff] %v3302
    %3413 = vst [vmem:[#allocation3 + $0x30] sm:$0xff] %v3373
    %3414 = vst [vmem:[#allocation3 + $0x38] sm:$0xff] %v3375
    %3415 = vst [vmem:[#allocation3 + $0x40] sm:$0xff] %v3306
    %3416 = vst [vmem:[#allocation3 + $0x48] sm:$0xff] %v3308
    %3417 = vst [vmem:[#allocation3 + $0x50] sm:$0xff] %v3379
    %3418 = vst [vmem:[#allocation3 + $0x58] sm:$0xff] %v3381
    %3419 = vst [vmem:[#allocation3 + $0x60] sm:$0xff] %v3310
    %3420 = vst [vmem:[#allocation3 + $0x68] sm:$0xff] %v3312
    %3421 = vst [vmem:[#allocation3 + $0x70] sm:$0xff] %v3383
    %3422 = vst [vmem:[#allocation3 + $0x78] sm:$0xff] %v3385
    %3423 = vst [vmem:[#allocation3 + $0x80] sm:$0xff] %v3316
    %3424 = vst [vmem:[#allocation3 + $0x88] sm:$0xff] %v3318
    %3425 = vst [vmem:[#allocation3 + $0x90] sm:$0xff] %v3389
    %3426 = vst [vmem:[#allocation3 + $0x98] sm:$0xff] %v3391
    %3427 = vst [vmem:[#allocation3 + $0xa0] sm:$0xff] %v3320
    %3428 = vst [vmem:[#allocation3 + $0xa8] sm:$0xff] %v3322
    %3429 = vst [vmem:[#allocation3 + $0xb0] sm:$0xff] %v3393
    %3430 = vst [vmem:[#allocation3 + $0xb8] sm:$0xff] %v3395
    %3431 = vst [vmem:[#allocation3 + $0xc0] sm:$0xff] %v3326
    %3432 = vst [vmem:[#allocation3 + $0xc8] sm:$0xff] %v3328
    %3433 = vst [vmem:[#allocation3 + $0xd0] sm:$0xff] %v3399
    %3434 = vst [vmem:[#allocation3 + $0xd8] sm:$0xff] %v3401
    %3435 = vst [vmem:[#allocation3 + $0xe0] sm:$0xff] %v3330
    %3436 = vst [vmem:[#allocation3 + $0xe8] sm:$0xff] %v3332
    %3437 = vst [vmem:[#allocation3 + $0xf0] sm:$0xff] %v3403
    %3438 = vst [vmem:[#allocation3 + $0xf8] sm:$0xff] %v3405
    %s3439 = scalar_lea.vmem [#allocation12], 8
    %v3440 = vld [vmem:[%s3439] sm:$0xff]
    %s3441 = scalar_lea.vmem [#allocation13], 8
    %v3442 = vld [vmem:[%s3441] sm:$0xff]
    %v3443 = vld [vmem:[#allocation3] sm:$0xff]
    %v3444 = vld [vmem:[#allocation3 + $0x8] sm:$0xff]
    %v3445 = vld [vmem:[#allocation3 + $0x10] sm:$0xff]
    %v3446 = vld [vmem:[#allocation3 + $0x18] sm:$0xff]
    %v3447 = vpack.c.bf16 %v3440, %v3440
    %s3448 = scalar_lea.vmem [#allocation9], 256
    %v3449 = vld [vmem:[%s3448] sm:$0xff]
    %v3450 = vld [vmem:[%s3448 + $0x8] sm:$0xff]
    %v3451 = vld [vmem:[%s3448 + $0x10] sm:$0xff]
    %v3452 = vld [vmem:[%s3448 + $0x18] sm:$0xff]
    %v3453 = vld [vmem:[%s3448 + $0x20] sm:$0xff]
    %v3454 = vld [vmem:[%s3448 + $0x28] sm:$0xff]
    %v3455 = vld [vmem:[%s3448 + $0x30] sm:$0xff]
    %v3456 = vld [vmem:[%s3448 + $0x38] sm:$0xff]
    %v3457 = vld [vmem:[%s3448 + $0x40] sm:$0xff]
    %v3458 = vld [vmem:[%s3448 + $0x48] sm:$0xff]
    %v3459 = vld [vmem:[%s3448 + $0x50] sm:$0xff]
    %v3460 = vld [vmem:[%s3448 + $0x58] sm:$0xff]
    %v3461 = vld [vmem:[%s3448 + $0x60] sm:$0xff]
    %v3462 = vld [vmem:[%s3448 + $0x68] sm:$0xff]
    %v3463 = vld [vmem:[%s3448 + $0x70] sm:$0xff]
    %v3464 = vld [vmem:[%s3448 + $0x78] sm:$0xff]
    %v3465 = vld [vmem:[%s3448 + $0x80] sm:$0xff]
    %v3466 = vld [vmem:[%s3448 + $0x88] sm:$0xff]
    %v3467 = vld [vmem:[%s3448 + $0x90] sm:$0xff]
    %v3468 = vld [vmem:[%s3448 + $0x98] sm:$0xff]
    %v3469 = vld [vmem:[%s3448 + $0xa0] sm:$0xff]
    %v3470 = vld [vmem:[%s3448 + $0xa8] sm:$0xff]
    %v3471 = vld [vmem:[%s3448 + $0xb0] sm:$0xff]
    %v3472 = vld [vmem:[%s3448 + $0xb8] sm:$0xff]
    %v3473 = vld [vmem:[%s3448 + $0xc0] sm:$0xff]
    %v3474 = vld [vmem:[%s3448 + $0xc8] sm:$0xff]
    %v3475 = vld [vmem:[%s3448 + $0xd0] sm:$0xff]
    %v3476 = vld [vmem:[%s3448 + $0xd8] sm:$0xff]
    %v3477 = vld [vmem:[%s3448 + $0xe0] sm:$0xff]
    %v3478 = vld [vmem:[%s3448 + $0xe8] sm:$0xff]
    %v3479 = vld [vmem:[%s3448 + $0xf0] sm:$0xff]
    %v3480 = vld [vmem:[%s3448 + $0xf8] sm:$0xff]
    %v3513 = vunpack.c.l.b16 %v3449
    %v3514 = vunpack.c.h.b16 %v3449
    %v3515 = vunpack.c.l.b16 %v3450
    %v3516 = vunpack.c.h.b16 %v3450
    %v3517 = vunpack.c.l.b16 %v3451
    %v3518 = vunpack.c.h.b16 %v3451
    %v3519 = vunpack.c.l.b16 %v3452
    %v3520 = vunpack.c.h.b16 %v3452
    %v3521 = vunpack.c.l.b16 %v3453
    %v3522 = vunpack.c.h.b16 %v3453
    %v3523 = vunpack.c.l.b16 %v3454
    %v3524 = vunpack.c.h.b16 %v3454
    %v3525 = vunpack.c.l.b16 %v3455
    %v3526 = vunpack.c.h.b16 %v3455
    %v3527 = vunpack.c.l.b16 %v3456
    %v3528 = vunpack.c.h.b16 %v3456
    %v3529 = vunpack.c.l.b16 %v3457
    %v3530 = vunpack.c.h.b16 %v3457
    %v3531 = vunpack.c.l.b16 %v3458
    %v3532 = vunpack.c.h.b16 %v3458
    %v3533 = vunpack.c.l.b16 %v3459
    %v3534 = vunpack.c.h.b16 %v3459
    %v3535 = vunpack.c.l.b16 %v3460
    %v3536 = vunpack.c.h.b16 %v3460
    %v3537 = vunpack.c.l.b16 %v3461
    %v3538 = vunpack.c.h.b16 %v3461
    %v3539 = vunpack.c.l.b16 %v3462
    %v3540 = vunpack.c.h.b16 %v3462
    %v3541 = vunpack.c.l.b16 %v3463
    %v3542 = vunpack.c.h.b16 %v3463
    %v3543 = vunpack.c.l.b16 %v3464
    %v3544 = vunpack.c.h.b16 %v3464
    %v3545 = vunpack.c.l.b16 %v3465
    %v3546 = vunpack.c.h.b16 %v3465
    %v3547 = vunpack.c.l.b16 %v3466
    %v3548 = vunpack.c.h.b16 %v3466
    %v3549 = vunpack.c.l.b16 %v3467
    %v3550 = vunpack.c.h.b16 %v3467
    %v3551 = vunpack.c.l.b16 %v3468
    %v3552 = vunpack.c.h.b16 %v3468
    %v3553 = vunpack.c.l.b16 %v3469
    %v3554 = vunpack.c.h.b16 %v3469
    %v3555 = vunpack.c.l.b16 %v3470
    %v3556 = vunpack.c.h.b16 %v3470
    %v3557 = vunpack.c.l.b16 %v3471
    %v3558 = vunpack.c.h.b16 %v3471
    %v3559 = vunpack.c.l.b16 %v3472
    %v3560 = vunpack.c.h.b16 %v3472
    %v3561 = vunpack.c.l.b16 %v3473
    %v3562 = vunpack.c.h.b16 %v3473
    %v3563 = vunpack.c.l.b16 %v3474
    %v3564 = vunpack.c.h.b16 %v3474
    %v3565 = vunpack.c.l.b16 %v3475
    %v3566 = vunpack.c.h.b16 %v3475
    %v3567 = vunpack.c.l.b16 %v3476
    %v3568 = vunpack.c.h.b16 %v3476
    %v3569 = vunpack.c.l.b16 %v3477
    %v3570 = vunpack.c.h.b16 %v3477
    %v3571 = vunpack.c.l.b16 %v3478
    %v3572 = vunpack.c.h.b16 %v3478
    %v3573 = vunpack.c.l.b16 %v3479
    %v3574 = vunpack.c.h.b16 %v3479
    %v3575 = vunpack.c.l.b16 %v3480
    %v3576 = vunpack.c.h.b16 %v3480
    %v3577 = vpack.c.b16 %v3517, %v3513
    %v3578 = vpack.c.b16 %v3518, %v3514
    %v3579 = vpack.c.b16 %v3519, %v3515
    %v3580 = vpack.c.b16 %v3520, %v3516
    %v3581 = vpack.c.b16 %v3525, %v3521
    %v3582 = vpack.c.b16 %v3526, %v3522
    %v3583 = vpack.c.b16 %v3527, %v3523
    %v3584 = vpack.c.b16 %v3528, %v3524
    %v3585 = vpack.c.b16 %v3533, %v3529
    %v3586 = vpack.c.b16 %v3534, %v3530
    %v3587 = vpack.c.b16 %v3535, %v3531
    %v3588 = vpack.c.b16 %v3536, %v3532
    %v3589 = vpack.c.b16 %v3541, %v3537
    %v3590 = vpack.c.b16 %v3542, %v3538
    %v3591 = vpack.c.b16 %v3543, %v3539
    %v3592 = vpack.c.b16 %v3544, %v3540
    %v3593 = vpack.c.b16 %v3549, %v3545
    %v3594 = vpack.c.b16 %v3550, %v3546
    %v3595 = vpack.c.b16 %v3551, %v3547
    %v3596 = vpack.c.b16 %v3552, %v3548
    %v3597 = vpack.c.b16 %v3557, %v3553
    %v3598 = vpack.c.b16 %v3558, %v3554
    %v3599 = vpack.c.b16 %v3559, %v3555
    %v3600 = vpack.c.b16 %v3560, %v3556
    %v3601 = vpack.c.b16 %v3565, %v3561
    %v3602 = vpack.c.b16 %v3566, %v3562
    %v3603 = vpack.c.b16 %v3567, %v3563
    %v3604 = vpack.c.b16 %v3568, %v3564
    %v3605 = vpack.c.b16 %v3573, %v3569
    %v3606 = vpack.c.b16 %v3574, %v3570
    %v3607 = vpack.c.b16 %v3575, %v3571
    %v3608 = vpack.c.b16 %v3576, %v3572
    %3641 = vmatprep.subr.bf16.mxu0 %v3578
    %3642 = vmatpush1.bf16.msra.mxu0 %v3577
    %3643 = vmatprep.subr.bf16.mxu0 %v3582
    %3644 = vmatpush1.bf16.msra.mxu0 %v3581
    %3645 = vmatprep.subr.bf16.mxu0 %v3586
    %3646 = vmatpush1.bf16.msra.mxu0 %v3585
    %3647 = vmatprep.subr.bf16.mxu0 %v3590
    %3648 = vmatpush1.bf16.msra.mxu0 %v3589
    %3649 = vmatprep.subr.bf16.mxu0 %v3594
    %3650 = vmatpush1.bf16.msra.mxu0 %v3593
    %3651 = vmatprep.subr.bf16.mxu0 %v3598
    %3652 = vmatpush1.bf16.msra.mxu0 %v3597
    %3653 = vmatprep.subr.bf16.mxu0 %v3602
    %3654 = vmatpush1.bf16.msra.mxu0 %v3601
    %3655 = vmatprep.subr.bf16.mxu0 %v3606
    %3656 = vmatpush1.bf16.msra.mxu0 %v3605
    %3657 = vmatprep.subr.bf16.mxu0 0
    %3658 = vmatpush1.bf16.msra.mxu0 0
    %3659 = vmatprep.subr.bf16.mxu0 0
    %3660 = vmatpush1.bf16.msra.mxu0 0
    %3661 = vmatprep.subr.bf16.mxu0 0
    %3662 = vmatpush1.bf16.msra.mxu0 0
    %3663 = vmatprep.subr.bf16.mxu0 0
    %3664 = vmatpush1.bf16.msra.mxu0 0
    %3665 = vmatprep.subr.bf16.mxu0 0
    %3666 = vmatpush1.bf16.msra.mxu0 0
    %3667 = vmatprep.subr.bf16.mxu0 0
    %3668 = vmatpush1.bf16.msra.mxu0 0
    %3669 = vmatprep.subr.bf16.mxu0 0
    %3670 = vmatpush1.bf16.msra.mxu0 0
    %3671 = vmatprep.subr.bf16.mxu0 0
    %3672 = vmatpush1.bf16.msra.mxu0 0
    %3673 = vmatprep.mubr.bf16.mxu0 0
    %3674 = vmatmul.mubr.bf16.gmra.mrb[0].mxu0 %v3447
    %v3675 = vpop.f32.mrb[0].mxu0
    %v3676 = vadd.f32 0.0, %v3675
    %v3677 = vpop.f32.mrb[0].mxu0
    %v3678 = vadd.f32 0.0, %v3677
    %v3679 = vpop.f32.mrb[0].mxu0
    %v3680 = vpop.f32.mrb[0].mxu0
    %3681 = vdwg.mxu0
    %3682 = vmatprep.subr.bf16.mxu0 %v3580
    %3683 = vmatpush1.bf16.msra.mxu0 %v3579
    %3684 = vmatprep.subr.bf16.mxu0 %v3584
    %3685 = vmatpush1.bf16.msra.mxu0 %v3583
    %3686 = vmatprep.subr.bf16.mxu0 %v3588
    %3687 = vmatpush1.bf16.msra.mxu0 %v3587
    %3688 = vmatprep.subr.bf16.mxu0 %v3592
    %3689 = vmatpush1.bf16.msra.mxu0 %v3591
    %3690 = vmatprep.subr.bf16.mxu0 %v3596
    %3691 = vmatpush1.bf16.msra.mxu0 %v3595
    %3692 = vmatprep.subr.bf16.mxu0 %v3600
    %3693 = vmatpush1.bf16.msra.mxu0 %v3599
    %3694 = vmatprep.subr.bf16.mxu0 %v3604
    %3695 = vmatpush1.bf16.msra.mxu0 %v3603
    %3696 = vmatprep.subr.bf16.mxu0 %v3608
    %3697 = vmatpush1.bf16.msra.mxu0 %v3607
    %3698 = vmatprep.subr.bf16.mxu0 0
    %3699 = vmatpush1.bf16.msra.mxu0 0
    %3700 = vmatprep.subr.bf16.mxu0 0
    %3701 = vmatpush1.bf16.msra.mxu0 0
    %3702 = vmatprep.subr.bf16.mxu0 0
    %3703 = vmatpush1.bf16.msra.mxu0 0
    %3704 = vmatprep.subr.bf16.mxu0 0
    %3705 = vmatpush1.bf16.msra.mxu0 0
    %3706 = vmatprep.subr.bf16.mxu0 0
    %3707 = vmatpush1.bf16.msra.mxu0 0
    %3708 = vmatprep.subr.bf16.mxu0 0
    %3709 = vmatpush1.bf16.msra.mxu0 0
    %3710 = vmatprep.subr.bf16.mxu0 0
    %3711 = vmatpush1.bf16.msra.mxu0 0
    %3712 = vmatprep.subr.bf16.mxu0 0
    %3713 = vmatpush1.bf16.msra.mxu0 0
    %3714 = vmatprep.mubr.bf16.mxu0 0
    %3715 = vmatmul.mubr.bf16.gmra.mrb[0].mxu0 %v3447
    %v3716 = vpop.f32.mrb[0].mxu0
    %v3717 = vadd.f32 0.0, %v3716
    %v3718 = vpop.f32.mrb[0].mxu0
    %v3719 = vadd.f32 0.0, %v3718
    %v3720 = vpop.f32.mrb[0].mxu0
    %v3721 = vpop.f32.mrb[0].mxu0
    %3722 = vdwg.mxu0
    %v3723 = vadd.f32 %v3443, %v3676
    %v3724 = vadd.f32 %v3444, %v3678
    %v3725 = vadd.f32 %v3445, %v3717
    %v3726 = vadd.f32 %v3446, %v3719
    %v3727 = vxor.u32 %v3723, 2147483648
    %v3728 = vxor.u32 %v3724, 2147483648
    %v3729 = vxor.u32 %v3725, 2147483648
    %v3730 = vmul.f32 %v3727, 1.442695
    %v3731 = vpow.pop %v3730
    %v3732 = vmul.f32 %v3728, 1.442695
    %v3733 = vpow.pop %v3732
    %v3734 = vmul.f32 %v3729, 1.442695
    %v3735 = vpow.pop %v3734
    %v3736 = vadd.f32 %v3731, 1.0
    %v3737 = vadd.f32 %v3733, 1.0
    %v3738 = vadd.f32 %v3735, 1.0
    %v3739 = vrcp.pop %v3736
    %v3740 = vmul.f32 1.0, %v3739
    %v3741 = vrcp.pop %v3737
    %v3742 = vmul.f32 1.0, %v3741
    %v3743 = vrcp.pop %v3738
    %v3744 = vmul.f32 1.0, %v3743
    %v3745 = vtanh.pop %v3726
    %v3746 = vmul.f32 %v3742, %v3442
    %v3747 = vmul.f32 %v3740, %v3745
    %v3748 = vadd.f32 %v3746, %v3747
    %v3749 = vtanh.pop %v3748
    %v3750 = vmul.f32 %v3744, %v3749
    %3751 = vst [vmem:[#allocation2] sm:$0xff] %v3750
    %v3752 = vld [vmem:[%s863] sm:$0xff]
    %v3753 = vld [vmem:[%s863 + $0x8] sm:$0xff]
    %v3754 = vld [vmem:[%s863 + $0x10] sm:$0xff]
    %v3755 = vld [vmem:[%s863 + $0x18] sm:$0xff]
    %v3756 = vpack.c.bf16 %v3750, %v3750
    %v3757 = vld [vmem:[%s3448] sm:$0xff]
    %v3758 = vld [vmem:[%s3448 + $0x8] sm:$0xff]
    %v3759 = vld [vmem:[%s3448 + $0x10] sm:$0xff]
    %v3760 = vld [vmem:[%s3448 + $0x18] sm:$0xff]
    %v3761 = vld [vmem:[%s3448 + $0x20] sm:$0xff]
    %v3762 = vld [vmem:[%s3448 + $0x28] sm:$0xff]
    %v3763 = vld [vmem:[%s3448 + $0x30] sm:$0xff]
    %v3764 = vld [vmem:[%s3448 + $0x38] sm:$0xff]
    %v3765 = vld [vmem:[%s3448 + $0x40] sm:$0xff]
    %v3766 = vld [vmem:[%s3448 + $0x48] sm:$0xff]
    %v3767 = vld [vmem:[%s3448 + $0x50] sm:$0xff]
    %v3768 = vld [vmem:[%s3448 + $0x58] sm:$0xff]
    %v3769 = vld [vmem:[%s3448 + $0x60] sm:$0xff]
    %v3770 = vld [vmem:[%s3448 + $0x68] sm:$0xff]
    %v3771 = vld [vmem:[%s3448 + $0x70] sm:$0xff]
    %v3772 = vld [vmem:[%s3448 + $0x78] sm:$0xff]
    %v3773 = vld [vmem:[%s3448 + $0x80] sm:$0xff]
    %v3774 = vld [vmem:[%s3448 + $0x88] sm:$0xff]
    %v3775 = vld [vmem:[%s3448 + $0x90] sm:$0xff]
    %v3776 = vld [vmem:[%s3448 + $0x98] sm:$0xff]
    %v3777 = vld [vmem:[%s3448 + $0xa0] sm:$0xff]
    %v3778 = vld [vmem:[%s3448 + $0xa8] sm:$0xff]
    %v3779 = vld [vmem:[%s3448 + $0xb0] sm:$0xff]
    %v3780 = vld [vmem:[%s3448 + $0xb8] sm:$0xff]
    %v3781 = vld [vmem:[%s3448 + $0xc0] sm:$0xff]
    %v3782 = vld [vmem:[%s3448 + $0xc8] sm:$0xff]
    %v3783 = vld [vmem:[%s3448 + $0xd0] sm:$0xff]
    %v3784 = vld [vmem:[%s3448 + $0xd8] sm:$0xff]
    %v3785 = vld [vmem:[%s3448 + $0xe0] sm:$0xff]
    %v3786 = vld [vmem:[%s3448 + $0xe8] sm:$0xff]
    %v3787 = vld [vmem:[%s3448 + $0xf0] sm:$0xff]
    %v3788 = vld [vmem:[%s3448 + $0xf8] sm:$0xff]
    %v3821 = vunpack.c.l.b16 %v3757
    %v3822 = vunpack.c.h.b16 %v3757
    %v3823 = vunpack.c.l.b16 %v3758
    %v3824 = vunpack.c.h.b16 %v3758
    %v3825 = vunpack.c.l.b16 %v3759
    %v3826 = vunpack.c.h.b16 %v3759
    %v3827 = vunpack.c.l.b16 %v3760
    %v3828 = vunpack.c.h.b16 %v3760
    %v3829 = vunpack.c.l.b16 %v3761
    %v3830 = vunpack.c.h.b16 %v3761
    %v3831 = vunpack.c.l.b16 %v3762
    %v3832 = vunpack.c.h.b16 %v3762
    %v3833 = vunpack.c.l.b16 %v3763
    %v3834 = vunpack.c.h.b16 %v3763
    %v3835 = vunpack.c.l.b16 %v3764
    %v3836 = vunpack.c.h.b16 %v3764
    %v3837 = vunpack.c.l.b16 %v3765
    %v3838 = vunpack.c.h.b16 %v3765
    %v3839 = vunpack.c.l.b16 %v3766
    %v3840 = vunpack.c.h.b16 %v3766
    %v3841 = vunpack.c.l.b16 %v3767
    %v3842 = vunpack.c.h.b16 %v3767
    %v3843 = vunpack.c.l.b16 %v3768
    %v3844 = vunpack.c.h.b16 %v3768
    %v3845 = vunpack.c.l.b16 %v3769
    %v3846 = vunpack.c.h.b16 %v3769
    %v3847 = vunpack.c.l.b16 %v3770
    %v3848 = vunpack.c.h.b16 %v3770
    %v3849 = vunpack.c.l.b16 %v3771
    %v3850 = vunpack.c.h.b16 %v3771
    %v3851 = vunpack.c.l.b16 %v3772
    %v3852 = vunpack.c.h.b16 %v3772
    %v3853 = vunpack.c.l.b16 %v3773
    %v3854 = vunpack.c.h.b16 %v3773
    %v3855 = vunpack.c.l.b16 %v3774
    %v3856 = vunpack.c.h.b16 %v3774
    %v3857 = vunpack.c.l.b16 %v3775
    %v3858 = vunpack.c.h.b16 %v3775
    %v3859 = vunpack.c.l.b16 %v3776
    %v3860 = vunpack.c.h.b16 %v3776
    %v3861 = vunpack.c.l.b16 %v3777
    %v3862 = vunpack.c.h.b16 %v3777
    %v3863 = vunpack.c.l.b16 %v3778
    %v3864 = vunpack.c.h.b16 %v3778
    %v3865 = vunpack.c.l.b16 %v3779
    %v3866 = vunpack.c.h.b16 %v3779
    %v3867 = vunpack.c.l.b16 %v3780
    %v3868 = vunpack.c.h.b16 %v3780
    %v3869 = vunpack.c.l.b16 %v3781
    %v3870 = vunpack.c.h.b16 %v3781
    %v3871 = vunpack.c.l.b16 %v3782
    %v3872 = vunpack.c.h.b16 %v3782
    %v3873 = vunpack.c.l.b16 %v3783
    %v3874 = vunpack.c.h.b16 %v3783
    %v3875 = vunpack.c.l.b16 %v3784
    %v3876 = vunpack.c.h.b16 %v3784
    %v3877 = vunpack.c.l.b16 %v3785
    %v3878 = vunpack.c.h.b16 %v3785
    %v3879 = vunpack.c.l.b16 %v3786
    %v3880 = vunpack.c.h.b16 %v3786
    %v3881 = vunpack.c.l.b16 %v3787
    %v3882 = vunpack.c.h.b16 %v3787
    %v3883 = vunpack.c.l.b16 %v3788
    %v3884 = vunpack.c.h.b16 %v3788
    %v3885 = vpack.c.b16 %v3825, %v3821
    %v3886 = vpack.c.b16 %v3826, %v3822
    %v3887 = vpack.c.b16 %v3827, %v3823
    %v3888 = vpack.c.b16 %v3828, %v3824
    %v3889 = vpack.c.b16 %v3833, %v3829
    %v3890 = vpack.c.b16 %v3834, %v3830
    %v3891 = vpack.c.b16 %v3835, %v3831
    %v3892 = vpack.c.b16 %v3836, %v3832
    %v3893 = vpack.c.b16 %v3841, %v3837
    %v3894 = vpack.c.b16 %v3842, %v3838
    %v3895 = vpack.c.b16 %v3843, %v3839
    %v3896 = vpack.c.b16 %v3844, %v3840
    %v3897 = vpack.c.b16 %v3849, %v3845
    %v3898 = vpack.c.b16 %v3850, %v3846
    %v3899 = vpack.c.b16 %v3851, %v3847
    %v3900 = vpack.c.b16 %v3852, %v3848
    %v3901 = vpack.c.b16 %v3857, %v3853
    %v3902 = vpack.c.b16 %v3858, %v3854
    %v3903 = vpack.c.b16 %v3859, %v3855
    %v3904 = vpack.c.b16 %v3860, %v3856
    %v3905 = vpack.c.b16 %v3865, %v3861
    %v3906 = vpack.c.b16 %v3866, %v3862
    %v3907 = vpack.c.b16 %v3867, %v3863
    %v3908 = vpack.c.b16 %v3868, %v3864
    %v3909 = vpack.c.b16 %v3873, %v3869
    %v3910 = vpack.c.b16 %v3874, %v3870
    %v3911 = vpack.c.b16 %v3875, %v3871
    %v3912 = vpack.c.b16 %v3876, %v3872
    %v3913 = vpack.c.b16 %v3881, %v3877
    %v3914 = vpack.c.b16 %v3882, %v3878
    %v3915 = vpack.c.b16 %v3883, %v3879
    %v3916 = vpack.c.b16 %v3884, %v3880
    %3949 = vmatprep.subr.bf16.mxu0 %v3886
    %3950 = vmatpush1.bf16.msra.mxu0 %v3885
    %3951 = vmatprep.subr.bf16.mxu0 %v3890
    %3952 = vmatpush1.bf16.msra.mxu0 %v3889
    %3953 = vmatprep.subr.bf16.mxu0 %v3894
    %3954 = vmatpush1.bf16.msra.mxu0 %v3893
    %3955 = vmatprep.subr.bf16.mxu0 %v3898
    %3956 = vmatpush1.bf16.msra.mxu0 %v3897
    %3957 = vmatprep.subr.bf16.mxu0 %v3902
    %3958 = vmatpush1.bf16.msra.mxu0 %v3901
    %3959 = vmatprep.subr.bf16.mxu0 %v3906
    %3960 = vmatpush1.bf16.msra.mxu0 %v3905
    %3961 = vmatprep.subr.bf16.mxu0 %v3910
    %3962 = vmatpush1.bf16.msra.mxu0 %v3909
    %3963 = vmatprep.subr.bf16.mxu0 %v3914
    %3964 = vmatpush1.bf16.msra.mxu0 %v3913
    %3965 = vmatprep.subr.bf16.mxu0 0
    %3966 = vmatpush1.bf16.msra.mxu0 0
    %3967 = vmatprep.subr.bf16.mxu0 0
    %3968 = vmatpush1.bf16.msra.mxu0 0
    %3969 = vmatprep.subr.bf16.mxu0 0
    %3970 = vmatpush1.bf16.msra.mxu0 0
    %3971 = vmatprep.subr.bf16.mxu0 0
    %3972 = vmatpush1.bf16.msra.mxu0 0
    %3973 = vmatprep.subr.bf16.mxu0 0
    %3974 = vmatpush1.bf16.msra.mxu0 0
    %3975 = vmatprep.subr.bf16.mxu0 0
    %3976 = vmatpush1.bf16.msra.mxu0 0
    %3977 = vmatprep.subr.bf16.mxu0 0
    %3978 = vmatpush1.bf16.msra.mxu0 0
    %3979 = vmatprep.subr.bf16.mxu0 0
    %3980 = vmatpush1.bf16.msra.mxu0 0
    %3981 = vmatprep.mubr.bf16.mxu0 0
    %3982 = vmatmul.mubr.bf16.gmra.mrb[0].mxu0 %v3756
    %v3983 = vpop.f32.mrb[0].mxu0
    %v3984 = vadd.f32 0.0, %v3983
    %v3985 = vpop.f32.mrb[0].mxu0
    %v3986 = vadd.f32 0.0, %v3985
    %v3987 = vpop.f32.mrb[0].mxu0
    %v3988 = vpop.f32.mrb[0].mxu0
    %3989 = vdwg.mxu0
    %3990 = vmatprep.subr.bf16.mxu0 %v3888
    %3991 = vmatpush1.bf16.msra.mxu0 %v3887
    %3992 = vmatprep.subr.bf16.mxu0 %v3892
    %3993 = vmatpush1.bf16.msra.mxu0 %v3891
    %3994 = vmatprep.subr.bf16.mxu0 %v3896
    %3995 = vmatpush1.bf16.msra.mxu0 %v3895
    %3996 = vmatprep.subr.bf16.mxu0 %v3900
    %3997 = vmatpush1.bf16.msra.mxu0 %v3899
    %3998 = vmatprep.subr.bf16.mxu0 %v3904
    %3999 = vmatpush1.bf16.msra.mxu0 %v3903
    %4000 = vmatprep.subr.bf16.mxu0 %v3908
    %4001 = vmatpush1.bf16.msra.mxu0 %v3907
    %4002 = vmatprep.subr.bf16.mxu0 %v3912
    %4003 = vmatpush1.bf16.msra.mxu0 %v3911
    %4004 = vmatprep.subr.bf16.mxu0 %v3916
    %4005 = vmatpush1.bf16.msra.mxu0 %v3915
    %4006 = vmatprep.subr.bf16.mxu0 0
    %4007 = vmatpush1.bf16.msra.mxu0 0
    %4008 = vmatprep.subr.bf16.mxu0 0
    %4009 = vmatpush1.bf16.msra.mxu0 0
    %4010 = vmatprep.subr.bf16.mxu0 0
    %4011 = vmatpush1.bf16.msra.mxu0 0
    %4012 = vmatprep.subr.bf16.mxu0 0
    %4013 = vmatpush1.bf16.msra.mxu0 0
    %4014 = vmatprep.subr.bf16.mxu0 0
    %4015 = vmatpush1.bf16.msra.mxu0 0
    %4016 = vmatprep.subr.bf16.mxu0 0
    %4017 = vmatpush1.bf16.msra.mxu0 0
    %4018 = vmatprep.subr.bf16.mxu0 0
    %4019 = vmatpush1.bf16.msra.mxu0 0
    %4020 = vmatprep.subr.bf16.mxu0 0
    %4021 = vmatpush1.bf16.msra.mxu0 0
    %4022 = vmatprep.mubr.bf16.mxu0 0
    %4023 = vmatmul.mubr.bf16.gmra.mrb[0].mxu0 %v3756
    %v4024 = vpop.f32.mrb[0].mxu0
    %v4025 = vadd.f32 0.0, %v4024
    %v4026 = vpop.f32.mrb[0].mxu0
    %v4027 = vadd.f32 0.0, %v4026
    %v4028 = vpop.f32.mrb[0].mxu0
    %v4029 = vpop.f32.mrb[0].mxu0
    %4030 = vdwg.mxu0
    %v4031 = vadd.f32 %v3752, %v3984
    %v4032 = vadd.f32 %v3753, %v3986
    %v4033 = vadd.f32 %v3754, %v4025
    %v4034 = vadd.f32 %v3755, %v4027
    %v4035 = vxor.u32 %v4031, 2147483648
    %v4036 = vxor.u32 %v4032, 2147483648
    %v4037 = vxor.u32 %v4033, 2147483648
    %v4038 = vmul.f32 %v4035, 1.442695
    %v4039 = vpow.pop %v4038
    %v4040 = vmul.f32 %v4036, 1.442695
    %v4041 = vpow.pop %v4040
    %v4042 = vmul.f32 %v4037, 1.442695
    %v4043 = vpow.pop %v4042
    %v4044 = vadd.f32 %v4039, 1.0
    %v4045 = vadd.f32 %v4041, 1.0
    %v4046 = vadd.f32 %v4043, 1.0
    %v4047 = vrcp.pop %v4044
    %v4048 = vmul.f32 1.0, %v4047
    %v4049 = vrcp.pop %v4045
    %v4050 = vmul.f32 1.0, %v4049
    %v4051 = vrcp.pop %v4046
    %v4052 = vmul.f32 1.0, %v4051
    %v4053 = vtanh.pop %v4034
    %v4054 = vmul.f32 %v4050, %v3748
    %v4055 = vmul.f32 %v4048, %v4053
    %v4056 = vadd.f32 %v4054, %v4055
    %v4057 = vtanh.pop %v4056
    %v4058 = vmul.f32 %v4052, %v4057
    %4059 = vst [vmem:[%s1171] sm:$0xff] %v4058
    %v4060 = vld [vmem:[%s1173] sm:$0xff]
    %v4061 = vld [vmem:[%s1173 + $0x8] sm:$0xff]
    %v4062 = vld [vmem:[%s1173 + $0x10] sm:$0xff]
    %v4063 = vld [vmem:[%s1173 + $0x18] sm:$0xff]
    %v4064 = vpack.c.bf16 %v4058, %v4058
    %v4065 = vld [vmem:[%s3448] sm:$0xff]
    %v4066 = vld [vmem:[%s3448 + $0x8] sm:$0xff]
    %v4067 = vld [vmem:[%s3448 + $0x10] sm:$0xff]
    %v4068 = vld [vmem:[%s3448 + $0x18] sm:$0xff]
    %v4069 = vld [vmem:[%s3448 + $0x20] sm:$0xff]
    %v4070 = vld [vmem:[%s3448 + $0x28] sm:$0xff]
    %v4071 = vld [vmem:[%s3448 + $0x30] sm:$0xff]
    %v4072 = vld [vmem:[%s3448 + $0x38] sm:$0xff]
    %v4073 = vld [vmem:[%s3448 + $0x40] sm:$0xff]
    %v4074 = vld [vmem:[%s3448 + $0x48] sm:$0xff]
    %v4075 = vld [vmem:[%s3448 + $0x50] sm:$0xff]
    %v4076 = vld [vmem:[%s3448 + $0x58] sm:$0xff]
    %v4077 = vld [vmem:[%s3448 + $0x60] sm:$0xff]
    %v4078 = vld [vmem:[%s3448 + $0x68] sm:$0xff]
    %v4079 = vld [vmem:[%s3448 + $0x70] sm:$0xff]
    %v4080 = vld [vmem:[%s3448 + $0x78] sm:$0xff]
    %v4081 = vld [vmem:[%s3448 + $0x80] sm:$0xff]
    %v4082 = vld [vmem:[%s3448 + $0x88] sm:$0xff]
    %v4083 = vld [vmem:[%s3448 + $0x90] sm:$0xff]
    %v4084 = vld [vmem:[%s3448 + $0x98] sm:$0xff]
    %v4085 = vld [vmem:[%s3448 + $0xa0] sm:$0xff]
    %v4086 = vld [vmem:[%s3448 + $0xa8] sm:$0xff]
    %v4087 = vld [vmem:[%s3448 + $0xb0] sm:$0xff]
    %v4088 = vld [vmem:[%s3448 + $0xb8] sm:$0xff]
    %v4089 = vld [vmem:[%s3448 + $0xc0] sm:$0xff]
    %v4090 = vld [vmem:[%s3448 + $0xc8] sm:$0xff]
    %v4091 = vld [vmem:[%s3448 + $0xd0] sm:$0xff]
    %v4092 = vld [vmem:[%s3448 + $0xd8] sm:$0xff]
    %v4093 = vld [vmem:[%s3448 + $0xe0] sm:$0xff]
    %v4094 = vld [vmem:[%s3448 + $0xe8] sm:$0xff]
    %v4095 = vld [vmem:[%s3448 + $0xf0] sm:$0xff]
    %v4096 = vld [vmem:[%s3448 + $0xf8] sm:$0xff]
    %v4129 = vunpack.c.l.b16 %v4065
    %v4130 = vunpack.c.h.b16 %v4065
    %v4131 = vunpack.c.l.b16 %v4066
    %v4132 = vunpack.c.h.b16 %v4066
    %v4133 = vunpack.c.l.b16 %v4067
    %v4134 = vunpack.c.h.b16 %v4067
    %v4135 = vunpack.c.l.b16 %v4068
    %v4136 = vunpack.c.h.b16 %v4068
    %v4137 = vunpack.c.l.b16 %v4069
    %v4138 = vunpack.c.h.b16 %v4069
    %v4139 = vunpack.c.l.b16 %v4070
    %v4140 = vunpack.c.h.b16 %v4070
    %v4141 = vunpack.c.l.b16 %v4071
    %v4142 = vunpack.c.h.b16 %v4071
    %v4143 = vunpack.c.l.b16 %v4072
    %v4144 = vunpack.c.h.b16 %v4072
    %v4145 = vunpack.c.l.b16 %v4073
    %v4146 = vunpack.c.h.b16 %v4073
    %v4147 = vunpack.c.l.b16 %v4074
    %v4148 = vunpack.c.h.b16 %v4074
    %v4149 = vunpack.c.l.b16 %v4075
    %v4150 = vunpack.c.h.b16 %v4075
    %v4151 = vunpack.c.l.b16 %v4076
    %v4152 = vunpack.c.h.b16 %v4076
    %v4153 = vunpack.c.l.b16 %v4077
    %v4154 = vunpack.c.h.b16 %v4077
    %v4155 = vunpack.c.l.b16 %v4078
    %v4156 = vunpack.c.h.b16 %v4078
    %v4157 = vunpack.c.l.b16 %v4079
    %v4158 = vunpack.c.h.b16 %v4079
    %v4159 = vunpack.c.l.b16 %v4080
    %v4160 = vunpack.c.h.b16 %v4080
    %v4161 = vunpack.c.l.b16 %v4081
    %v4162 = vunpack.c.h.b16 %v4081
    %v4163 = vunpack.c.l.b16 %v4082
    %v4164 = vunpack.c.h.b16 %v4082
    %v4165 = vunpack.c.l.b16 %v4083
    %v4166 = vunpack.c.h.b16 %v4083
    %v4167 = vunpack.c.l.b16 %v4084
    %v4168 = vunpack.c.h.b16 %v4084
    %v4169 = vunpack.c.l.b16 %v4085
    %v4170 = vunpack.c.h.b16 %v4085
    %v4171 = vunpack.c.l.b16 %v4086
    %v4172 = vunpack.c.h.b16 %v4086
    %v4173 = vunpack.c.l.b16 %v4087
    %v4174 = vunpack.c.h.b16 %v4087
    %v4175 = vunpack.c.l.b16 %v4088
    %v4176 = vunpack.c.h.b16 %v4088
    %v4177 = vunpack.c.l.b16 %v4089
    %v4178 = vunpack.c.h.b16 %v4089
    %v4179 = vunpack.c.l.b16 %v4090
    %v4180 = vunpack.c.h.b16 %v4090
    %v4181 = vunpack.c.l.b16 %v4091
    %v4182 = vunpack.c.h.b16 %v4091
    %v4183 = vunpack.c.l.b16 %v4092
    %v4184 = vunpack.c.h.b16 %v4092
    %v4185 = vunpack.c.l.b16 %v4093
    %v4186 = vunpack.c.h.b16 %v4093
    %v4187 = vunpack.c.l.b16 %v4094
    %v4188 = vunpack.c.h.b16 %v4094
    %v4189 = vunpack.c.l.b16 %v4095
    %v4190 = vunpack.c.h.b16 %v4095
    %v4191 = vunpack.c.l.b16 %v4096
    %v4192 = vunpack.c.h.b16 %v4096
    %v4193 = vpack.c.b16 %v4133, %v4129
    %v4194 = vpack.c.b16 %v4134, %v4130
    %v4195 = vpack.c.b16 %v4135, %v4131
    %v4196 = vpack.c.b16 %v4136, %v4132
    %v4197 = vpack.c.b16 %v4141, %v4137
    %v4198 = vpack.c.b16 %v4142, %v4138
    %v4199 = vpack.c.b16 %v4143, %v4139
    %v4200 = vpack.c.b16 %v4144, %v4140
    %v4201 = vpack.c.b16 %v4149, %v4145
    %v4202 = vpack.c.b16 %v4150, %v4146
    %v4203 = vpack.c.b16 %v4151, %v4147
    %v4204 = vpack.c.b16 %v4152, %v4148
    %v4205 = vpack.c.b16 %v4157, %v4153
    %v4206 = vpack.c.b16 %v4158, %v4154
    %v4207 = vpack.c.b16 %v4159, %v4155
    %v4208 = vpack.c.b16 %v4160, %v4156
    %v4209 = vpack.c.b16 %v4165, %v4161
    %v4210 = vpack.c.b16 %v4166, %v4162
    %v4211 = vpack.c.b16 %v4167, %v4163
    %v4212 = vpack.c.b16 %v4168, %v4164
    %v4213 = vpack.c.b16 %v4173, %v4169
    %v4214 = vpack.c.b16 %v4174, %v4170
    %v4215 = vpack.c.b16 %v4175, %v4171
    %v4216 = vpack.c.b16 %v4176, %v4172
    %v4217 = vpack.c.b16 %v4181, %v4177
    %v4218 = vpack.c.b16 %v4182, %v4178
    %v4219 = vpack.c.b16 %v4183, %v4179
    %v4220 = vpack.c.b16 %v4184, %v4180
    %v4221 = vpack.c.b16 %v4189, %v4185
    %v4222 = vpack.c.b16 %v4190, %v4186
    %v4223 = vpack.c.b16 %v4191, %v4187
    %v4224 = vpack.c.b16 %v4192, %v4188
    %4257 = vmatprep.subr.bf16.mxu0 %v4194
    %4258 = vmatpush1.bf16.msra.mxu0 %v4193
    %4259 = vmatprep.subr.bf16.mxu0 %v4198
    %4260 = vmatpush1.bf16.msra.mxu0 %v4197
    %4261 = vmatprep.subr.bf16.mxu0 %v4202
    %4262 = vmatpush1.bf16.msra.mxu0 %v4201
    %4263 = vmatprep.subr.bf16.mxu0 %v4206
    %4264 = vmatpush1.bf16.msra.mxu0 %v4205
    %4265 = vmatprep.subr.bf16.mxu0 %v4210
    %4266 = vmatpush1.bf16.msra.mxu0 %v4209
    %4267 = vmatprep.subr.bf16.mxu0 %v4214
    %4268 = vmatpush1.bf16.msra.mxu0 %v4213
    %4269 = vmatprep.subr.bf16.mxu0 %v4218
    %4270 = vmatpush1.bf16.msra.mxu0 %v4217
    %4271 = vmatprep.subr.bf16.mxu0 %v4222
    %4272 = vmatpush1.bf16.msra.mxu0 %v4221
    %4273 = vmatprep.subr.bf16.mxu0 0
    %4274 = vmatpush1.bf16.msra.mxu0 0
    %4275 = vmatprep.subr.bf16.mxu0 0
    %4276 = vmatpush1.bf16.msra.mxu0 0
    %4277 = vmatprep.subr.bf16.mxu0 0
    %4278 = vmatpush1.bf16.msra.mxu0 0
    %4279 = vmatprep.subr.bf16.mxu0 0
    %4280 = vmatpush1.bf16.msra.mxu0 0
    %4281 = vmatprep.subr.bf16.mxu0 0
    %4282 = vmatpush1.bf16.msra.mxu0 0
    %4283 = vmatprep.subr.bf16.mxu0 0
    %4284 = vmatpush1.bf16.msra.mxu0 0
    %4285 = vmatprep.subr.bf16.mxu0 0
    %4286 = vmatpush1.bf16.msra.mxu0 0
    %4287 = vmatprep.subr.bf16.mxu0 0
    %4288 = vmatpush1.bf16.msra.mxu0 0
    %4289 = vmatprep.mubr.bf16.mxu0 0
    %4290 = vmatmul.mubr.bf16.gmra.mrb[0].mxu0 %v4064
    %v4291 = vpop.f32.mrb[0].mxu0
    %v4292 = vadd.f32 0.0, %v4291
    %v4293 = vpop.f32.mrb[0].mxu0
    %v4294 = vadd.f32 0.0, %v4293
    %v4295 = vpop.f32.mrb[0].mxu0
    %v4296 = vpop.f32.mrb[0].mxu0
    %4297 = vdwg.mxu0
    %4298 = vmatprep.subr.bf16.mxu0 %v4196
    %4299 = vmatpush1.bf16.msra.mxu0 %v4195
    %4300 = vmatprep.subr.bf16.mxu0 %v4200
    %4301 = vmatpush1.bf16.msra.mxu0 %v4199
    %4302 = vmatprep.subr.bf16.mxu0 %v4204
    %4303 = vmatpush1.bf16.msra.mxu0 %v4203
    %4304 = vmatprep.subr.bf16.mxu0 %v4208
    %4305 = vmatpush1.bf16.msra.mxu0 %v4207
    %4306 = vmatprep.subr.bf16.mxu0 %v4212
    %4307 = vmatpush1.bf16.msra.mxu0 %v4211
    %4308 = vmatprep.subr.bf16.mxu0 %v4216
    %4309 = vmatpush1.bf16.msra.mxu0 %v4215
    %4310 = vmatprep.subr.bf16.mxu0 %v4220
    %4311 = vmatpush1.bf16.msra.mxu0 %v4219
    %4312 = vmatprep.subr.bf16.mxu0 %v4224
    %4313 = vmatpush1.bf16.msra.mxu0 %v4223
    %4314 = vmatprep.subr.bf16.mxu0 0
    %4315 = vmatpush1.bf16.msra.mxu0 0
    %4316 = vmatprep.subr.bf16.mxu0 0
    %4317 = vmatpush1.bf16.msra.mxu0 0
    %4318 = vmatprep.subr.bf16.mxu0 0
    %4319 = vmatpush1.bf16.msra.mxu0 0
    %4320 = vmatprep.subr.bf16.mxu0 0
    %4321 = vmatpush1.bf16.msra.mxu0 0
    %4322 = vmatprep.subr.bf16.mxu0 0
    %4323 = vmatpush1.bf16.msra.mxu0 0
    %4324 = vmatprep.subr.bf16.mxu0 0
    %4325 = vmatpush1.bf16.msra.mxu0 0
    %4326 = vmatprep.subr.bf16.mxu0 0
    %4327 = vmatpush1.bf16.msra.mxu0 0
    %4328 = vmatprep.subr.bf16.mxu0 0
    %4329 = vmatpush1.bf16.msra.mxu0 0
    %4330 = vmatprep.mubr.bf16.mxu0 0
    %4331 = vmatmul.mubr.bf16.gmra.mrb[0].mxu0 %v4064
    %v4332 = vpop.f32.mrb[0].mxu0
    %v4333 = vadd.f32 0.0, %v4332
    %v4334 = vpop.f32.mrb[0].mxu0
    %v4335 = vadd.f32 0.0, %v4334
    %v4336 = vpop.f32.mrb[0].mxu0
    %v4337 = vpop.f32.mrb[0].mxu0
    %4338 = vdwg.mxu0
    %v4339 = vadd.f32 %v4060, %v4292
    %v4340 = vadd.f32 %v4061, %v4294
    %v4341 = vadd.f32 %v4062, %v4333
    %v4342 = vadd.f32 %v4063, %v4335
    %v4343 = vxor.u32 %v4339, 2147483648
    %v4344 = vxor.u32 %v4340, 2147483648
    %v4345 = vxor.u32 %v4341, 2147483648
    %v4346 = vmul.f32 %v4343, 1.442695
    %v4347 = vpow.pop %v4346
    %v4348 = vmul.f32 %v4344, 1.442695
    %v4349 = vpow.pop %v4348
    %v4350 = vmul.f32 %v4345, 1.442695
    %v4351 = vpow.pop %v4350
    %v4352 = vadd.f32 %v4347, 1.0
    %v4353 = vadd.f32 %v4349, 1.0
    %v4354 = vadd.f32 %v4351, 1.0
    %v4355 = vrcp.pop %v4352
    %v4356 = vmul.f32 1.0, %v4355
    %v4357 = vrcp.pop %v4353
    %v4358 = vmul.f32 1.0, %v4357
    %v4359 = vrcp.pop %v4354
    %v4360 = vmul.f32 1.0, %v4359
    %v4361 = vtanh.pop %v4342
    %v4362 = vmul.f32 %v4358, %v4056
    %v4363 = vmul.f32 %v4356, %v4361
    %v4364 = vadd.f32 %v4362, %v4363
    %v4365 = vtanh.pop %v4364
    %v4366 = vmul.f32 %v4360, %v4365
    %4367 = vst [vmem:[%s1481] sm:$0xff] %v4366
    %v4368 = vld [vmem:[%s1483] sm:$0xff]
    %v4369 = vld [vmem:[%s1483 + $0x8] sm:$0xff]
    %v4370 = vld [vmem:[%s1483 + $0x10] sm:$0xff]
    %v4371 = vld [vmem:[%s1483 + $0x18] sm:$0xff]
    %v4372 = vpack.c.bf16 %v4366, %v4366
    %v4373 = vld [vmem:[%s3448] sm:$0xff]
    %v4374 = vld [vmem:[%s3448 + $0x8] sm:$0xff]
    %v4375 = vld [vmem:[%s3448 + $0x10] sm:$0xff]
    %v4376 = vld [vmem:[%s3448 + $0x18] sm:$0xff]
    %v4377 = vld [vmem:[%s3448 + $0x20] sm:$0xff]
    %v4378 = vld [vmem:[%s3448 + $0x28] sm:$0xff]
    %v4379 = vld [vmem:[%s3448 + $0x30] sm:$0xff]
    %v4380 = vld [vmem:[%s3448 + $0x38] sm:$0xff]
    %v4381 = vld [vmem:[%s3448 + $0x40] sm:$0xff]
    %v4382 = vld [vmem:[%s3448 + $0x48] sm:$0xff]
    %v4383 = vld [vmem:[%s3448 + $0x50] sm:$0xff]
    %v4384 = vld [vmem:[%s3448 + $0x58] sm:$0xff]
    %v4385 = vld [vmem:[%s3448 + $0x60] sm:$0xff]
    %v4386 = vld [vmem:[%s3448 + $0x68] sm:$0xff]
    %v4387 = vld [vmem:[%s3448 + $0x70] sm:$0xff]
    %v4388 = vld [vmem:[%s3448 + $0x78] sm:$0xff]
    %v4389 = vld [vmem:[%s3448 + $0x80] sm:$0xff]
    %v4390 = vld [vmem:[%s3448 + $0x88] sm:$0xff]
    %v4391 = vld [vmem:[%s3448 + $0x90] sm:$0xff]
    %v4392 = vld [vmem:[%s3448 + $0x98] sm:$0xff]
    %v4393 = vld [vmem:[%s3448 + $0xa0] sm:$0xff]
    %v4394 = vld [vmem:[%s3448 + $0xa8] sm:$0xff]
    %v4395 = vld [vmem:[%s3448 + $0xb0] sm:$0xff]
    %v4396 = vld [vmem:[%s3448 + $0xb8] sm:$0xff]
    %v4397 = vld [vmem:[%s3448 + $0xc0] sm:$0xff]
    %v4398 = vld [vmem:[%s3448 + $0xc8] sm:$0xff]
    %v4399 = vld [vmem:[%s3448 + $0xd0] sm:$0xff]
    %v4400 = vld [vmem:[%s3448 + $0xd8] sm:$0xff]
    %v4401 = vld [vmem:[%s3448 + $0xe0] sm:$0xff]
    %v4402 = vld [vmem:[%s3448 + $0xe8] sm:$0xff]
    %v4403 = vld [vmem:[%s3448 + $0xf0] sm:$0xff]
    %v4404 = vld [vmem:[%s3448 + $0xf8] sm:$0xff]
    %v4437 = vunpack.c.l.b16 %v4373
    %v4438 = vunpack.c.h.b16 %v4373
    %v4439 = vunpack.c.l.b16 %v4374
    %v4440 = vunpack.c.h.b16 %v4374
    %v4441 = vunpack.c.l.b16 %v4375
    %v4442 = vunpack.c.h.b16 %v4375
    %v4443 = vunpack.c.l.b16 %v4376
    %v4444 = vunpack.c.h.b16 %v4376
    %v4445 = vunpack.c.l.b16 %v4377
    %v4446 = vunpack.c.h.b16 %v4377
    %v4447 = vunpack.c.l.b16 %v4378
    %v4448 = vunpack.c.h.b16 %v4378
    %v4449 = vunpack.c.l.b16 %v4379
    %v4450 = vunpack.c.h.b16 %v4379
    %v4451 = vunpack.c.l.b16 %v4380
    %v4452 = vunpack.c.h.b16 %v4380
    %v4453 = vunpack.c.l.b16 %v4381
    %v4454 = vunpack.c.h.b16 %v4381
    %v4455 = vunpack.c.l.b16 %v4382
    %v4456 = vunpack.c.h.b16 %v4382
    %v4457 = vunpack.c.l.b16 %v4383
    %v4458 = vunpack.c.h.b16 %v4383
    %v4459 = vunpack.c.l.b16 %v4384
    %v4460 = vunpack.c.h.b16 %v4384
    %v4461 = vunpack.c.l.b16 %v4385
    %v4462 = vunpack.c.h.b16 %v4385
    %v4463 = vunpack.c.l.b16 %v4386
    %v4464 = vunpack.c.h.b16 %v4386
    %v4465 = vunpack.c.l.b16 %v4387
    %v4466 = vunpack.c.h.b16 %v4387
    %v4467 = vunpack.c.l.b16 %v4388
    %v4468 = vunpack.c.h.b16 %v4388
    %v4469 = vunpack.c.l.b16 %v4389
    %v4470 = vunpack.c.h.b16 %v4389
    %v4471 = vunpack.c.l.b16 %v4390
    %v4472 = vunpack.c.h.b16 %v4390
    %v4473 = vunpack.c.l.b16 %v4391
    %v4474 = vunpack.c.h.b16 %v4391
    %v4475 = vunpack.c.l.b16 %v4392
    %v4476 = vunpack.c.h.b16 %v4392
    %v4477 = vunpack.c.l.b16 %v4393
    %v4478 = vunpack.c.h.b16 %v4393
    %v4479 = vunpack.c.l.b16 %v4394
    %v4480 = vunpack.c.h.b16 %v4394
    %v4481 = vunpack.c.l.b16 %v4395
    %v4482 = vunpack.c.h.b16 %v4395
    %v4483 = vunpack.c.l.b16 %v4396
    %v4484 = vunpack.c.h.b16 %v4396
    %v4485 = vunpack.c.l.b16 %v4397
    %v4486 = vunpack.c.h.b16 %v4397
    %v4487 = vunpack.c.l.b16 %v4398
    %v4488 = vunpack.c.h.b16 %v4398
    %v4489 = vunpack.c.l.b16 %v4399
    %v4490 = vunpack.c.h.b16 %v4399
    %v4491 = vunpack.c.l.b16 %v4400
    %v4492 = vunpack.c.h.b16 %v4400
    %v4493 = vunpack.c.l.b16 %v4401
    %v4494 = vunpack.c.h.b16 %v4401
    %v4495 = vunpack.c.l.b16 %v4402
    %v4496 = vunpack.c.h.b16 %v4402
    %v4497 = vunpack.c.l.b16 %v4403
    %v4498 = vunpack.c.h.b16 %v4403
    %v4499 = vunpack.c.l.b16 %v4404
    %v4500 = vunpack.c.h.b16 %v4404
    %v4501 = vpack.c.b16 %v4441, %v4437
    %v4502 = vpack.c.b16 %v4442, %v4438
    %v4503 = vpack.c.b16 %v4443, %v4439
    %v4504 = vpack.c.b16 %v4444, %v4440
    %v4505 = vpack.c.b16 %v4449, %v4445
    %v4506 = vpack.c.b16 %v4450, %v4446
    %v4507 = vpack.c.b16 %v4451, %v4447
    %v4508 = vpack.c.b16 %v4452, %v4448
    %v4509 = vpack.c.b16 %v4457, %v4453
    %v4510 = vpack.c.b16 %v4458, %v4454
    %v4511 = vpack.c.b16 %v4459, %v4455
    %v4512 = vpack.c.b16 %v4460, %v4456
    %v4513 = vpack.c.b16 %v4465, %v4461
    %v4514 = vpack.c.b16 %v4466, %v4462
    %v4515 = vpack.c.b16 %v4467, %v4463
    %v4516 = vpack.c.b16 %v4468, %v4464
    %v4517 = vpack.c.b16 %v4473, %v4469
    %v4518 = vpack.c.b16 %v4474, %v4470
    %v4519 = vpack.c.b16 %v4475, %v4471
    %v4520 = vpack.c.b16 %v4476, %v4472
    %v4521 = vpack.c.b16 %v4481, %v4477
    %v4522 = vpack.c.b16 %v4482, %v4478
    %v4523 = vpack.c.b16 %v4483, %v4479
    %v4524 = vpack.c.b16 %v4484, %v4480
    %v4525 = vpack.c.b16 %v4489, %v4485
    %v4526 = vpack.c.b16 %v4490, %v4486
    %v4527 = vpack.c.b16 %v4491, %v4487
    %v4528 = vpack.c.b16 %v4492, %v4488
    %v4529 = vpack.c.b16 %v4497, %v4493
    %v4530 = vpack.c.b16 %v4498, %v4494
    %v4531 = vpack.c.b16 %v4499, %v4495
    %v4532 = vpack.c.b16 %v4500, %v4496
    %4565 = vmatprep.subr.bf16.mxu0 %v4502
    %4566 = vmatpush1.bf16.msra.mxu0 %v4501
    %4567 = vmatprep.subr.bf16.mxu0 %v4506
    %4568 = vmatpush1.bf16.msra.mxu0 %v4505
    %4569 = vmatprep.subr.bf16.mxu0 %v4510
    %4570 = vmatpush1.bf16.msra.mxu0 %v4509
    %4571 = vmatprep.subr.bf16.mxu0 %v4514
    %4572 = vmatpush1.bf16.msra.mxu0 %v4513
    %4573 = vmatprep.subr.bf16.mxu0 %v4518
    %4574 = vmatpush1.bf16.msra.mxu0 %v4517
    %4575 = vmatprep.subr.bf16.mxu0 %v4522
    %4576 = vmatpush1.bf16.msra.mxu0 %v4521
    %4577 = vmatprep.subr.bf16.mxu0 %v4526
    %4578 = vmatpush1.bf16.msra.mxu0 %v4525
    %4579 = vmatprep.subr.bf16.mxu0 %v4530
    %4580 = vmatpush1.bf16.msra.mxu0 %v4529
    %4581 = vmatprep.subr.bf16.mxu0 0
    %4582 = vmatpush1.bf16.msra.mxu0 0
    %4583 = vmatprep.subr.bf16.mxu0 0
    %4584 = vmatpush1.bf16.msra.mxu0 0
    %4585 = vmatprep.subr.bf16.mxu0 0
    %4586 = vmatpush1.bf16.msra.mxu0 0
    %4587 = vmatprep.subr.bf16.mxu0 0
    %4588 = vmatpush1.bf16.msra.mxu0 0
    %4589 = vmatprep.subr.bf16.mxu0 0
    %4590 = vmatpush1.bf16.msra.mxu0 0
    %4591 = vmatprep.subr.bf16.mxu0 0
    %4592 = vmatpush1.bf16.msra.mxu0 0
    %4593 = vmatprep.subr.bf16.mxu0 0
    %4594 = vmatpush1.bf16.msra.mxu0 0
    %4595 = vmatprep.subr.bf16.mxu0 0
    %4596 = vmatpush1.bf16.msra.mxu0 0
    %4597 = vmatprep.mubr.bf16.mxu0 0
    %4598 = vmatmul.mubr.bf16.gmra.mrb[0].mxu0 %v4372
    %v4599 = vpop.f32.mrb[0].mxu0
    %v4600 = vadd.f32 0.0, %v4599
    %v4601 = vpop.f32.mrb[0].mxu0
    %v4602 = vadd.f32 0.0, %v4601
    %v4603 = vpop.f32.mrb[0].mxu0
    %v4604 = vpop.f32.mrb[0].mxu0
    %4605 = vdwg.mxu0
    %4606 = vmatprep.subr.bf16.mxu0 %v4504
    %4607 = vmatpush1.bf16.msra.mxu0 %v4503
    %4608 = vmatprep.subr.bf16.mxu0 %v4508
    %4609 = vmatpush1.bf16.msra.mxu0 %v4507
    %4610 = vmatprep.subr.bf16.mxu0 %v4512
    %4611 = vmatpush1.bf16.msra.mxu0 %v4511
    %4612 = vmatprep.subr.bf16.mxu0 %v4516
    %4613 = vmatpush1.bf16.msra.mxu0 %v4515
    %4614 = vmatprep.subr.bf16.mxu0 %v4520
    %4615 = vmatpush1.bf16.msra.mxu0 %v4519
    %4616 = vmatprep.subr.bf16.mxu0 %v4524
    %4617 = vmatpush1.bf16.msra.mxu0 %v4523
    %4618 = vmatprep.subr.bf16.mxu0 %v4528
    %4619 = vmatpush1.bf16.msra.mxu0 %v4527
    %4620 = vmatprep.subr.bf16.mxu0 %v4532
    %4621 = vmatpush1.bf16.msra.mxu0 %v4531
    %4622 = vmatprep.subr.bf16.mxu0 0
    %4623 = vmatpush1.bf16.msra.mxu0 0
    %4624 = vmatprep.subr.bf16.mxu0 0
    %4625 = vmatpush1.bf16.msra.mxu0 0
    %4626 = vmatprep.subr.bf16.mxu0 0
    %4627 = vmatpush1.bf16.msra.mxu0 0
    %4628 = vmatprep.subr.bf16.mxu0 0
    %4629 = vmatpush1.bf16.msra.mxu0 0
    %4630 = vmatprep.subr.bf16.mxu0 0
    %4631 = vmatpush1.bf16.msra.mxu0 0
    %4632 = vmatprep.subr.bf16.mxu0 0
    %4633 = vmatpush1.bf16.msra.mxu0 0
    %4634 = vmatprep.subr.bf16.mxu0 0
    %4635 = vmatpush1.bf16.msra.mxu0 0
    %4636 = vmatprep.subr.bf16.mxu0 0
    %4637 = vmatpush1.bf16.msra.mxu0 0
    %4638 = vmatprep.mubr.bf16.mxu0 0
    %4639 = vmatmul.mubr.bf16.gmra.mrb[0].mxu0 %v4372
    %v4640 = vpop.f32.mrb[0].mxu0
    %v4641 = vadd.f32 0.0, %v4640
    %v4642 = vpop.f32.mrb[0].mxu0
    %v4643 = vadd.f32 0.0, %v4642
    %v4644 = vpop.f32.mrb[0].mxu0
    %v4645 = vpop.f32.mrb[0].mxu0
    %4646 = vdwg.mxu0
    %v4647 = vadd.f32 %v4368, %v4600
    %v4648 = vadd.f32 %v4369, %v4602
    %v4649 = vadd.f32 %v4370, %v4641
    %v4650 = vadd.f32 %v4371, %v4643
    %v4651 = vxor.u32 %v4647, 2147483648
    %v4652 = vxor.u32 %v4648, 2147483648
    %v4653 = vxor.u32 %v4649, 2147483648
    %v4654 = vmul.f32 %v4651, 1.442695
    %v4655 = vpow.pop %v4654
    %v4656 = vmul.f32 %v4652, 1.442695
    %v4657 = vpow.pop %v4656
    %v4658 = vmul.f32 %v4653, 1.442695
    %v4659 = vpow.pop %v4658
    %v4660 = vadd.f32 %v4655, 1.0
    %v4661 = vadd.f32 %v4657, 1.0
    %v4662 = vadd.f32 %v4659, 1.0
    %v4663 = vrcp.pop %v4660
    %v4664 = vmul.f32 1.0, %v4663
    %v4665 = vrcp.pop %v4661
    %v4666 = vmul.f32 1.0, %v4665
    %v4667 = vrcp.pop %v4662
    %v4668 = vmul.f32 1.0, %v4667
    %v4669 = vtanh.pop %v4650
    %v4670 = vmul.f32 %v4666, %v4364
    %v4671 = vmul.f32 %v4664, %v4669
    %v4672 = vadd.f32 %v4670, %v4671
    %v4673 = vtanh.pop %v4672
    %v4674 = vmul.f32 %v4668, %v4673
    %4675 = vst [vmem:[%s1791] sm:$0xff] %v4674
    %v4676 = vld [vmem:[%s1793] sm:$0xff]
    %v4677 = vld [vmem:[%s1793 + $0x8] sm:$0xff]
    %v4678 = vld [vmem:[%s1793 + $0x10] sm:$0xff]
    %v4679 = vld [vmem:[%s1793 + $0x18] sm:$0xff]
    %v4680 = vpack.c.bf16 %v4674, %v4674
    %v4681 = vld [vmem:[%s3448] sm:$0xff]
    %v4682 = vld [vmem:[%s3448 + $0x8] sm:$0xff]
    %v4683 = vld [vmem:[%s3448 + $0x10] sm:$0xff]
    %v4684 = vld [vmem:[%s3448 + $0x18] sm:$0xff]
    %v4685 = vld [vmem:[%s3448 + $0x20] sm:$0xff]
    %v4686 = vld [vmem:[%s3448 + $0x28] sm:$0xff]
    %v4687 = vld [vmem:[%s3448 + $0x30] sm:$0xff]
    %v4688 = vld [vmem:[%s3448 + $0x38] sm:$0xff]
    %v4689 = vld [vmem:[%s3448 + $0x40] sm:$0xff]
    %v4690 = vld [vmem:[%s3448 + $0x48] sm:$0xff]
    %v4691 = vld [vmem:[%s3448 + $0x50] sm:$0xff]
    %v4692 = vld [vmem:[%s3448 + $0x58] sm:$0xff]
    %v4693 = vld [vmem:[%s3448 + $0x60] sm:$0xff]
    %v4694 = vld [vmem:[%s3448 + $0x68] sm:$0xff]
    %v4695 = vld [vmem:[%s3448 + $0x70] sm:$0xff]
    %v4696 = vld [vmem:[%s3448 + $0x78] sm:$0xff]
    %v4697 = vld [vmem:[%s3448 + $0x80] sm:$0xff]
    %v4698 = vld [vmem:[%s3448 + $0x88] sm:$0xff]
    %v4699 = vld [vmem:[%s3448 + $0x90] sm:$0xff]
    %v4700 = vld [vmem:[%s3448 + $0x98] sm:$0xff]
    %v4701 = vld [vmem:[%s3448 + $0xa0] sm:$0xff]
    %v4702 = vld [vmem:[%s3448 + $0xa8] sm:$0xff]
    %v4703 = vld [vmem:[%s3448 + $0xb0] sm:$0xff]
    %v4704 = vld [vmem:[%s3448 + $0xb8] sm:$0xff]
    %v4705 = vld [vmem:[%s3448 + $0xc0] sm:$0xff]
    %v4706 = vld [vmem:[%s3448 + $0xc8] sm:$0xff]
    %v4707 = vld [vmem:[%s3448 + $0xd0] sm:$0xff]
    %v4708 = vld [vmem:[%s3448 + $0xd8] sm:$0xff]
    %v4709 = vld [vmem:[%s3448 + $0xe0] sm:$0xff]
    %v4710 = vld [vmem:[%s3448 + $0xe8] sm:$0xff]
    %v4711 = vld [vmem:[%s3448 + $0xf0] sm:$0xff]
    %v4712 = vld [vmem:[%s3448 + $0xf8] sm:$0xff]
    %v4745 = vunpack.c.l.b16 %v4681
    %v4746 = vunpack.c.h.b16 %v4681
    %v4747 = vunpack.c.l.b16 %v4682
    %v4748 = vunpack.c.h.b16 %v4682
    %v4749 = vunpack.c.l.b16 %v4683
    %v4750 = vunpack.c.h.b16 %v4683
    %v4751 = vunpack.c.l.b16 %v4684
    %v4752 = vunpack.c.h.b16 %v4684
    %v4753 = vunpack.c.l.b16 %v4685
    %v4754 = vunpack.c.h.b16 %v4685
    %v4755 = vunpack.c.l.b16 %v4686
    %v4756 = vunpack.c.h.b16 %v4686
    %v4757 = vunpack.c.l.b16 %v4687
    %v4758 = vunpack.c.h.b16 %v4687
    %v4759 = vunpack.c.l.b16 %v4688
    %v4760 = vunpack.c.h.b16 %v4688
    %v4761 = vunpack.c.l.b16 %v4689
    %v4762 = vunpack.c.h.b16 %v4689
    %v4763 = vunpack.c.l.b16 %v4690
    %v4764 = vunpack.c.h.b16 %v4690
    %v4765 = vunpack.c.l.b16 %v4691
    %v4766 = vunpack.c.h.b16 %v4691
    %v4767 = vunpack.c.l.b16 %v4692
    %v4768 = vunpack.c.h.b16 %v4692
    %v4769 = vunpack.c.l.b16 %v4693
    %v4770 = vunpack.c.h.b16 %v4693
    %v4771 = vunpack.c.l.b16 %v4694
    %v4772 = vunpack.c.h.b16 %v4694
    %v4773 = vunpack.c.l.b16 %v4695
    %v4774 = vunpack.c.h.b16 %v4695
    %v4775 = vunpack.c.l.b16 %v4696
    %v4776 = vunpack.c.h.b16 %v4696
    %v4777 = vunpack.c.l.b16 %v4697
    %v4778 = vunpack.c.h.b16 %v4697
    %v4779 = vunpack.c.l.b16 %v4698
    %v4780 = vunpack.c.h.b16 %v4698
    %v4781 = vunpack.c.l.b16 %v4699
    %v4782 = vunpack.c.h.b16 %v4699
    %v4783 = vunpack.c.l.b16 %v4700
    %v4784 = vunpack.c.h.b16 %v4700
    %v4785 = vunpack.c.l.b16 %v4701
    %v4786 = vunpack.c.h.b16 %v4701
    %v4787 = vunpack.c.l.b16 %v4702
    %v4788 = vunpack.c.h.b16 %v4702
    %v4789 = vunpack.c.l.b16 %v4703
    %v4790 = vunpack.c.h.b16 %v4703
    %v4791 = vunpack.c.l.b16 %v4704
    %v4792 = vunpack.c.h.b16 %v4704
    %v4793 = vunpack.c.l.b16 %v4705
    %v4794 = vunpack.c.h.b16 %v4705
    %v4795 = vunpack.c.l.b16 %v4706
    %v4796 = vunpack.c.h.b16 %v4706
    %v4797 = vunpack.c.l.b16 %v4707
    %v4798 = vunpack.c.h.b16 %v4707
    %v4799 = vunpack.c.l.b16 %v4708
    %v4800 = vunpack.c.h.b16 %v4708
    %v4801 = vunpack.c.l.b16 %v4709
    %v4802 = vunpack.c.h.b16 %v4709
    %v4803 = vunpack.c.l.b16 %v4710
    %v4804 = vunpack.c.h.b16 %v4710
    %v4805 = vunpack.c.l.b16 %v4711
    %v4806 = vunpack.c.h.b16 %v4711
    %v4807 = vunpack.c.l.b16 %v4712
    %v4808 = vunpack.c.h.b16 %v4712
    %v4809 = vpack.c.b16 %v4749, %v4745
    %v4810 = vpack.c.b16 %v4750, %v4746
    %v4811 = vpack.c.b16 %v4751, %v4747
    %v4812 = vpack.c.b16 %v4752, %v4748
    %v4813 = vpack.c.b16 %v4757, %v4753
    %v4814 = vpack.c.b16 %v4758, %v4754
    %v4815 = vpack.c.b16 %v4759, %v4755
    %v4816 = vpack.c.b16 %v4760, %v4756
    %v4817 = vpack.c.b16 %v4765, %v4761
    %v4818 = vpack.c.b16 %v4766, %v4762
    %v4819 = vpack.c.b16 %v4767, %v4763
    %v4820 = vpack.c.b16 %v4768, %v4764
    %v4821 = vpack.c.b16 %v4773, %v4769
    %v4822 = vpack.c.b16 %v4774, %v4770
    %v4823 = vpack.c.b16 %v4775, %v4771
    %v4824 = vpack.c.b16 %v4776, %v4772
    %v4825 = vpack.c.b16 %v4781, %v4777
    %v4826 = vpack.c.b16 %v4782, %v4778
    %v4827 = vpack.c.b16 %v4783, %v4779
    %v4828 = vpack.c.b16 %v4784, %v4780
    %v4829 = vpack.c.b16 %v4789, %v4785
    %v4830 = vpack.c.b16 %v4790, %v4786
    %v4831 = vpack.c.b16 %v4791, %v4787
    %v4832 = vpack.c.b16 %v4792, %v4788
    %v4833 = vpack.c.b16 %v4797, %v4793
    %v4834 = vpack.c.b16 %v4798, %v4794
    %v4835 = vpack.c.b16 %v4799, %v4795
    %v4836 = vpack.c.b16 %v4800, %v4796
    %v4837 = vpack.c.b16 %v4805, %v4801
    %v4838 = vpack.c.b16 %v4806, %v4802
    %v4839 = vpack.c.b16 %v4807, %v4803
    %v4840 = vpack.c.b16 %v4808, %v4804
    %4873 = vmatprep.subr.bf16.mxu0 %v4810
    %4874 = vmatpush1.bf16.msra.mxu0 %v4809
    %4875 = vmatprep.subr.bf16.mxu0 %v4814
    %4876 = vmatpush1.bf16.msra.mxu0 %v4813
    %4877 = vmatprep.subr.bf16.mxu0 %v4818
    %4878 = vmatpush1.bf16.msra.mxu0 %v4817
    %4879 = vmatprep.subr.bf16.mxu0 %v4822
    %4880 = vmatpush1.bf16.msra.mxu0 %v4821
    %4881 = vmatprep.subr.bf16.mxu0 %v4826
    %4882 = vmatpush1.bf16.msra.mxu0 %v4825
    %4883 = vmatprep.subr.bf16.mxu0 %v4830
    %4884 = vmatpush1.bf16.msra.mxu0 %v4829
    %4885 = vmatprep.subr.bf16.mxu0 %v4834
    %4886 = vmatpush1.bf16.msra.mxu0 %v4833
    %4887 = vmatprep.subr.bf16.mxu0 %v4838
    %4888 = vmatpush1.bf16.msra.mxu0 %v4837
    %4889 = vmatprep.subr.bf16.mxu0 0
    %4890 = vmatpush1.bf16.msra.mxu0 0
    %4891 = vmatprep.subr.bf16.mxu0 0
    %4892 = vmatpush1.bf16.msra.mxu0 0
    %4893 = vmatprep.subr.bf16.mxu0 0
    %4894 = vmatpush1.bf16.msra.mxu0 0
    %4895 = vmatprep.subr.bf16.mxu0 0
    %4896 = vmatpush1.bf16.msra.mxu0 0
    %4897 = vmatprep.subr.bf16.mxu0 0
    %4898 = vmatpush1.bf16.msra.mxu0 0
    %4899 = vmatprep.subr.bf16.mxu0 0
    %4900 = vmatpush1.bf16.msra.mxu0 0
    %4901 = vmatprep.subr.bf16.mxu0 0
    %4902 = vmatpush1.bf16.msra.mxu0 0
    %4903 = vmatprep.subr.bf16.mxu0 0
    %4904 = vmatpush1.bf16.msra.mxu0 0
    %4905 = vmatprep.mubr.bf16.mxu0 0
    %4906 = vmatmul.mubr.bf16.gmra.mrb[0].mxu0 %v4680
    %v4907 = vpop.f32.mrb[0].mxu0
    %v4908 = vadd.f32 0.0, %v4907
    %v4909 = vpop.f32.mrb[0].mxu0
    %v4910 = vadd.f32 0.0, %v4909
    %v4911 = vpop.f32.mrb[0].mxu0
    %v4912 = vpop.f32.mrb[0].mxu0
    %4913 = vdwg.mxu0
    %4914 = vmatprep.subr.bf16.mxu0 %v4812
    %4915 = vmatpush1.bf16.msra.mxu0 %v4811
    %4916 = vmatprep.subr.bf16.mxu0 %v4816
    %4917 = vmatpush1.bf16.msra.mxu0 %v4815
    %4918 = vmatprep.subr.bf16.mxu0 %v4820
    %4919 = vmatpush1.bf16.msra.mxu0 %v4819
    %4920 = vmatprep.subr.bf16.mxu0 %v4824
    %4921 = vmatpush1.bf16.msra.mxu0 %v4823
    %4922 = vmatprep.subr.bf16.mxu0 %v4828
    %4923 = vmatpush1.bf16.msra.mxu0 %v4827
    %4924 = vmatprep.subr.bf16.mxu0 %v4832
    %4925 = vmatpush1.bf16.msra.mxu0 %v4831
    %4926 = vmatprep.subr.bf16.mxu0 %v4836
    %4927 = vmatpush1.bf16.msra.mxu0 %v4835
    %4928 = vmatprep.subr.bf16.mxu0 %v4840
    %4929 = vmatpush1.bf16.msra.mxu0 %v4839
    %4930 = vmatprep.subr.bf16.mxu0 0
    %4931 = vmatpush1.bf16.msra.mxu0 0
    %4932 = vmatprep.subr.bf16.mxu0 0
    %4933 = vmatpush1.bf16.msra.mxu0 0
    %4934 = vmatprep.subr.bf16.mxu0 0
    %4935 = vmatpush1.bf16.msra.mxu0 0
    %4936 = vmatprep.subr.bf16.mxu0 0
    %4937 = vmatpush1.bf16.msra.mxu0 0
    %4938 = vmatprep.subr.bf16.mxu0 0
    %4939 = vmatpush1.bf16.msra.mxu0 0
    %4940 = vmatprep.subr.bf16.mxu0 0
    %4941 = vmatpush1.bf16.msra.mxu0 0
    %4942 = vmatprep.subr.bf16.mxu0 0
    %4943 = vmatpush1.bf16.msra.mxu0 0
    %4944 = vmatprep.subr.bf16.mxu0 0
    %4945 = vmatpush1.bf16.msra.mxu0 0
    %4946 = vmatprep.mubr.bf16.mxu0 0
    %4947 = vmatmul.mubr.bf16.gmra.mrb[0].mxu0 %v4680
    %v4948 = vpop.f32.mrb[0].mxu0
    %v4949 = vadd.f32 0.0, %v4948
    %v4950 = vpop.f32.mrb[0].mxu0
    %v4951 = vadd.f32 0.0, %v4950
    %v4952 = vpop.f32.mrb[0].mxu0
    %v4953 = vpop.f32.mrb[0].mxu0
    %4954 = vdwg.mxu0
    %v4955 = vadd.f32 %v4676, %v4908
    %v4956 = vadd.f32 %v4677, %v4910
    %v4957 = vadd.f32 %v4678, %v4949
    %v4958 = vadd.f32 %v4679, %v4951
    %v4959 = vxor.u32 %v4955, 2147483648
    %v4960 = vxor.u32 %v4956, 2147483648
    %v4961 = vxor.u32 %v4957, 2147483648
    %v4962 = vmul.f32 %v4959, 1.442695
    %v4963 = vpow.pop %v4962
    %v4964 = vmul.f32 %v4960, 1.442695
    %v4965 = vpow.pop %v4964
    %v4966 = vmul.f32 %v4961, 1.442695
    %v4967 = vpow.pop %v4966
    %v4968 = vadd.f32 %v4963, 1.0
    %v4969 = vadd.f32 %v4965, 1.0
    %v4970 = vadd.f32 %v4967, 1.0
    %v4971 = vrcp.pop %v4968
    %v4972 = vmul.f32 1.0, %v4971
    %v4973 = vrcp.pop %v4969
    %v4974 = vmul.f32 1.0, %v4973
    %v4975 = vrcp.pop %v4970
    %v4976 = vmul.f32 1.0, %v4975
    %v4977 = vtanh.pop %v4958
    %v4978 = vmul.f32 %v4974, %v4672
    %v4979 = vmul.f32 %v4972, %v4977
    %v4980 = vadd.f32 %v4978, %v4979
    %v4981 = vtanh.pop %v4980
    %v4982 = vmul.f32 %v4976, %v4981
    %4983 = vst [vmem:[%s2101] sm:$0xff] %v4982
    %v4984 = vld [vmem:[%s2103] sm:$0xff]
    %v4985 = vld [vmem:[%s2103 + $0x8] sm:$0xff]
    %v4986 = vld [vmem:[%s2103 + $0x10] sm:$0xff]
    %v4987 = vld [vmem:[%s2103 + $0x18] sm:$0xff]
    %v4988 = vpack.c.bf16 %v4982, %v4982
    %v4989 = vld [vmem:[%s3448] sm:$0xff]
    %v4990 = vld [vmem:[%s3448 + $0x8] sm:$0xff]
    %v4991 = vld [vmem:[%s3448 + $0x10] sm:$0xff]
    %v4992 = vld [vmem:[%s3448 + $0x18] sm:$0xff]
    %v4993 = vld [vmem:[%s3448 + $0x20] sm:$0xff]
    %v4994 = vld [vmem:[%s3448 + $0x28] sm:$0xff]
    %v4995 = vld [vmem:[%s3448 + $0x30] sm:$0xff]
    %v4996 = vld [vmem:[%s3448 + $0x38] sm:$0xff]
    %v4997 = vld [vmem:[%s3448 + $0x40] sm:$0xff]
    %v4998 = vld [vmem:[%s3448 + $0x48] sm:$0xff]
    %v4999 = vld [vmem:[%s3448 + $0x50] sm:$0xff]
    %v5000 = vld [vmem:[%s3448 + $0x58] sm:$0xff]
    %v5001 = vld [vmem:[%s3448 + $0x60] sm:$0xff]
    %v5002 = vld [vmem:[%s3448 + $0x68] sm:$0xff]
    %v5003 = vld [vmem:[%s3448 + $0x70] sm:$0xff]
    %v5004 = vld [vmem:[%s3448 + $0x78] sm:$0xff]
    %v5005 = vld [vmem:[%s3448 + $0x80] sm:$0xff]
    %v5006 = vld [vmem:[%s3448 + $0x88] sm:$0xff]
    %v5007 = vld [vmem:[%s3448 + $0x90] sm:$0xff]
    %v5008 = vld [vmem:[%s3448 + $0x98] sm:$0xff]
    %v5009 = vld [vmem:[%s3448 + $0xa0] sm:$0xff]
    %v5010 = vld [vmem:[%s3448 + $0xa8] sm:$0xff]
    %v5011 = vld [vmem:[%s3448 + $0xb0] sm:$0xff]
    %v5012 = vld [vmem:[%s3448 + $0xb8] sm:$0xff]
    %v5013 = vld [vmem:[%s3448 + $0xc0] sm:$0xff]
    %v5014 = vld [vmem:[%s3448 + $0xc8] sm:$0xff]
    %v5015 = vld [vmem:[%s3448 + $0xd0] sm:$0xff]
    %v5016 = vld [vmem:[%s3448 + $0xd8] sm:$0xff]
    %v5017 = vld [vmem:[%s3448 + $0xe0] sm:$0xff]
    %v5018 = vld [vmem:[%s3448 + $0xe8] sm:$0xff]
    %v5019 = vld [vmem:[%s3448 + $0xf0] sm:$0xff]
    %v5020 = vld [vmem:[%s3448 + $0xf8] sm:$0xff]
    %v5053 = vunpack.c.l.b16 %v4989
    %v5054 = vunpack.c.h.b16 %v4989
    %v5055 = vunpack.c.l.b16 %v4990
    %v5056 = vunpack.c.h.b16 %v4990
    %v5057 = vunpack.c.l.b16 %v4991
    %v5058 = vunpack.c.h.b16 %v4991
    %v5059 = vunpack.c.l.b16 %v4992
    %v5060 = vunpack.c.h.b16 %v4992
    %v5061 = vunpack.c.l.b16 %v4993
    %v5062 = vunpack.c.h.b16 %v4993
    %v5063 = vunpack.c.l.b16 %v4994
    %v5064 = vunpack.c.h.b16 %v4994
    %v5065 = vunpack.c.l.b16 %v4995
    %v5066 = vunpack.c.h.b16 %v4995
    %v5067 = vunpack.c.l.b16 %v4996
    %v5068 = vunpack.c.h.b16 %v4996
    %v5069 = vunpack.c.l.b16 %v4997
    %v5070 = vunpack.c.h.b16 %v4997
    %v5071 = vunpack.c.l.b16 %v4998
    %v5072 = vunpack.c.h.b16 %v4998
    %v5073 = vunpack.c.l.b16 %v4999
    %v5074 = vunpack.c.h.b16 %v4999
    %v5075 = vunpack.c.l.b16 %v5000
    %v5076 = vunpack.c.h.b16 %v5000
    %v5077 = vunpack.c.l.b16 %v5001
    %v5078 = vunpack.c.h.b16 %v5001
    %v5079 = vunpack.c.l.b16 %v5002
    %v5080 = vunpack.c.h.b16 %v5002
    %v5081 = vunpack.c.l.b16 %v5003
    %v5082 = vunpack.c.h.b16 %v5003
    %v5083 = vunpack.c.l.b16 %v5004
    %v5084 = vunpack.c.h.b16 %v5004
    %v5085 = vunpack.c.l.b16 %v5005
    %v5086 = vunpack.c.h.b16 %v5005
    %v5087 = vunpack.c.l.b16 %v5006
    %v5088 = vunpack.c.h.b16 %v5006
    %v5089 = vunpack.c.l.b16 %v5007
    %v5090 = vunpack.c.h.b16 %v5007
    %v5091 = vunpack.c.l.b16 %v5008
    %v5092 = vunpack.c.h.b16 %v5008
    %v5093 = vunpack.c.l.b16 %v5009
    %v5094 = vunpack.c.h.b16 %v5009
    %v5095 = vunpack.c.l.b16 %v5010
    %v5096 = vunpack.c.h.b16 %v5010
    %v5097 = vunpack.c.l.b16 %v5011
    %v5098 = vunpack.c.h.b16 %v5011
    %v5099 = vunpack.c.l.b16 %v5012
    %v5100 = vunpack.c.h.b16 %v5012
    %v5101 = vunpack.c.l.b16 %v5013
    %v5102 = vunpack.c.h.b16 %v5013
    %v5103 = vunpack.c.l.b16 %v5014
    %v5104 = vunpack.c.h.b16 %v5014
    %v5105 = vunpack.c.l.b16 %v5015
    %v5106 = vunpack.c.h.b16 %v5015
    %v5107 = vunpack.c.l.b16 %v5016
    %v5108 = vunpack.c.h.b16 %v5016
    %v5109 = vunpack.c.l.b16 %v5017
    %v5110 = vunpack.c.h.b16 %v5017
    %v5111 = vunpack.c.l.b16 %v5018
    %v5112 = vunpack.c.h.b16 %v5018
    %v5113 = vunpack.c.l.b16 %v5019
    %v5114 = vunpack.c.h.b16 %v5019
    %v5115 = vunpack.c.l.b16 %v5020
    %v5116 = vunpack.c.h.b16 %v5020
    %v5117 = vpack.c.b16 %v5057, %v5053
    %v5118 = vpack.c.b16 %v5058, %v5054
    %v5119 = vpack.c.b16 %v5059, %v5055
    %v5120 = vpack.c.b16 %v5060, %v5056
    %v5121 = vpack.c.b16 %v5065, %v5061
    %v5122 = vpack.c.b16 %v5066, %v5062
    %v5123 = vpack.c.b16 %v5067, %v5063
    %v5124 = vpack.c.b16 %v5068, %v5064
    %v5125 = vpack.c.b16 %v5073, %v5069
    %v5126 = vpack.c.b16 %v5074, %v5070
    %v5127 = vpack.c.b16 %v5075, %v5071
    %v5128 = vpack.c.b16 %v5076, %v5072
    %v5129 = vpack.c.b16 %v5081, %v5077
    %v5130 = vpack.c.b16 %v5082, %v5078
    %v5131 = vpack.c.b16 %v5083, %v5079
    %v5132 = vpack.c.b16 %v5084, %v5080
    %v5133 = vpack.c.b16 %v5089, %v5085
    %v5134 = vpack.c.b16 %v5090, %v5086
    %v5135 = vpack.c.b16 %v5091, %v5087
    %v5136 = vpack.c.b16 %v5092, %v5088
    %v5137 = vpack.c.b16 %v5097, %v5093
    %v5138 = vpack.c.b16 %v5098, %v5094
    %v5139 = vpack.c.b16 %v5099, %v5095
    %v5140 = vpack.c.b16 %v5100, %v5096
    %v5141 = vpack.c.b16 %v5105, %v5101
    %v5142 = vpack.c.b16 %v5106, %v5102
    %v5143 = vpack.c.b16 %v5107, %v5103
    %v5144 = vpack.c.b16 %v5108, %v5104
    %v5145 = vpack.c.b16 %v5113, %v5109
    %v5146 = vpack.c.b16 %v5114, %v5110
    %v5147 = vpack.c.b16 %v5115, %v5111
    %v5148 = vpack.c.b16 %v5116, %v5112
    %5181 = vmatprep.subr.bf16.mxu0 %v5118
    %5182 = vmatpush1.bf16.msra.mxu0 %v5117
    %5183 = vmatprep.subr.bf16.mxu0 %v5122
    %5184 = vmatpush1.bf16.msra.mxu0 %v5121
    %5185 = vmatprep.subr.bf16.mxu0 %v5126
    %5186 = vmatpush1.bf16.msra.mxu0 %v5125
    %5187 = vmatprep.subr.bf16.mxu0 %v5130
    %5188 = vmatpush1.bf16.msra.mxu0 %v5129
    %5189 = vmatprep.subr.bf16.mxu0 %v5134
    %5190 = vmatpush1.bf16.msra.mxu0 %v5133
    %5191 = vmatprep.subr.bf16.mxu0 %v5138
    %5192 = vmatpush1.bf16.msra.mxu0 %v5137
    %5193 = vmatprep.subr.bf16.mxu0 %v5142
    %5194 = vmatpush1.bf16.msra.mxu0 %v5141
    %5195 = vmatprep.subr.bf16.mxu0 %v5146
    %5196 = vmatpush1.bf16.msra.mxu0 %v5145
    %5197 = vmatprep.subr.bf16.mxu0 0
    %5198 = vmatpush1.bf16.msra.mxu0 0
    %5199 = vmatprep.subr.bf16.mxu0 0
    %5200 = vmatpush1.bf16.msra.mxu0 0
    %5201 = vmatprep.subr.bf16.mxu0 0
    %5202 = vmatpush1.bf16.msra.mxu0 0
    %5203 = vmatprep.subr.bf16.mxu0 0
    %5204 = vmatpush1.bf16.msra.mxu0 0
    %5205 = vmatprep.subr.bf16.mxu0 0
    %5206 = vmatpush1.bf16.msra.mxu0 0
    %5207 = vmatprep.subr.bf16.mxu0 0
    %5208 = vmatpush1.bf16.msra.mxu0 0
    %5209 = vmatprep.subr.bf16.mxu0 0
    %5210 = vmatpush1.bf16.msra.mxu0 0
    %5211 = vmatprep.subr.bf16.mxu0 0
    %5212 = vmatpush1.bf16.msra.mxu0 0
    %5213 = vmatprep.mubr.bf16.mxu0 0
    %5214 = vmatmul.mubr.bf16.gmra.mrb[0].mxu0 %v4988
    %v5215 = vpop.f32.mrb[0].mxu0
    %v5216 = vadd.f32 0.0, %v5215
    %v5217 = vpop.f32.mrb[0].mxu0
    %v5218 = vadd.f32 0.0, %v5217
    %v5219 = vpop.f32.mrb[0].mxu0
    %v5220 = vpop.f32.mrb[0].mxu0
    %5221 = vdwg.mxu0
    %5222 = vmatprep.subr.bf16.mxu0 %v5120
    %5223 = vmatpush1.bf16.msra.mxu0 %v5119
    %5224 = vmatprep.subr.bf16.mxu0 %v5124
    %5225 = vmatpush1.bf16.msra.mxu0 %v5123
    %5226 = vmatprep.subr.bf16.mxu0 %v5128
    %5227 = vmatpush1.bf16.msra.mxu0 %v5127
    %5228 = vmatprep.subr.bf16.mxu0 %v5132
    %5229 = vmatpush1.bf16.msra.mxu0 %v5131
    %5230 = vmatprep.subr.bf16.mxu0 %v5136
    %5231 = vmatpush1.bf16.msra.mxu0 %v5135
    %5232 = vmatprep.subr.bf16.mxu0 %v5140
    %5233 = vmatpush1.bf16.msra.mxu0 %v5139
    %5234 = vmatprep.subr.bf16.mxu0 %v5144
    %5235 = vmatpush1.bf16.msra.mxu0 %v5143
    %5236 = vmatprep.subr.bf16.mxu0 %v5148
    %5237 = vmatpush1.bf16.msra.mxu0 %v5147
    %5238 = vmatprep.subr.bf16.mxu0 0
    %5239 = vmatpush1.bf16.msra.mxu0 0
    %5240 = vmatprep.subr.bf16.mxu0 0
    %5241 = vmatpush1.bf16.msra.mxu0 0
    %5242 = vmatprep.subr.bf16.mxu0 0
    %5243 = vmatpush1.bf16.msra.mxu0 0
    %5244 = vmatprep.subr.bf16.mxu0 0
    %5245 = vmatpush1.bf16.msra.mxu0 0
    %5246 = vmatprep.subr.bf16.mxu0 0
    %5247 = vmatpush1.bf16.msra.mxu0 0
    %5248 = vmatprep.subr.bf16.mxu0 0
    %5249 = vmatpush1.bf16.msra.mxu0 0
    %5250 = vmatprep.subr.bf16.mxu0 0
    %5251 = vmatpush1.bf16.msra.mxu0 0
    %5252 = vmatprep.subr.bf16.mxu0 0
    %5253 = vmatpush1.bf16.msra.mxu0 0
    %5254 = vmatprep.mubr.bf16.mxu0 0
    %5255 = vmatmul.mubr.bf16.gmra.mrb[0].mxu0 %v4988
    %v5256 = vpop.f32.mrb[0].mxu0
    %v5257 = vadd.f32 0.0, %v5256
    %v5258 = vpop.f32.mrb[0].mxu0
    %v5259 = vadd.f32 0.0, %v5258
    %v5260 = vpop.f32.mrb[0].mxu0
    %v5261 = vpop.f32.mrb[0].mxu0
    %5262 = vdwg.mxu0
    %v5263 = vadd.f32 %v4984, %v5216
    %v5264 = vadd.f32 %v4985, %v5218
    %v5265 = vadd.f32 %v4986, %v5257
    %v5266 = vadd.f32 %v4987, %v5259
    %v5267 = vxor.u32 %v5263, 2147483648
    %v5268 = vxor.u32 %v5264, 2147483648
    %v5269 = vxor.u32 %v5265, 2147483648
    %v5270 = vmul.f32 %v5267, 1.442695
    %v5271 = vpow.pop %v5270
    %v5272 = vmul.f32 %v5268, 1.442695
    %v5273 = vpow.pop %v5272
    %v5274 = vmul.f32 %v5269, 1.442695
    %v5275 = vpow.pop %v5274
    %v5276 = vadd.f32 %v5271, 1.0
    %v5277 = vadd.f32 %v5273, 1.0
    %v5278 = vadd.f32 %v5275, 1.0
    %v5279 = vrcp.pop %v5276
    %v5280 = vmul.f32 1.0, %v5279
    %v5281 = vrcp.pop %v5277
    %v5282 = vmul.f32 1.0, %v5281
    %v5283 = vrcp.pop %v5278
    %v5284 = vmul.f32 1.0, %v5283
    %v5285 = vtanh.pop %v5266
    %v5286 = vmul.f32 %v5282, %v4980
    %v5287 = vmul.f32 %v5280, %v5285
    %v5288 = vadd.f32 %v5286, %v5287
    %v5289 = vtanh.pop %v5288
    %v5290 = vmul.f32 %v5284, %v5289
    %5291 = vst [vmem:[%s2411] sm:$0xff] %v5290
    %v5292 = vld [vmem:[%s2413] sm:$0xff]
    %v5293 = vld [vmem:[%s2413 + $0x8] sm:$0xff]
    %v5294 = vld [vmem:[%s2413 + $0x10] sm:$0xff]
    %v5295 = vld [vmem:[%s2413 + $0x18] sm:$0xff]
    %v5296 = vpack.c.bf16 %v5290, %v5290
    %v5297 = vld [vmem:[%s3448] sm:$0xff]
    %v5298 = vld [vmem:[%s3448 + $0x8] sm:$0xff]
    %v5299 = vld [vmem:[%s3448 + $0x10] sm:$0xff]
    %v5300 = vld [vmem:[%s3448 + $0x18] sm:$0xff]
    %v5301 = vld [vmem:[%s3448 + $0x20] sm:$0xff]
    %v5302 = vld [vmem:[%s3448 + $0x28] sm:$0xff]
    %v5303 = vld [vmem:[%s3448 + $0x30] sm:$0xff]
    %v5304 = vld [vmem:[%s3448 + $0x38] sm:$0xff]
    %v5305 = vld [vmem:[%s3448 + $0x40] sm:$0xff]
    %v5306 = vld [vmem:[%s3448 + $0x48] sm:$0xff]
    %v5307 = vld [vmem:[%s3448 + $0x50] sm:$0xff]
    %v5308 = vld [vmem:[%s3448 + $0x58] sm:$0xff]
    %v5309 = vld [vmem:[%s3448 + $0x60] sm:$0xff]
    %v5310 = vld [vmem:[%s3448 + $0x68] sm:$0xff]
    %v5311 = vld [vmem:[%s3448 + $0x70] sm:$0xff]
    %v5312 = vld [vmem:[%s3448 + $0x78] sm:$0xff]
    %v5313 = vld [vmem:[%s3448 + $0x80] sm:$0xff]
    %v5314 = vld [vmem:[%s3448 + $0x88] sm:$0xff]
    %v5315 = vld [vmem:[%s3448 + $0x90] sm:$0xff]
    %v5316 = vld [vmem:[%s3448 + $0x98] sm:$0xff]
    %v5317 = vld [vmem:[%s3448 + $0xa0] sm:$0xff]
    %v5318 = vld [vmem:[%s3448 + $0xa8] sm:$0xff]
    %v5319 = vld [vmem:[%s3448 + $0xb0] sm:$0xff]
    %v5320 = vld [vmem:[%s3448 + $0xb8] sm:$0xff]
    %v5321 = vld [vmem:[%s3448 + $0xc0] sm:$0xff]
    %v5322 = vld [vmem:[%s3448 + $0xc8] sm:$0xff]
    %v5323 = vld [vmem:[%s3448 + $0xd0] sm:$0xff]
    %v5324 = vld [vmem:[%s3448 + $0xd8] sm:$0xff]
    %v5325 = vld [vmem:[%s3448 + $0xe0] sm:$0xff]
    %v5326 = vld [vmem:[%s3448 + $0xe8] sm:$0xff]
    %v5327 = vld [vmem:[%s3448 + $0xf0] sm:$0xff]
    %v5328 = vld [vmem:[%s3448 + $0xf8] sm:$0xff]
    %v5361 = vunpack.c.l.b16 %v5297
    %v5362 = vunpack.c.h.b16 %v5297
    %v5363 = vunpack.c.l.b16 %v5298
    %v5364 = vunpack.c.h.b16 %v5298
    %v5365 = vunpack.c.l.b16 %v5299
    %v5366 = vunpack.c.h.b16 %v5299
    %v5367 = vunpack.c.l.b16 %v5300
    %v5368 = vunpack.c.h.b16 %v5300
    %v5369 = vunpack.c.l.b16 %v5301
    %v5370 = vunpack.c.h.b16 %v5301
    %v5371 = vunpack.c.l.b16 %v5302
    %v5372 = vunpack.c.h.b16 %v5302
    %v5373 = vunpack.c.l.b16 %v5303
    %v5374 = vunpack.c.h.b16 %v5303
    %v5375 = vunpack.c.l.b16 %v5304
    %v5376 = vunpack.c.h.b16 %v5304
    %v5377 = vunpack.c.l.b16 %v5305
    %v5378 = vunpack.c.h.b16 %v5305
    %v5379 = vunpack.c.l.b16 %v5306
    %v5380 = vunpack.c.h.b16 %v5306
    %v5381 = vunpack.c.l.b16 %v5307
    %v5382 = vunpack.c.h.b16 %v5307
    %v5383 = vunpack.c.l.b16 %v5308
    %v5384 = vunpack.c.h.b16 %v5308
    %v5385 = vunpack.c.l.b16 %v5309
    %v5386 = vunpack.c.h.b16 %v5309
    %v5387 = vunpack.c.l.b16 %v5310
    %v5388 = vunpack.c.h.b16 %v5310
    %v5389 = vunpack.c.l.b16 %v5311
    %v5390 = vunpack.c.h.b16 %v5311
    %v5391 = vunpack.c.l.b16 %v5312
    %v5392 = vunpack.c.h.b16 %v5312
    %v5393 = vunpack.c.l.b16 %v5313
    %v5394 = vunpack.c.h.b16 %v5313
    %v5395 = vunpack.c.l.b16 %v5314
    %v5396 = vunpack.c.h.b16 %v5314
    %v5397 = vunpack.c.l.b16 %v5315
    %v5398 = vunpack.c.h.b16 %v5315
    %v5399 = vunpack.c.l.b16 %v5316
    %v5400 = vunpack.c.h.b16 %v5316
    %v5401 = vunpack.c.l.b16 %v5317
    %v5402 = vunpack.c.h.b16 %v5317
    %v5403 = vunpack.c.l.b16 %v5318
    %v5404 = vunpack.c.h.b16 %v5318
    %v5405 = vunpack.c.l.b16 %v5319
    %v5406 = vunpack.c.h.b16 %v5319
    %v5407 = vunpack.c.l.b16 %v5320
    %v5408 = vunpack.c.h.b16 %v5320
    %v5409 = vunpack.c.l.b16 %v5321
    %v5410 = vunpack.c.h.b16 %v5321
    %v5411 = vunpack.c.l.b16 %v5322
    %v5412 = vunpack.c.h.b16 %v5322
    %v5413 = vunpack.c.l.b16 %v5323
    %v5414 = vunpack.c.h.b16 %v5323
    %v5415 = vunpack.c.l.b16 %v5324
    %v5416 = vunpack.c.h.b16 %v5324
    %v5417 = vunpack.c.l.b16 %v5325
    %v5418 = vunpack.c.h.b16 %v5325
    %v5419 = vunpack.c.l.b16 %v5326
    %v5420 = vunpack.c.h.b16 %v5326
    %v5421 = vunpack.c.l.b16 %v5327
    %v5422 = vunpack.c.h.b16 %v5327
    %v5423 = vunpack.c.l.b16 %v5328
    %v5424 = vunpack.c.h.b16 %v5328
    %v5425 = vpack.c.b16 %v5365, %v5361
    %v5426 = vpack.c.b16 %v5366, %v5362
    %v5427 = vpack.c.b16 %v5367, %v5363
    %v5428 = vpack.c.b16 %v5368, %v5364
    %v5429 = vpack.c.b16 %v5373, %v5369
    %v5430 = vpack.c.b16 %v5374, %v5370
    %v5431 = vpack.c.b16 %v5375, %v5371
    %v5432 = vpack.c.b16 %v5376, %v5372
    %v5433 = vpack.c.b16 %v5381, %v5377
    %v5434 = vpack.c.b16 %v5382, %v5378
    %v5435 = vpack.c.b16 %v5383, %v5379
    %v5436 = vpack.c.b16 %v5384, %v5380
    %v5437 = vpack.c.b16 %v5389, %v5385
    %v5438 = vpack.c.b16 %v5390, %v5386
    %v5439 = vpack.c.b16 %v5391, %v5387
    %v5440 = vpack.c.b16 %v5392, %v5388
    %v5441 = vpack.c.b16 %v5397, %v5393
    %v5442 = vpack.c.b16 %v5398, %v5394
    %v5443 = vpack.c.b16 %v5399, %v5395
    %v5444 = vpack.c.b16 %v5400, %v5396
    %v5445 = vpack.c.b16 %v5405, %v5401
    %v5446 = vpack.c.b16 %v5406, %v5402
    %v5447 = vpack.c.b16 %v5407, %v5403
    %v5448 = vpack.c.b16 %v5408, %v5404
    %v5449 = vpack.c.b16 %v5413, %v5409
    %v5450 = vpack.c.b16 %v5414, %v5410
    %v5451 = vpack.c.b16 %v5415, %v5411
    %v5452 = vpack.c.b16 %v5416, %v5412
    %v5453 = vpack.c.b16 %v5421, %v5417
    %v5454 = vpack.c.b16 %v5422, %v5418
    %v5455 = vpack.c.b16 %v5423, %v5419
    %v5456 = vpack.c.b16 %v5424, %v5420
    %5489 = vmatprep.subr.bf16.mxu0 %v5426
    %5490 = vmatpush1.bf16.msra.mxu0 %v5425
    %5491 = vmatprep.subr.bf16.mxu0 %v5430
    %5492 = vmatpush1.bf16.msra.mxu0 %v5429
    %5493 = vmatprep.subr.bf16.mxu0 %v5434
    %5494 = vmatpush1.bf16.msra.mxu0 %v5433
    %5495 = vmatprep.subr.bf16.mxu0 %v5438
    %5496 = vmatpush1.bf16.msra.mxu0 %v5437
    %5497 = vmatprep.subr.bf16.mxu0 %v5442
    %5498 = vmatpush1.bf16.msra.mxu0 %v5441
    %5499 = vmatprep.subr.bf16.mxu0 %v5446
    %5500 = vmatpush1.bf16.msra.mxu0 %v5445
    %5501 = vmatprep.subr.bf16.mxu0 %v5450
    %5502 = vmatpush1.bf16.msra.mxu0 %v5449
    %5503 = vmatprep.subr.bf16.mxu0 %v5454
    %5504 = vmatpush1.bf16.msra.mxu0 %v5453
    %5505 = vmatprep.subr.bf16.mxu0 0
    %5506 = vmatpush1.bf16.msra.mxu0 0
    %5507 = vmatprep.subr.bf16.mxu0 0
    %5508 = vmatpush1.bf16.msra.mxu0 0
    %5509 = vmatprep.subr.bf16.mxu0 0
    %5510 = vmatpush1.bf16.msra.mxu0 0
    %5511 = vmatprep.subr.bf16.mxu0 0
    %5512 = vmatpush1.bf16.msra.mxu0 0
    %5513 = vmatprep.subr.bf16.mxu0 0
    %5514 = vmatpush1.bf16.msra.mxu0 0
    %5515 = vmatprep.subr.bf16.mxu0 0
    %5516 = vmatpush1.bf16.msra.mxu0 0
    %5517 = vmatprep.subr.bf16.mxu0 0
    %5518 = vmatpush1.bf16.msra.mxu0 0
    %5519 = vmatprep.subr.bf16.mxu0 0
    %5520 = vmatpush1.bf16.msra.mxu0 0
    %5521 = vmatprep.mubr.bf16.mxu0 0
    %5522 = vmatmul.mubr.bf16.gmra.mrb[0].mxu0 %v5296
    %v5523 = vpop.f32.mrb[0].mxu0
    %v5524 = vadd.f32 0.0, %v5523
    %v5525 = vpop.f32.mrb[0].mxu0
    %v5526 = vadd.f32 0.0, %v5525
    %v5527 = vpop.f32.mrb[0].mxu0
    %v5528 = vpop.f32.mrb[0].mxu0
    %5529 = vdwg.mxu0
    %5530 = vmatprep.subr.bf16.mxu0 %v5428
    %5531 = vmatpush1.bf16.msra.mxu0 %v5427
    %5532 = vmatprep.subr.bf16.mxu0 %v5432
    %5533 = vmatpush1.bf16.msra.mxu0 %v5431
    %5534 = vmatprep.subr.bf16.mxu0 %v5436
    %5535 = vmatpush1.bf16.msra.mxu0 %v5435
    %5536 = vmatprep.subr.bf16.mxu0 %v5440
    %5537 = vmatpush1.bf16.msra.mxu0 %v5439
    %5538 = vmatprep.subr.bf16.mxu0 %v5444
    %5539 = vmatpush1.bf16.msra.mxu0 %v5443
    %5540 = vmatprep.subr.bf16.mxu0 %v5448
    %5541 = vmatpush1.bf16.msra.mxu0 %v5447
    %5542 = vmatprep.subr.bf16.mxu0 %v5452
    %5543 = vmatpush1.bf16.msra.mxu0 %v5451
    %5544 = vmatprep.subr.bf16.mxu0 %v5456
    %5545 = vmatpush1.bf16.msra.mxu0 %v5455
    %5546 = vmatprep.subr.bf16.mxu0 0
    %5547 = vmatpush1.bf16.msra.mxu0 0
    %5548 = vmatprep.subr.bf16.mxu0 0
    %5549 = vmatpush1.bf16.msra.mxu0 0
    %5550 = vmatprep.subr.bf16.mxu0 0
    %5551 = vmatpush1.bf16.msra.mxu0 0
    %5552 = vmatprep.subr.bf16.mxu0 0
    %5553 = vmatpush1.bf16.msra.mxu0 0
    %5554 = vmatprep.subr.bf16.mxu0 0
    %5555 = vmatpush1.bf16.msra.mxu0 0
    %5556 = vmatprep.subr.bf16.mxu0 0
    %5557 = vmatpush1.bf16.msra.mxu0 0
    %5558 = vmatprep.subr.bf16.mxu0 0
    %5559 = vmatpush1.bf16.msra.mxu0 0
    %5560 = vmatprep.subr.bf16.mxu0 0
    %5561 = vmatpush1.bf16.msra.mxu0 0
    %5562 = vmatprep.mubr.bf16.mxu0 0
    %5563 = vmatmul.mubr.bf16.gmra.mrb[0].mxu0 %v5296
    %v5564 = vpop.f32.mrb[0].mxu0
    %v5565 = vadd.f32 0.0, %v5564
    %v5566 = vpop.f32.mrb[0].mxu0
    %v5567 = vadd.f32 0.0, %v5566
    %v5568 = vpop.f32.mrb[0].mxu0
    %v5569 = vpop.f32.mrb[0].mxu0
    %5570 = vdwg.mxu0
    %v5571 = vadd.f32 %v5292, %v5524
    %v5572 = vadd.f32 %v5293, %v5526
    %v5573 = vadd.f32 %v5294, %v5565
    %v5574 = vadd.f32 %v5295, %v5567
    %v5575 = vxor.u32 %v5571, 2147483648
    %v5576 = vxor.u32 %v5572, 2147483648
    %v5577 = vxor.u32 %v5573, 2147483648
    %v5578 = vmul.f32 %v5575, 1.442695
    %v5579 = vpow.pop %v5578
    %v5580 = vmul.f32 %v5576, 1.442695
    %v5581 = vpow.pop %v5580
    %v5582 = vmul.f32 %v5577, 1.442695
    %v5583 = vpow.pop %v5582
    %v5584 = vadd.f32 %v5579, 1.0
    %v5585 = vadd.f32 %v5581, 1.0
    %v5586 = vadd.f32 %v5583, 1.0
    %v5587 = vrcp.pop %v5584
    %v5588 = vmul.f32 1.0, %v5587
    %v5589 = vrcp.pop %v5585
    %v5590 = vmul.f32 1.0, %v5589
    %v5591 = vrcp.pop %v5586
    %v5592 = vmul.f32 1.0, %v5591
    %v5593 = vtanh.pop %v5574
    %v5594 = vmul.f32 %v5590, %v5288
    %v5595 = vmul.f32 %v5588, %v5593
    %v5596 = vadd.f32 %v5594, %v5595
    %v5597 = vtanh.pop %v5596
    %v5598 = vmul.f32 %v5592, %v5597
    %5599 = vst [vmem:[%s2721] sm:$0xff] %v5598
    %v5600 = vld [vmem:[%s2723] sm:$0xff]
    %v5601 = vld [vmem:[%s2723 + $0x8] sm:$0xff]
    %v5602 = vld [vmem:[%s2723 + $0x10] sm:$0xff]
    %v5603 = vld [vmem:[%s2723 + $0x18] sm:$0xff]
    %v5604 = vpack.c.bf16 %v5598, %v5598
    %v5605 = vld [vmem:[%s3448] sm:$0xff]
    %v5606 = vld [vmem:[%s3448 + $0x8] sm:$0xff]
    %v5607 = vld [vmem:[%s3448 + $0x10] sm:$0xff]
    %v5608 = vld [vmem:[%s3448 + $0x18] sm:$0xff]
    %v5609 = vld [vmem:[%s3448 + $0x20] sm:$0xff]
    %v5610 = vld [vmem:[%s3448 + $0x28] sm:$0xff]
    %v5611 = vld [vmem:[%s3448 + $0x30] sm:$0xff]
    %v5612 = vld [vmem:[%s3448 + $0x38] sm:$0xff]
    %v5613 = vld [vmem:[%s3448 + $0x40] sm:$0xff]
    %v5614 = vld [vmem:[%s3448 + $0x48] sm:$0xff]
    %v5615 = vld [vmem:[%s3448 + $0x50] sm:$0xff]
    %v5616 = vld [vmem:[%s3448 + $0x58] sm:$0xff]
    %v5617 = vld [vmem:[%s3448 + $0x60] sm:$0xff]
    %v5618 = vld [vmem:[%s3448 + $0x68] sm:$0xff]
    %v5619 = vld [vmem:[%s3448 + $0x70] sm:$0xff]
    %v5620 = vld [vmem:[%s3448 + $0x78] sm:$0xff]
    %v5621 = vld [vmem:[%s3448 + $0x80] sm:$0xff]
    %v5622 = vld [vmem:[%s3448 + $0x88] sm:$0xff]
    %v5623 = vld [vmem:[%s3448 + $0x90] sm:$0xff]
    %v5624 = vld [vmem:[%s3448 + $0x98] sm:$0xff]
    %v5625 = vld [vmem:[%s3448 + $0xa0] sm:$0xff]
    %v5626 = vld [vmem:[%s3448 + $0xa8] sm:$0xff]
    %v5627 = vld [vmem:[%s3448 + $0xb0] sm:$0xff]
    %v5628 = vld [vmem:[%s3448 + $0xb8] sm:$0xff]
    %v5629 = vld [vmem:[%s3448 + $0xc0] sm:$0xff]
    %v5630 = vld [vmem:[%s3448 + $0xc8] sm:$0xff]
    %v5631 = vld [vmem:[%s3448 + $0xd0] sm:$0xff]
    %v5632 = vld [vmem:[%s3448 + $0xd8] sm:$0xff]
    %v5633 = vld [vmem:[%s3448 + $0xe0] sm:$0xff]
    %v5634 = vld [vmem:[%s3448 + $0xe8] sm:$0xff]
    %v5635 = vld [vmem:[%s3448 + $0xf0] sm:$0xff]
    %v5636 = vld [vmem:[%s3448 + $0xf8] sm:$0xff]
    %v5669 = vunpack.c.l.b16 %v5605
    %v5670 = vunpack.c.h.b16 %v5605
    %v5671 = vunpack.c.l.b16 %v5606
    %v5672 = vunpack.c.h.b16 %v5606
    %v5673 = vunpack.c.l.b16 %v5607
    %v5674 = vunpack.c.h.b16 %v5607
    %v5675 = vunpack.c.l.b16 %v5608
    %v5676 = vunpack.c.h.b16 %v5608
    %v5677 = vunpack.c.l.b16 %v5609
    %v5678 = vunpack.c.h.b16 %v5609
    %v5679 = vunpack.c.l.b16 %v5610
    %v5680 = vunpack.c.h.b16 %v5610
    %v5681 = vunpack.c.l.b16 %v5611
    %v5682 = vunpack.c.h.b16 %v5611
    %v5683 = vunpack.c.l.b16 %v5612
    %v5684 = vunpack.c.h.b16 %v5612
    %v5685 = vunpack.c.l.b16 %v5613
    %v5686 = vunpack.c.h.b16 %v5613
    %v5687 = vunpack.c.l.b16 %v5614
    %v5688 = vunpack.c.h.b16 %v5614
    %v5689 = vunpack.c.l.b16 %v5615
    %v5690 = vunpack.c.h.b16 %v5615
    %v5691 = vunpack.c.l.b16 %v5616
    %v5692 = vunpack.c.h.b16 %v5616
    %v5693 = vunpack.c.l.b16 %v5617
    %v5694 = vunpack.c.h.b16 %v5617
    %v5695 = vunpack.c.l.b16 %v5618
    %v5696 = vunpack.c.h.b16 %v5618
    %v5697 = vunpack.c.l.b16 %v5619
    %v5698 = vunpack.c.h.b16 %v5619
    %v5699 = vunpack.c.l.b16 %v5620
    %v5700 = vunpack.c.h.b16 %v5620
    %v5701 = vunpack.c.l.b16 %v5621
    %v5702 = vunpack.c.h.b16 %v5621
    %v5703 = vunpack.c.l.b16 %v5622
    %v5704 = vunpack.c.h.b16 %v5622
    %v5705 = vunpack.c.l.b16 %v5623
    %v5706 = vunpack.c.h.b16 %v5623
    %v5707 = vunpack.c.l.b16 %v5624
    %v5708 = vunpack.c.h.b16 %v5624
    %v5709 = vunpack.c.l.b16 %v5625
    %v5710 = vunpack.c.h.b16 %v5625
    %v5711 = vunpack.c.l.b16 %v5626
    %v5712 = vunpack.c.h.b16 %v5626
    %v5713 = vunpack.c.l.b16 %v5627
    %v5714 = vunpack.c.h.b16 %v5627
    %v5715 = vunpack.c.l.b16 %v5628
    %v5716 = vunpack.c.h.b16 %v5628
    %v5717 = vunpack.c.l.b16 %v5629
    %v5718 = vunpack.c.h.b16 %v5629
    %v5719 = vunpack.c.l.b16 %v5630
    %v5720 = vunpack.c.h.b16 %v5630
    %v5721 = vunpack.c.l.b16 %v5631
    %v5722 = vunpack.c.h.b16 %v5631
    %v5723 = vunpack.c.l.b16 %v5632
    %v5724 = vunpack.c.h.b16 %v5632
    %v5725 = vunpack.c.l.b16 %v5633
    %v5726 = vunpack.c.h.b16 %v5633
    %v5727 = vunpack.c.l.b16 %v5634
    %v5728 = vunpack.c.h.b16 %v5634
    %v5729 = vunpack.c.l.b16 %v5635
    %v5730 = vunpack.c.h.b16 %v5635
    %v5731 = vunpack.c.l.b16 %v5636
    %v5732 = vunpack.c.h.b16 %v5636
    %v5733 = vpack.c.b16 %v5673, %v5669
    %v5734 = vpack.c.b16 %v5674, %v5670
    %v5735 = vpack.c.b16 %v5675, %v5671
    %v5736 = vpack.c.b16 %v5676, %v5672
    %v5737 = vpack.c.b16 %v5681, %v5677
    %v5738 = vpack.c.b16 %v5682, %v5678
    %v5739 = vpack.c.b16 %v5683, %v5679
    %v5740 = vpack.c.b16 %v5684, %v5680
    %v5741 = vpack.c.b16 %v5689, %v5685
    %v5742 = vpack.c.b16 %v5690, %v5686
    %v5743 = vpack.c.b16 %v5691, %v5687
    %v5744 = vpack.c.b16 %v5692, %v5688
    %v5745 = vpack.c.b16 %v5697, %v5693
    %v5746 = vpack.c.b16 %v5698, %v5694
    %v5747 = vpack.c.b16 %v5699, %v5695
    %v5748 = vpack.c.b16 %v5700, %v5696
    %v5749 = vpack.c.b16 %v5705, %v5701
    %v5750 = vpack.c.b16 %v5706, %v5702
    %v5751 = vpack.c.b16 %v5707, %v5703
    %v5752 = vpack.c.b16 %v5708, %v5704
    %v5753 = vpack.c.b16 %v5713, %v5709
    %v5754 = vpack.c.b16 %v5714, %v5710
    %v5755 = vpack.c.b16 %v5715, %v5711
    %v5756 = vpack.c.b16 %v5716, %v5712
    %v5757 = vpack.c.b16 %v5721, %v5717
    %v5758 = vpack.c.b16 %v5722, %v5718
    %v5759 = vpack.c.b16 %v5723, %v5719
    %v5760 = vpack.c.b16 %v5724, %v5720
    %v5761 = vpack.c.b16 %v5729, %v5725
    %v5762 = vpack.c.b16 %v5730, %v5726
    %v5763 = vpack.c.b16 %v5731, %v5727
    %v5764 = vpack.c.b16 %v5732, %v5728
    %5797 = vmatprep.subr.bf16.mxu0 %v5734
    %5798 = vmatpush1.bf16.msra.mxu0 %v5733
    %5799 = vmatprep.subr.bf16.mxu0 %v5738
    %5800 = vmatpush1.bf16.msra.mxu0 %v5737
    %5801 = vmatprep.subr.bf16.mxu0 %v5742
    %5802 = vmatpush1.bf16.msra.mxu0 %v5741
    %5803 = vmatprep.subr.bf16.mxu0 %v5746
    %5804 = vmatpush1.bf16.msra.mxu0 %v5745
    %5805 = vmatprep.subr.bf16.mxu0 %v5750
    %5806 = vmatpush1.bf16.msra.mxu0 %v5749
    %5807 = vmatprep.subr.bf16.mxu0 %v5754
    %5808 = vmatpush1.bf16.msra.mxu0 %v5753
    %5809 = vmatprep.subr.bf16.mxu0 %v5758
    %5810 = vmatpush1.bf16.msra.mxu0 %v5757
    %5811 = vmatprep.subr.bf16.mxu0 %v5762
    %5812 = vmatpush1.bf16.msra.mxu0 %v5761
    %5813 = vmatprep.subr.bf16.mxu0 0
    %5814 = vmatpush1.bf16.msra.mxu0 0
    %5815 = vmatprep.subr.bf16.mxu0 0
    %5816 = vmatpush1.bf16.msra.mxu0 0
    %5817 = vmatprep.subr.bf16.mxu0 0
    %5818 = vmatpush1.bf16.msra.mxu0 0
    %5819 = vmatprep.subr.bf16.mxu0 0
    %5820 = vmatpush1.bf16.msra.mxu0 0
    %5821 = vmatprep.subr.bf16.mxu0 0
    %5822 = vmatpush1.bf16.msra.mxu0 0
    %5823 = vmatprep.subr.bf16.mxu0 0
    %5824 = vmatpush1.bf16.msra.mxu0 0
    %5825 = vmatprep.subr.bf16.mxu0 0
    %5826 = vmatpush1.bf16.msra.mxu0 0
    %5827 = vmatprep.subr.bf16.mxu0 0
    %5828 = vmatpush1.bf16.msra.mxu0 0
    %5829 = vmatprep.mubr.bf16.mxu0 0
    %5830 = vmatmul.mubr.bf16.gmra.mrb[0].mxu0 %v5604
    %v5831 = vpop.f32.mrb[0].mxu0
    %v5832 = vadd.f32 0.0, %v5831
    %v5833 = vpop.f32.mrb[0].mxu0
    %v5834 = vadd.f32 0.0, %v5833
    %v5835 = vpop.f32.mrb[0].mxu0
    %v5836 = vpop.f32.mrb[0].mxu0
    %5837 = vdwg.mxu0
    %5838 = vmatprep.subr.bf16.mxu0 %v5736
    %5839 = vmatpush1.bf16.msra.mxu0 %v5735
    %5840 = vmatprep.subr.bf16.mxu0 %v5740
    %5841 = vmatpush1.bf16.msra.mxu0 %v5739
    %5842 = vmatprep.subr.bf16.mxu0 %v5744
    %5843 = vmatpush1.bf16.msra.mxu0 %v5743
    %5844 = vmatprep.subr.bf16.mxu0 %v5748
    %5845 = vmatpush1.bf16.msra.mxu0 %v5747
    %5846 = vmatprep.subr.bf16.mxu0 %v5752
    %5847 = vmatpush1.bf16.msra.mxu0 %v5751
    %5848 = vmatprep.subr.bf16.mxu0 %v5756
    %5849 = vmatpush1.bf16.msra.mxu0 %v5755
    %5850 = vmatprep.subr.bf16.mxu0 %v5760
    %5851 = vmatpush1.bf16.msra.mxu0 %v5759
    %5852 = vmatprep.subr.bf16.mxu0 %v5764
    %5853 = vmatpush1.bf16.msra.mxu0 %v5763
    %5854 = vmatprep.subr.bf16.mxu0 0
    %5855 = vmatpush1.bf16.msra.mxu0 0
    %5856 = vmatprep.subr.bf16.mxu0 0
    %5857 = vmatpush1.bf16.msra.mxu0 0
    %5858 = vmatprep.subr.bf16.mxu0 0
    %5859 = vmatpush1.bf16.msra.mxu0 0
    %5860 = vmatprep.subr.bf16.mxu0 0
    %5861 = vmatpush1.bf16.msra.mxu0 0
    %5862 = vmatprep.subr.bf16.mxu0 0
    %5863 = vmatpush1.bf16.msra.mxu0 0
    %5864 = vmatprep.subr.bf16.mxu0 0
    %5865 = vmatpush1.bf16.msra.mxu0 0
    %5866 = vmatprep.subr.bf16.mxu0 0
    %5867 = vmatpush1.bf16.msra.mxu0 0
    %5868 = vmatprep.subr.bf16.mxu0 0
    %5869 = vmatpush1.bf16.msra.mxu0 0
    %5870 = vmatprep.mubr.bf16.mxu0 0
    %5871 = vmatmul.mubr.bf16.gmra.mrb[0].mxu0 %v5604
    %v5872 = vpop.f32.mrb[0].mxu0
    %v5873 = vadd.f32 0.0, %v5872
    %v5874 = vpop.f32.mrb[0].mxu0
    %v5875 = vadd.f32 0.0, %v5874
    %v5876 = vpop.f32.mrb[0].mxu0
    %v5877 = vpop.f32.mrb[0].mxu0
    %5878 = vdwg.mxu0
    %v5879 = vadd.f32 %v5600, %v5832
    %v5880 = vadd.f32 %v5601, %v5834
    %v5881 = vadd.f32 %v5602, %v5873
    %v5882 = vadd.f32 %v5603, %v5875
    %v5883 = vxor.u32 %v5879, 2147483648
    %v5884 = vxor.u32 %v5880, 2147483648
    %v5885 = vxor.u32 %v5881, 2147483648
    %v5886 = vmul.f32 %v5883, 1.442695
    %v5887 = vpow.pop %v5886
    %v5888 = vmul.f32 %v5884, 1.442695
    %v5889 = vpow.pop %v5888
    %v5890 = vmul.f32 %v5885, 1.442695
    %v5891 = vpow.pop %v5890
    %v5892 = vadd.f32 %v5887, 1.0
    %v5893 = vadd.f32 %v5889, 1.0
    %v5894 = vadd.f32 %v5891, 1.0
    %v5895 = vrcp.pop %v5892
    %v5896 = vmul.f32 1.0, %v5895
    %v5897 = vrcp.pop %v5893
    %v5898 = vmul.f32 1.0, %v5897
    %v5899 = vrcp.pop %v5894
    %v5900 = vmul.f32 1.0, %v5899
    %v5901 = vtanh.pop %v5882
    %v5902 = vmul.f32 %v5898, %v5596
    %v5903 = vmul.f32 %v5896, %v5901
    %v5904 = vadd.f32 %v5902, %v5903
    %v5905 = vtanh.pop %v5904
    %v5906 = vmul.f32 %v5900, %v5905
    %5907 = vst [vmem:[%s3031] sm:$0xff] %v5906
    %v5908 = vld [vmem:[#allocation2] sm:$0xff]
    %v5909 = vld [vmem:[#allocation2 + $0x8] sm:$0xff]
    %v5910 = vld [vmem:[#allocation2 + $0x10] sm:$0xff]
    %v5911 = vld [vmem:[#allocation2 + $0x18] sm:$0xff]
    %v5912 = vld [vmem:[#allocation2 + $0x20] sm:$0xff]
    %v5913 = vld [vmem:[#allocation2 + $0x28] sm:$0xff]
    %v5914 = vld [vmem:[#allocation2 + $0x30] sm:$0xff]
    %v5915 = vld [vmem:[#allocation2 + $0x38] sm:$0xff]
    %s5916 = scalar_lea.vmem [#allocation7], 512
    %v5917 = vld [vmem:[%s5916] sm:$0xff]
    %v5918 = vld [vmem:[%s5916 + $0x8] sm:$0xff]
    %v5919 = vld [vmem:[%s5916 + $0x10] sm:$0xff]
    %v5920 = vld [vmem:[%s5916 + $0x18] sm:$0xff]
    %v5921 = vld [vmem:[%s5916 + $0x20] sm:$0xff]
    %v5922 = vld [vmem:[%s5916 + $0x28] sm:$0xff]
    %v5923 = vld [vmem:[%s5916 + $0x30] sm:$0xff]
    %v5924 = vld [vmem:[%s5916 + $0x38] sm:$0xff]
    %v5925 = vld [vmem:[%s5916 + $0x40] sm:$0xff]
    %v5926 = vld [vmem:[%s5916 + $0x48] sm:$0xff]
    %v5927 = vld [vmem:[%s5916 + $0x50] sm:$0xff]
    %v5928 = vld [vmem:[%s5916 + $0x58] sm:$0xff]
    %v5929 = vld [vmem:[%s5916 + $0x60] sm:$0xff]
    %v5930 = vld [vmem:[%s5916 + $0x68] sm:$0xff]
    %v5931 = vld [vmem:[%s5916 + $0x70] sm:$0xff]
    %v5932 = vld [vmem:[%s5916 + $0x78] sm:$0xff]
    %v5933 = vld [vmem:[%s5916 + $0x80] sm:$0xff]
    %v5934 = vld [vmem:[%s5916 + $0x88] sm:$0xff]
    %v5935 = vld [vmem:[%s5916 + $0x90] sm:$0xff]
    %v5936 = vld [vmem:[%s5916 + $0x98] sm:$0xff]
    %v5937 = vld [vmem:[%s5916 + $0xa0] sm:$0xff]
    %v5938 = vld [vmem:[%s5916 + $0xa8] sm:$0xff]
    %v5939 = vld [vmem:[%s5916 + $0xb0] sm:$0xff]
    %v5940 = vld [vmem:[%s5916 + $0xb8] sm:$0xff]
    %v5941 = vld [vmem:[%s5916 + $0xc0] sm:$0xff]
    %v5942 = vld [vmem:[%s5916 + $0xc8] sm:$0xff]
    %v5943 = vld [vmem:[%s5916 + $0xd0] sm:$0xff]
    %v5944 = vld [vmem:[%s5916 + $0xd8] sm:$0xff]
    %v5945 = vld [vmem:[%s5916 + $0xe0] sm:$0xff]
    %v5946 = vld [vmem:[%s5916 + $0xe8] sm:$0xff]
    %v5947 = vld [vmem:[%s5916 + $0xf0] sm:$0xff]
    %v5948 = vld [vmem:[%s5916 + $0xf8] sm:$0xff]
    %s5949 = scalar_lea.vmem [#allocation10], 8
    %v5950 = vld [vmem:[%s5949] sm:$0xf]
    %v5951 = vpack.c.bf16 %v5909, %v5908
    %v5952 = vpack.c.bf16 %v5911, %v5910
    %v5953 = vpack.c.bf16 %v5913, %v5912
    %v5954 = vpack.c.bf16 %v5915, %v5914
    %v5956 = vlaneseq
    %v5957 = vshrl.u32 %v5956, 7
    %v5958 = vsub.s32 0, %v5957
    %v5959 = vrot.slane %v5950, %v5958
    %v5960 = vlaneseq
    %v5961 = vshrl.u32 %v5960, 7
    %v5962 = vsub.s32 1, %v5961
    %v5963 = vrot.slane %v5950, %v5962
    %v5964 = vlaneseq
    %v5965 = vshrl.u32 %v5964, 7
    %v5966 = vsub.s32 2, %v5965
    %v5967 = vrot.slane %v5950, %v5966
    %v5968 = vlaneseq
    %v5969 = vshrl.u32 %v5968, 7
    %v5970 = vsub.s32 3, %v5969
    %v5971 = vrot.slane %v5950, %v5970
    %v6008 = vunpack.c.l.b16 %v5917
    %v6009 = vunpack.c.h.b16 %v5917
    %v6010 = vunpack.c.l.b16 %v5918
    %v6011 = vunpack.c.h.b16 %v5918
    %v6012 = vunpack.c.l.b16 %v5919
    %v6013 = vunpack.c.h.b16 %v5919
    %v6014 = vunpack.c.l.b16 %v5920
    %v6015 = vunpack.c.h.b16 %v5920
    %v6016 = vunpack.c.l.b16 %v5921
    %v6017 = vunpack.c.h.b16 %v5921
    %v6018 = vunpack.c.l.b16 %v5922
    %v6019 = vunpack.c.h.b16 %v5922
    %v6020 = vunpack.c.l.b16 %v5923
    %v6021 = vunpack.c.h.b16 %v5923
    %v6022 = vunpack.c.l.b16 %v5924
    %v6023 = vunpack.c.h.b16 %v5924
    %v6024 = vunpack.c.l.b16 %v5925
    %v6025 = vunpack.c.h.b16 %v5925
    %v6026 = vunpack.c.l.b16 %v5926
    %v6027 = vunpack.c.h.b16 %v5926
    %v6028 = vunpack.c.l.b16 %v5927
    %v6029 = vunpack.c.h.b16 %v5927
    %v6030 = vunpack.c.l.b16 %v5928
    %v6031 = vunpack.c.h.b16 %v5928
    %v6032 = vunpack.c.l.b16 %v5929
    %v6033 = vunpack.c.h.b16 %v5929
    %v6034 = vunpack.c.l.b16 %v5930
    %v6035 = vunpack.c.h.b16 %v5930
    %v6036 = vunpack.c.l.b16 %v5931
    %v6037 = vunpack.c.h.b16 %v5931
    %v6038 = vunpack.c.l.b16 %v5932
    %v6039 = vunpack.c.h.b16 %v5932
    %v6040 = vunpack.c.l.b16 %v5933
    %v6041 = vunpack.c.h.b16 %v5933
    %v6042 = vunpack.c.l.b16 %v5934
    %v6043 = vunpack.c.h.b16 %v5934
    %v6044 = vunpack.c.l.b16 %v5935
    %v6045 = vunpack.c.h.b16 %v5935
    %v6046 = vunpack.c.l.b16 %v5936
    %v6047 = vunpack.c.h.b16 %v5936
    %v6048 = vunpack.c.l.b16 %v5937
    %v6049 = vunpack.c.h.b16 %v5937
    %v6050 = vunpack.c.l.b16 %v5938
    %v6051 = vunpack.c.h.b16 %v5938
    %v6052 = vunpack.c.l.b16 %v5939
    %v6053 = vunpack.c.h.b16 %v5939
    %v6054 = vunpack.c.l.b16 %v5940
    %v6055 = vunpack.c.h.b16 %v5940
    %v6056 = vunpack.c.l.b16 %v5941
    %v6057 = vunpack.c.h.b16 %v5941
    %v6058 = vunpack.c.l.b16 %v5942
    %v6059 = vunpack.c.h.b16 %v5942
    %v6060 = vunpack.c.l.b16 %v5943
    %v6061 = vunpack.c.h.b16 %v5943
    %v6062 = vunpack.c.l.b16 %v5944
    %v6063 = vunpack.c.h.b16 %v5944
    %v6064 = vunpack.c.l.b16 %v5945
    %v6065 = vunpack.c.h.b16 %v5945
    %v6066 = vunpack.c.l.b16 %v5946
    %v6067 = vunpack.c.h.b16 %v5946
    %v6068 = vunpack.c.l.b16 %v5947
    %v6069 = vunpack.c.h.b16 %v5947
    %v6070 = vunpack.c.l.b16 %v5948
    %v6071 = vunpack.c.h.b16 %v5948
    %v6072 = vpack.c.b16 %v6012, %v6008
    %v6073 = vpack.c.b16 %v6013, %v6009
    %v6074 = vpack.c.b16 %v6014, %v6010
    %v6075 = vpack.c.b16 %v6015, %v6011
    %v6076 = vpack.c.b16 %v6020, %v6016
    %v6077 = vpack.c.b16 %v6021, %v6017
    %v6078 = vpack.c.b16 %v6022, %v6018
    %v6079 = vpack.c.b16 %v6023, %v6019
    %v6080 = vpack.c.b16 %v6028, %v6024
    %v6081 = vpack.c.b16 %v6029, %v6025
    %v6082 = vpack.c.b16 %v6030, %v6026
    %v6083 = vpack.c.b16 %v6031, %v6027
    %v6084 = vpack.c.b16 %v6036, %v6032
    %v6085 = vpack.c.b16 %v6037, %v6033
    %v6086 = vpack.c.b16 %v6038, %v6034
    %v6087 = vpack.c.b16 %v6039, %v6035
    %v6088 = vpack.c.b16 %v6044, %v6040
    %v6089 = vpack.c.b16 %v6045, %v6041
    %v6090 = vpack.c.b16 %v6046, %v6042
    %v6091 = vpack.c.b16 %v6047, %v6043
    %v6092 = vpack.c.b16 %v6052, %v6048
    %v6093 = vpack.c.b16 %v6053, %v6049
    %v6094 = vpack.c.b16 %v6054, %v6050
    %v6095 = vpack.c.b16 %v6055, %v6051
    %v6096 = vpack.c.b16 %v6060, %v6056
    %v6097 = vpack.c.b16 %v6061, %v6057
    %v6098 = vpack.c.b16 %v6062, %v6058
    %v6099 = vpack.c.b16 %v6063, %v6059
    %v6100 = vpack.c.b16 %v6068, %v6064
    %v6101 = vpack.c.b16 %v6069, %v6065
    %v6102 = vpack.c.b16 %v6070, %v6066
    %v6103 = vpack.c.b16 %v6071, %v6067
    %6136 = vmatprep.subr.bf16.mxu0 %v6073
    %6137 = vmatpush1.bf16.msra.mxu0 %v6072
    %6138 = vmatprep.subr.bf16.mxu0 %v6077
    %6139 = vmatpush1.bf16.msra.mxu0 %v6076
    %6140 = vmatprep.subr.bf16.mxu0 %v6081
    %6141 = vmatpush1.bf16.msra.mxu0 %v6080
    %6142 = vmatprep.subr.bf16.mxu0 %v6085
    %6143 = vmatpush1.bf16.msra.mxu0 %v6084
    %6144 = vmatprep.subr.bf16.mxu0 %v6089
    %6145 = vmatpush1.bf16.msra.mxu0 %v6088
    %6146 = vmatprep.subr.bf16.mxu0 %v6093
    %6147 = vmatpush1.bf16.msra.mxu0 %v6092
    %6148 = vmatprep.subr.bf16.mxu0 %v6097
    %6149 = vmatpush1.bf16.msra.mxu0 %v6096
    %6150 = vmatprep.subr.bf16.mxu0 %v6101
    %6151 = vmatpush1.bf16.msra.mxu0 %v6100
    %6152 = vmatprep.subr.bf16.mxu0 0
    %6153 = vmatpush1.bf16.msra.mxu0 0
    %6154 = vmatprep.subr.bf16.mxu0 0
    %6155 = vmatpush1.bf16.msra.mxu0 0
    %6156 = vmatprep.subr.bf16.mxu0 0
    %6157 = vmatpush1.bf16.msra.mxu0 0
    %6158 = vmatprep.subr.bf16.mxu0 0
    %6159 = vmatpush1.bf16.msra.mxu0 0
    %6160 = vmatprep.subr.bf16.mxu0 0
    %6161 = vmatpush1.bf16.msra.mxu0 0
    %6162 = vmatprep.subr.bf16.mxu0 0
    %6163 = vmatpush1.bf16.msra.mxu0 0
    %6164 = vmatprep.subr.bf16.mxu0 0
    %6165 = vmatpush1.bf16.msra.mxu0 0
    %6166 = vmatprep.subr.bf16.mxu0 0
    %6167 = vmatpush1.bf16.msra.mxu0 0
    %6168 = vmatprep.mubr.bf16.mxu0 0
    %6169 = vmatmul.mubr.bf16.gmra.mrb[0].mxu0 %v5951
    %v6170 = vpop.f32.mrb[0].mxu0
    %v6171 = vadd.f32 %v5959, %v6170
    %v6172 = vpop.f32.mrb[0].mxu0
    %v6173 = vadd.f32 %v5963, %v6172
    %v6174 = vpop.f32.mrb[0].mxu0
    %v6175 = vadd.f32 %v5959, %v6174
    %v6176 = vpop.f32.mrb[0].mxu0
    %v6177 = vadd.f32 %v5963, %v6176
    %6178 = vmatprep.mubr.bf16.mxu0 0
    %6179 = vmatmul.mubr.bf16.gmra.mrb[0].mxu0 %v5952
    %v6180 = vpop.f32.mrb[0].mxu0
    %v6181 = vadd.f32 %v5959, %v6180
    %v6182 = vpop.f32.mrb[0].mxu0
    %v6183 = vadd.f32 %v5963, %v6182
    %v6184 = vpop.f32.mrb[0].mxu0
    %v6185 = vadd.f32 %v5959, %v6184
    %v6186 = vpop.f32.mrb[0].mxu0
    %v6187 = vadd.f32 %v5963, %v6186
    %6188 = vmatprep.mubr.bf16.mxu0 0
    %6189 = vmatmul.mubr.bf16.gmra.mrb[0].mxu0 %v5953
    %v6190 = vpop.f32.mrb[0].mxu0
    %v6191 = vadd.f32 %v5959, %v6190
    %v6192 = vpop.f32.mrb[0].mxu0
    %v6193 = vadd.f32 %v5963, %v6192
    %v6194 = vpop.f32.mrb[0].mxu0
    %v6195 = vadd.f32 %v5959, %v6194
    %v6196 = vpop.f32.mrb[0].mxu0
    %v6197 = vadd.f32 %v5963, %v6196
    %6198 = vmatprep.mubr.bf16.mxu0 0
    %6199 = vmatmul.mubr.bf16.gmra.mrb[0].mxu0 %v5954
    %v6200 = vpop.f32.mrb[0].mxu0
    %v6201 = vadd.f32 %v5959, %v6200
    %v6202 = vpop.f32.mrb[0].mxu0
    %v6203 = vadd.f32 %v5963, %v6202
    %v6204 = vpop.f32.mrb[0].mxu0
    %v6205 = vadd.f32 %v5959, %v6204
    %v6206 = vpop.f32.mrb[0].mxu0
    %v6207 = vadd.f32 %v5963, %v6206
    %6208 = vdwg.mxu0
    %6209 = vmatprep.subr.bf16.mxu0 %v6075
    %6210 = vmatpush1.bf16.msra.mxu0 %v6074
    %6211 = vmatprep.subr.bf16.mxu0 %v6079
    %6212 = vmatpush1.bf16.msra.mxu0 %v6078
    %6213 = vmatprep.subr.bf16.mxu0 %v6083
    %6214 = vmatpush1.bf16.msra.mxu0 %v6082
    %6215 = vmatprep.subr.bf16.mxu0 %v6087
    %6216 = vmatpush1.bf16.msra.mxu0 %v6086
    %6217 = vmatprep.subr.bf16.mxu0 %v6091
    %6218 = vmatpush1.bf16.msra.mxu0 %v6090
    %6219 = vmatprep.subr.bf16.mxu0 %v6095
    %6220 = vmatpush1.bf16.msra.mxu0 %v6094
    %6221 = vmatprep.subr.bf16.mxu0 %v6099
    %6222 = vmatpush1.bf16.msra.mxu0 %v6098
    %6223 = vmatprep.subr.bf16.mxu0 %v6103
    %6224 = vmatpush1.bf16.msra.mxu0 %v6102
    %6225 = vmatprep.subr.bf16.mxu0 0
    %6226 = vmatpush1.bf16.msra.mxu0 0
    %6227 = vmatprep.subr.bf16.mxu0 0
    %6228 = vmatpush1.bf16.msra.mxu0 0
    %6229 = vmatprep.subr.bf16.mxu0 0
    %6230 = vmatpush1.bf16.msra.mxu0 0
    %6231 = vmatprep.subr.bf16.mxu0 0
    %6232 = vmatpush1.bf16.msra.mxu0 0
    %6233 = vmatprep.subr.bf16.mxu0 0
    %6234 = vmatpush1.bf16.msra.mxu0 0
    %6235 = vmatprep.subr.bf16.mxu0 0
    %6236 = vmatpush1.bf16.msra.mxu0 0
    %6237 = vmatprep.subr.bf16.mxu0 0
    %6238 = vmatpush1.bf16.msra.mxu0 0
    %6239 = vmatprep.subr.bf16.mxu0 0
    %6240 = vmatpush1.bf16.msra.mxu0 0
    %6241 = vmatprep.mubr.bf16.mxu0 0
    %6242 = vmatmul.mubr.bf16.gmra.mrb[0].mxu0 %v5951
    %v6243 = vpop.f32.mrb[0].mxu0
    %v6244 = vadd.f32 %v5967, %v6243
    %v6245 = vpop.f32.mrb[0].mxu0
    %v6246 = vadd.f32 %v5971, %v6245
    %v6247 = vpop.f32.mrb[0].mxu0
    %v6248 = vadd.f32 %v5967, %v6247
    %v6249 = vpop.f32.mrb[0].mxu0
    %v6250 = vadd.f32 %v5971, %v6249
    %6251 = vmatprep.mubr.bf16.mxu0 0
    %6252 = vmatmul.mubr.bf16.gmra.mrb[0].mxu0 %v5952
    %v6253 = vpop.f32.mrb[0].mxu0
    %v6254 = vadd.f32 %v5967, %v6253
    %v6255 = vpop.f32.mrb[0].mxu0
    %v6256 = vadd.f32 %v5971, %v6255
    %v6257 = vpop.f32.mrb[0].mxu0
    %v6258 = vadd.f32 %v5967, %v6257
    %v6259 = vpop.f32.mrb[0].mxu0
    %v6260 = vadd.f32 %v5971, %v6259
    %6261 = vmatprep.mubr.bf16.mxu0 0
    %6262 = vmatmul.mubr.bf16.gmra.mrb[0].mxu0 %v5953
    %v6263 = vpop.f32.mrb[0].mxu0
    %v6264 = vadd.f32 %v5967, %v6263
    %v6265 = vpop.f32.mrb[0].mxu0
    %v6266 = vadd.f32 %v5971, %v6265
    %v6267 = vpop.f32.mrb[0].mxu0
    %v6268 = vadd.f32 %v5967, %v6267
    %v6269 = vpop.f32.mrb[0].mxu0
    %v6270 = vadd.f32 %v5971, %v6269
    %6271 = vmatprep.mubr.bf16.mxu0 0
    %6272 = vmatmul.mubr.bf16.gmra.mrb[0].mxu0 %v5954
    %v6273 = vpop.f32.mrb[0].mxu0
    %v6274 = vadd.f32 %v5967, %v6273
    %v6275 = vpop.f32.mrb[0].mxu0
    %v6276 = vadd.f32 %v5971, %v6275
    %v6277 = vpop.f32.mrb[0].mxu0
    %v6278 = vadd.f32 %v5967, %v6277
    %v6279 = vpop.f32.mrb[0].mxu0
    %v6280 = vadd.f32 %v5971, %v6279
    %6281 = vdwg.mxu0
    %6282 = vst [vmem:[#allocation3] sm:$0xff] %v6171
    %6283 = vst [vmem:[#allocation3 + $0x8] sm:$0xff] %v6173
    %6284 = vst [vmem:[#allocation3 + $0x10] sm:$0xff] %v6244
    %6285 = vst [vmem:[#allocation3 + $0x18] sm:$0xff] %v6246
    %6286 = vst [vmem:[#allocation3 + $0x20] sm:$0xff] %v6175
    %6287 = vst [vmem:[#allocation3 + $0x28] sm:$0xff] %v6177
    %6288 = vst [vmem:[#allocation3 + $0x30] sm:$0xff] %v6248
    %6289 = vst [vmem:[#allocation3 + $0x38] sm:$0xff] %v6250
    %6290 = vst [vmem:[#allocation3 + $0x40] sm:$0xff] %v6181
    %6291 = vst [vmem:[#allocation3 + $0x48] sm:$0xff] %v6183
    %6292 = vst [vmem:[#allocation3 + $0x50] sm:$0xff] %v6254
    %6293 = vst [vmem:[#allocation3 + $0x58] sm:$0xff] %v6256
    %6294 = vst [vmem:[#allocation3 + $0x60] sm:$0xff] %v6185
    %6295 = vst [vmem:[#allocation3 + $0x68] sm:$0xff] %v6187
    %6296 = vst [vmem:[#allocation3 + $0x70] sm:$0xff] %v6258
    %6297 = vst [vmem:[#allocation3 + $0x78] sm:$0xff] %v6260
    %6298 = vst [vmem:[#allocation3 + $0x80] sm:$0xff] %v6191
    %6299 = vst [vmem:[#allocation3 + $0x88] sm:$0xff] %v6193
    %6300 = vst [vmem:[#allocation3 + $0x90] sm:$0xff] %v6264
    %6301 = vst [vmem:[#allocation3 + $0x98] sm:$0xff] %v6266
    %6302 = vst [vmem:[#allocation3 + $0xa0] sm:$0xff] %v6195
    %6303 = vst [vmem:[#allocation3 + $0xa8] sm:$0xff] %v6197
    %6304 = vst [vmem:[#allocation3 + $0xb0] sm:$0xff] %v6268
    %6305 = vst [vmem:[#allocation3 + $0xb8] sm:$0xff] %v6270
    %6306 = vst [vmem:[#allocation3 + $0xc0] sm:$0xff] %v6201
    %6307 = vst [vmem:[#allocation3 + $0xc8] sm:$0xff] %v6203
    %6308 = vst [vmem:[#allocation3 + $0xd0] sm:$0xff] %v6274
    %6309 = vst [vmem:[#allocation3 + $0xd8] sm:$0xff] %v6276
    %6310 = vst [vmem:[#allocation3 + $0xe0] sm:$0xff] %v6205
    %6311 = vst [vmem:[#allocation3 + $0xe8] sm:$0xff] %v6207
    %6312 = vst [vmem:[#allocation3 + $0xf0] sm:$0xff] %v6278
    %6313 = vst [vmem:[#allocation3 + $0xf8] sm:$0xff] %v6280
    %s6314 = scalar_lea.vmem [#allocation12], 16
    %v6315 = vld [vmem:[%s6314] sm:$0xff]
    %s6316 = scalar_lea.vmem [#allocation13], 16
    %v6317 = vld [vmem:[%s6316] sm:$0xff]
    %v6318 = vld [vmem:[#allocation3] sm:$0xff]
    %v6319 = vld [vmem:[#allocation3 + $0x8] sm:$0xff]
    %v6320 = vld [vmem:[#allocation3 + $0x10] sm:$0xff]
    %v6321 = vld [vmem:[#allocation3 + $0x18] sm:$0xff]
    %v6322 = vpack.c.bf16 %v6315, %v6315
    %s6323 = scalar_lea.vmem [#allocation9], 512
    %v6324 = vld [vmem:[%s6323] sm:$0xff]
    %v6325 = vld [vmem:[%s6323 + $0x8] sm:$0xff]
    %v6326 = vld [vmem:[%s6323 + $0x10] sm:$0xff]
    %v6327 = vld [vmem:[%s6323 + $0x18] sm:$0xff]
    %v6328 = vld [vmem:[%s6323 + $0x20] sm:$0xff]
    %v6329 = vld [vmem:[%s6323 + $0x28] sm:$0xff]
    %v6330 = vld [vmem:[%s6323 + $0x30] sm:$0xff]
    %v6331 = vld [vmem:[%s6323 + $0x38] sm:$0xff]
    %v6332 = vld [vmem:[%s6323 + $0x40] sm:$0xff]
    %v6333 = vld [vmem:[%s6323 + $0x48] sm:$0xff]
    %v6334 = vld [vmem:[%s6323 + $0x50] sm:$0xff]
    %v6335 = vld [vmem:[%s6323 + $0x58] sm:$0xff]
    %v6336 = vld [vmem:[%s6323 + $0x60] sm:$0xff]
    %v6337 = vld [vmem:[%s6323 + $0x68] sm:$0xff]
    %v6338 = vld [vmem:[%s6323 + $0x70] sm:$0xff]
    %v6339 = vld [vmem:[%s6323 + $0x78] sm:$0xff]
    %v6340 = vld [vmem:[%s6323 + $0x80] sm:$0xff]
    %v6341 = vld [vmem:[%s6323 + $0x88] sm:$0xff]
    %v6342 = vld [vmem:[%s6323 + $0x90] sm:$0xff]
    %v6343 = vld [vmem:[%s6323 + $0x98] sm:$0xff]
    %v6344 = vld [vmem:[%s6323 + $0xa0] sm:$0xff]
    %v6345 = vld [vmem:[%s6323 + $0xa8] sm:$0xff]
    %v6346 = vld [vmem:[%s6323 + $0xb0] sm:$0xff]
    %v6347 = vld [vmem:[%s6323 + $0xb8] sm:$0xff]
    %v6348 = vld [vmem:[%s6323 + $0xc0] sm:$0xff]
    %v6349 = vld [vmem:[%s6323 + $0xc8] sm:$0xff]
    %v6350 = vld [vmem:[%s6323 + $0xd0] sm:$0xff]
    %v6351 = vld [vmem:[%s6323 + $0xd8] sm:$0xff]
    %v6352 = vld [vmem:[%s6323 + $0xe0] sm:$0xff]
    %v6353 = vld [vmem:[%s6323 + $0xe8] sm:$0xff]
    %v6354 = vld [vmem:[%s6323 + $0xf0] sm:$0xff]
    %v6355 = vld [vmem:[%s6323 + $0xf8] sm:$0xff]
    %v6388 = vunpack.c.l.b16 %v6324
    %v6389 = vunpack.c.h.b16 %v6324
    %v6390 = vunpack.c.l.b16 %v6325
    %v6391 = vunpack.c.h.b16 %v6325
    %v6392 = vunpack.c.l.b16 %v6326
    %v6393 = vunpack.c.h.b16 %v6326
    %v6394 = vunpack.c.l.b16 %v6327
    %v6395 = vunpack.c.h.b16 %v6327
    %v6396 = vunpack.c.l.b16 %v6328
    %v6397 = vunpack.c.h.b16 %v6328
    %v6398 = vunpack.c.l.b16 %v6329
    %v6399 = vunpack.c.h.b16 %v6329
    %v6400 = vunpack.c.l.b16 %v6330
    %v6401 = vunpack.c.h.b16 %v6330
    %v6402 = vunpack.c.l.b16 %v6331
    %v6403 = vunpack.c.h.b16 %v6331
    %v6404 = vunpack.c.l.b16 %v6332
    %v6405 = vunpack.c.h.b16 %v6332
    %v6406 = vunpack.c.l.b16 %v6333
    %v6407 = vunpack.c.h.b16 %v6333
    %v6408 = vunpack.c.l.b16 %v6334
    %v6409 = vunpack.c.h.b16 %v6334
    %v6410 = vunpack.c.l.b16 %v6335
    %v6411 = vunpack.c.h.b16 %v6335
    %v6412 = vunpack.c.l.b16 %v6336
    %v6413 = vunpack.c.h.b16 %v6336
    %v6414 = vunpack.c.l.b16 %v6337
    %v6415 = vunpack.c.h.b16 %v6337
    %v6416 = vunpack.c.l.b16 %v6338
    %v6417 = vunpack.c.h.b16 %v6338
    %v6418 = vunpack.c.l.b16 %v6339
    %v6419 = vunpack.c.h.b16 %v6339
    %v6420 = vunpack.c.l.b16 %v6340
    %v6421 = vunpack.c.h.b16 %v6340
    %v6422 = vunpack.c.l.b16 %v6341
    %v6423 = vunpack.c.h.b16 %v6341
    %v6424 = vunpack.c.l.b16 %v6342
    %v6425 = vunpack.c.h.b16 %v6342
    %v6426 = vunpack.c.l.b16 %v6343
    %v6427 = vunpack.c.h.b16 %v6343
    %v6428 = vunpack.c.l.b16 %v6344
    %v6429 = vunpack.c.h.b16 %v6344
    %v6430 = vunpack.c.l.b16 %v6345
    %v6431 = vunpack.c.h.b16 %v6345
    %v6432 = vunpack.c.l.b16 %v6346
    %v6433 = vunpack.c.h.b16 %v6346
    %v6434 = vunpack.c.l.b16 %v6347
    %v6435 = vunpack.c.h.b16 %v6347
    %v6436 = vunpack.c.l.b16 %v6348
    %v6437 = vunpack.c.h.b16 %v6348
    %v6438 = vunpack.c.l.b16 %v6349
    %v6439 = vunpack.c.h.b16 %v6349
    %v6440 = vunpack.c.l.b16 %v6350
    %v6441 = vunpack.c.h.b16 %v6350
    %v6442 = vunpack.c.l.b16 %v6351
    %v6443 = vunpack.c.h.b16 %v6351
    %v6444 = vunpack.c.l.b16 %v6352
    %v6445 = vunpack.c.h.b16 %v6352
    %v6446 = vunpack.c.l.b16 %v6353
    %v6447 = vunpack.c.h.b16 %v6353
    %v6448 = vunpack.c.l.b16 %v6354
    %v6449 = vunpack.c.h.b16 %v6354
    %v6450 = vunpack.c.l.b16 %v6355
    %v6451 = vunpack.c.h.b16 %v6355
    %v6452 = vpack.c.b16 %v6392, %v6388
    %v6453 = vpack.c.b16 %v6393, %v6389
    %v6454 = vpack.c.b16 %v6394, %v6390
    %v6455 = vpack.c.b16 %v6395, %v6391
    %v6456 = vpack.c.b16 %v6400, %v6396
    %v6457 = vpack.c.b16 %v6401, %v6397
    %v6458 = vpack.c.b16 %v6402, %v6398
    %v6459 = vpack.c.b16 %v6403, %v6399
    %v6460 = vpack.c.b16 %v6408, %v6404
    %v6461 = vpack.c.b16 %v6409, %v6405
    %v6462 = vpack.c.b16 %v6410, %v6406
    %v6463 = vpack.c.b16 %v6411, %v6407
    %v6464 = vpack.c.b16 %v6416, %v6412
    %v6465 = vpack.c.b16 %v6417, %v6413
    %v6466 = vpack.c.b16 %v6418, %v6414
    %v6467 = vpack.c.b16 %v6419, %v6415
    %v6468 = vpack.c.b16 %v6424, %v6420
    %v6469 = vpack.c.b16 %v6425, %v6421
    %v6470 = vpack.c.b16 %v6426, %v6422
    %v6471 = vpack.c.b16 %v6427, %v6423
    %v6472 = vpack.c.b16 %v6432, %v6428
    %v6473 = vpack.c.b16 %v6433, %v6429
    %v6474 = vpack.c.b16 %v6434, %v6430
    %v6475 = vpack.c.b16 %v6435, %v6431
    %v6476 = vpack.c.b16 %v6440, %v6436
    %v6477 = vpack.c.b16 %v6441, %v6437
    %v6478 = vpack.c.b16 %v6442, %v6438
    %v6479 = vpack.c.b16 %v6443, %v6439
    %v6480 = vpack.c.b16 %v6448, %v6444
    %v6481 = vpack.c.b16 %v6449, %v6445
    %v6482 = vpack.c.b16 %v6450, %v6446
    %v6483 = vpack.c.b16 %v6451, %v6447
    %6516 = vmatprep.subr.bf16.mxu0 %v6453
    %6517 = vmatpush1.bf16.msra.mxu0 %v6452
    %6518 = vmatprep.subr.bf16.mxu0 %v6457
    %6519 = vmatpush1.bf16.msra.mxu0 %v6456
    %6520 = vmatprep.subr.bf16.mxu0 %v6461
    %6521 = vmatpush1.bf16.msra.mxu0 %v6460
    %6522 = vmatprep.subr.bf16.mxu0 %v6465
    %6523 = vmatpush1.bf16.msra.mxu0 %v6464
    %6524 = vmatprep.subr.bf16.mxu0 %v6469
    %6525 = vmatpush1.bf16.msra.mxu0 %v6468
    %6526 = vmatprep.subr.bf16.mxu0 %v6473
    %6527 = vmatpush1.bf16.msra.mxu0 %v6472
    %6528 = vmatprep.subr.bf16.mxu0 %v6477
    %6529 = vmatpush1.bf16.msra.mxu0 %v6476
    %6530 = vmatprep.subr.bf16.mxu0 %v6481
    %6531 = vmatpush1.bf16.msra.mxu0 %v6480
    %6532 = vmatprep.subr.bf16.mxu0 0
    %6533 = vmatpush1.bf16.msra.mxu0 0
    %6534 = vmatprep.subr.bf16.mxu0 0
    %6535 = vmatpush1.bf16.msra.mxu0 0
    %6536 = vmatprep.subr.bf16.mxu0 0
    %6537 = vmatpush1.bf16.msra.mxu0 0
    %6538 = vmatprep.subr.bf16.mxu0 0
    %6539 = vmatpush1.bf16.msra.mxu0 0
    %6540 = vmatprep.subr.bf16.mxu0 0
    %6541 = vmatpush1.bf16.msra.mxu0 0
    %6542 = vmatprep.subr.bf16.mxu0 0
    %6543 = vmatpush1.bf16.msra.mxu0 0
    %6544 = vmatprep.subr.bf16.mxu0 0
    %6545 = vmatpush1.bf16.msra.mxu0 0
    %6546 = vmatprep.subr.bf16.mxu0 0
    %6547 = vmatpush1.bf16.msra.mxu0 0
    %6548 = vmatprep.mubr.bf16.mxu0 0
    %6549 = vmatmul.mubr.bf16.gmra.mrb[0].mxu0 %v6322
    %v6550 = vpop.f32.mrb[0].mxu0
    %v6551 = vadd.f32 0.0, %v6550
    %v6552 = vpop.f32.mrb[0].mxu0
    %v6553 = vadd.f32 0.0, %v6552
    %v6554 = vpop.f32.mrb[0].mxu0
    %v6555 = vpop.f32.mrb[0].mxu0
    %6556 = vdwg.mxu0
    %6557 = vmatprep.subr.bf16.mxu0 %v6455
    %6558 = vmatpush1.bf16.msra.mxu0 %v6454
    %6559 = vmatprep.subr.bf16.mxu0 %v6459
    %6560 = vmatpush1.bf16.msra.mxu0 %v6458
    %6561 = vmatprep.subr.bf16.mxu0 %v6463
    %6562 = vmatpush1.bf16.msra.mxu0 %v6462
    %6563 = vmatprep.subr.bf16.mxu0 %v6467
    %6564 = vmatpush1.bf16.msra.mxu0 %v6466
    %6565 = vmatprep.subr.bf16.mxu0 %v6471
    %6566 = vmatpush1.bf16.msra.mxu0 %v6470
    %6567 = vmatprep.subr.bf16.mxu0 %v6475
    %6568 = vmatpush1.bf16.msra.mxu0 %v6474
    %6569 = vmatprep.subr.bf16.mxu0 %v6479
    %6570 = vmatpush1.bf16.msra.mxu0 %v6478
    %6571 = vmatprep.subr.bf16.mxu0 %v6483
    %6572 = vmatpush1.bf16.msra.mxu0 %v6482
    %6573 = vmatprep.subr.bf16.mxu0 0
    %6574 = vmatpush1.bf16.msra.mxu0 0
    %6575 = vmatprep.subr.bf16.mxu0 0
    %6576 = vmatpush1.bf16.msra.mxu0 0
    %6577 = vmatprep.subr.bf16.mxu0 0
    %6578 = vmatpush1.bf16.msra.mxu0 0
    %6579 = vmatprep.subr.bf16.mxu0 0
    %6580 = vmatpush1.bf16.msra.mxu0 0
    %6581 = vmatprep.subr.bf16.mxu0 0
    %6582 = vmatpush1.bf16.msra.mxu0 0
    %6583 = vmatprep.subr.bf16.mxu0 0
    %6584 = vmatpush1.bf16.msra.mxu0 0
    %6585 = vmatprep.subr.bf16.mxu0 0
    %6586 = vmatpush1.bf16.msra.mxu0 0
    %6587 = vmatprep.subr.bf16.mxu0 0
    %6588 = vmatpush1.bf16.msra.mxu0 0
    %6589 = vmatprep.mubr.bf16.mxu0 0
    %6590 = vmatmul.mubr.bf16.gmra.mrb[0].mxu0 %v6322
    %v6591 = vpop.f32.mrb[0].mxu0
    %v6592 = vadd.f32 0.0, %v6591
    %v6593 = vpop.f32.mrb[0].mxu0
    %v6594 = vadd.f32 0.0, %v6593
    %v6595 = vpop.f32.mrb[0].mxu0
    %v6596 = vpop.f32.mrb[0].mxu0
    %6597 = vdwg.mxu0
    %v6598 = vadd.f32 %v6318, %v6551
    %v6599 = vadd.f32 %v6319, %v6553
    %v6600 = vadd.f32 %v6320, %v6592
    %v6601 = vadd.f32 %v6321, %v6594
    %v6602 = vxor.u32 %v6598, 2147483648
    %v6603 = vxor.u32 %v6599, 2147483648
    %v6604 = vxor.u32 %v6600, 2147483648
    %v6605 = vmul.f32 %v6602, 1.442695
    %v6606 = vpow.pop %v6605
    %v6607 = vmul.f32 %v6603, 1.442695
    %v6608 = vpow.pop %v6607
    %v6609 = vmul.f32 %v6604, 1.442695
    %v6610 = vpow.pop %v6609
    %v6611 = vadd.f32 %v6606, 1.0
    %v6612 = vadd.f32 %v6608, 1.0
    %v6613 = vadd.f32 %v6610, 1.0
    %v6614 = vrcp.pop %v6611
    %v6615 = vmul.f32 1.0, %v6614
    %v6616 = vrcp.pop %v6612
    %v6617 = vmul.f32 1.0, %v6616
    %v6618 = vrcp.pop %v6613
    %v6619 = vmul.f32 1.0, %v6618
    %v6620 = vtanh.pop %v6601
    %v6621 = vmul.f32 %v6617, %v6317
    %v6622 = vmul.f32 %v6615, %v6620
    %v6623 = vadd.f32 %v6621, %v6622
    %v6624 = vtanh.pop %v6623
    %v6625 = vmul.f32 %v6619, %v6624
    %6626 = vst [vmem:[#allocation2] sm:$0xff] %v6625
    %v6627 = vld [vmem:[%s863] sm:$0xff]
    %v6628 = vld [vmem:[%s863 + $0x8] sm:$0xff]
    %v6629 = vld [vmem:[%s863 + $0x10] sm:$0xff]
    %v6630 = vld [vmem:[%s863 + $0x18] sm:$0xff]
    %v6631 = vpack.c.bf16 %v6625, %v6625
    %v6632 = vld [vmem:[%s6323] sm:$0xff]
    %v6633 = vld [vmem:[%s6323 + $0x8] sm:$0xff]
    %v6634 = vld [vmem:[%s6323 + $0x10] sm:$0xff]
    %v6635 = vld [vmem:[%s6323 + $0x18] sm:$0xff]
    %v6636 = vld [vmem:[%s6323 + $0x20] sm:$0xff]
    %v6637 = vld [vmem:[%s6323 + $0x28] sm:$0xff]
    %v6638 = vld [vmem:[%s6323 + $0x30] sm:$0xff]
    %v6639 = vld [vmem:[%s6323 + $0x38] sm:$0xff]
    %v6640 = vld [vmem:[%s6323 + $0x40] sm:$0xff]
    %v6641 = vld [vmem:[%s6323 + $0x48] sm:$0xff]
    %v6642 = vld [vmem:[%s6323 + $0x50] sm:$0xff]
    %v6643 = vld [vmem:[%s6323 + $0x58] sm:$0xff]
    %v6644 = vld [vmem:[%s6323 + $0x60] sm:$0xff]
    %v6645 = vld [vmem:[%s6323 + $0x68] sm:$0xff]
    %v6646 = vld [vmem:[%s6323 + $0x70] sm:$0xff]
    %v6647 = vld [vmem:[%s6323 + $0x78] sm:$0xff]
    %v6648 = vld [vmem:[%s6323 + $0x80] sm:$0xff]
    %v6649 = vld [vmem:[%s6323 + $0x88] sm:$0xff]
    %v6650 = vld [vmem:[%s6323 + $0x90] sm:$0xff]
    %v6651 = vld [vmem:[%s6323 + $0x98] sm:$0xff]
    %v6652 = vld [vmem:[%s6323 + $0xa0] sm:$0xff]
    %v6653 = vld [vmem:[%s6323 + $0xa8] sm:$0xff]
    %v6654 = vld [vmem:[%s6323 + $0xb0] sm:$0xff]
    %v6655 = vld [vmem:[%s6323 + $0xb8] sm:$0xff]
    %v6656 = vld [vmem:[%s6323 + $0xc0] sm:$0xff]
    %v6657 = vld [vmem:[%s6323 + $0xc8] sm:$0xff]
    %v6658 = vld [vmem:[%s6323 + $0xd0] sm:$0xff]
    %v6659 = vld [vmem:[%s6323 + $0xd8] sm:$0xff]
    %v6660 = vld [vmem:[%s6323 + $0xe0] sm:$0xff]
    %v6661 = vld [vmem:[%s6323 + $0xe8] sm:$0xff]
    %v6662 = vld [vmem:[%s6323 + $0xf0] sm:$0xff]
    %v6663 = vld [vmem:[%s6323 + $0xf8] sm:$0xff]
    %v6696 = vunpack.c.l.b16 %v6632
    %v6697 = vunpack.c.h.b16 %v6632
    %v6698 = vunpack.c.l.b16 %v6633
    %v6699 = vunpack.c.h.b16 %v6633
    %v6700 = vunpack.c.l.b16 %v6634
    %v6701 = vunpack.c.h.b16 %v6634
    %v6702 = vunpack.c.l.b16 %v6635
    %v6703 = vunpack.c.h.b16 %v6635
    %v6704 = vunpack.c.l.b16 %v6636
    %v6705 = vunpack.c.h.b16 %v6636
    %v6706 = vunpack.c.l.b16 %v6637
    %v6707 = vunpack.c.h.b16 %v6637
    %v6708 = vunpack.c.l.b16 %v6638
    %v6709 = vunpack.c.h.b16 %v6638
    %v6710 = vunpack.c.l.b16 %v6639
    %v6711 = vunpack.c.h.b16 %v6639
    %v6712 = vunpack.c.l.b16 %v6640
    %v6713 = vunpack.c.h.b16 %v6640
    %v6714 = vunpack.c.l.b16 %v6641
    %v6715 = vunpack.c.h.b16 %v6641
    %v6716 = vunpack.c.l.b16 %v6642
    %v6717 = vunpack.c.h.b16 %v6642
    %v6718 = vunpack.c.l.b16 %v6643
    %v6719 = vunpack.c.h.b16 %v6643
    %v6720 = vunpack.c.l.b16 %v6644
    %v6721 = vunpack.c.h.b16 %v6644
    %v6722 = vunpack.c.l.b16 %v6645
    %v6723 = vunpack.c.h.b16 %v6645
    %v6724 = vunpack.c.l.b16 %v6646
    %v6725 = vunpack.c.h.b16 %v6646
    %v6726 = vunpack.c.l.b16 %v6647
    %v6727 = vunpack.c.h.b16 %v6647
    %v6728 = vunpack.c.l.b16 %v6648
    %v6729 = vunpack.c.h.b16 %v6648
    %v6730 = vunpack.c.l.b16 %v6649
    %v6731 = vunpack.c.h.b16 %v6649
    %v6732 = vunpack.c.l.b16 %v6650
    %v6733 = vunpack.c.h.b16 %v6650
    %v6734 = vunpack.c.l.b16 %v6651
    %v6735 = vunpack.c.h.b16 %v6651
    %v6736 = vunpack.c.l.b16 %v6652
    %v6737 = vunpack.c.h.b16 %v6652
    %v6738 = vunpack.c.l.b16 %v6653
    %v6739 = vunpack.c.h.b16 %v6653
    %v6740 = vunpack.c.l.b16 %v6654
    %v6741 = vunpack.c.h.b16 %v6654
    %v6742 = vunpack.c.l.b16 %v6655
    %v6743 = vunpack.c.h.b16 %v6655
    %v6744 = vunpack.c.l.b16 %v6656
    %v6745 = vunpack.c.h.b16 %v6656
    %v6746 = vunpack.c.l.b16 %v6657
    %v6747 = vunpack.c.h.b16 %v6657
    %v6748 = vunpack.c.l.b16 %v6658
    %v6749 = vunpack.c.h.b16 %v6658
    %v6750 = vunpack.c.l.b16 %v6659
    %v6751 = vunpack.c.h.b16 %v6659
    %v6752 = vunpack.c.l.b16 %v6660
    %v6753 = vunpack.c.h.b16 %v6660
    %v6754 = vunpack.c.l.b16 %v6661
    %v6755 = vunpack.c.h.b16 %v6661
    %v6756 = vunpack.c.l.b16 %v6662
    %v6757 = vunpack.c.h.b16 %v6662
    %v6758 = vunpack.c.l.b16 %v6663
    %v6759 = vunpack.c.h.b16 %v6663
    %v6760 = vpack.c.b16 %v6700, %v6696
    %v6761 = vpack.c.b16 %v6701, %v6697
    %v6762 = vpack.c.b16 %v6702, %v6698
    %v6763 = vpack.c.b16 %v6703, %v6699
    %v6764 = vpack.c.b16 %v6708, %v6704
    %v6765 = vpack.c.b16 %v6709, %v6705
    %v6766 = vpack.c.b16 %v6710, %v6706
    %v6767 = vpack.c.b16 %v6711, %v6707
    %v6768 = vpack.c.b16 %v6716, %v6712
    %v6769 = vpack.c.b16 %v6717, %v6713
    %v6770 = vpack.c.b16 %v6718, %v6714
    %v6771 = vpack.c.b16 %v6719, %v6715
    %v6772 = vpack.c.b16 %v6724, %v6720
    %v6773 = vpack.c.b16 %v6725, %v6721
    %v6774 = vpack.c.b16 %v6726, %v6722
    %v6775 = vpack.c.b16 %v6727, %v6723
    %v6776 = vpack.c.b16 %v6732, %v6728
    %v6777 = vpack.c.b16 %v6733, %v6729
    %v6778 = vpack.c.b16 %v6734, %v6730
    %v6779 = vpack.c.b16 %v6735, %v6731
    %v6780 = vpack.c.b16 %v6740, %v6736
    %v6781 = vpack.c.b16 %v6741, %v6737
    %v6782 = vpack.c.b16 %v6742, %v6738
    %v6783 = vpack.c.b16 %v6743, %v6739
    %v6784 = vpack.c.b16 %v6748, %v6744
    %v6785 = vpack.c.b16 %v6749, %v6745
    %v6786 = vpack.c.b16 %v6750, %v6746
    %v6787 = vpack.c.b16 %v6751, %v6747
    %v6788 = vpack.c.b16 %v6756, %v6752
    %v6789 = vpack.c.b16 %v6757, %v6753
    %v6790 = vpack.c.b16 %v6758, %v6754
    %v6791 = vpack.c.b16 %v6759, %v6755
    %6824 = vmatprep.subr.bf16.mxu0 %v6761
    %6825 = vmatpush1.bf16.msra.mxu0 %v6760
    %6826 = vmatprep.subr.bf16.mxu0 %v6765
    %6827 = vmatpush1.bf16.msra.mxu0 %v6764
    %6828 = vmatprep.subr.bf16.mxu0 %v6769
    %6829 = vmatpush1.bf16.msra.mxu0 %v6768
    %6830 = vmatprep.subr.bf16.mxu0 %v6773
    %6831 = vmatpush1.bf16.msra.mxu0 %v6772
    %6832 = vmatprep.subr.bf16.mxu0 %v6777
    %6833 = vmatpush1.bf16.msra.mxu0 %v6776
    %6834 = vmatprep.subr.bf16.mxu0 %v6781
    %6835 = vmatpush1.bf16.msra.mxu0 %v6780
    %6836 = vmatprep.subr.bf16.mxu0 %v6785
    %6837 = vmatpush1.bf16.msra.mxu0 %v6784
    %6838 = vmatprep.subr.bf16.mxu0 %v6789
    %6839 = vmatpush1.bf16.msra.mxu0 %v6788
    %6840 = vmatprep.subr.bf16.mxu0 0
    %6841 = vmatpush1.bf16.msra.mxu0 0
    %6842 = vmatprep.subr.bf16.mxu0 0
    %6843 = vmatpush1.bf16.msra.mxu0 0
    %6844 = vmatprep.subr.bf16.mxu0 0
    %6845 = vmatpush1.bf16.msra.mxu0 0
    %6846 = vmatprep.subr.bf16.mxu0 0
    %6847 = vmatpush1.bf16.msra.mxu0 0
    %6848 = vmatprep.subr.bf16.mxu0 0
    %6849 = vmatpush1.bf16.msra.mxu0 0
    %6850 = vmatprep.subr.bf16.mxu0 0
    %6851 = vmatpush1.bf16.msra.mxu0 0
    %6852 = vmatprep.subr.bf16.mxu0 0
    %6853 = vmatpush1.bf16.msra.mxu0 0
    %6854 = vmatprep.subr.bf16.mxu0 0
    %6855 = vmatpush1.bf16.msra.mxu0 0
    %6856 = vmatprep.mubr.bf16.mxu0 0
    %6857 = vmatmul.mubr.bf16.gmra.mrb[0].mxu0 %v6631
    %v6858 = vpop.f32.mrb[0].mxu0
    %v6859 = vadd.f32 0.0, %v6858
    %v6860 = vpop.f32.mrb[0].mxu0
    %v6861 = vadd.f32 0.0, %v6860
    %v6862 = vpop.f32.mrb[0].mxu0
    %v6863 = vpop.f32.mrb[0].mxu0
    %6864 = vdwg.mxu0
    %6865 = vmatprep.subr.bf16.mxu0 %v6763
    %6866 = vmatpush1.bf16.msra.mxu0 %v6762
    %6867 = vmatprep.subr.bf16.mxu0 %v6767
    %6868 = vmatpush1.bf16.msra.mxu0 %v6766
    %6869 = vmatprep.subr.bf16.mxu0 %v6771
    %6870 = vmatpush1.bf16.msra.mxu0 %v6770
    %6871 = vmatprep.subr.bf16.mxu0 %v6775
    %6872 = vmatpush1.bf16.msra.mxu0 %v6774
    %6873 = vmatprep.subr.bf16.mxu0 %v6779
    %6874 = vmatpush1.bf16.msra.mxu0 %v6778
    %6875 = vmatprep.subr.bf16.mxu0 %v6783
    %6876 = vmatpush1.bf16.msra.mxu0 %v6782
    %6877 = vmatprep.subr.bf16.mxu0 %v6787
    %6878 = vmatpush1.bf16.msra.mxu0 %v6786
    %6879 = vmatprep.subr.bf16.mxu0 %v6791
    %6880 = vmatpush1.bf16.msra.mxu0 %v6790
    %6881 = vmatprep.subr.bf16.mxu0 0
    %6882 = vmatpush1.bf16.msra.mxu0 0
    %6883 = vmatprep.subr.bf16.mxu0 0
    %6884 = vmatpush1.bf16.msra.mxu0 0
    %6885 = vmatprep.subr.bf16.mxu0 0
    %6886 = vmatpush1.bf16.msra.mxu0 0
    %6887 = vmatprep.subr.bf16.mxu0 0
    %6888 = vmatpush1.bf16.msra.mxu0 0
    %6889 = vmatprep.subr.bf16.mxu0 0
    %6890 = vmatpush1.bf16.msra.mxu0 0
    %6891 = vmatprep.subr.bf16.mxu0 0
    %6892 = vmatpush1.bf16.msra.mxu0 0
    %6893 = vmatprep.subr.bf16.mxu0 0
    %6894 = vmatpush1.bf16.msra.mxu0 0
    %6895 = vmatprep.subr.bf16.mxu0 0
    %6896 = vmatpush1.bf16.msra.mxu0 0
    %6897 = vmatprep.mubr.bf16.mxu0 0
    %6898 = vmatmul.mubr.bf16.gmra.mrb[0].mxu0 %v6631
    %v6899 = vpop.f32.mrb[0].mxu0
    %v6900 = vadd.f32 0.0, %v6899
    %v6901 = vpop.f32.mrb[0].mxu0
    %v6902 = vadd.f32 0.0, %v6901
    %v6903 = vpop.f32.mrb[0].mxu0
    %v6904 = vpop.f32.mrb[0].mxu0
    %6905 = vdwg.mxu0
    %v6906 = vadd.f32 %v6627, %v6859
    %v6907 = vadd.f32 %v6628, %v6861
    %v6908 = vadd.f32 %v6629, %v6900
    %v6909 = vadd.f32 %v6630, %v6902
    %v6910 = vxor.u32 %v6906, 2147483648
    %v6911 = vxor.u32 %v6907, 2147483648
    %v6912 = vxor.u32 %v6908, 2147483648
    %v6913 = vmul.f32 %v6910, 1.442695
    %v6914 = vpow.pop %v6913
    %v6915 = vmul.f32 %v6911, 1.442695
    %v6916 = vpow.pop %v6915
    %v6917 = vmul.f32 %v6912, 1.442695
    %v6918 = vpow.pop %v6917
    %v6919 = vadd.f32 %v6914, 1.0
    %v6920 = vadd.f32 %v6916, 1.0
    %v6921 = vadd.f32 %v6918, 1.0
    %v6922 = vrcp.pop %v6919
    %v6923 = vmul.f32 1.0, %v6922
    %v6924 = vrcp.pop %v6920
    %v6925 = vmul.f32 1.0, %v6924
    %v6926 = vrcp.pop %v6921
    %v6927 = vmul.f32 1.0, %v6926
    %v6928 = vtanh.pop %v6909
    %v6929 = vmul.f32 %v6925, %v6623
    %v6930 = vmul.f32 %v6923, %v6928
    %v6931 = vadd.f32 %v6929, %v6930
    %v6932 = vtanh.pop %v6931
    %v6933 = vmul.f32 %v6927, %v6932
    %6934 = vst [vmem:[%s1171] sm:$0xff] %v6933
    %v6935 = vld [vmem:[%s1173] sm:$0xff]
    %v6936 = vld [vmem:[%s1173 + $0x8] sm:$0xff]
    %v6937 = vld [vmem:[%s1173 + $0x10] sm:$0xff]
    %v6938 = vld [vmem:[%s1173 + $0x18] sm:$0xff]
    %v6939 = vpack.c.bf16 %v6933, %v6933
    %v6940 = vld [vmem:[%s6323] sm:$0xff]
    %v6941 = vld [vmem:[%s6323 + $0x8] sm:$0xff]
    %v6942 = vld [vmem:[%s6323 + $0x10] sm:$0xff]
    %v6943 = vld [vmem:[%s6323 + $0x18] sm:$0xff]
    %v6944 = vld [vmem:[%s6323 + $0x20] sm:$0xff]
    %v6945 = vld [vmem:[%s6323 + $0x28] sm:$0xff]
    %v6946 = vld [vmem:[%s6323 + $0x30] sm:$0xff]
    %v6947 = vld [vmem:[%s6323 + $0x38] sm:$0xff]
    %v6948 = vld [vmem:[%s6323 + $0x40] sm:$0xff]
    %v6949 = vld [vmem:[%s6323 + $0x48] sm:$0xff]
    %v6950 = vld [vmem:[%s6323 + $0x50] sm:$0xff]
    %v6951 = vld [vmem:[%s6323 + $0x58] sm:$0xff]
    %v6952 = vld [vmem:[%s6323 + $0x60] sm:$0xff]
    %v6953 = vld [vmem:[%s6323 + $0x68] sm:$0xff]
    %v6954 = vld [vmem:[%s6323 + $0x70] sm:$0xff]
    %v6955 = vld [vmem:[%s6323 + $0x78] sm:$0xff]
    %v6956 = vld [vmem:[%s6323 + $0x80] sm:$0xff]
    %v6957 = vld [vmem:[%s6323 + $0x88] sm:$0xff]
    %v6958 = vld [vmem:[%s6323 + $0x90] sm:$0xff]
    %v6959 = vld [vmem:[%s6323 + $0x98] sm:$0xff]
    %v6960 = vld [vmem:[%s6323 + $0xa0] sm:$0xff]
    %v6961 = vld [vmem:[%s6323 + $0xa8] sm:$0xff]
    %v6962 = vld [vmem:[%s6323 + $0xb0] sm:$0xff]
    %v6963 = vld [vmem:[%s6323 + $0xb8] sm:$0xff]
    %v6964 = vld [vmem:[%s6323 + $0xc0] sm:$0xff]
    %v6965 = vld [vmem:[%s6323 + $0xc8] sm:$0xff]
    %v6966 = vld [vmem:[%s6323 + $0xd0] sm:$0xff]
    %v6967 = vld [vmem:[%s6323 + $0xd8] sm:$0xff]
    %v6968 = vld [vmem:[%s6323 + $0xe0] sm:$0xff]
    %v6969 = vld [vmem:[%s6323 + $0xe8] sm:$0xff]
    %v6970 = vld [vmem:[%s6323 + $0xf0] sm:$0xff]
    %v6971 = vld [vmem:[%s6323 + $0xf8] sm:$0xff]
    %v7004 = vunpack.c.l.b16 %v6940
    %v7005 = vunpack.c.h.b16 %v6940
    %v7006 = vunpack.c.l.b16 %v6941
    %v7007 = vunpack.c.h.b16 %v6941
    %v7008 = vunpack.c.l.b16 %v6942
    %v7009 = vunpack.c.h.b16 %v6942
    %v7010 = vunpack.c.l.b16 %v6943
    %v7011 = vunpack.c.h.b16 %v6943
    %v7012 = vunpack.c.l.b16 %v6944
    %v7013 = vunpack.c.h.b16 %v6944
    %v7014 = vunpack.c.l.b16 %v6945
    %v7015 = vunpack.c.h.b16 %v6945
    %v7016 = vunpack.c.l.b16 %v6946
    %v7017 = vunpack.c.h.b16 %v6946
    %v7018 = vunpack.c.l.b16 %v6947
    %v7019 = vunpack.c.h.b16 %v6947
    %v7020 = vunpack.c.l.b16 %v6948
    %v7021 = vunpack.c.h.b16 %v6948
    %v7022 = vunpack.c.l.b16 %v6949
    %v7023 = vunpack.c.h.b16 %v6949
    %v7024 = vunpack.c.l.b16 %v6950
    %v7025 = vunpack.c.h.b16 %v6950
    %v7026 = vunpack.c.l.b16 %v6951
    %v7027 = vunpack.c.h.b16 %v6951
    %v7028 = vunpack.c.l.b16 %v6952
    %v7029 = vunpack.c.h.b16 %v6952
    %v7030 = vunpack.c.l.b16 %v6953
    %v7031 = vunpack.c.h.b16 %v6953
    %v7032 = vunpack.c.l.b16 %v6954
    %v7033 = vunpack.c.h.b16 %v6954
    %v7034 = vunpack.c.l.b16 %v6955
    %v7035 = vunpack.c.h.b16 %v6955
    %v7036 = vunpack.c.l.b16 %v6956
    %v7037 = vunpack.c.h.b16 %v6956
    %v7038 = vunpack.c.l.b16 %v6957
    %v7039 = vunpack.c.h.b16 %v6957
    %v7040 = vunpack.c.l.b16 %v6958
    %v7041 = vunpack.c.h.b16 %v6958
    %v7042 = vunpack.c.l.b16 %v6959
    %v7043 = vunpack.c.h.b16 %v6959
    %v7044 = vunpack.c.l.b16 %v6960
    %v7045 = vunpack.c.h.b16 %v6960
    %v7046 = vunpack.c.l.b16 %v6961
    %v7047 = vunpack.c.h.b16 %v6961
    %v7048 = vunpack.c.l.b16 %v6962
    %v7049 = vunpack.c.h.b16 %v6962
    %v7050 = vunpack.c.l.b16 %v6963
    %v7051 = vunpack.c.h.b16 %v6963
    %v7052 = vunpack.c.l.b16 %v6964
    %v7053 = vunpack.c.h.b16 %v6964
    %v7054 = vunpack.c.l.b16 %v6965
    %v7055 = vunpack.c.h.b16 %v6965
    %v7056 = vunpack.c.l.b16 %v6966
    %v7057 = vunpack.c.h.b16 %v6966
    %v7058 = vunpack.c.l.b16 %v6967
    %v7059 = vunpack.c.h.b16 %v6967
    %v7060 = vunpack.c.l.b16 %v6968
    %v7061 = vunpack.c.h.b16 %v6968
    %v7062 = vunpack.c.l.b16 %v6969
    %v7063 = vunpack.c.h.b16 %v6969
    %v7064 = vunpack.c.l.b16 %v6970
    %v7065 = vunpack.c.h.b16 %v6970
    %v7066 = vunpack.c.l.b16 %v6971
    %v7067 = vunpack.c.h.b16 %v6971
    %v7068 = vpack.c.b16 %v7008, %v7004
    %v7069 = vpack.c.b16 %v7009, %v7005
    %v7070 = vpack.c.b16 %v7010, %v7006
    %v7071 = vpack.c.b16 %v7011, %v7007
    %v7072 = vpack.c.b16 %v7016, %v7012
    %v7073 = vpack.c.b16 %v7017, %v7013
    %v7074 = vpack.c.b16 %v7018, %v7014
    %v7075 = vpack.c.b16 %v7019, %v7015
    %v7076 = vpack.c.b16 %v7024, %v7020
    %v7077 = vpack.c.b16 %v7025, %v7021
    %v7078 = vpack.c.b16 %v7026, %v7022
    %v7079 = vpack.c.b16 %v7027, %v7023
    %v7080 = vpack.c.b16 %v7032, %v7028
    %v7081 = vpack.c.b16 %v7033, %v7029
    %v7082 = vpack.c.b16 %v7034, %v7030
    %v7083 = vpack.c.b16 %v7035, %v7031
    %v7084 = vpack.c.b16 %v7040, %v7036
    %v7085 = vpack.c.b16 %v7041, %v7037
    %v7086 = vpack.c.b16 %v7042, %v7038
    %v7087 = vpack.c.b16 %v7043, %v7039
    %v7088 = vpack.c.b16 %v7048, %v7044
    %v7089 = vpack.c.b16 %v7049, %v7045
    %v7090 = vpack.c.b16 %v7050, %v7046
    %v7091 = vpack.c.b16 %v7051, %v7047
    %v7092 = vpack.c.b16 %v7056, %v7052
    %v7093 = vpack.c.b16 %v7057, %v7053
    %v7094 = vpack.c.b16 %v7058, %v7054
    %v7095 = vpack.c.b16 %v7059, %v7055
    %v7096 = vpack.c.b16 %v7064, %v7060
    %v7097 = vpack.c.b16 %v7065, %v7061
    %v7098 = vpack.c.b16 %v7066, %v7062
    %v7099 = vpack.c.b16 %v7067, %v7063
    %7132 = vmatprep.subr.bf16.mxu0 %v7069
    %7133 = vmatpush1.bf16.msra.mxu0 %v7068
    %7134 = vmatprep.subr.bf16.mxu0 %v7073
    %7135 = vmatpush1.bf16.msra.mxu0 %v7072
    %7136 = vmatprep.subr.bf16.mxu0 %v7077
    %7137 = vmatpush1.bf16.msra.mxu0 %v7076
    %7138 = vmatprep.subr.bf16.mxu0 %v7081
    %7139 = vmatpush1.bf16.msra.mxu0 %v7080
    %7140 = vmatprep.subr.bf16.mxu0 %v7085
    %7141 = vmatpush1.bf16.msra.mxu0 %v7084
    %7142 = vmatprep.subr.bf16.mxu0 %v7089
    %7143 = vmatpush1.bf16.msra.mxu0 %v7088
    %7144 = vmatprep.subr.bf16.mxu0 %v7093
    %7145 = vmatpush1.bf16.msra.mxu0 %v7092
    %7146 = vmatprep.subr.bf16.mxu0 %v7097
    %7147 = vmatpush1.bf16.msra.mxu0 %v7096
    %7148 = vmatprep.subr.bf16.mxu0 0
    %7149 = vmatpush1.bf16.msra.mxu0 0
    %7150 = vmatprep.subr.bf16.mxu0 0
    %7151 = vmatpush1.bf16.msra.mxu0 0
    %7152 = vmatprep.subr.bf16.mxu0 0
    %7153 = vmatpush1.bf16.msra.mxu0 0
    %7154 = vmatprep.subr.bf16.mxu0 0
    %7155 = vmatpush1.bf16.msra.mxu0 0
    %7156 = vmatprep.subr.bf16.mxu0 0
    %7157 = vmatpush1.bf16.msra.mxu0 0
    %7158 = vmatprep.subr.bf16.mxu0 0
    %7159 = vmatpush1.bf16.msra.mxu0 0
    %7160 = vmatprep.subr.bf16.mxu0 0
    %7161 = vmatpush1.bf16.msra.mxu0 0
    %7162 = vmatprep.subr.bf16.mxu0 0
    %7163 = vmatpush1.bf16.msra.mxu0 0
    %7164 = vmatprep.mubr.bf16.mxu0 0
    %7165 = vmatmul.mubr.bf16.gmra.mrb[0].mxu0 %v6939
    %v7166 = vpop.f32.mrb[0].mxu0
    %v7167 = vadd.f32 0.0, %v7166
    %v7168 = vpop.f32.mrb[0].mxu0
    %v7169 = vadd.f32 0.0, %v7168
    %v7170 = vpop.f32.mrb[0].mxu0
    %v7171 = vpop.f32.mrb[0].mxu0
    %7172 = vdwg.mxu0
    %7173 = vmatprep.subr.bf16.mxu0 %v7071
    %7174 = vmatpush1.bf16.msra.mxu0 %v7070
    %7175 = vmatprep.subr.bf16.mxu0 %v7075
    %7176 = vmatpush1.bf16.msra.mxu0 %v7074
    %7177 = vmatprep.subr.bf16.mxu0 %v7079
    %7178 = vmatpush1.bf16.msra.mxu0 %v7078
    %7179 = vmatprep.subr.bf16.mxu0 %v7083
    %7180 = vmatpush1.bf16.msra.mxu0 %v7082
    %7181 = vmatprep.subr.bf16.mxu0 %v7087
    %7182 = vmatpush1.bf16.msra.mxu0 %v7086
    %7183 = vmatprep.subr.bf16.mxu0 %v7091
    %7184 = vmatpush1.bf16.msra.mxu0 %v7090
    %7185 = vmatprep.subr.bf16.mxu0 %v7095
    %7186 = vmatpush1.bf16.msra.mxu0 %v7094
    %7187 = vmatprep.subr.bf16.mxu0 %v7099
    %7188 = vmatpush1.bf16.msra.mxu0 %v7098
    %7189 = vmatprep.subr.bf16.mxu0 0
    %7190 = vmatpush1.bf16.msra.mxu0 0
    %7191 = vmatprep.subr.bf16.mxu0 0
    %7192 = vmatpush1.bf16.msra.mxu0 0
    %7193 = vmatprep.subr.bf16.mxu0 0
    %7194 = vmatpush1.bf16.msra.mxu0 0
    %7195 = vmatprep.subr.bf16.mxu0 0
    %7196 = vmatpush1.bf16.msra.mxu0 0
    %7197 = vmatprep.subr.bf16.mxu0 0
    %7198 = vmatpush1.bf16.msra.mxu0 0
    %7199 = vmatprep.subr.bf16.mxu0 0
    %7200 = vmatpush1.bf16.msra.mxu0 0
    %7201 = vmatprep.subr.bf16.mxu0 0
    %7202 = vmatpush1.bf16.msra.mxu0 0
    %7203 = vmatprep.subr.bf16.mxu0 0
    %7204 = vmatpush1.bf16.msra.mxu0 0
    %7205 = vmatprep.mubr.bf16.mxu0 0
    %7206 = vmatmul.mubr.bf16.gmra.mrb[0].mxu0 %v6939
    %v7207 = vpop.f32.mrb[0].mxu0
    %v7208 = vadd.f32 0.0, %v7207
    %v7209 = vpop.f32.mrb[0].mxu0
    %v7210 = vadd.f32 0.0, %v7209
    %v7211 = vpop.f32.mrb[0].mxu0
    %v7212 = vpop.f32.mrb[0].mxu0
    %7213 = vdwg.mxu0
    %v7214 = vadd.f32 %v6935, %v7167
    %v7215 = vadd.f32 %v6936, %v7169
    %v7216 = vadd.f32 %v6937, %v7208
    %v7217 = vadd.f32 %v6938, %v7210
    %v7218 = vxor.u32 %v7214, 2147483648
    %v7219 = vxor.u32 %v7215, 2147483648
    %v7220 = vxor.u32 %v7216, 2147483648
    %v7221 = vmul.f32 %v7218, 1.442695
    %v7222 = vpow.pop %v7221
    %v7223 = vmul.f32 %v7219, 1.442695
    %v7224 = vpow.pop %v7223
    %v7225 = vmul.f32 %v7220, 1.442695
    %v7226 = vpow.pop %v7225
    %v7227 = vadd.f32 %v7222, 1.0
    %v7228 = vadd.f32 %v7224, 1.0
    %v7229 = vadd.f32 %v7226, 1.0
    %v7230 = vrcp.pop %v7227
    %v7231 = vmul.f32 1.0, %v7230
    %v7232 = vrcp.pop %v7228
    %v7233 = vmul.f32 1.0, %v7232
    %v7234 = vrcp.pop %v7229
    %v7235 = vmul.f32 1.0, %v7234
    %v7236 = vtanh.pop %v7217
    %v7237 = vmul.f32 %v7233, %v6931
    %v7238 = vmul.f32 %v7231, %v7236
    %v7239 = vadd.f32 %v7237, %v7238
    %v7240 = vtanh.pop %v7239
    %v7241 = vmul.f32 %v7235, %v7240
    %7242 = vst [vmem:[%s1481] sm:$0xff] %v7241
    %v7243 = vld [vmem:[%s1483] sm:$0xff]
    %v7244 = vld [vmem:[%s1483 + $0x8] sm:$0xff]
    %v7245 = vld [vmem:[%s1483 + $0x10] sm:$0xff]
    %v7246 = vld [vmem:[%s1483 + $0x18] sm:$0xff]
    %v7247 = vpack.c.bf16 %v7241, %v7241
    %v7248 = vld [vmem:[%s6323] sm:$0xff]
    %v7249 = vld [vmem:[%s6323 + $0x8] sm:$0xff]
    %v7250 = vld [vmem:[%s6323 + $0x10] sm:$0xff]
    %v7251 = vld [vmem:[%s6323 + $0x18] sm:$0xff]
    %v7252 = vld [vmem:[%s6323 + $0x20] sm:$0xff]
    %v7253 = vld [vmem:[%s6323 + $0x28] sm:$0xff]
    %v7254 = vld [vmem:[%s6323 + $0x30] sm:$0xff]
    %v7255 = vld [vmem:[%s6323 + $0x38] sm:$0xff]
    %v7256 = vld [vmem:[%s6323 + $0x40] sm:$0xff]
    %v7257 = vld [vmem:[%s6323 + $0x48] sm:$0xff]
    %v7258 = vld [vmem:[%s6323 + $0x50] sm:$0xff]
    %v7259 = vld [vmem:[%s6323 + $0x58] sm:$0xff]
    %v7260 = vld [vmem:[%s6323 + $0x60] sm:$0xff]
    %v7261 = vld [vmem:[%s6323 + $0x68] sm:$0xff]
    %v7262 = vld [vmem:[%s6323 + $0x70] sm:$0xff]
    %v7263 = vld [vmem:[%s6323 + $0x78] sm:$0xff]
    %v7264 = vld [vmem:[%s6323 + $0x80] sm:$0xff]
    %v7265 = vld [vmem:[%s6323 + $0x88] sm:$0xff]
    %v7266 = vld [vmem:[%s6323 + $0x90] sm:$0xff]
    %v7267 = vld [vmem:[%s6323 + $0x98] sm:$0xff]
    %v7268 = vld [vmem:[%s6323 + $0xa0] sm:$0xff]
    %v7269 = vld [vmem:[%s6323 + $0xa8] sm:$0xff]
    %v7270 = vld [vmem:[%s6323 + $0xb0] sm:$0xff]
    %v7271 = vld [vmem:[%s6323 + $0xb8] sm:$0xff]
    %v7272 = vld [vmem:[%s6323 + $0xc0] sm:$0xff]
    %v7273 = vld [vmem:[%s6323 + $0xc8] sm:$0xff]
    %v7274 = vld [vmem:[%s6323 + $0xd0] sm:$0xff]
    %v7275 = vld [vmem:[%s6323 + $0xd8] sm:$0xff]
    %v7276 = vld [vmem:[%s6323 + $0xe0] sm:$0xff]
    %v7277 = vld [vmem:[%s6323 + $0xe8] sm:$0xff]
    %v7278 = vld [vmem:[%s6323 + $0xf0] sm:$0xff]
    %v7279 = vld [vmem:[%s6323 + $0xf8] sm:$0xff]
    %v7312 = vunpack.c.l.b16 %v7248
    %v7313 = vunpack.c.h.b16 %v7248
    %v7314 = vunpack.c.l.b16 %v7249
    %v7315 = vunpack.c.h.b16 %v7249
    %v7316 = vunpack.c.l.b16 %v7250
    %v7317 = vunpack.c.h.b16 %v7250
    %v7318 = vunpack.c.l.b16 %v7251
    %v7319 = vunpack.c.h.b16 %v7251
    %v7320 = vunpack.c.l.b16 %v7252
    %v7321 = vunpack.c.h.b16 %v7252
    %v7322 = vunpack.c.l.b16 %v7253
    %v7323 = vunpack.c.h.b16 %v7253
    %v7324 = vunpack.c.l.b16 %v7254
    %v7325 = vunpack.c.h.b16 %v7254
    %v7326 = vunpack.c.l.b16 %v7255
    %v7327 = vunpack.c.h.b16 %v7255
    %v7328 = vunpack.c.l.b16 %v7256
    %v7329 = vunpack.c.h.b16 %v7256
    %v7330 = vunpack.c.l.b16 %v7257
    %v7331 = vunpack.c.h.b16 %v7257
    %v7332 = vunpack.c.l.b16 %v7258
    %v7333 = vunpack.c.h.b16 %v7258
    %v7334 = vunpack.c.l.b16 %v7259
    %v7335 = vunpack.c.h.b16 %v7259
    %v7336 = vunpack.c.l.b16 %v7260
    %v7337 = vunpack.c.h.b16 %v7260
    %v7338 = vunpack.c.l.b16 %v7261
    %v7339 = vunpack.c.h.b16 %v7261
    %v7340 = vunpack.c.l.b16 %v7262
    %v7341 = vunpack.c.h.b16 %v7262
    %v7342 = vunpack.c.l.b16 %v7263
    %v7343 = vunpack.c.h.b16 %v7263
    %v7344 = vunpack.c.l.b16 %v7264
    %v7345 = vunpack.c.h.b16 %v7264
    %v7346 = vunpack.c.l.b16 %v7265
    %v7347 = vunpack.c.h.b16 %v7265
    %v7348 = vunpack.c.l.b16 %v7266
    %v7349 = vunpack.c.h.b16 %v7266
    %v7350 = vunpack.c.l.b16 %v7267
    %v7351 = vunpack.c.h.b16 %v7267
    %v7352 = vunpack.c.l.b16 %v7268
    %v7353 = vunpack.c.h.b16 %v7268
    %v7354 = vunpack.c.l.b16 %v7269
    %v7355 = vunpack.c.h.b16 %v7269
    %v7356 = vunpack.c.l.b16 %v7270
    %v7357 = vunpack.c.h.b16 %v7270
    %v7358 = vunpack.c.l.b16 %v7271
    %v7359 = vunpack.c.h.b16 %v7271
    %v7360 = vunpack.c.l.b16 %v7272
    %v7361 = vunpack.c.h.b16 %v7272
    %v7362 = vunpack.c.l.b16 %v7273
    %v7363 = vunpack.c.h.b16 %v7273
    %v7364 = vunpack.c.l.b16 %v7274
    %v7365 = vunpack.c.h.b16 %v7274
    %v7366 = vunpack.c.l.b16 %v7275
    %v7367 = vunpack.c.h.b16 %v7275
    %v7368 = vunpack.c.l.b16 %v7276
    %v7369 = vunpack.c.h.b16 %v7276
    %v7370 = vunpack.c.l.b16 %v7277
    %v7371 = vunpack.c.h.b16 %v7277
    %v7372 = vunpack.c.l.b16 %v7278
    %v7373 = vunpack.c.h.b16 %v7278
    %v7374 = vunpack.c.l.b16 %v7279
    %v7375 = vunpack.c.h.b16 %v7279
    %v7376 = vpack.c.b16 %v7316, %v7312
    %v7377 = vpack.c.b16 %v7317, %v7313
    %v7378 = vpack.c.b16 %v7318, %v7314
    %v7379 = vpack.c.b16 %v7319, %v7315
    %v7380 = vpack.c.b16 %v7324, %v7320
    %v7381 = vpack.c.b16 %v7325, %v7321
    %v7382 = vpack.c.b16 %v7326, %v7322
    %v7383 = vpack.c.b16 %v7327, %v7323
    %v7384 = vpack.c.b16 %v7332, %v7328
    %v7385 = vpack.c.b16 %v7333, %v7329
    %v7386 = vpack.c.b16 %v7334, %v7330
    %v7387 = vpack.c.b16 %v7335, %v7331
    %v7388 = vpack.c.b16 %v7340, %v7336
    %v7389 = vpack.c.b16 %v7341, %v7337
    %v7390 = vpack.c.b16 %v7342, %v7338
    %v7391 = vpack.c.b16 %v7343, %v7339
    %v7392 = vpack.c.b16 %v7348, %v7344
    %v7393 = vpack.c.b16 %v7349, %v7345
    %v7394 = vpack.c.b16 %v7350, %v7346
    %v7395 = vpack.c.b16 %v7351, %v7347
    %v7396 = vpack.c.b16 %v7356, %v7352
    %v7397 = vpack.c.b16 %v7357, %v7353
    %v7398 = vpack.c.b16 %v7358, %v7354
    %v7399 = vpack.c.b16 %v7359, %v7355
    %v7400 = vpack.c.b16 %v7364, %v7360
    %v7401 = vpack.c.b16 %v7365, %v7361
    %v7402 = vpack.c.b16 %v7366, %v7362
    %v7403 = vpack.c.b16 %v7367, %v7363
    %v7404 = vpack.c.b16 %v7372, %v7368
    %v7405 = vpack.c.b16 %v7373, %v7369
    %v7406 = vpack.c.b16 %v7374, %v7370
    %v7407 = vpack.c.b16 %v7375, %v7371
    %7440 = vmatprep.subr.bf16.mxu0 %v7377
    %7441 = vmatpush1.bf16.msra.mxu0 %v7376
    %7442 = vmatprep.subr.bf16.mxu0 %v7381
    %7443 = vmatpush1.bf16.msra.mxu0 %v7380
    %7444 = vmatprep.subr.bf16.mxu0 %v7385
    %7445 = vmatpush1.bf16.msra.mxu0 %v7384
    %7446 = vmatprep.subr.bf16.mxu0 %v7389
    %7447 = vmatpush1.bf16.msra.mxu0 %v7388
    %7448 = vmatprep.subr.bf16.mxu0 %v7393
    %7449 = vmatpush1.bf16.msra.mxu0 %v7392
    %7450 = vmatprep.subr.bf16.mxu0 %v7397
    %7451 = vmatpush1.bf16.msra.mxu0 %v7396
    %7452 = vmatprep.subr.bf16.mxu0 %v7401
    %7453 = vmatpush1.bf16.msra.mxu0 %v7400
    %7454 = vmatprep.subr.bf16.mxu0 %v7405
    %7455 = vmatpush1.bf16.msra.mxu0 %v7404
    %7456 = vmatprep.subr.bf16.mxu0 0
    %7457 = vmatpush1.bf16.msra.mxu0 0
    %7458 = vmatprep.subr.bf16.mxu0 0
    %7459 = vmatpush1.bf16.msra.mxu0 0
    %7460 = vmatprep.subr.bf16.mxu0 0
    %7461 = vmatpush1.bf16.msra.mxu0 0
    %7462 = vmatprep.subr.bf16.mxu0 0
    %7463 = vmatpush1.bf16.msra.mxu0 0
    %7464 = vmatprep.subr.bf16.mxu0 0
    %7465 = vmatpush1.bf16.msra.mxu0 0
    %7466 = vmatprep.subr.bf16.mxu0 0
    %7467 = vmatpush1.bf16.msra.mxu0 0
    %7468 = vmatprep.subr.bf16.mxu0 0
    %7469 = vmatpush1.bf16.msra.mxu0 0
    %7470 = vmatprep.subr.bf16.mxu0 0
    %7471 = vmatpush1.bf16.msra.mxu0 0
    %7472 = vmatprep.mubr.bf16.mxu0 0
    %7473 = vmatmul.mubr.bf16.gmra.mrb[0].mxu0 %v7247
    %v7474 = vpop.f32.mrb[0].mxu0
    %v7475 = vadd.f32 0.0, %v7474
    %v7476 = vpop.f32.mrb[0].mxu0
    %v7477 = vadd.f32 0.0, %v7476
    %v7478 = vpop.f32.mrb[0].mxu0
    %v7479 = vpop.f32.mrb[0].mxu0
    %7480 = vdwg.mxu0
    %7481 = vmatprep.subr.bf16.mxu0 %v7379
    %7482 = vmatpush1.bf16.msra.mxu0 %v7378
    %7483 = vmatprep.subr.bf16.mxu0 %v7383
    %7484 = vmatpush1.bf16.msra.mxu0 %v7382
    %7485 = vmatprep.subr.bf16.mxu0 %v7387
    %7486 = vmatpush1.bf16.msra.mxu0 %v7386
    %7487 = vmatprep.subr.bf16.mxu0 %v7391
    %7488 = vmatpush1.bf16.msra.mxu0 %v7390
    %7489 = vmatprep.subr.bf16.mxu0 %v7395
    %7490 = vmatpush1.bf16.msra.mxu0 %v7394
    %7491 = vmatprep.subr.bf16.mxu0 %v7399
    %7492 = vmatpush1.bf16.msra.mxu0 %v7398
    %7493 = vmatprep.subr.bf16.mxu0 %v7403
    %7494 = vmatpush1.bf16.msra.mxu0 %v7402
    %7495 = vmatprep.subr.bf16.mxu0 %v7407
    %7496 = vmatpush1.bf16.msra.mxu0 %v7406
    %7497 = vmatprep.subr.bf16.mxu0 0
    %7498 = vmatpush1.bf16.msra.mxu0 0
    %7499 = vmatprep.subr.bf16.mxu0 0
    %7500 = vmatpush1.bf16.msra.mxu0 0
    %7501 = vmatprep.subr.bf16.mxu0 0
    %7502 = vmatpush1.bf16.msra.mxu0 0
    %7503 = vmatprep.subr.bf16.mxu0 0
    %7504 = vmatpush1.bf16.msra.mxu0 0
    %7505 = vmatprep.subr.bf16.mxu0 0
    %7506 = vmatpush1.bf16.msra.mxu0 0
    %7507 = vmatprep.subr.bf16.mxu0 0
    %7508 = vmatpush1.bf16.msra.mxu0 0
    %7509 = vmatprep.subr.bf16.mxu0 0
    %7510 = vmatpush1.bf16.msra.mxu0 0
    %7511 = vmatprep.subr.bf16.mxu0 0
    %7512 = vmatpush1.bf16.msra.mxu0 0
    %7513 = vmatprep.mubr.bf16.mxu0 0
    %7514 = vmatmul.mubr.bf16.gmra.mrb[0].mxu0 %v7247
    %v7515 = vpop.f32.mrb[0].mxu0
    %v7516 = vadd.f32 0.0, %v7515
    %v7517 = vpop.f32.mrb[0].mxu0
    %v7518 = vadd.f32 0.0, %v7517
    %v7519 = vpop.f32.mrb[0].mxu0
    %v7520 = vpop.f32.mrb[0].mxu0
    %7521 = vdwg.mxu0
    %v7522 = vadd.f32 %v7243, %v7475
    %v7523 = vadd.f32 %v7244, %v7477
    %v7524 = vadd.f32 %v7245, %v7516
    %v7525 = vadd.f32 %v7246, %v7518
    %v7526 = vxor.u32 %v7522, 2147483648
    %v7527 = vxor.u32 %v7523, 2147483648
    %v7528 = vxor.u32 %v7524, 2147483648
    %v7529 = vmul.f32 %v7526, 1.442695
    %v7530 = vpow.pop %v7529
    %v7531 = vmul.f32 %v7527, 1.442695
    %v7532 = vpow.pop %v7531
    %v7533 = vmul.f32 %v7528, 1.442695
    %v7534 = vpow.pop %v7533
    %v7535 = vadd.f32 %v7530, 1.0
    %v7536 = vadd.f32 %v7532, 1.0
    %v7537 = vadd.f32 %v7534, 1.0
    %v7538 = vrcp.pop %v7535
    %v7539 = vmul.f32 1.0, %v7538
    %v7540 = vrcp.pop %v7536
    %v7541 = vmul.f32 1.0, %v7540
    %v7542 = vrcp.pop %v7537
    %v7543 = vmul.f32 1.0, %v7542
    %v7544 = vtanh.pop %v7525
    %v7545 = vmul.f32 %v7541, %v7239
    %v7546 = vmul.f32 %v7539, %v7544
    %v7547 = vadd.f32 %v7545, %v7546
    %v7548 = vtanh.pop %v7547
    %v7549 = vmul.f32 %v7543, %v7548
    %7550 = vst [vmem:[%s1791] sm:$0xff] %v7549
    %v7551 = vld [vmem:[%s1793] sm:$0xff]
    %v7552 = vld [vmem:[%s1793 + $0x8] sm:$0xff]
    %v7553 = vld [vmem:[%s1793 + $0x10] sm:$0xff]
    %v7554 = vld [vmem:[%s1793 + $0x18] sm:$0xff]
    %v7555 = vpack.c.bf16 %v7549, %v7549
    %v7556 = vld [vmem:[%s6323] sm:$0xff]
    %v7557 = vld [vmem:[%s6323 + $0x8] sm:$0xff]
    %v7558 = vld [vmem:[%s6323 + $0x10] sm:$0xff]
    %v7559 = vld [vmem:[%s6323 + $0x18] sm:$0xff]
    %v7560 = vld [vmem:[%s6323 + $0x20] sm:$0xff]
    %v7561 = vld [vmem:[%s6323 + $0x28] sm:$0xff]
    %v7562 = vld [vmem:[%s6323 + $0x30] sm:$0xff]
    %v7563 = vld [vmem:[%s6323 + $0x38] sm:$0xff]
    %v7564 = vld [vmem:[%s6323 + $0x40] sm:$0xff]
    %v7565 = vld [vmem:[%s6323 + $0x48] sm:$0xff]
    %v7566 = vld [vmem:[%s6323 + $0x50] sm:$0xff]
    %v7567 = vld [vmem:[%s6323 + $0x58] sm:$0xff]
    %v7568 = vld [vmem:[%s6323 + $0x60] sm:$0xff]
    %v7569 = vld [vmem:[%s6323 + $0x68] sm:$0xff]
    %v7570 = vld [vmem:[%s6323 + $0x70] sm:$0xff]
    %v7571 = vld [vmem:[%s6323 + $0x78] sm:$0xff]
    %v7572 = vld [vmem:[%s6323 + $0x80] sm:$0xff]
    %v7573 = vld [vmem:[%s6323 + $0x88] sm:$0xff]
    %v7574 = vld [vmem:[%s6323 + $0x90] sm:$0xff]
    %v7575 = vld [vmem:[%s6323 + $0x98] sm:$0xff]
    %v7576 = vld [vmem:[%s6323 + $0xa0] sm:$0xff]
    %v7577 = vld [vmem:[%s6323 + $0xa8] sm:$0xff]
    %v7578 = vld [vmem:[%s6323 + $0xb0] sm:$0xff]
    %v7579 = vld [vmem:[%s6323 + $0xb8] sm:$0xff]
    %v7580 = vld [vmem:[%s6323 + $0xc0] sm:$0xff]
    %v7581 = vld [vmem:[%s6323 + $0xc8] sm:$0xff]
    %v7582 = vld [vmem:[%s6323 + $0xd0] sm:$0xff]
    %v7583 = vld [vmem:[%s6323 + $0xd8] sm:$0xff]
    %v7584 = vld [vmem:[%s6323 + $0xe0] sm:$0xff]
    %v7585 = vld [vmem:[%s6323 + $0xe8] sm:$0xff]
    %v7586 = vld [vmem:[%s6323 + $0xf0] sm:$0xff]
    %v7587 = vld [vmem:[%s6323 + $0xf8] sm:$0xff]
    %v7620 = vunpack.c.l.b16 %v7556
    %v7621 = vunpack.c.h.b16 %v7556
    %v7622 = vunpack.c.l.b16 %v7557
    %v7623 = vunpack.c.h.b16 %v7557
    %v7624 = vunpack.c.l.b16 %v7558
    %v7625 = vunpack.c.h.b16 %v7558
    %v7626 = vunpack.c.l.b16 %v7559
    %v7627 = vunpack.c.h.b16 %v7559
    %v7628 = vunpack.c.l.b16 %v7560
    %v7629 = vunpack.c.h.b16 %v7560
    %v7630 = vunpack.c.l.b16 %v7561
    %v7631 = vunpack.c.h.b16 %v7561
    %v7632 = vunpack.c.l.b16 %v7562
    %v7633 = vunpack.c.h.b16 %v7562
    %v7634 = vunpack.c.l.b16 %v7563
    %v7635 = vunpack.c.h.b16 %v7563
    %v7636 = vunpack.c.l.b16 %v7564
    %v7637 = vunpack.c.h.b16 %v7564
    %v7638 = vunpack.c.l.b16 %v7565
    %v7639 = vunpack.c.h.b16 %v7565
    %v7640 = vunpack.c.l.b16 %v7566
    %v7641 = vunpack.c.h.b16 %v7566
    %v7642 = vunpack.c.l.b16 %v7567
    %v7643 = vunpack.c.h.b16 %v7567
    %v7644 = vunpack.c.l.b16 %v7568
    %v7645 = vunpack.c.h.b16 %v7568
    %v7646 = vunpack.c.l.b16 %v7569
    %v7647 = vunpack.c.h.b16 %v7569
    %v7648 = vunpack.c.l.b16 %v7570
    %v7649 = vunpack.c.h.b16 %v7570
    %v7650 = vunpack.c.l.b16 %v7571
    %v7651 = vunpack.c.h.b16 %v7571
    %v7652 = vunpack.c.l.b16 %v7572
    %v7653 = vunpack.c.h.b16 %v7572
    %v7654 = vunpack.c.l.b16 %v7573
    %v7655 = vunpack.c.h.b16 %v7573
    %v7656 = vunpack.c.l.b16 %v7574
    %v7657 = vunpack.c.h.b16 %v7574
    %v7658 = vunpack.c.l.b16 %v7575
    %v7659 = vunpack.c.h.b16 %v7575
    %v7660 = vunpack.c.l.b16 %v7576
    %v7661 = vunpack.c.h.b16 %v7576
    %v7662 = vunpack.c.l.b16 %v7577
    %v7663 = vunpack.c.h.b16 %v7577
    %v7664 = vunpack.c.l.b16 %v7578
    %v7665 = vunpack.c.h.b16 %v7578
    %v7666 = vunpack.c.l.b16 %v7579
    %v7667 = vunpack.c.h.b16 %v7579
    %v7668 = vunpack.c.l.b16 %v7580
    %v7669 = vunpack.c.h.b16 %v7580
    %v7670 = vunpack.c.l.b16 %v7581
    %v7671 = vunpack.c.h.b16 %v7581
    %v7672 = vunpack.c.l.b16 %v7582
    %v7673 = vunpack.c.h.b16 %v7582
    %v7674 = vunpack.c.l.b16 %v7583
    %v7675 = vunpack.c.h.b16 %v7583
    %v7676 = vunpack.c.l.b16 %v7584
    %v7677 = vunpack.c.h.b16 %v7584
    %v7678 = vunpack.c.l.b16 %v7585
    %v7679 = vunpack.c.h.b16 %v7585
    %v7680 = vunpack.c.l.b16 %v7586
    %v7681 = vunpack.c.h.b16 %v7586
    %v7682 = vunpack.c.l.b16 %v7587
    %v7683 = vunpack.c.h.b16 %v7587
    %v7684 = vpack.c.b16 %v7624, %v7620
    %v7685 = vpack.c.b16 %v7625, %v7621
    %v7686 = vpack.c.b16 %v7626, %v7622
    %v7687 = vpack.c.b16 %v7627, %v7623
    %v7688 = vpack.c.b16 %v7632, %v7628
    %v7689 = vpack.c.b16 %v7633, %v7629
    %v7690 = vpack.c.b16 %v7634, %v7630
    %v7691 = vpack.c.b16 %v7635, %v7631
    %v7692 = vpack.c.b16 %v7640, %v7636
    %v7693 = vpack.c.b16 %v7641, %v7637
    %v7694 = vpack.c.b16 %v7642, %v7638
    %v7695 = vpack.c.b16 %v7643, %v7639
    %v7696 = vpack.c.b16 %v7648, %v7644
    %v7697 = vpack.c.b16 %v7649, %v7645
    %v7698 = vpack.c.b16 %v7650, %v7646
    %v7699 = vpack.c.b16 %v7651, %v7647
    %v7700 = vpack.c.b16 %v7656, %v7652
    %v7701 = vpack.c.b16 %v7657, %v7653
    %v7702 = vpack.c.b16 %v7658, %v7654
    %v7703 = vpack.c.b16 %v7659, %v7655
    %v7704 = vpack.c.b16 %v7664, %v7660
    %v7705 = vpack.c.b16 %v7665, %v7661
    %v7706 = vpack.c.b16 %v7666, %v7662
    %v7707 = vpack.c.b16 %v7667, %v7663
    %v7708 = vpack.c.b16 %v7672, %v7668
    %v7709 = vpack.c.b16 %v7673, %v7669
    %v7710 = vpack.c.b16 %v7674, %v7670
    %v7711 = vpack.c.b16 %v7675, %v7671
    %v7712 = vpack.c.b16 %v7680, %v7676
    %v7713 = vpack.c.b16 %v7681, %v7677
    %v7714 = vpack.c.b16 %v7682, %v7678
    %v7715 = vpack.c.b16 %v7683, %v7679
    %7748 = vmatprep.subr.bf16.mxu0 %v7685
    %7749 = vmatpush1.bf16.msra.mxu0 %v7684
    %7750 = vmatprep.subr.bf16.mxu0 %v7689
    %7751 = vmatpush1.bf16.msra.mxu0 %v7688
    %7752 = vmatprep.subr.bf16.mxu0 %v7693
    %7753 = vmatpush1.bf16.msra.mxu0 %v7692
    %7754 = vmatprep.subr.bf16.mxu0 %v7697
    %7755 = vmatpush1.bf16.msra.mxu0 %v7696
    %7756 = vmatprep.subr.bf16.mxu0 %v7701
    %7757 = vmatpush1.bf16.msra.mxu0 %v7700
    %7758 = vmatprep.subr.bf16.mxu0 %v7705
    %7759 = vmatpush1.bf16.msra.mxu0 %v7704
    %7760 = vmatprep.subr.bf16.mxu0 %v7709
    %7761 = vmatpush1.bf16.msra.mxu0 %v7708
    %7762 = vmatprep.subr.bf16.mxu0 %v7713
    %7763 = vmatpush1.bf16.msra.mxu0 %v7712
    %7764 = vmatprep.subr.bf16.mxu0 0
    %7765 = vmatpush1.bf16.msra.mxu0 0
    %7766 = vmatprep.subr.bf16.mxu0 0
    %7767 = vmatpush1.bf16.msra.mxu0 0
    %7768 = vmatprep.subr.bf16.mxu0 0
    %7769 = vmatpush1.bf16.msra.mxu0 0
    %7770 = vmatprep.subr.bf16.mxu0 0
    %7771 = vmatpush1.bf16.msra.mxu0 0
    %7772 = vmatprep.subr.bf16.mxu0 0
    %7773 = vmatpush1.bf16.msra.mxu0 0
    %7774 = vmatprep.subr.bf16.mxu0 0
    %7775 = vmatpush1.bf16.msra.mxu0 0
    %7776 = vmatprep.subr.bf16.mxu0 0
    %7777 = vmatpush1.bf16.msra.mxu0 0
    %7778 = vmatprep.subr.bf16.mxu0 0
    %7779 = vmatpush1.bf16.msra.mxu0 0
    %7780 = vmatprep.mubr.bf16.mxu0 0
    %7781 = vmatmul.mubr.bf16.gmra.mrb[0].mxu0 %v7555
    %v7782 = vpop.f32.mrb[0].mxu0
    %v7783 = vadd.f32 0.0, %v7782
    %v7784 = vpop.f32.mrb[0].mxu0
    %v7785 = vadd.f32 0.0, %v7784
    %v7786 = vpop.f32.mrb[0].mxu0
    %v7787 = vpop.f32.mrb[0].mxu0
    %7788 = vdwg.mxu0
    %7789 = vmatprep.subr.bf16.mxu0 %v7687
    %7790 = vmatpush1.bf16.msra.mxu0 %v7686
    %7791 = vmatprep.subr.bf16.mxu0 %v7691
    %7792 = vmatpush1.bf16.msra.mxu0 %v7690
    %7793 = vmatprep.subr.bf16.mxu0 %v7695
    %7794 = vmatpush1.bf16.msra.mxu0 %v7694
    %7795 = vmatprep.subr.bf16.mxu0 %v7699
    %7796 = vmatpush1.bf16.msra.mxu0 %v7698
    %7797 = vmatprep.subr.bf16.mxu0 %v7703
    %7798 = vmatpush1.bf16.msra.mxu0 %v7702
    %7799 = vmatprep.subr.bf16.mxu0 %v7707
    %7800 = vmatpush1.bf16.msra.mxu0 %v7706
    %7801 = vmatprep.subr.bf16.mxu0 %v7711
    %7802 = vmatpush1.bf16.msra.mxu0 %v7710
    %7803 = vmatprep.subr.bf16.mxu0 %v7715
    %7804 = vmatpush1.bf16.msra.mxu0 %v7714
    %7805 = vmatprep.subr.bf16.mxu0 0
    %7806 = vmatpush1.bf16.msra.mxu0 0
    %7807 = vmatprep.subr.bf16.mxu0 0
    %7808 = vmatpush1.bf16.msra.mxu0 0
    %7809 = vmatprep.subr.bf16.mxu0 0
    %7810 = vmatpush1.bf16.msra.mxu0 0
    %7811 = vmatprep.subr.bf16.mxu0 0
    %7812 = vmatpush1.bf16.msra.mxu0 0
    %7813 = vmatprep.subr.bf16.mxu0 0
    %7814 = vmatpush1.bf16.msra.mxu0 0
    %7815 = vmatprep.subr.bf16.mxu0 0
    %7816 = vmatpush1.bf16.msra.mxu0 0
    %7817 = vmatprep.subr.bf16.mxu0 0
    %7818 = vmatpush1.bf16.msra.mxu0 0
    %7819 = vmatprep.subr.bf16.mxu0 0
    %7820 = vmatpush1.bf16.msra.mxu0 0
    %7821 = vmatprep.mubr.bf16.mxu0 0
    %7822 = vmatmul.mubr.bf16.gmra.mrb[0].mxu0 %v7555
    %v7823 = vpop.f32.mrb[0].mxu0
    %v7824 = vadd.f32 0.0, %v7823
    %v7825 = vpop.f32.mrb[0].mxu0
    %v7826 = vadd.f32 0.0, %v7825
    %v7827 = vpop.f32.mrb[0].mxu0
    %v7828 = vpop.f32.mrb[0].mxu0
    %7829 = vdwg.mxu0
    %v7830 = vadd.f32 %v7551, %v7783
    %v7831 = vadd.f32 %v7552, %v7785
    %v7832 = vadd.f32 %v7553, %v7824
    %v7833 = vadd.f32 %v7554, %v7826
    %v7834 = vxor.u32 %v7830, 2147483648
    %v7835 = vxor.u32 %v7831, 2147483648
    %v7836 = vxor.u32 %v7832, 2147483648
    %v7837 = vmul.f32 %v7834, 1.442695
    %v7838 = vpow.pop %v7837
    %v7839 = vmul.f32 %v7835, 1.442695
    %v7840 = vpow.pop %v7839
    %v7841 = vmul.f32 %v7836, 1.442695
    %v7842 = vpow.pop %v7841
    %v7843 = vadd.f32 %v7838, 1.0
    %v7844 = vadd.f32 %v7840, 1.0
    %v7845 = vadd.f32 %v7842, 1.0
    %v7846 = vrcp.pop %v7843
    %v7847 = vmul.f32 1.0, %v7846
    %v7848 = vrcp.pop %v7844
    %v7849 = vmul.f32 1.0, %v7848
    %v7850 = vrcp.pop %v7845
    %v7851 = vmul.f32 1.0, %v7850
    %v7852 = vtanh.pop %v7833
    %v7853 = vmul.f32 %v7849, %v7547
    %v7854 = vmul.f32 %v7847, %v7852
    %v7855 = vadd.f32 %v7853, %v7854
    %v7856 = vtanh.pop %v7855
    %v7857 = vmul.f32 %v7851, %v7856
    %7858 = vst [vmem:[%s2101] sm:$0xff] %v7857
    %v7859 = vld [vmem:[%s2103] sm:$0xff]
    %v7860 = vld [vmem:[%s2103 + $0x8] sm:$0xff]
    %v7861 = vld [vmem:[%s2103 + $0x10] sm:$0xff]
    %v7862 = vld [vmem:[%s2103 + $0x18] sm:$0xff]
    %v7863 = vpack.c.bf16 %v7857, %v7857
    %v7864 = vld [vmem:[%s6323] sm:$0xff]
    %v7865 = vld [vmem:[%s6323 + $0x8] sm:$0xff]
    %v7866 = vld [vmem:[%s6323 + $0x10] sm:$0xff]
    %v7867 = vld [vmem:[%s6323 + $0x18] sm:$0xff]
    %v7868 = vld [vmem:[%s6323 + $0x20] sm:$0xff]
    %v7869 = vld [vmem:[%s6323 + $0x28] sm:$0xff]
    %v7870 = vld [vmem:[%s6323 + $0x30] sm:$0xff]
    %v7871 = vld [vmem:[%s6323 + $0x38] sm:$0xff]
    %v7872 = vld [vmem:[%s6323 + $0x40] sm:$0xff]
    %v7873 = vld [vmem:[%s6323 + $0x48] sm:$0xff]
    %v7874 = vld [vmem:[%s6323 + $0x50] sm:$0xff]
    %v7875 = vld [vmem:[%s6323 + $0x58] sm:$0xff]
    %v7876 = vld [vmem:[%s6323 + $0x60] sm:$0xff]
    %v7877 = vld [vmem:[%s6323 + $0x68] sm:$0xff]
    %v7878 = vld [vmem:[%s6323 + $0x70] sm:$0xff]
    %v7879 = vld [vmem:[%s6323 + $0x78] sm:$0xff]
    %v7880 = vld [vmem:[%s6323 + $0x80] sm:$0xff]
    %v7881 = vld [vmem:[%s6323 + $0x88] sm:$0xff]
    %v7882 = vld [vmem:[%s6323 + $0x90] sm:$0xff]
    %v7883 = vld [vmem:[%s6323 + $0x98] sm:$0xff]
    %v7884 = vld [vmem:[%s6323 + $0xa0] sm:$0xff]
    %v7885 = vld [vmem:[%s6323 + $0xa8] sm:$0xff]
    %v7886 = vld [vmem:[%s6323 + $0xb0] sm:$0xff]
    %v7887 = vld [vmem:[%s6323 + $0xb8] sm:$0xff]
    %v7888 = vld [vmem:[%s6323 + $0xc0] sm:$0xff]
    %v7889 = vld [vmem:[%s6323 + $0xc8] sm:$0xff]
    %v7890 = vld [vmem:[%s6323 + $0xd0] sm:$0xff]
    %v7891 = vld [vmem:[%s6323 + $0xd8] sm:$0xff]
    %v7892 = vld [vmem:[%s6323 + $0xe0] sm:$0xff]
    %v7893 = vld [vmem:[%s6323 + $0xe8] sm:$0xff]
    %v7894 = vld [vmem:[%s6323 + $0xf0] sm:$0xff]
    %v7895 = vld [vmem:[%s6323 + $0xf8] sm:$0xff]
    %v7928 = vunpack.c.l.b16 %v7864
    %v7929 = vunpack.c.h.b16 %v7864
    %v7930 = vunpack.c.l.b16 %v7865
    %v7931 = vunpack.c.h.b16 %v7865
    %v7932 = vunpack.c.l.b16 %v7866
    %v7933 = vunpack.c.h.b16 %v7866
    %v7934 = vunpack.c.l.b16 %v7867
    %v7935 = vunpack.c.h.b16 %v7867
    %v7936 = vunpack.c.l.b16 %v7868
    %v7937 = vunpack.c.h.b16 %v7868
    %v7938 = vunpack.c.l.b16 %v7869
    %v7939 = vunpack.c.h.b16 %v7869
    %v7940 = vunpack.c.l.b16 %v7870
    %v7941 = vunpack.c.h.b16 %v7870
    %v7942 = vunpack.c.l.b16 %v7871
    %v7943 = vunpack.c.h.b16 %v7871
    %v7944 = vunpack.c.l.b16 %v7872
    %v7945 = vunpack.c.h.b16 %v7872
    %v7946 = vunpack.c.l.b16 %v7873
    %v7947 = vunpack.c.h.b16 %v7873
    %v7948 = vunpack.c.l.b16 %v7874
    %v7949 = vunpack.c.h.b16 %v7874
    %v7950 = vunpack.c.l.b16 %v7875
    %v7951 = vunpack.c.h.b16 %v7875
    %v7952 = vunpack.c.l.b16 %v7876
    %v7953 = vunpack.c.h.b16 %v7876
    %v7954 = vunpack.c.l.b16 %v7877
    %v7955 = vunpack.c.h.b16 %v7877
    %v7956 = vunpack.c.l.b16 %v7878
    %v7957 = vunpack.c.h.b16 %v7878
    %v7958 = vunpack.c.l.b16 %v7879
    %v7959 = vunpack.c.h.b16 %v7879
    %v7960 = vunpack.c.l.b16 %v7880
    %v7961 = vunpack.c.h.b16 %v7880
    %v7962 = vunpack.c.l.b16 %v7881
    %v7963 = vunpack.c.h.b16 %v7881
    %v7964 = vunpack.c.l.b16 %v7882
    %v7965 = vunpack.c.h.b16 %v7882
    %v7966 = vunpack.c.l.b16 %v7883
    %v7967 = vunpack.c.h.b16 %v7883
    %v7968 = vunpack.c.l.b16 %v7884
    %v7969 = vunpack.c.h.b16 %v7884
    %v7970 = vunpack.c.l.b16 %v7885
    %v7971 = vunpack.c.h.b16 %v7885
    %v7972 = vunpack.c.l.b16 %v7886
    %v7973 = vunpack.c.h.b16 %v7886
    %v7974 = vunpack.c.l.b16 %v7887
    %v7975 = vunpack.c.h.b16 %v7887
    %v7976 = vunpack.c.l.b16 %v7888
    %v7977 = vunpack.c.h.b16 %v7888
    %v7978 = vunpack.c.l.b16 %v7889
    %v7979 = vunpack.c.h.b16 %v7889
    %v7980 = vunpack.c.l.b16 %v7890
    %v7981 = vunpack.c.h.b16 %v7890
    %v7982 = vunpack.c.l.b16 %v7891
    %v7983 = vunpack.c.h.b16 %v7891
    %v7984 = vunpack.c.l.b16 %v7892
    %v7985 = vunpack.c.h.b16 %v7892
    %v7986 = vunpack.c.l.b16 %v7893
    %v7987 = vunpack.c.h.b16 %v7893
    %v7988 = vunpack.c.l.b16 %v7894
    %v7989 = vunpack.c.h.b16 %v7894
    %v7990 = vunpack.c.l.b16 %v7895
    %v7991 = vunpack.c.h.b16 %v7895
    %v7992 = vpack.c.b16 %v7932, %v7928
    %v7993 = vpack.c.b16 %v7933, %v7929
    %v7994 = vpack.c.b16 %v7934, %v7930
    %v7995 = vpack.c.b16 %v7935, %v7931
    %v7996 = vpack.c.b16 %v7940, %v7936
    %v7997 = vpack.c.b16 %v7941, %v7937
    %v7998 = vpack.c.b16 %v7942, %v7938
    %v7999 = vpack.c.b16 %v7943, %v7939
    %v8000 = vpack.c.b16 %v7948, %v7944
    %v8001 = vpack.c.b16 %v7949, %v7945
    %v8002 = vpack.c.b16 %v7950, %v7946
    %v8003 = vpack.c.b16 %v7951, %v7947
    %v8004 = vpack.c.b16 %v7956, %v7952
    %v8005 = vpack.c.b16 %v7957, %v7953
    %v8006 = vpack.c.b16 %v7958, %v7954
    %v8007 = vpack.c.b16 %v7959, %v7955
    %v8008 = vpack.c.b16 %v7964, %v7960
    %v8009 = vpack.c.b16 %v7965, %v7961
    %v8010 = vpack.c.b16 %v7966, %v7962
    %v8011 = vpack.c.b16 %v7967, %v7963
    %v8012 = vpack.c.b16 %v7972, %v7968
    %v8013 = vpack.c.b16 %v7973, %v7969
    %v8014 = vpack.c.b16 %v7974, %v7970
    %v8015 = vpack.c.b16 %v7975, %v7971
    %v8016 = vpack.c.b16 %v7980, %v7976
    %v8017 = vpack.c.b16 %v7981, %v7977
    %v8018 = vpack.c.b16 %v7982, %v7978
    %v8019 = vpack.c.b16 %v7983, %v7979
    %v8020 = vpack.c.b16 %v7988, %v7984
    %v8021 = vpack.c.b16 %v7989, %v7985
    %v8022 = vpack.c.b16 %v7990, %v7986
    %v8023 = vpack.c.b16 %v7991, %v7987
    %8056 = vmatprep.subr.bf16.mxu0 %v7993
    %8057 = vmatpush1.bf16.msra.mxu0 %v7992
    %8058 = vmatprep.subr.bf16.mxu0 %v7997
    %8059 = vmatpush1.bf16.msra.mxu0 %v7996
    %8060 = vmatprep.subr.bf16.mxu0 %v8001
    %8061 = vmatpush1.bf16.msra.mxu0 %v8000
    %8062 = vmatprep.subr.bf16.mxu0 %v8005
    %8063 = vmatpush1.bf16.msra.mxu0 %v8004
    %8064 = vmatprep.subr.bf16.mxu0 %v8009
    %8065 = vmatpush1.bf16.msra.mxu0 %v8008
    %8066 = vmatprep.subr.bf16.mxu0 %v8013
    %8067 = vmatpush1.bf16.msra.mxu0 %v8012
    %8068 = vmatprep.subr.bf16.mxu0 %v8017
    %8069 = vmatpush1.bf16.msra.mxu0 %v8016
    %8070 = vmatprep.subr.bf16.mxu0 %v8021
    %8071 = vmatpush1.bf16.msra.mxu0 %v8020
    %8072 = vmatprep.subr.bf16.mxu0 0
    %8073 = vmatpush1.bf16.msra.mxu0 0
    %8074 = vmatprep.subr.bf16.mxu0 0
    %8075 = vmatpush1.bf16.msra.mxu0 0
    %8076 = vmatprep.subr.bf16.mxu0 0
    %8077 = vmatpush1.bf16.msra.mxu0 0
    %8078 = vmatprep.subr.bf16.mxu0 0
    %8079 = vmatpush1.bf16.msra.mxu0 0
    %8080 = vmatprep.subr.bf16.mxu0 0
    %8081 = vmatpush1.bf16.msra.mxu0 0
    %8082 = vmatprep.subr.bf16.mxu0 0
    %8083 = vmatpush1.bf16.msra.mxu0 0
    %8084 = vmatprep.subr.bf16.mxu0 0
    %8085 = vmatpush1.bf16.msra.mxu0 0
    %8086 = vmatprep.subr.bf16.mxu0 0
    %8087 = vmatpush1.bf16.msra.mxu0 0
    %8088 = vmatprep.mubr.bf16.mxu0 0
    %8089 = vmatmul.mubr.bf16.gmra.mrb[0].mxu0 %v7863
    %v8090 = vpop.f32.mrb[0].mxu0
    %v8091 = vadd.f32 0.0, %v8090
    %v8092 = vpop.f32.mrb[0].mxu0
    %v8093 = vadd.f32 0.0, %v8092
    %v8094 = vpop.f32.mrb[0].mxu0
    %v8095 = vpop.f32.mrb[0].mxu0
    %8096 = vdwg.mxu0
    %8097 = vmatprep.subr.bf16.mxu0 %v7995
    %8098 = vmatpush1.bf16.msra.mxu0 %v7994
    %8099 = vmatprep.subr.bf16.mxu0 %v7999
    %8100 = vmatpush1.bf16.msra.mxu0 %v7998
    %8101 = vmatprep.subr.bf16.mxu0 %v8003
    %8102 = vmatpush1.bf16.msra.mxu0 %v8002
    %8103 = vmatprep.subr.bf16.mxu0 %v8007
    %8104 = vmatpush1.bf16.msra.mxu0 %v8006
    %8105 = vmatprep.subr.bf16.mxu0 %v8011
    %8106 = vmatpush1.bf16.msra.mxu0 %v8010
    %8107 = vmatprep.subr.bf16.mxu0 %v8015
    %8108 = vmatpush1.bf16.msra.mxu0 %v8014
    %8109 = vmatprep.subr.bf16.mxu0 %v8019
    %8110 = vmatpush1.bf16.msra.mxu0 %v8018
    %8111 = vmatprep.subr.bf16.mxu0 %v8023
    %8112 = vmatpush1.bf16.msra.mxu0 %v8022
    %8113 = vmatprep.subr.bf16.mxu0 0
    %8114 = vmatpush1.bf16.msra.mxu0 0
    %8115 = vmatprep.subr.bf16.mxu0 0
    %8116 = vmatpush1.bf16.msra.mxu0 0
    %8117 = vmatprep.subr.bf16.mxu0 0
    %8118 = vmatpush1.bf16.msra.mxu0 0
    %8119 = vmatprep.subr.bf16.mxu0 0
    %8120 = vmatpush1.bf16.msra.mxu0 0
    %8121 = vmatprep.subr.bf16.mxu0 0
    %8122 = vmatpush1.bf16.msra.mxu0 0
    %8123 = vmatprep.subr.bf16.mxu0 0
    %8124 = vmatpush1.bf16.msra.mxu0 0
    %8125 = vmatprep.subr.bf16.mxu0 0
    %8126 = vmatpush1.bf16.msra.mxu0 0
    %8127 = vmatprep.subr.bf16.mxu0 0
    %8128 = vmatpush1.bf16.msra.mxu0 0
    %8129 = vmatprep.mubr.bf16.mxu0 0
    %8130 = vmatmul.mubr.bf16.gmra.mrb[0].mxu0 %v7863
    %v8131 = vpop.f32.mrb[0].mxu0
    %v8132 = vadd.f32 0.0, %v8131
    %v8133 = vpop.f32.mrb[0].mxu0
    %v8134 = vadd.f32 0.0, %v8133
    %v8135 = vpop.f32.mrb[0].mxu0
    %v8136 = vpop.f32.mrb[0].mxu0
    %8137 = vdwg.mxu0
    %v8138 = vadd.f32 %v7859, %v8091
    %v8139 = vadd.f32 %v7860, %v8093
    %v8140 = vadd.f32 %v7861, %v8132
    %v8141 = vadd.f32 %v7862, %v8134
    %v8142 = vxor.u32 %v8138, 2147483648
    %v8143 = vxor.u32 %v8139, 2147483648
    %v8144 = vxor.u32 %v8140, 2147483648
    %v8145 = vmul.f32 %v8142, 1.442695
    %v8146 = vpow.pop %v8145
    %v8147 = vmul.f32 %v8143, 1.442695
    %v8148 = vpow.pop %v8147
    %v8149 = vmul.f32 %v8144, 1.442695
    %v8150 = vpow.pop %v8149
    %v8151 = vadd.f32 %v8146, 1.0
    %v8152 = vadd.f32 %v8148, 1.0
    %v8153 = vadd.f32 %v8150, 1.0
    %v8154 = vrcp.pop %v8151
    %v8155 = vmul.f32 1.0, %v8154
    %v8156 = vrcp.pop %v8152
    %v8157 = vmul.f32 1.0, %v8156
    %v8158 = vrcp.pop %v8153
    %v8159 = vmul.f32 1.0, %v8158
    %v8160 = vtanh.pop %v8141
    %v8161 = vmul.f32 %v8157, %v7855
    %v8162 = vmul.f32 %v8155, %v8160
    %v8163 = vadd.f32 %v8161, %v8162
    %v8164 = vtanh.pop %v8163
    %v8165 = vmul.f32 %v8159, %v8164
    %8166 = vst [vmem:[%s2411] sm:$0xff] %v8165
    %v8167 = vld [vmem:[%s2413] sm:$0xff]
    %v8168 = vld [vmem:[%s2413 + $0x8] sm:$0xff]
    %v8169 = vld [vmem:[%s2413 + $0x10] sm:$0xff]
    %v8170 = vld [vmem:[%s2413 + $0x18] sm:$0xff]
    %v8171 = vpack.c.bf16 %v8165, %v8165
    %v8172 = vld [vmem:[%s6323] sm:$0xff]
    %v8173 = vld [vmem:[%s6323 + $0x8] sm:$0xff]
    %v8174 = vld [vmem:[%s6323 + $0x10] sm:$0xff]
    %v8175 = vld [vmem:[%s6323 + $0x18] sm:$0xff]
    %v8176 = vld [vmem:[%s6323 + $0x20] sm:$0xff]
    %v8177 = vld [vmem:[%s6323 + $0x28] sm:$0xff]
    %v8178 = vld [vmem:[%s6323 + $0x30] sm:$0xff]
    %v8179 = vld [vmem:[%s6323 + $0x38] sm:$0xff]
    %v8180 = vld [vmem:[%s6323 + $0x40] sm:$0xff]
    %v8181 = vld [vmem:[%s6323 + $0x48] sm:$0xff]
    %v8182 = vld [vmem:[%s6323 + $0x50] sm:$0xff]
    %v8183 = vld [vmem:[%s6323 + $0x58] sm:$0xff]
    %v8184 = vld [vmem:[%s6323 + $0x60] sm:$0xff]
    %v8185 = vld [vmem:[%s6323 + $0x68] sm:$0xff]
    %v8186 = vld [vmem:[%s6323 + $0x70] sm:$0xff]
    %v8187 = vld [vmem:[%s6323 + $0x78] sm:$0xff]
    %v8188 = vld [vmem:[%s6323 + $0x80] sm:$0xff]
    %v8189 = vld [vmem:[%s6323 + $0x88] sm:$0xff]
    %v8190 = vld [vmem:[%s6323 + $0x90] sm:$0xff]
    %v8191 = vld [vmem:[%s6323 + $0x98] sm:$0xff]
    %v8192 = vld [vmem:[%s6323 + $0xa0] sm:$0xff]
    %v8193 = vld [vmem:[%s6323 + $0xa8] sm:$0xff]
    %v8194 = vld [vmem:[%s6323 + $0xb0] sm:$0xff]
    %v8195 = vld [vmem:[%s6323 + $0xb8] sm:$0xff]
    %v8196 = vld [vmem:[%s6323 + $0xc0] sm:$0xff]
    %v8197 = vld [vmem:[%s6323 + $0xc8] sm:$0xff]
    %v8198 = vld [vmem:[%s6323 + $0xd0] sm:$0xff]
    %v8199 = vld [vmem:[%s6323 + $0xd8] sm:$0xff]
    %v8200 = vld [vmem:[%s6323 + $0xe0] sm:$0xff]
    %v8201 = vld [vmem:[%s6323 + $0xe8] sm:$0xff]
    %v8202 = vld [vmem:[%s6323 + $0xf0] sm:$0xff]
    %v8203 = vld [vmem:[%s6323 + $0xf8] sm:$0xff]
    %v8236 = vunpack.c.l.b16 %v8172
    %v8237 = vunpack.c.h.b16 %v8172
    %v8238 = vunpack.c.l.b16 %v8173
    %v8239 = vunpack.c.h.b16 %v8173
    %v8240 = vunpack.c.l.b16 %v8174
    %v8241 = vunpack.c.h.b16 %v8174
    %v8242 = vunpack.c.l.b16 %v8175
    %v8243 = vunpack.c.h.b16 %v8175
    %v8244 = vunpack.c.l.b16 %v8176
    %v8245 = vunpack.c.h.b16 %v8176
    %v8246 = vunpack.c.l.b16 %v8177
    %v8247 = vunpack.c.h.b16 %v8177
    %v8248 = vunpack.c.l.b16 %v8178
    %v8249 = vunpack.c.h.b16 %v8178
    %v8250 = vunpack.c.l.b16 %v8179
    %v8251 = vunpack.c.h.b16 %v8179
    %v8252 = vunpack.c.l.b16 %v8180
    %v8253 = vunpack.c.h.b16 %v8180
    %v8254 = vunpack.c.l.b16 %v8181
    %v8255 = vunpack.c.h.b16 %v8181
    %v8256 = vunpack.c.l.b16 %v8182
    %v8257 = vunpack.c.h.b16 %v8182
    %v8258 = vunpack.c.l.b16 %v8183
    %v8259 = vunpack.c.h.b16 %v8183
    %v8260 = vunpack.c.l.b16 %v8184
    %v8261 = vunpack.c.h.b16 %v8184
    %v8262 = vunpack.c.l.b16 %v8185
    %v8263 = vunpack.c.h.b16 %v8185
    %v8264 = vunpack.c.l.b16 %v8186
    %v8265 = vunpack.c.h.b16 %v8186
    %v8266 = vunpack.c.l.b16 %v8187
    %v8267 = vunpack.c.h.b16 %v8187
    %v8268 = vunpack.c.l.b16 %v8188
    %v8269 = vunpack.c.h.b16 %v8188
    %v8270 = vunpack.c.l.b16 %v8189
    %v8271 = vunpack.c.h.b16 %v8189
    %v8272 = vunpack.c.l.b16 %v8190
    %v8273 = vunpack.c.h.b16 %v8190
    %v8274 = vunpack.c.l.b16 %v8191
    %v8275 = vunpack.c.h.b16 %v8191
    %v8276 = vunpack.c.l.b16 %v8192
    %v8277 = vunpack.c.h.b16 %v8192
    %v8278 = vunpack.c.l.b16 %v8193
    %v8279 = vunpack.c.h.b16 %v8193
    %v8280 = vunpack.c.l.b16 %v8194
    %v8281 = vunpack.c.h.b16 %v8194
    %v8282 = vunpack.c.l.b16 %v8195
    %v8283 = vunpack.c.h.b16 %v8195
    %v8284 = vunpack.c.l.b16 %v8196
    %v8285 = vunpack.c.h.b16 %v8196
    %v8286 = vunpack.c.l.b16 %v8197
    %v8287 = vunpack.c.h.b16 %v8197
    %v8288 = vunpack.c.l.b16 %v8198
    %v8289 = vunpack.c.h.b16 %v8198
    %v8290 = vunpack.c.l.b16 %v8199
    %v8291 = vunpack.c.h.b16 %v8199
    %v8292 = vunpack.c.l.b16 %v8200
    %v8293 = vunpack.c.h.b16 %v8200
    %v8294 = vunpack.c.l.b16 %v8201
    %v8295 = vunpack.c.h.b16 %v8201
    %v8296 = vunpack.c.l.b16 %v8202
    %v8297 = vunpack.c.h.b16 %v8202
    %v8298 = vunpack.c.l.b16 %v8203
    %v8299 = vunpack.c.h.b16 %v8203
    %v8300 = vpack.c.b16 %v8240, %v8236
    %v8301 = vpack.c.b16 %v8241, %v8237
    %v8302 = vpack.c.b16 %v8242, %v8238
    %v8303 = vpack.c.b16 %v8243, %v8239
    %v8304 = vpack.c.b16 %v8248, %v8244
    %v8305 = vpack.c.b16 %v8249, %v8245
    %v8306 = vpack.c.b16 %v8250, %v8246
    %v8307 = vpack.c.b16 %v8251, %v8247
    %v8308 = vpack.c.b16 %v8256, %v8252
    %v8309 = vpack.c.b16 %v8257, %v8253
    %v8310 = vpack.c.b16 %v8258, %v8254
    %v8311 = vpack.c.b16 %v8259, %v8255
    %v8312 = vpack.c.b16 %v8264, %v8260
    %v8313 = vpack.c.b16 %v8265, %v8261
    %v8314 = vpack.c.b16 %v8266, %v8262
    %v8315 = vpack.c.b16 %v8267, %v8263
    %v8316 = vpack.c.b16 %v8272, %v8268
    %v8317 = vpack.c.b16 %v8273, %v8269
    %v8318 = vpack.c.b16 %v8274, %v8270
    %v8319 = vpack.c.b16 %v8275, %v8271
    %v8320 = vpack.c.b16 %v8280, %v8276
    %v8321 = vpack.c.b16 %v8281, %v8277
    %v8322 = vpack.c.b16 %v8282, %v8278
    %v8323 = vpack.c.b16 %v8283, %v8279
    %v8324 = vpack.c.b16 %v8288, %v8284
    %v8325 = vpack.c.b16 %v8289, %v8285
    %v8326 = vpack.c.b16 %v8290, %v8286
    %v8327 = vpack.c.b16 %v8291, %v8287
    %v8328 = vpack.c.b16 %v8296, %v8292
    %v8329 = vpack.c.b16 %v8297, %v8293
    %v8330 = vpack.c.b16 %v8298, %v8294
    %v8331 = vpack.c.b16 %v8299, %v8295
    %8364 = vmatprep.subr.bf16.mxu0 %v8301
    %8365 = vmatpush1.bf16.msra.mxu0 %v8300
    %8366 = vmatprep.subr.bf16.mxu0 %v8305
    %8367 = vmatpush1.bf16.msra.mxu0 %v8304
    %8368 = vmatprep.subr.bf16.mxu0 %v8309
    %8369 = vmatpush1.bf16.msra.mxu0 %v8308
    %8370 = vmatprep.subr.bf16.mxu0 %v8313
    %8371 = vmatpush1.bf16.msra.mxu0 %v8312
    %8372 = vmatprep.subr.bf16.mxu0 %v8317
    %8373 = vmatpush1.bf16.msra.mxu0 %v8316
    %8374 = vmatprep.subr.bf16.mxu0 %v8321
    %8375 = vmatpush1.bf16.msra.mxu0 %v8320
    %8376 = vmatprep.subr.bf16.mxu0 %v8325
    %8377 = vmatpush1.bf16.msra.mxu0 %v8324
    %8378 = vmatprep.subr.bf16.mxu0 %v8329
    %8379 = vmatpush1.bf16.msra.mxu0 %v8328
    %8380 = vmatprep.subr.bf16.mxu0 0
    %8381 = vmatpush1.bf16.msra.mxu0 0
    %8382 = vmatprep.subr.bf16.mxu0 0
    %8383 = vmatpush1.bf16.msra.mxu0 0
    %8384 = vmatprep.subr.bf16.mxu0 0
    %8385 = vmatpush1.bf16.msra.mxu0 0
    %8386 = vmatprep.subr.bf16.mxu0 0
    %8387 = vmatpush1.bf16.msra.mxu0 0
    %8388 = vmatprep.subr.bf16.mxu0 0
    %8389 = vmatpush1.bf16.msra.mxu0 0
    %8390 = vmatprep.subr.bf16.mxu0 0
    %8391 = vmatpush1.bf16.msra.mxu0 0
    %8392 = vmatprep.subr.bf16.mxu0 0
    %8393 = vmatpush1.bf16.msra.mxu0 0
    %8394 = vmatprep.subr.bf16.mxu0 0
    %8395 = vmatpush1.bf16.msra.mxu0 0
    %8396 = vmatprep.mubr.bf16.mxu0 0
    %8397 = vmatmul.mubr.bf16.gmra.mrb[0].mxu0 %v8171
    %v8398 = vpop.f32.mrb[0].mxu0
    %v8399 = vadd.f32 0.0, %v8398
    %v8400 = vpop.f32.mrb[0].mxu0
    %v8401 = vadd.f32 0.0, %v8400
    %v8402 = vpop.f32.mrb[0].mxu0
    %v8403 = vpop.f32.mrb[0].mxu0
    %8404 = vdwg.mxu0
    %8405 = vmatprep.subr.bf16.mxu0 %v8303
    %8406 = vmatpush1.bf16.msra.mxu0 %v8302
    %8407 = vmatprep.subr.bf16.mxu0 %v8307
    %8408 = vmatpush1.bf16.msra.mxu0 %v8306
    %8409 = vmatprep.subr.bf16.mxu0 %v8311
    %8410 = vmatpush1.bf16.msra.mxu0 %v8310
    %8411 = vmatprep.subr.bf16.mxu0 %v8315
    %8412 = vmatpush1.bf16.msra.mxu0 %v8314
    %8413 = vmatprep.subr.bf16.mxu0 %v8319
    %8414 = vmatpush1.bf16.msra.mxu0 %v8318
    %8415 = vmatprep.subr.bf16.mxu0 %v8323
    %8416 = vmatpush1.bf16.msra.mxu0 %v8322
    %8417 = vmatprep.subr.bf16.mxu0 %v8327
    %8418 = vmatpush1.bf16.msra.mxu0 %v8326
    %8419 = vmatprep.subr.bf16.mxu0 %v8331
    %8420 = vmatpush1.bf16.msra.mxu0 %v8330
    %8421 = vmatprep.subr.bf16.mxu0 0
    %8422 = vmatpush1.bf16.msra.mxu0 0
    %8423 = vmatprep.subr.bf16.mxu0 0
    %8424 = vmatpush1.bf16.msra.mxu0 0
    %8425 = vmatprep.subr.bf16.mxu0 0
    %8426 = vmatpush1.bf16.msra.mxu0 0
    %8427 = vmatprep.subr.bf16.mxu0 0
    %8428 = vmatpush1.bf16.msra.mxu0 0
    %8429 = vmatprep.subr.bf16.mxu0 0
    %8430 = vmatpush1.bf16.msra.mxu0 0
    %8431 = vmatprep.subr.bf16.mxu0 0
    %8432 = vmatpush1.bf16.msra.mxu0 0
    %8433 = vmatprep.subr.bf16.mxu0 0
    %8434 = vmatpush1.bf16.msra.mxu0 0
    %8435 = vmatprep.subr.bf16.mxu0 0
    %8436 = vmatpush1.bf16.msra.mxu0 0
    %8437 = vmatprep.mubr.bf16.mxu0 0
    %8438 = vmatmul.mubr.bf16.gmra.mrb[0].mxu0 %v8171
    %v8439 = vpop.f32.mrb[0].mxu0
    %v8440 = vadd.f32 0.0, %v8439
    %v8441 = vpop.f32.mrb[0].mxu0
    %v8442 = vadd.f32 0.0, %v8441
    %v8443 = vpop.f32.mrb[0].mxu0
    %v8444 = vpop.f32.mrb[0].mxu0
    %8445 = vdwg.mxu0
    %v8446 = vadd.f32 %v8167, %v8399
    %v8447 = vadd.f32 %v8168, %v8401
    %v8448 = vadd.f32 %v8169, %v8440
    %v8449 = vadd.f32 %v8170, %v8442
    %v8450 = vxor.u32 %v8446, 2147483648
    %v8451 = vxor.u32 %v8447, 2147483648
    %v8452 = vxor.u32 %v8448, 2147483648
    %v8453 = vmul.f32 %v8450, 1.442695
    %v8454 = vpow.pop %v8453
    %v8455 = vmul.f32 %v8451, 1.442695
    %v8456 = vpow.pop %v8455
    %v8457 = vmul.f32 %v8452, 1.442695
    %v8458 = vpow.pop %v8457
    %v8459 = vadd.f32 %v8454, 1.0
    %v8460 = vadd.f32 %v8456, 1.0
    %v8461 = vadd.f32 %v8458, 1.0
    %v8462 = vrcp.pop %v8459
    %v8463 = vmul.f32 1.0, %v8462
    %v8464 = vrcp.pop %v8460
    %v8465 = vmul.f32 1.0, %v8464
    %v8466 = vrcp.pop %v8461
    %v8467 = vmul.f32 1.0, %v8466
    %v8468 = vtanh.pop %v8449
    %v8469 = vmul.f32 %v8465, %v8163
    %v8470 = vmul.f32 %v8463, %v8468
    %v8471 = vadd.f32 %v8469, %v8470
    %v8472 = vtanh.pop %v8471
    %v8473 = vmul.f32 %v8467, %v8472
    %8474 = vst [vmem:[%s2721] sm:$0xff] %v8473
    %v8475 = vld [vmem:[%s2723] sm:$0xff]
    %v8476 = vld [vmem:[%s2723 + $0x8] sm:$0xff]
    %v8477 = vld [vmem:[%s2723 + $0x10] sm:$0xff]
    %v8478 = vld [vmem:[%s2723 + $0x18] sm:$0xff]
    %v8479 = vpack.c.bf16 %v8473, %v8473
    %v8480 = vld [vmem:[%s6323] sm:$0xff]
    %v8481 = vld [vmem:[%s6323 + $0x8] sm:$0xff]
    %v8482 = vld [vmem:[%s6323 + $0x10] sm:$0xff]
    %v8483 = vld [vmem:[%s6323 + $0x18] sm:$0xff]
    %v8484 = vld [vmem:[%s6323 + $0x20] sm:$0xff]
    %v8485 = vld [vmem:[%s6323 + $0x28] sm:$0xff]
    %v8486 = vld [vmem:[%s6323 + $0x30] sm:$0xff]
    %v8487 = vld [vmem:[%s6323 + $0x38] sm:$0xff]
    %v8488 = vld [vmem:[%s6323 + $0x40] sm:$0xff]
    %v8489 = vld [vmem:[%s6323 + $0x48] sm:$0xff]
    %v8490 = vld [vmem:[%s6323 + $0x50] sm:$0xff]
    %v8491 = vld [vmem:[%s6323 + $0x58] sm:$0xff]
    %v8492 = vld [vmem:[%s6323 + $0x60] sm:$0xff]
    %v8493 = vld [vmem:[%s6323 + $0x68] sm:$0xff]
    %v8494 = vld [vmem:[%s6323 + $0x70] sm:$0xff]
    %v8495 = vld [vmem:[%s6323 + $0x78] sm:$0xff]
    %v8496 = vld [vmem:[%s6323 + $0x80] sm:$0xff]
    %v8497 = vld [vmem:[%s6323 + $0x88] sm:$0xff]
    %v8498 = vld [vmem:[%s6323 + $0x90] sm:$0xff]
    %v8499 = vld [vmem:[%s6323 + $0x98] sm:$0xff]
    %v8500 = vld [vmem:[%s6323 + $0xa0] sm:$0xff]
    %v8501 = vld [vmem:[%s6323 + $0xa8] sm:$0xff]
    %v8502 = vld [vmem:[%s6323 + $0xb0] sm:$0xff]
    %v8503 = vld [vmem:[%s6323 + $0xb8] sm:$0xff]
    %v8504 = vld [vmem:[%s6323 + $0xc0] sm:$0xff]
    %v8505 = vld [vmem:[%s6323 + $0xc8] sm:$0xff]
    %v8506 = vld [vmem:[%s6323 + $0xd0] sm:$0xff]
    %v8507 = vld [vmem:[%s6323 + $0xd8] sm:$0xff]
    %v8508 = vld [vmem:[%s6323 + $0xe0] sm:$0xff]
    %v8509 = vld [vmem:[%s6323 + $0xe8] sm:$0xff]
    %v8510 = vld [vmem:[%s6323 + $0xf0] sm:$0xff]
    %v8511 = vld [vmem:[%s6323 + $0xf8] sm:$0xff]
    %v8544 = vunpack.c.l.b16 %v8480
    %v8545 = vunpack.c.h.b16 %v8480
    %v8546 = vunpack.c.l.b16 %v8481
    %v8547 = vunpack.c.h.b16 %v8481
    %v8548 = vunpack.c.l.b16 %v8482
    %v8549 = vunpack.c.h.b16 %v8482
    %v8550 = vunpack.c.l.b16 %v8483
    %v8551 = vunpack.c.h.b16 %v8483
    %v8552 = vunpack.c.l.b16 %v8484
    %v8553 = vunpack.c.h.b16 %v8484
    %v8554 = vunpack.c.l.b16 %v8485
    %v8555 = vunpack.c.h.b16 %v8485
    %v8556 = vunpack.c.l.b16 %v8486
    %v8557 = vunpack.c.h.b16 %v8486
    %v8558 = vunpack.c.l.b16 %v8487
    %v8559 = vunpack.c.h.b16 %v8487
    %v8560 = vunpack.c.l.b16 %v8488
    %v8561 = vunpack.c.h.b16 %v8488
    %v8562 = vunpack.c.l.b16 %v8489
    %v8563 = vunpack.c.h.b16 %v8489
    %v8564 = vunpack.c.l.b16 %v8490
    %v8565 = vunpack.c.h.b16 %v8490
    %v8566 = vunpack.c.l.b16 %v8491
    %v8567 = vunpack.c.h.b16 %v8491
    %v8568 = vunpack.c.l.b16 %v8492
    %v8569 = vunpack.c.h.b16 %v8492
    %v8570 = vunpack.c.l.b16 %v8493
    %v8571 = vunpack.c.h.b16 %v8493
    %v8572 = vunpack.c.l.b16 %v8494
    %v8573 = vunpack.c.h.b16 %v8494
    %v8574 = vunpack.c.l.b16 %v8495
    %v8575 = vunpack.c.h.b16 %v8495
    %v8576 = vunpack.c.l.b16 %v8496
    %v8577 = vunpack.c.h.b16 %v8496
    %v8578 = vunpack.c.l.b16 %v8497
    %v8579 = vunpack.c.h.b16 %v8497
    %v8580 = vunpack.c.l.b16 %v8498
    %v8581 = vunpack.c.h.b16 %v8498
    %v8582 = vunpack.c.l.b16 %v8499
    %v8583 = vunpack.c.h.b16 %v8499
    %v8584 = vunpack.c.l.b16 %v8500
    %v8585 = vunpack.c.h.b16 %v8500
    %v8586 = vunpack.c.l.b16 %v8501
    %v8587 = vunpack.c.h.b16 %v8501
    %v8588 = vunpack.c.l.b16 %v8502
    %v8589 = vunpack.c.h.b16 %v8502
    %v8590 = vunpack.c.l.b16 %v8503
    %v8591 = vunpack.c.h.b16 %v8503
    %v8592 = vunpack.c.l.b16 %v8504
    %v8593 = vunpack.c.h.b16 %v8504
    %v8594 = vunpack.c.l.b16 %v8505
    %v8595 = vunpack.c.h.b16 %v8505
    %v8596 = vunpack.c.l.b16 %v8506
    %v8597 = vunpack.c.h.b16 %v8506
    %v8598 = vunpack.c.l.b16 %v8507
    %v8599 = vunpack.c.h.b16 %v8507
    %v8600 = vunpack.c.l.b16 %v8508
    %v8601 = vunpack.c.h.b16 %v8508
    %v8602 = vunpack.c.l.b16 %v8509
    %v8603 = vunpack.c.h.b16 %v8509
    %v8604 = vunpack.c.l.b16 %v8510
    %v8605 = vunpack.c.h.b16 %v8510
    %v8606 = vunpack.c.l.b16 %v8511
    %v8607 = vunpack.c.h.b16 %v8511
    %v8608 = vpack.c.b16 %v8548, %v8544
    %v8609 = vpack.c.b16 %v8549, %v8545
    %v8610 = vpack.c.b16 %v8550, %v8546
    %v8611 = vpack.c.b16 %v8551, %v8547
    %v8612 = vpack.c.b16 %v8556, %v8552
    %v8613 = vpack.c.b16 %v8557, %v8553
    %v8614 = vpack.c.b16 %v8558, %v8554
    %v8615 = vpack.c.b16 %v8559, %v8555
    %v8616 = vpack.c.b16 %v8564, %v8560
    %v8617 = vpack.c.b16 %v8565, %v8561
    %v8618 = vpack.c.b16 %v8566, %v8562
    %v8619 = vpack.c.b16 %v8567, %v8563
    %v8620 = vpack.c.b16 %v8572, %v8568
    %v8621 = vpack.c.b16 %v8573, %v8569
    %v8622 = vpack.c.b16 %v8574, %v8570
    %v8623 = vpack.c.b16 %v8575, %v8571
    %v8624 = vpack.c.b16 %v8580, %v8576
    %v8625 = vpack.c.b16 %v8581, %v8577
    %v8626 = vpack.c.b16 %v8582, %v8578
    %v8627 = vpack.c.b16 %v8583, %v8579
    %v8628 = vpack.c.b16 %v8588, %v8584
    %v8629 = vpack.c.b16 %v8589, %v8585
    %v8630 = vpack.c.b16 %v8590, %v8586
    %v8631 = vpack.c.b16 %v8591, %v8587
    %v8632 = vpack.c.b16 %v8596, %v8592
    %v8633 = vpack.c.b16 %v8597, %v8593
    %v8634 = vpack.c.b16 %v8598, %v8594
    %v8635 = vpack.c.b16 %v8599, %v8595
    %v8636 = vpack.c.b16 %v8604, %v8600
    %v8637 = vpack.c.b16 %v8605, %v8601
    %v8638 = vpack.c.b16 %v8606, %v8602
    %v8639 = vpack.c.b16 %v8607, %v8603
    %8672 = vmatprep.subr.bf16.mxu0 %v8609
    %8673 = vmatpush1.bf16.msra.mxu0 %v8608
    %8674 = vmatprep.subr.bf16.mxu0 %v8613
    %8675 = vmatpush1.bf16.msra.mxu0 %v8612
    %8676 = vmatprep.subr.bf16.mxu0 %v8617
    %8677 = vmatpush1.bf16.msra.mxu0 %v8616
    %8678 = vmatprep.subr.bf16.mxu0 %v8621
    %8679 = vmatpush1.bf16.msra.mxu0 %v8620
    %8680 = vmatprep.subr.bf16.mxu0 %v8625
    %8681 = vmatpush1.bf16.msra.mxu0 %v8624
    %8682 = vmatprep.subr.bf16.mxu0 %v8629
    %8683 = vmatpush1.bf16.msra.mxu0 %v8628
    %8684 = vmatprep.subr.bf16.mxu0 %v8633
    %8685 = vmatpush1.bf16.msra.mxu0 %v8632
    %8686 = vmatprep.subr.bf16.mxu0 %v8637
    %8687 = vmatpush1.bf16.msra.mxu0 %v8636
    %8688 = vmatprep.subr.bf16.mxu0 0
    %8689 = vmatpush1.bf16.msra.mxu0 0
    %8690 = vmatprep.subr.bf16.mxu0 0
    %8691 = vmatpush1.bf16.msra.mxu0 0
    %8692 = vmatprep.subr.bf16.mxu0 0
    %8693 = vmatpush1.bf16.msra.mxu0 0
    %8694 = vmatprep.subr.bf16.mxu0 0
    %8695 = vmatpush1.bf16.msra.mxu0 0
    %8696 = vmatprep.subr.bf16.mxu0 0
    %8697 = vmatpush1.bf16.msra.mxu0 0
    %8698 = vmatprep.subr.bf16.mxu0 0
    %8699 = vmatpush1.bf16.msra.mxu0 0
    %8700 = vmatprep.subr.bf16.mxu0 0
    %8701 = vmatpush1.bf16.msra.mxu0 0
    %8702 = vmatprep.subr.bf16.mxu0 0
    %8703 = vmatpush1.bf16.msra.mxu0 0
    %8704 = vmatprep.mubr.bf16.mxu0 0
    %8705 = vmatmul.mubr.bf16.gmra.mrb[0].mxu0 %v8479
    %v8706 = vpop.f32.mrb[0].mxu0
    %v8707 = vadd.f32 0.0, %v8706
    %v8708 = vpop.f32.mrb[0].mxu0
    %v8709 = vadd.f32 0.0, %v8708
    %v8710 = vpop.f32.mrb[0].mxu0
    %v8711 = vpop.f32.mrb[0].mxu0
    %8712 = vdwg.mxu0
    %8713 = vmatprep.subr.bf16.mxu0 %v8611
    %8714 = vmatpush1.bf16.msra.mxu0 %v8610
    %8715 = vmatprep.subr.bf16.mxu0 %v8615
    %8716 = vmatpush1.bf16.msra.mxu0 %v8614
    %8717 = vmatprep.subr.bf16.mxu0 %v8619
    %8718 = vmatpush1.bf16.msra.mxu0 %v8618
    %8719 = vmatprep.subr.bf16.mxu0 %v8623
    %8720 = vmatpush1.bf16.msra.mxu0 %v8622
    %8721 = vmatprep.subr.bf16.mxu0 %v8627
    %8722 = vmatpush1.bf16.msra.mxu0 %v8626
    %8723 = vmatprep.subr.bf16.mxu0 %v8631
    %8724 = vmatpush1.bf16.msra.mxu0 %v8630
    %8725 = vmatprep.subr.bf16.mxu0 %v8635
    %8726 = vmatpush1.bf16.msra.mxu0 %v8634
    %8727 = vmatprep.subr.bf16.mxu0 %v8639
    %8728 = vmatpush1.bf16.msra.mxu0 %v8638
    %8729 = vmatprep.subr.bf16.mxu0 0
    %8730 = vmatpush1.bf16.msra.mxu0 0
    %8731 = vmatprep.subr.bf16.mxu0 0
    %8732 = vmatpush1.bf16.msra.mxu0 0
    %8733 = vmatprep.subr.bf16.mxu0 0
    %8734 = vmatpush1.bf16.msra.mxu0 0
    %8735 = vmatprep.subr.bf16.mxu0 0
    %8736 = vmatpush1.bf16.msra.mxu0 0
    %8737 = vmatprep.subr.bf16.mxu0 0
    %8738 = vmatpush1.bf16.msra.mxu0 0
    %8739 = vmatprep.subr.bf16.mxu0 0
    %8740 = vmatpush1.bf16.msra.mxu0 0
    %8741 = vmatprep.subr.bf16.mxu0 0
    %8742 = vmatpush1.bf16.msra.mxu0 0
    %8743 = vmatprep.subr.bf16.mxu0 0
    %8744 = vmatpush1.bf16.msra.mxu0 0
    %8745 = vmatprep.mubr.bf16.mxu0 0
    %8746 = vmatmul.mubr.bf16.gmra.mrb[0].mxu0 %v8479
    %v8747 = vpop.f32.mrb[0].mxu0
    %v8748 = vadd.f32 0.0, %v8747
    %v8749 = vpop.f32.mrb[0].mxu0
    %v8750 = vadd.f32 0.0, %v8749
    %v8751 = vpop.f32.mrb[0].mxu0
    %v8752 = vpop.f32.mrb[0].mxu0
    %8753 = vdwg.mxu0
    %v8754 = vadd.f32 %v8475, %v8707
    %v8755 = vadd.f32 %v8476, %v8709
    %v8756 = vadd.f32 %v8477, %v8748
    %v8757 = vadd.f32 %v8478, %v8750
    %v8758 = vxor.u32 %v8754, 2147483648
    %v8759 = vxor.u32 %v8755, 2147483648
    %v8760 = vxor.u32 %v8756, 2147483648
    %v8761 = vmul.f32 %v8758, 1.442695
    %v8762 = vpow.pop %v8761
    %v8763 = vmul.f32 %v8759, 1.442695
    %v8764 = vpow.pop %v8763
    %v8765 = vmul.f32 %v8760, 1.442695
    %v8766 = vpow.pop %v8765
    %v8767 = vadd.f32 %v8762, 1.0
    %v8768 = vadd.f32 %v8764, 1.0
    %v8769 = vadd.f32 %v8766, 1.0
    %v8770 = vrcp.pop %v8767
    %v8771 = vmul.f32 1.0, %v8770
    %v8772 = vrcp.pop %v8768
    %v8773 = vmul.f32 1.0, %v8772
    %v8774 = vrcp.pop %v8769
    %v8775 = vmul.f32 1.0, %v8774
    %v8776 = vtanh.pop %v8757
    %v8777 = vmul.f32 %v8773, %v8471
    %v8778 = vmul.f32 %v8771, %v8776
    %v8779 = vadd.f32 %v8777, %v8778
    %v8780 = vtanh.pop %v8779
    %v8781 = vmul.f32 %v8775, %v8780
    %8782 = vst [vmem:[%s3031] sm:$0xff] %v8781
    %v8783 = vld [vmem:[#allocation2] sm:$0xff]
    %v8784 = vld [vmem:[#allocation2 + $0x8] sm:$0xff]
    %v8785 = vld [vmem:[#allocation2 + $0x10] sm:$0xff]
    %v8786 = vld [vmem:[#allocation2 + $0x18] sm:$0xff]
    %v8787 = vld [vmem:[#allocation2 + $0x20] sm:$0xff]
    %v8788 = vld [vmem:[#allocation2 + $0x28] sm:$0xff]
    %v8789 = vld [vmem:[#allocation2 + $0x30] sm:$0xff]
    %v8790 = vld [vmem:[#allocation2 + $0x38] sm:$0xff]
    %v8791 = vld [vmem:[#allocation15] sm:$0xff]
    %v8792 = vld [vmem:[#allocation15 + $0x8] sm:$0xff]
    %v8793 = vld [vmem:[#allocation15 + $0x10] sm:$0xff]
    %v8794 = vld [vmem:[#allocation15 + $0x18] sm:$0xff]
    %v8795 = vld [vmem:[#allocation15 + $0x20] sm:$0xff]
    %v8796 = vld [vmem:[#allocation15 + $0x28] sm:$0xff]
    %v8797 = vld [vmem:[#allocation15 + $0x30] sm:$0xff]
    %v8798 = vld [vmem:[#allocation15 + $0x38] sm:$0xff]
    %v8799 = vld [vmem:[#allocation15 + $0x40] sm:$0xff]
    %v8800 = vld [vmem:[#allocation15 + $0x48] sm:$0xff]
    %v8801 = vld [vmem:[#allocation15 + $0x50] sm:$0xff]
    %v8802 = vld [vmem:[#allocation15 + $0x58] sm:$0xff]
    %v8803 = vld [vmem:[#allocation15 + $0x60] sm:$0xff]
    %v8804 = vld [vmem:[#allocation15 + $0x68] sm:$0xff]
    %v8805 = vld [vmem:[#allocation15 + $0x70] sm:$0xff]
    %v8806 = vld [vmem:[#allocation15 + $0x78] sm:$0xff]
    %v8807 = vld [vmem:[#allocation15 + $0x80] sm:$0xff]
    %v8808 = vld [vmem:[#allocation15 + $0x88] sm:$0xff]
    %v8809 = vld [vmem:[#allocation15 + $0x90] sm:$0xff]
    %v8810 = vld [vmem:[#allocation15 + $0x98] sm:$0xff]
    %v8811 = vld [vmem:[#allocation15 + $0xa0] sm:$0xff]
    %v8812 = vld [vmem:[#allocation15 + $0xa8] sm:$0xff]
    %v8813 = vld [vmem:[#allocation15 + $0xb0] sm:$0xff]
    %v8814 = vld [vmem:[#allocation15 + $0xb8] sm:$0xff]
    %v8815 = vld [vmem:[#allocation15 + $0xc0] sm:$0xff]
    %v8816 = vld [vmem:[#allocation15 + $0xc8] sm:$0xff]
    %v8817 = vld [vmem:[#allocation15 + $0xd0] sm:$0xff]
    %v8818 = vld [vmem:[#allocation15 + $0xd8] sm:$0xff]
    %v8819 = vld [vmem:[#allocation15 + $0xe0] sm:$0xff]
    %v8820 = vld [vmem:[#allocation15 + $0xe8] sm:$0xff]
    %v8821 = vld [vmem:[#allocation15 + $0xf0] sm:$0xff]
    %v8822 = vld [vmem:[#allocation15 + $0xf8] sm:$0xff]
    %v8823 = vld [vmem:[%s8] sm:$0xf]
    %v8824 = vpack.c.bf16 %v8784, %v8783
    %v8825 = vpack.c.bf16 %v8786, %v8785
    %v8826 = vpack.c.bf16 %v8788, %v8787
    %v8827 = vpack.c.bf16 %v8790, %v8789
    %v8829 = vlaneseq
    %v8830 = vshrl.u32 %v8829, 7
    %v8831 = vsub.s32 0, %v8830
    %v8832 = vrot.slane %v8823, %v8831
    %v8833 = vlaneseq
    %v8834 = vshrl.u32 %v8833, 7
    %v8835 = vsub.s32 1, %v8834
    %v8836 = vrot.slane %v8823, %v8835
    %v8837 = vlaneseq
    %v8838 = vshrl.u32 %v8837, 7
    %v8839 = vsub.s32 2, %v8838
    %v8840 = vrot.slane %v8823, %v8839
    %v8841 = vlaneseq
    %v8842 = vshrl.u32 %v8841, 7
    %v8843 = vsub.s32 3, %v8842
    %v8844 = vrot.slane %v8823, %v8843
    %v8881 = vunpack.c.l.b16 %v8791
    %v8882 = vunpack.c.h.b16 %v8791
    %v8883 = vunpack.c.l.b16 %v8792
    %v8884 = vunpack.c.h.b16 %v8792
    %v8885 = vunpack.c.l.b16 %v8793
    %v8886 = vunpack.c.h.b16 %v8793
    %v8887 = vunpack.c.l.b16 %v8794
    %v8888 = vunpack.c.h.b16 %v8794
    %v8889 = vunpack.c.l.b16 %v8795
    %v8890 = vunpack.c.h.b16 %v8795
    %v8891 = vunpack.c.l.b16 %v8796
    %v8892 = vunpack.c.h.b16 %v8796
    %v8893 = vunpack.c.l.b16 %v8797
    %v8894 = vunpack.c.h.b16 %v8797
    %v8895 = vunpack.c.l.b16 %v8798
    %v8896 = vunpack.c.h.b16 %v8798
    %v8897 = vunpack.c.l.b16 %v8799
    %v8898 = vunpack.c.h.b16 %v8799
    %v8899 = vunpack.c.l.b16 %v8800
    %v8900 = vunpack.c.h.b16 %v8800
    %v8901 = vunpack.c.l.b16 %v8801
    %v8902 = vunpack.c.h.b16 %v8801
    %v8903 = vunpack.c.l.b16 %v8802
    %v8904 = vunpack.c.h.b16 %v8802
    %v8905 = vunpack.c.l.b16 %v8803
    %v8906 = vunpack.c.h.b16 %v8803
    %v8907 = vunpack.c.l.b16 %v8804
    %v8908 = vunpack.c.h.b16 %v8804
    %v8909 = vunpack.c.l.b16 %v8805
    %v8910 = vunpack.c.h.b16 %v8805
    %v8911 = vunpack.c.l.b16 %v8806
    %v8912 = vunpack.c.h.b16 %v8806
    %v8913 = vunpack.c.l.b16 %v8807
    %v8914 = vunpack.c.h.b16 %v8807
    %v8915 = vunpack.c.l.b16 %v8808
    %v8916 = vunpack.c.h.b16 %v8808
    %v8917 = vunpack.c.l.b16 %v8809
    %v8918 = vunpack.c.h.b16 %v8809
    %v8919 = vunpack.c.l.b16 %v8810
    %v8920 = vunpack.c.h.b16 %v8810
    %v8921 = vunpack.c.l.b16 %v8811
    %v8922 = vunpack.c.h.b16 %v8811
    %v8923 = vunpack.c.l.b16 %v8812
    %v8924 = vunpack.c.h.b16 %v8812
    %v8925 = vunpack.c.l.b16 %v8813
    %v8926 = vunpack.c.h.b16 %v8813
    %v8927 = vunpack.c.l.b16 %v8814
    %v8928 = vunpack.c.h.b16 %v8814
    %v8929 = vunpack.c.l.b16 %v8815
    %v8930 = vunpack.c.h.b16 %v8815
    %v8931 = vunpack.c.l.b16 %v8816
    %v8932 = vunpack.c.h.b16 %v8816
    %v8933 = vunpack.c.l.b16 %v8817
    %v8934 = vunpack.c.h.b16 %v8817
    %v8935 = vunpack.c.l.b16 %v8818
    %v8936 = vunpack.c.h.b16 %v8818
    %v8937 = vunpack.c.l.b16 %v8819
    %v8938 = vunpack.c.h.b16 %v8819
    %v8939 = vunpack.c.l.b16 %v8820
    %v8940 = vunpack.c.h.b16 %v8820
    %v8941 = vunpack.c.l.b16 %v8821
    %v8942 = vunpack.c.h.b16 %v8821
    %v8943 = vunpack.c.l.b16 %v8822
    %v8944 = vunpack.c.h.b16 %v8822
    %v8945 = vpack.c.b16 %v8885, %v8881
    %v8946 = vpack.c.b16 %v8886, %v8882
    %v8947 = vpack.c.b16 %v8887, %v8883
    %v8948 = vpack.c.b16 %v8888, %v8884
    %v8949 = vpack.c.b16 %v8893, %v8889
    %v8950 = vpack.c.b16 %v8894, %v8890
    %v8951 = vpack.c.b16 %v8895, %v8891
    %v8952 = vpack.c.b16 %v8896, %v8892
    %v8953 = vpack.c.b16 %v8901, %v8897
    %v8954 = vpack.c.b16 %v8902, %v8898
    %v8955 = vpack.c.b16 %v8903, %v8899
    %v8956 = vpack.c.b16 %v8904, %v8900
    %v8957 = vpack.c.b16 %v8909, %v8905
    %v8958 = vpack.c.b16 %v8910, %v8906
    %v8959 = vpack.c.b16 %v8911, %v8907
    %v8960 = vpack.c.b16 %v8912, %v8908
    %v8961 = vpack.c.b16 %v8917, %v8913
    %v8962 = vpack.c.b16 %v8918, %v8914
    %v8963 = vpack.c.b16 %v8919, %v8915
    %v8964 = vpack.c.b16 %v8920, %v8916
    %v8965 = vpack.c.b16 %v8925, %v8921
    %v8966 = vpack.c.b16 %v8926, %v8922
    %v8967 = vpack.c.b16 %v8927, %v8923
    %v8968 = vpack.c.b16 %v8928, %v8924
    %v8969 = vpack.c.b16 %v8933, %v8929
    %v8970 = vpack.c.b16 %v8934, %v8930
    %v8971 = vpack.c.b16 %v8935, %v8931
    %v8972 = vpack.c.b16 %v8936, %v8932
    %v8973 = vpack.c.b16 %v8941, %v8937
    %v8974 = vpack.c.b16 %v8942, %v8938
    %v8975 = vpack.c.b16 %v8943, %v8939
    %v8976 = vpack.c.b16 %v8944, %v8940
    %9009 = vmatprep.subr.bf16.mxu0 %v8946
    %9010 = vmatpush1.bf16.msra.mxu0 %v8945
    %9011 = vmatprep.subr.bf16.mxu0 %v8950
    %9012 = vmatpush1.bf16.msra.mxu0 %v8949
    %9013 = vmatprep.subr.bf16.mxu0 %v8954
    %9014 = vmatpush1.bf16.msra.mxu0 %v8953
    %9015 = vmatprep.subr.bf16.mxu0 %v8958
    %9016 = vmatpush1.bf16.msra.mxu0 %v8957
    %9017 = vmatprep.subr.bf16.mxu0 %v8962
    %9018 = vmatpush1.bf16.msra.mxu0 %v8961
    %9019 = vmatprep.subr.bf16.mxu0 %v8966
    %9020 = vmatpush1.bf16.msra.mxu0 %v8965
    %9021 = vmatprep.subr.bf16.mxu0 %v8970
    %9022 = vmatpush1.bf16.msra.mxu0 %v8969
    %9023 = vmatprep.subr.bf16.mxu0 %v8974
    %9024 = vmatpush1.bf16.msra.mxu0 %v8973
    %9025 = vmatprep.subr.bf16.mxu0 0
    %9026 = vmatpush1.bf16.msra.mxu0 0
    %9027 = vmatprep.subr.bf16.mxu0 0
    %9028 = vmatpush1.bf16.msra.mxu0 0
    %9029 = vmatprep.subr.bf16.mxu0 0
    %9030 = vmatpush1.bf16.msra.mxu0 0
    %9031 = vmatprep.subr.bf16.mxu0 0
    %9032 = vmatpush1.bf16.msra.mxu0 0
    %9033 = vmatprep.subr.bf16.mxu0 0
    %9034 = vmatpush1.bf16.msra.mxu0 0
    %9035 = vmatprep.subr.bf16.mxu0 0
    %9036 = vmatpush1.bf16.msra.mxu0 0
    %9037 = vmatprep.subr.bf16.mxu0 0
    %9038 = vmatpush1.bf16.msra.mxu0 0
    %9039 = vmatprep.subr.bf16.mxu0 0
    %9040 = vmatpush1.bf16.msra.mxu0 0
    %9041 = vmatprep.mubr.bf16.mxu0 0
    %9042 = vmatmul.mubr.bf16.gmra.mrb[0].mxu0 %v8824
    %v9043 = vpop.f32.mrb[0].mxu0
    %v9044 = vadd.f32 %v8832, %v9043
    %v9045 = vpop.f32.mrb[0].mxu0
    %v9046 = vadd.f32 %v8836, %v9045
    %v9047 = vpop.f32.mrb[0].mxu0
    %v9048 = vadd.f32 %v8832, %v9047
    %v9049 = vpop.f32.mrb[0].mxu0
    %v9050 = vadd.f32 %v8836, %v9049
    %9051 = vmatprep.mubr.bf16.mxu0 0
    %9052 = vmatmul.mubr.bf16.gmra.mrb[0].mxu0 %v8825
    %v9053 = vpop.f32.mrb[0].mxu0
    %v9054 = vadd.f32 %v8832, %v9053
    %v9055 = vpop.f32.mrb[0].mxu0
    %v9056 = vadd.f32 %v8836, %v9055
    %v9057 = vpop.f32.mrb[0].mxu0
    %v9058 = vadd.f32 %v8832, %v9057
    %v9059 = vpop.f32.mrb[0].mxu0
    %v9060 = vadd.f32 %v8836, %v9059
    %9061 = vmatprep.mubr.bf16.mxu0 0
    %9062 = vmatmul.mubr.bf16.gmra.mrb[0].mxu0 %v8826
    %v9063 = vpop.f32.mrb[0].mxu0
    %v9064 = vadd.f32 %v8832, %v9063
    %v9065 = vpop.f32.mrb[0].mxu0
    %v9066 = vadd.f32 %v8836, %v9065
    %v9067 = vpop.f32.mrb[0].mxu0
    %v9068 = vadd.f32 %v8832, %v9067
    %v9069 = vpop.f32.mrb[0].mxu0
    %v9070 = vadd.f32 %v8836, %v9069
    %9071 = vmatprep.mubr.bf16.mxu0 0
    %9072 = vmatmul.mubr.bf16.gmra.mrb[0].mxu0 %v8827
    %v9073 = vpop.f32.mrb[0].mxu0
    %v9074 = vadd.f32 %v8832, %v9073
    %v9075 = vpop.f32.mrb[0].mxu0
    %v9076 = vadd.f32 %v8836, %v9075
    %v9077 = vpop.f32.mrb[0].mxu0
    %v9078 = vadd.f32 %v8832, %v9077
    %v9079 = vpop.f32.mrb[0].mxu0
    %v9080 = vadd.f32 %v8836, %v9079
    %9081 = vdwg.mxu0
    %9082 = vmatprep.subr.bf16.mxu0 %v8948
    %9083 = vmatpush1.bf16.msra.mxu0 %v8947
    %9084 = vmatprep.subr.bf16.mxu0 %v8952
    %9085 = vmatpush1.bf16.msra.mxu0 %v8951
    %9086 = vmatprep.subr.bf16.mxu0 %v8956
    %9087 = vmatpush1.bf16.msra.mxu0 %v8955
    %9088 = vmatprep.subr.bf16.mxu0 %v8960
    %9089 = vmatpush1.bf16.msra.mxu0 %v8959
    %9090 = vmatprep.subr.bf16.mxu0 %v8964
    %9091 = vmatpush1.bf16.msra.mxu0 %v8963
    %9092 = vmatprep.subr.bf16.mxu0 %v8968
    %9093 = vmatpush1.bf16.msra.mxu0 %v8967
    %9094 = vmatprep.subr.bf16.mxu0 %v8972
    %9095 = vmatpush1.bf16.msra.mxu0 %v8971
    %9096 = vmatprep.subr.bf16.mxu0 %v8976
    %9097 = vmatpush1.bf16.msra.mxu0 %v8975
    %9098 = vmatprep.subr.bf16.mxu0 0
    %9099 = vmatpush1.bf16.msra.mxu0 0
    %9100 = vmatprep.subr.bf16.mxu0 0
    %9101 = vmatpush1.bf16.msra.mxu0 0
    %9102 = vmatprep.subr.bf16.mxu0 0
    %9103 = vmatpush1.bf16.msra.mxu0 0
    %9104 = vmatprep.subr.bf16.mxu0 0
    %9105 = vmatpush1.bf16.msra.mxu0 0
    %9106 = vmatprep.subr.bf16.mxu0 0
    %9107 = vmatpush1.bf16.msra.mxu0 0
    %9108 = vmatprep.subr.bf16.mxu0 0
    %9109 = vmatpush1.bf16.msra.mxu0 0
    %9110 = vmatprep.subr.bf16.mxu0 0
    %9111 = vmatpush1.bf16.msra.mxu0 0
    %9112 = vmatprep.subr.bf16.mxu0 0
    %9113 = vmatpush1.bf16.msra.mxu0 0
    %9114 = vmatprep.mubr.bf16.mxu0 0
    %9115 = vmatmul.mubr.bf16.gmra.mrb[0].mxu0 %v8824
    %v9116 = vpop.f32.mrb[0].mxu0
    %v9117 = vadd.f32 %v8840, %v9116
    %v9118 = vpop.f32.mrb[0].mxu0
    %v9119 = vadd.f32 %v8844, %v9118
    %v9120 = vpop.f32.mrb[0].mxu0
    %v9121 = vadd.f32 %v8840, %v9120
    %v9122 = vpop.f32.mrb[0].mxu0
    %v9123 = vadd.f32 %v8844, %v9122
    %9124 = vmatprep.mubr.bf16.mxu0 0
    %9125 = vmatmul.mubr.bf16.gmra.mrb[0].mxu0 %v8825
    %v9126 = vpop.f32.mrb[0].mxu0
    %v9127 = vadd.f32 %v8840, %v9126
    %v9128 = vpop.f32.mrb[0].mxu0
    %v9129 = vadd.f32 %v8844, %v9128
    %v9130 = vpop.f32.mrb[0].mxu0
    %v9131 = vadd.f32 %v8840, %v9130
    %v9132 = vpop.f32.mrb[0].mxu0
    %v9133 = vadd.f32 %v8844, %v9132
    %9134 = vmatprep.mubr.bf16.mxu0 0
    %9135 = vmatmul.mubr.bf16.gmra.mrb[0].mxu0 %v8826
    %v9136 = vpop.f32.mrb[0].mxu0
    %v9137 = vadd.f32 %v8840, %v9136
    %v9138 = vpop.f32.mrb[0].mxu0
    %v9139 = vadd.f32 %v8844, %v9138
    %v9140 = vpop.f32.mrb[0].mxu0
    %v9141 = vadd.f32 %v8840, %v9140
    %v9142 = vpop.f32.mrb[0].mxu0
    %v9143 = vadd.f32 %v8844, %v9142
    %9144 = vmatprep.mubr.bf16.mxu0 0
    %9145 = vmatmul.mubr.bf16.gmra.mrb[0].mxu0 %v8827
    %v9146 = vpop.f32.mrb[0].mxu0
    %v9147 = vadd.f32 %v8840, %v9146
    %v9148 = vpop.f32.mrb[0].mxu0
    %v9149 = vadd.f32 %v8844, %v9148
    %v9150 = vpop.f32.mrb[0].mxu0
    %v9151 = vadd.f32 %v8840, %v9150
    %v9152 = vpop.f32.mrb[0].mxu0
    %v9153 = vadd.f32 %v8844, %v9152
    %9154 = vdwg.mxu0
    %9155 = vst [vmem:[#allocation3] sm:$0xff] %v9044
    %9156 = vst [vmem:[#allocation3 + $0x8] sm:$0xff] %v9046
    %9157 = vst [vmem:[#allocation3 + $0x10] sm:$0xff] %v9117
    %9158 = vst [vmem:[#allocation3 + $0x18] sm:$0xff] %v9119
    %9159 = vst [vmem:[#allocation3 + $0x20] sm:$0xff] %v9048
    %9160 = vst [vmem:[#allocation3 + $0x28] sm:$0xff] %v9050
    %9161 = vst [vmem:[#allocation3 + $0x30] sm:$0xff] %v9121
    %9162 = vst [vmem:[#allocation3 + $0x38] sm:$0xff] %v9123
    %9163 = vst [vmem:[#allocation3 + $0x40] sm:$0xff] %v9054
    %9164 = vst [vmem:[#allocation3 + $0x48] sm:$0xff] %v9056
    %9165 = vst [vmem:[#allocation3 + $0x50] sm:$0xff] %v9127
    %9166 = vst [vmem:[#allocation3 + $0x58] sm:$0xff] %v9129
    %9167 = vst [vmem:[#allocation3 + $0x60] sm:$0xff] %v9058
    %9168 = vst [vmem:[#allocation3 + $0x68] sm:$0xff] %v9060
    %9169 = vst [vmem:[#allocation3 + $0x70] sm:$0xff] %v9131
    %9170 = vst [vmem:[#allocation3 + $0x78] sm:$0xff] %v9133
    %9171 = vst [vmem:[#allocation3 + $0x80] sm:$0xff] %v9064
    %9172 = vst [vmem:[#allocation3 + $0x88] sm:$0xff] %v9066
    %9173 = vst [vmem:[#allocation3 + $0x90] sm:$0xff] %v9137
    %9174 = vst [vmem:[#allocation3 + $0x98] sm:$0xff] %v9139
    %9175 = vst [vmem:[#allocation3 + $0xa0] sm:$0xff] %v9068
    %9176 = vst [vmem:[#allocation3 + $0xa8] sm:$0xff] %v9070
    %9177 = vst [vmem:[#allocation3 + $0xb0] sm:$0xff] %v9141
    %9178 = vst [vmem:[#allocation3 + $0xb8] sm:$0xff] %v9143
    %9179 = vst [vmem:[#allocation3 + $0xc0] sm:$0xff] %v9074
    %9180 = vst [vmem:[#allocation3 + $0xc8] sm:$0xff] %v9076
    %9181 = vst [vmem:[#allocation3 + $0xd0] sm:$0xff] %v9147
    %9182 = vst [vmem:[#allocation3 + $0xd8] sm:$0xff] %v9149
    %9183 = vst [vmem:[#allocation3 + $0xe0] sm:$0xff] %v9078
    %9184 = vst [vmem:[#allocation3 + $0xe8] sm:$0xff] %v9080
    %9185 = vst [vmem:[#allocation3 + $0xf0] sm:$0xff] %v9151
    %9186 = vst [vmem:[#allocation3 + $0xf8] sm:$0xff] %v9153
    %v9187 = vld [vmem:[%s9] sm:$0xff]
    %v9188 = vld [vmem:[%s10] sm:$0xff]
    %v9189 = vld [vmem:[#allocation3] sm:$0xff]
    %v9190 = vld [vmem:[#allocation3 + $0x8] sm:$0xff]
    %v9191 = vld [vmem:[#allocation3 + $0x10] sm:$0xff]
    %v9192 = vld [vmem:[#allocation3 + $0x18] sm:$0xff]
    %v9193 = vpack.c.bf16 %v9187, %v9187
    %v9194 = vld [vmem:[#allocation16] sm:$0xff]
    %v9195 = vld [vmem:[#allocation16 + $0x8] sm:$0xff]
    %v9196 = vld [vmem:[#allocation16 + $0x10] sm:$0xff]
    %v9197 = vld [vmem:[#allocation16 + $0x18] sm:$0xff]
    %v9198 = vld [vmem:[#allocation16 + $0x20] sm:$0xff]
    %v9199 = vld [vmem:[#allocation16 + $0x28] sm:$0xff]
    %v9200 = vld [vmem:[#allocation16 + $0x30] sm:$0xff]
    %v9201 = vld [vmem:[#allocation16 + $0x38] sm:$0xff]
    %v9202 = vld [vmem:[#allocation16 + $0x40] sm:$0xff]
    %v9203 = vld [vmem:[#allocation16 + $0x48] sm:$0xff]
    %v9204 = vld [vmem:[#allocation16 + $0x50] sm:$0xff]
    %v9205 = vld [vmem:[#allocation16 + $0x58] sm:$0xff]
    %v9206 = vld [vmem:[#allocation16 + $0x60] sm:$0xff]
    %v9207 = vld [vmem:[#allocation16 + $0x68] sm:$0xff]
    %v9208 = vld [vmem:[#allocation16 + $0x70] sm:$0xff]
    %v9209 = vld [vmem:[#allocation16 + $0x78] sm:$0xff]
    %v9210 = vld [vmem:[#allocation16 + $0x80] sm:$0xff]
    %v9211 = vld [vmem:[#allocation16 + $0x88] sm:$0xff]
    %v9212 = vld [vmem:[#allocation16 + $0x90] sm:$0xff]
    %v9213 = vld [vmem:[#allocation16 + $0x98] sm:$0xff]
    %v9214 = vld [vmem:[#allocation16 + $0xa0] sm:$0xff]
    %v9215 = vld [vmem:[#allocation16 + $0xa8] sm:$0xff]
    %v9216 = vld [vmem:[#allocation16 + $0xb0] sm:$0xff]
    %v9217 = vld [vmem:[#allocation16 + $0xb8] sm:$0xff]
    %v9218 = vld [vmem:[#allocation16 + $0xc0] sm:$0xff]
    %v9219 = vld [vmem:[#allocation16 + $0xc8] sm:$0xff]
    %v9220 = vld [vmem:[#allocation16 + $0xd0] sm:$0xff]
    %v9221 = vld [vmem:[#allocation16 + $0xd8] sm:$0xff]
    %v9222 = vld [vmem:[#allocation16 + $0xe0] sm:$0xff]
    %v9223 = vld [vmem:[#allocation16 + $0xe8] sm:$0xff]
    %v9224 = vld [vmem:[#allocation16 + $0xf0] sm:$0xff]
    %v9225 = vld [vmem:[#allocation16 + $0xf8] sm:$0xff]
    %v9258 = vunpack.c.l.b16 %v9194
    %v9259 = vunpack.c.h.b16 %v9194
    %v9260 = vunpack.c.l.b16 %v9195
    %v9261 = vunpack.c.h.b16 %v9195
    %v9262 = vunpack.c.l.b16 %v9196
    %v9263 = vunpack.c.h.b16 %v9196
    %v9264 = vunpack.c.l.b16 %v9197
    %v9265 = vunpack.c.h.b16 %v9197
    %v9266 = vunpack.c.l.b16 %v9198
    %v9267 = vunpack.c.h.b16 %v9198
    %v9268 = vunpack.c.l.b16 %v9199
    %v9269 = vunpack.c.h.b16 %v9199
    %v9270 = vunpack.c.l.b16 %v9200
    %v9271 = vunpack.c.h.b16 %v9200
    %v9272 = vunpack.c.l.b16 %v9201
    %v9273 = vunpack.c.h.b16 %v9201
    %v9274 = vunpack.c.l.b16 %v9202
    %v9275 = vunpack.c.h.b16 %v9202
    %v9276 = vunpack.c.l.b16 %v9203
    %v9277 = vunpack.c.h.b16 %v9203
    %v9278 = vunpack.c.l.b16 %v9204
    %v9279 = vunpack.c.h.b16 %v9204
    %v9280 = vunpack.c.l.b16 %v9205
    %v9281 = vunpack.c.h.b16 %v9205
    %v9282 = vunpack.c.l.b16 %v9206
    %v9283 = vunpack.c.h.b16 %v9206
    %v9284 = vunpack.c.l.b16 %v9207
    %v9285 = vunpack.c.h.b16 %v9207
    %v9286 = vunpack.c.l.b16 %v9208
    %v9287 = vunpack.c.h.b16 %v9208
    %v9288 = vunpack.c.l.b16 %v9209
    %v9289 = vunpack.c.h.b16 %v9209
    %v9290 = vunpack.c.l.b16 %v9210
    %v9291 = vunpack.c.h.b16 %v9210
    %v9292 = vunpack.c.l.b16 %v9211
    %v9293 = vunpack.c.h.b16 %v9211
    %v9294 = vunpack.c.l.b16 %v9212
    %v9295 = vunpack.c.h.b16 %v9212
    %v9296 = vunpack.c.l.b16 %v9213
    %v9297 = vunpack.c.h.b16 %v9213
    %v9298 = vunpack.c.l.b16 %v9214
    %v9299 = vunpack.c.h.b16 %v9214
    %v9300 = vunpack.c.l.b16 %v9215
    %v9301 = vunpack.c.h.b16 %v9215
    %v9302 = vunpack.c.l.b16 %v9216
    %v9303 = vunpack.c.h.b16 %v9216
    %v9304 = vunpack.c.l.b16 %v9217
    %v9305 = vunpack.c.h.b16 %v9217
    %v9306 = vunpack.c.l.b16 %v9218
    %v9307 = vunpack.c.h.b16 %v9218
    %v9308 = vunpack.c.l.b16 %v9219
    %v9309 = vunpack.c.h.b16 %v9219
    %v9310 = vunpack.c.l.b16 %v9220
    %v9311 = vunpack.c.h.b16 %v9220
    %v9312 = vunpack.c.l.b16 %v9221
    %v9313 = vunpack.c.h.b16 %v9221
    %v9314 = vunpack.c.l.b16 %v9222
    %v9315 = vunpack.c.h.b16 %v9222
    %v9316 = vunpack.c.l.b16 %v9223
    %v9317 = vunpack.c.h.b16 %v9223
    %v9318 = vunpack.c.l.b16 %v9224
    %v9319 = vunpack.c.h.b16 %v9224
    %v9320 = vunpack.c.l.b16 %v9225
    %v9321 = vunpack.c.h.b16 %v9225
    %v9322 = vpack.c.b16 %v9262, %v9258
    %v9323 = vpack.c.b16 %v9263, %v9259
    %v9324 = vpack.c.b16 %v9264, %v9260
    %v9325 = vpack.c.b16 %v9265, %v9261
    %v9326 = vpack.c.b16 %v9270, %v9266
    %v9327 = vpack.c.b16 %v9271, %v9267
    %v9328 = vpack.c.b16 %v9272, %v9268
    %v9329 = vpack.c.b16 %v9273, %v9269
    %v9330 = vpack.c.b16 %v9278, %v9274
    %v9331 = vpack.c.b16 %v9279, %v9275
    %v9332 = vpack.c.b16 %v9280, %v9276
    %v9333 = vpack.c.b16 %v9281, %v9277
    %v9334 = vpack.c.b16 %v9286, %v9282
    %v9335 = vpack.c.b16 %v9287, %v9283
    %v9336 = vpack.c.b16 %v9288, %v9284
    %v9337 = vpack.c.b16 %v9289, %v9285
    %v9338 = vpack.c.b16 %v9294, %v9290
    %v9339 = vpack.c.b16 %v9295, %v9291
    %v9340 = vpack.c.b16 %v9296, %v9292
    %v9341 = vpack.c.b16 %v9297, %v9293
    %v9342 = vpack.c.b16 %v9302, %v9298
    %v9343 = vpack.c.b16 %v9303, %v9299
    %v9344 = vpack.c.b16 %v9304, %v9300
    %v9345 = vpack.c.b16 %v9305, %v9301
    %v9346 = vpack.c.b16 %v9310, %v9306
    %v9347 = vpack.c.b16 %v9311, %v9307
    %v9348 = vpack.c.b16 %v9312, %v9308
    %v9349 = vpack.c.b16 %v9313, %v9309
    %v9350 = vpack.c.b16 %v9318, %v9314
    %v9351 = vpack.c.b16 %v9319, %v9315
    %v9352 = vpack.c.b16 %v9320, %v9316
    %v9353 = vpack.c.b16 %v9321, %v9317
    %9386 = vmatprep.subr.bf16.mxu0 %v9323
    %9387 = vmatpush1.bf16.msra.mxu0 %v9322
    %9388 = vmatprep.subr.bf16.mxu0 %v9327
    %9389 = vmatpush1.bf16.msra.mxu0 %v9326
    %9390 = vmatprep.subr.bf16.mxu0 %v9331
    %9391 = vmatpush1.bf16.msra.mxu0 %v9330
    %9392 = vmatprep.subr.bf16.mxu0 %v9335
    %9393 = vmatpush1.bf16.msra.mxu0 %v9334
    %9394 = vmatprep.subr.bf16.mxu0 %v9339
    %9395 = vmatpush1.bf16.msra.mxu0 %v9338
    %9396 = vmatprep.subr.bf16.mxu0 %v9343
    %9397 = vmatpush1.bf16.msra.mxu0 %v9342
    %9398 = vmatprep.subr.bf16.mxu0 %v9347
    %9399 = vmatpush1.bf16.msra.mxu0 %v9346
    %9400 = vmatprep.subr.bf16.mxu0 %v9351
    %9401 = vmatpush1.bf16.msra.mxu0 %v9350
    %9402 = vmatprep.subr.bf16.mxu0 0
    %9403 = vmatpush1.bf16.msra.mxu0 0
    %9404 = vmatprep.subr.bf16.mxu0 0
    %9405 = vmatpush1.bf16.msra.mxu0 0
    %9406 = vmatprep.subr.bf16.mxu0 0
    %9407 = vmatpush1.bf16.msra.mxu0 0
    %9408 = vmatprep.subr.bf16.mxu0 0
    %9409 = vmatpush1.bf16.msra.mxu0 0
    %9410 = vmatprep.subr.bf16.mxu0 0
    %9411 = vmatpush1.bf16.msra.mxu0 0
    %9412 = vmatprep.subr.bf16.mxu0 0
    %9413 = vmatpush1.bf16.msra.mxu0 0
    %9414 = vmatprep.subr.bf16.mxu0 0
    %9415 = vmatpush1.bf16.msra.mxu0 0
    %9416 = vmatprep.subr.bf16.mxu0 0
    %9417 = vmatpush1.bf16.msra.mxu0 0
    %9418 = vmatprep.mubr.bf16.mxu0 0
    %9419 = vmatmul.mubr.bf16.gmra.mrb[0].mxu0 %v9193
    %v9420 = vpop.f32.mrb[0].mxu0
    %v9421 = vadd.f32 0.0, %v9420
    %v9422 = vpop.f32.mrb[0].mxu0
    %v9423 = vadd.f32 0.0, %v9422
    %v9424 = vpop.f32.mrb[0].mxu0
    %v9425 = vpop.f32.mrb[0].mxu0
    %9426 = vdwg.mxu0
    %9427 = vmatprep.subr.bf16.mxu0 %v9325
    %9428 = vmatpush1.bf16.msra.mxu0 %v9324
    %9429 = vmatprep.subr.bf16.mxu0 %v9329
    %9430 = vmatpush1.bf16.msra.mxu0 %v9328
    %9431 = vmatprep.subr.bf16.mxu0 %v9333
    %9432 = vmatpush1.bf16.msra.mxu0 %v9332
    %9433 = vmatprep.subr.bf16.mxu0 %v9337
    %9434 = vmatpush1.bf16.msra.mxu0 %v9336
    %9435 = vmatprep.subr.bf16.mxu0 %v9341
    %9436 = vmatpush1.bf16.msra.mxu0 %v9340
    %9437 = vmatprep.subr.bf16.mxu0 %v9345
    %9438 = vmatpush1.bf16.msra.mxu0 %v9344
    %9439 = vmatprep.subr.bf16.mxu0 %v9349
    %9440 = vmatpush1.bf16.msra.mxu0 %v9348
    %9441 = vmatprep.subr.bf16.mxu0 %v9353
    %9442 = vmatpush1.bf16.msra.mxu0 %v9352
    %9443 = vmatprep.subr.bf16.mxu0 0
    %9444 = vmatpush1.bf16.msra.mxu0 0
    %9445 = vmatprep.subr.bf16.mxu0 0
    %9446 = vmatpush1.bf16.msra.mxu0 0
    %9447 = vmatprep.subr.bf16.mxu0 0
    %9448 = vmatpush1.bf16.msra.mxu0 0
    %9449 = vmatprep.subr.bf16.mxu0 0
    %9450 = vmatpush1.bf16.msra.mxu0 0
    %9451 = vmatprep.subr.bf16.mxu0 0
    %9452 = vmatpush1.bf16.msra.mxu0 0
    %9453 = vmatprep.subr.bf16.mxu0 0
    %9454 = vmatpush1.bf16.msra.mxu0 0
    %9455 = vmatprep.subr.bf16.mxu0 0
    %9456 = vmatpush1.bf16.msra.mxu0 0
    %9457 = vmatprep.subr.bf16.mxu0 0
    %9458 = vmatpush1.bf16.msra.mxu0 0
    %9459 = vmatprep.mubr.bf16.mxu0 0
    %9460 = vmatmul.mubr.bf16.gmra.mrb[0].mxu0 %v9193
    %v9461 = vpop.f32.mrb[0].mxu0
    %v9462 = vadd.f32 0.0, %v9461
    %v9463 = vpop.f32.mrb[0].mxu0
    %v9464 = vadd.f32 0.0, %v9463
    %v9465 = vpop.f32.mrb[0].mxu0
    %v9466 = vpop.f32.mrb[0].mxu0
    %9467 = vdwg.mxu0
    %v9468 = vadd.f32 %v9189, %v9421
    %v9469 = vadd.f32 %v9190, %v9423
    %v9470 = vadd.f32 %v9191, %v9462
    %v9471 = vadd.f32 %v9192, %v9464
    %v9472 = vxor.u32 %v9468, 2147483648
    %v9473 = vxor.u32 %v9469, 2147483648
    %v9474 = vxor.u32 %v9470, 2147483648
    %v9475 = vmul.f32 %v9472, 1.442695
    %v9476 = vpow.pop %v9475
    %v9477 = vmul.f32 %v9473, 1.442695
    %v9478 = vpow.pop %v9477
    %v9479 = vmul.f32 %v9474, 1.442695
    %v9480 = vpow.pop %v9479
    %v9481 = vadd.f32 %v9476, 1.0
    %v9482 = vadd.f32 %v9478, 1.0
    %v9483 = vadd.f32 %v9480, 1.0
    %v9484 = vrcp.pop %v9481
    %v9485 = vmul.f32 1.0, %v9484
    %v9486 = vrcp.pop %v9482
    %v9487 = vmul.f32 1.0, %v9486
    %v9488 = vrcp.pop %v9483
    %v9489 = vmul.f32 1.0, %v9488
    %v9490 = vtanh.pop %v9471
    %v9491 = vmul.f32 %v9487, %v9188
    %v9492 = vmul.f32 %v9485, %v9490
    %v9493 = vadd.f32 %v9491, %v9492
    %v9494 = vtanh.pop %v9493
    %v9495 = vmul.f32 %v9489, %v9494
    %v9496 = vld [vmem:[%s863] sm:$0xff]
    %v9497 = vld [vmem:[%s863 + $0x8] sm:$0xff]
    %v9498 = vld [vmem:[%s863 + $0x10] sm:$0xff]
    %v9499 = vld [vmem:[%s863 + $0x18] sm:$0xff]
    %v9500 = vpack.c.bf16 %v9495, %v9495
    %9501 = vmatprep.subr.bf16.mxu0 %v9323
    %9502 = vmatpush1.bf16.msra.mxu0 %v9322
    %9503 = vmatprep.subr.bf16.mxu0 %v9327
    %9504 = vmatpush1.bf16.msra.mxu0 %v9326
    %9505 = vmatprep.subr.bf16.mxu0 %v9331
    %9506 = vmatpush1.bf16.msra.mxu0 %v9330
    %9507 = vmatprep.subr.bf16.mxu0 %v9335
    %9508 = vmatpush1.bf16.msra.mxu0 %v9334
    %9509 = vmatprep.subr.bf16.mxu0 %v9339
    %9510 = vmatpush1.bf16.msra.mxu0 %v9338
    %9511 = vmatprep.subr.bf16.mxu0 %v9343
    %9512 = vmatpush1.bf16.msra.mxu0 %v9342
    %9513 = vmatprep.subr.bf16.mxu0 %v9347
    %9514 = vmatpush1.bf16.msra.mxu0 %v9346
    %9515 = vmatprep.subr.bf16.mxu0 %v9351
    %9516 = vmatpush1.bf16.msra.mxu0 %v9350
    %9517 = vmatprep.subr.bf16.mxu0 0
    %9518 = vmatpush1.bf16.msra.mxu0 0
    %9519 = vmatprep.subr.bf16.mxu0 0
    %9520 = vmatpush1.bf16.msra.mxu0 0
    %9521 = vmatprep.subr.bf16.mxu0 0
    %9522 = vmatpush1.bf16.msra.mxu0 0
    %9523 = vmatprep.subr.bf16.mxu0 0
    %9524 = vmatpush1.bf16.msra.mxu0 0
    %9525 = vmatprep.subr.bf16.mxu0 0
    %9526 = vmatpush1.bf16.msra.mxu0 0
    %9527 = vmatprep.subr.bf16.mxu0 0
    %9528 = vmatpush1.bf16.msra.mxu0 0
    %9529 = vmatprep.subr.bf16.mxu0 0
    %9530 = vmatpush1.bf16.msra.mxu0 0
    %9531 = vmatprep.subr.bf16.mxu0 0
    %9532 = vmatpush1.bf16.msra.mxu0 0
    %9533 = vmatprep.mubr.bf16.mxu0 0
    %9534 = vmatmul.mubr.bf16.gmra.mrb[0].mxu0 %v9500
    %v9535 = vpop.f32.mrb[0].mxu0
    %v9536 = vadd.f32 0.0, %v9535
    %v9537 = vpop.f32.mrb[0].mxu0
    %v9538 = vadd.f32 0.0, %v9537
    %v9539 = vpop.f32.mrb[0].mxu0
    %v9540 = vpop.f32.mrb[0].mxu0
    %9541 = vdwg.mxu0
    %9542 = vmatprep.subr.bf16.mxu0 %v9325
    %9543 = vmatpush1.bf16.msra.mxu0 %v9324
    %9544 = vmatprep.subr.bf16.mxu0 %v9329
    %9545 = vmatpush1.bf16.msra.mxu0 %v9328
    %9546 = vmatprep.subr.bf16.mxu0 %v9333
    %9547 = vmatpush1.bf16.msra.mxu0 %v9332
    %9548 = vmatprep.subr.bf16.mxu0 %v9337
    %9549 = vmatpush1.bf16.msra.mxu0 %v9336
    %9550 = vmatprep.subr.bf16.mxu0 %v9341
    %9551 = vmatpush1.bf16.msra.mxu0 %v9340
    %9552 = vmatprep.subr.bf16.mxu0 %v9345
    %9553 = vmatpush1.bf16.msra.mxu0 %v9344
    %9554 = vmatprep.subr.bf16.mxu0 %v9349
    %9555 = vmatpush1.bf16.msra.mxu0 %v9348
    %9556 = vmatprep.subr.bf16.mxu0 %v9353
    %9557 = vmatpush1.bf16.msra.mxu0 %v9352
    %9558 = vmatprep.subr.bf16.mxu0 0
    %9559 = vmatpush1.bf16.msra.mxu0 0
    %9560 = vmatprep.subr.bf16.mxu0 0
    %9561 = vmatpush1.bf16.msra.mxu0 0
    %9562 = vmatprep.subr.bf16.mxu0 0
    %9563 = vmatpush1.bf16.msra.mxu0 0
    %9564 = vmatprep.subr.bf16.mxu0 0
    %9565 = vmatpush1.bf16.msra.mxu0 0
    %9566 = vmatprep.subr.bf16.mxu0 0
    %9567 = vmatpush1.bf16.msra.mxu0 0
    %9568 = vmatprep.subr.bf16.mxu0 0
    %9569 = vmatpush1.bf16.msra.mxu0 0
    %9570 = vmatprep.subr.bf16.mxu0 0
    %9571 = vmatpush1.bf16.msra.mxu0 0
    %9572 = vmatprep.subr.bf16.mxu0 0
    %9573 = vmatpush1.bf16.msra.mxu0 0
    %9574 = vmatprep.mubr.bf16.mxu0 0
    %9575 = vmatmul.mubr.bf16.gmra.mrb[0].mxu0 %v9500
    %v9576 = vpop.f32.mrb[0].mxu0
    %v9577 = vadd.f32 0.0, %v9576
    %v9578 = vpop.f32.mrb[0].mxu0
    %v9579 = vadd.f32 0.0, %v9578
    %v9580 = vpop.f32.mrb[0].mxu0
    %v9581 = vpop.f32.mrb[0].mxu0
    %9582 = vdwg.mxu0
    %v9583 = vadd.f32 %v9496, %v9536
    %v9584 = vadd.f32 %v9497, %v9538
    %v9585 = vadd.f32 %v9498, %v9577
    %v9586 = vadd.f32 %v9499, %v9579
    %v9587 = vxor.u32 %v9583, 2147483648
    %v9588 = vxor.u32 %v9584, 2147483648
    %v9589 = vxor.u32 %v9585, 2147483648
    %v9590 = vmul.f32 %v9587, 1.442695
    %v9591 = vpow.pop %v9590
    %v9592 = vmul.f32 %v9588, 1.442695
    %v9593 = vpow.pop %v9592
    %v9594 = vmul.f32 %v9589, 1.442695
    %v9595 = vpow.pop %v9594
    %v9596 = vadd.f32 %v9591, 1.0
    %v9597 = vadd.f32 %v9593, 1.0
    %v9598 = vadd.f32 %v9595, 1.0
    %v9599 = vrcp.pop %v9596
    %v9600 = vmul.f32 1.0, %v9599
    %v9601 = vrcp.pop %v9597
    %v9602 = vmul.f32 1.0, %v9601
    %v9603 = vrcp.pop %v9598
    %v9604 = vmul.f32 1.0, %v9603
    %v9605 = vtanh.pop %v9586
    %v9606 = vmul.f32 %v9602, %v9493
    %v9607 = vmul.f32 %v9600, %v9605
    %v9608 = vadd.f32 %v9606, %v9607
    %v9609 = vtanh.pop %v9608
    %v9610 = vmul.f32 %v9604, %v9609
    %v9611 = vld [vmem:[%s1173] sm:$0xff]
    %v9612 = vld [vmem:[%s1173 + $0x8] sm:$0xff]
    %v9613 = vld [vmem:[%s1173 + $0x10] sm:$0xff]
    %v9614 = vld [vmem:[%s1173 + $0x18] sm:$0xff]
    %v9615 = vpack.c.bf16 %v9610, %v9610
    %9616 = vmatprep.subr.bf16.mxu0 %v9323
    %9617 = vmatpush1.bf16.msra.mxu0 %v9322
    %9618 = vmatprep.subr.bf16.mxu0 %v9327
    %9619 = vmatpush1.bf16.msra.mxu0 %v9326
    %9620 = vmatprep.subr.bf16.mxu0 %v9331
    %9621 = vmatpush1.bf16.msra.mxu0 %v9330
    %9622 = vmatprep.subr.bf16.mxu0 %v9335
    %9623 = vmatpush1.bf16.msra.mxu0 %v9334
    %9624 = vmatprep.subr.bf16.mxu0 %v9339
    %9625 = vmatpush1.bf16.msra.mxu0 %v9338
    %9626 = vmatprep.subr.bf16.mxu0 %v9343
    %9627 = vmatpush1.bf16.msra.mxu0 %v9342
    %9628 = vmatprep.subr.bf16.mxu0 %v9347
    %9629 = vmatpush1.bf16.msra.mxu0 %v9346
    %9630 = vmatprep.subr.bf16.mxu0 %v9351
    %9631 = vmatpush1.bf16.msra.mxu0 %v9350
    %9632 = vmatprep.subr.bf16.mxu0 0
    %9633 = vmatpush1.bf16.msra.mxu0 0
    %9634 = vmatprep.subr.bf16.mxu0 0
    %9635 = vmatpush1.bf16.msra.mxu0 0
    %9636 = vmatprep.subr.bf16.mxu0 0
    %9637 = vmatpush1.bf16.msra.mxu0 0
    %9638 = vmatprep.subr.bf16.mxu0 0
    %9639 = vmatpush1.bf16.msra.mxu0 0
    %9640 = vmatprep.subr.bf16.mxu0 0
    %9641 = vmatpush1.bf16.msra.mxu0 0
    %9642 = vmatprep.subr.bf16.mxu0 0
    %9643 = vmatpush1.bf16.msra.mxu0 0
    %9644 = vmatprep.subr.bf16.mxu0 0
    %9645 = vmatpush1.bf16.msra.mxu0 0
    %9646 = vmatprep.subr.bf16.mxu0 0
    %9647 = vmatpush1.bf16.msra.mxu0 0
    %9648 = vmatprep.mubr.bf16.mxu0 0
    %9649 = vmatmul.mubr.bf16.gmra.mrb[0].mxu0 %v9615
    %v9650 = vpop.f32.mrb[0].mxu0
    %v9651 = vadd.f32 0.0, %v9650
    %v9652 = vpop.f32.mrb[0].mxu0
    %v9653 = vadd.f32 0.0, %v9652
    %v9654 = vpop.f32.mrb[0].mxu0
    %v9655 = vpop.f32.mrb[0].mxu0
    %9656 = vdwg.mxu0
    %9657 = vmatprep.subr.bf16.mxu0 %v9325
    %9658 = vmatpush1.bf16.msra.mxu0 %v9324
    %9659 = vmatprep.subr.bf16.mxu0 %v9329
    %9660 = vmatpush1.bf16.msra.mxu0 %v9328
    %9661 = vmatprep.subr.bf16.mxu0 %v9333
    %9662 = vmatpush1.bf16.msra.mxu0 %v9332
    %9663 = vmatprep.subr.bf16.mxu0 %v9337
    %9664 = vmatpush1.bf16.msra.mxu0 %v9336
    %9665 = vmatprep.subr.bf16.mxu0 %v9341
    %9666 = vmatpush1.bf16.msra.mxu0 %v9340
    %9667 = vmatprep.subr.bf16.mxu0 %v9345
    %9668 = vmatpush1.bf16.msra.mxu0 %v9344
    %9669 = vmatprep.subr.bf16.mxu0 %v9349
    %9670 = vmatpush1.bf16.msra.mxu0 %v9348
    %9671 = vmatprep.subr.bf16.mxu0 %v9353
    %9672 = vmatpush1.bf16.msra.mxu0 %v9352
    %9673 = vmatprep.subr.bf16.mxu0 0
    %9674 = vmatpush1.bf16.msra.mxu0 0
    %9675 = vmatprep.subr.bf16.mxu0 0
    %9676 = vmatpush1.bf16.msra.mxu0 0
    %9677 = vmatprep.subr.bf16.mxu0 0
    %9678 = vmatpush1.bf16.msra.mxu0 0
    %9679 = vmatprep.subr.bf16.mxu0 0
    %9680 = vmatpush1.bf16.msra.mxu0 0
    %9681 = vmatprep.subr.bf16.mxu0 0
    %9682 = vmatpush1.bf16.msra.mxu0 0
    %9683 = vmatprep.subr.bf16.mxu0 0
    %9684 = vmatpush1.bf16.msra.mxu0 0
    %9685 = vmatprep.subr.bf16.mxu0 0
    %9686 = vmatpush1.bf16.msra.mxu0 0
    %9687 = vmatprep.subr.bf16.mxu0 0
    %9688 = vmatpush1.bf16.msra.mxu0 0
    %9689 = vmatprep.mubr.bf16.mxu0 0
    %9690 = vmatmul.mubr.bf16.gmra.mrb[0].mxu0 %v9615
    %v9691 = vpop.f32.mrb[0].mxu0
    %v9692 = vadd.f32 0.0, %v9691
    %v9693 = vpop.f32.mrb[0].mxu0
    %v9694 = vadd.f32 0.0, %v9693
    %v9695 = vpop.f32.mrb[0].mxu0
    %v9696 = vpop.f32.mrb[0].mxu0
    %9697 = vdwg.mxu0
    %v9698 = vadd.f32 %v9611, %v9651
    %v9699 = vadd.f32 %v9612, %v9653
    %v9700 = vadd.f32 %v9613, %v9692
    %v9701 = vadd.f32 %v9614, %v9694
    %v9702 = vxor.u32 %v9698, 2147483648
    %v9703 = vxor.u32 %v9699, 2147483648
    %v9704 = vxor.u32 %v9700, 2147483648
    %v9705 = vmul.f32 %v9702, 1.442695
    %v9706 = vpow.pop %v9705
    %v9707 = vmul.f32 %v9703, 1.442695
    %v9708 = vpow.pop %v9707
    %v9709 = vmul.f32 %v9704, 1.442695
    %v9710 = vpow.pop %v9709
    %v9711 = vadd.f32 %v9706, 1.0
    %v9712 = vadd.f32 %v9708, 1.0
    %v9713 = vadd.f32 %v9710, 1.0
    %v9714 = vrcp.pop %v9711
    %v9715 = vmul.f32 1.0, %v9714
    %v9716 = vrcp.pop %v9712
    %v9717 = vmul.f32 1.0, %v9716
    %v9718 = vrcp.pop %v9713
    %v9719 = vmul.f32 1.0, %v9718
    %v9720 = vtanh.pop %v9701
    %v9721 = vmul.f32 %v9717, %v9608
    %v9722 = vmul.f32 %v9715, %v9720
    %v9723 = vadd.f32 %v9721, %v9722
    %v9724 = vtanh.pop %v9723
    %v9725 = vmul.f32 %v9719, %v9724
    %v9726 = vld [vmem:[%s1483] sm:$0xff]
    %v9727 = vld [vmem:[%s1483 + $0x8] sm:$0xff]
    %v9728 = vld [vmem:[%s1483 + $0x10] sm:$0xff]
    %v9729 = vld [vmem:[%s1483 + $0x18] sm:$0xff]
    %v9730 = vpack.c.bf16 %v9725, %v9725
    %9731 = vmatprep.subr.bf16.mxu0 %v9323
    %9732 = vmatpush1.bf16.msra.mxu0 %v9322
    %9733 = vmatprep.subr.bf16.mxu0 %v9327
    %9734 = vmatpush1.bf16.msra.mxu0 %v9326
    %9735 = vmatprep.subr.bf16.mxu0 %v9331
    %9736 = vmatpush1.bf16.msra.mxu0 %v9330
    %9737 = vmatprep.subr.bf16.mxu0 %v9335
    %9738 = vmatpush1.bf16.msra.mxu0 %v9334
    %9739 = vmatprep.subr.bf16.mxu0 %v9339
    %9740 = vmatpush1.bf16.msra.mxu0 %v9338
    %9741 = vmatprep.subr.bf16.mxu0 %v9343
    %9742 = vmatpush1.bf16.msra.mxu0 %v9342
    %9743 = vmatprep.subr.bf16.mxu0 %v9347
    %9744 = vmatpush1.bf16.msra.mxu0 %v9346
    %9745 = vmatprep.subr.bf16.mxu0 %v9351
    %9746 = vmatpush1.bf16.msra.mxu0 %v9350
    %9747 = vmatprep.subr.bf16.mxu0 0
    %9748 = vmatpush1.bf16.msra.mxu0 0
    %9749 = vmatprep.subr.bf16.mxu0 0
    %9750 = vmatpush1.bf16.msra.mxu0 0
    %9751 = vmatprep.subr.bf16.mxu0 0
    %9752 = vmatpush1.bf16.msra.mxu0 0
    %9753 = vmatprep.subr.bf16.mxu0 0
    %9754 = vmatpush1.bf16.msra.mxu0 0
    %9755 = vmatprep.subr.bf16.mxu0 0
    %9756 = vmatpush1.bf16.msra.mxu0 0
    %9757 = vmatprep.subr.bf16.mxu0 0
    %9758 = vmatpush1.bf16.msra.mxu0 0
    %9759 = vmatprep.subr.bf16.mxu0 0
    %9760 = vmatpush1.bf16.msra.mxu0 0
    %9761 = vmatprep.subr.bf16.mxu0 0
    %9762 = vmatpush1.bf16.msra.mxu0 0
    %9763 = vmatprep.mubr.bf16.mxu0 0
    %9764 = vmatmul.mubr.bf16.gmra.mrb[0].mxu0 %v9730
    %v9765 = vpop.f32.mrb[0].mxu0
    %v9766 = vadd.f32 0.0, %v9765
    %v9767 = vpop.f32.mrb[0].mxu0
    %v9768 = vadd.f32 0.0, %v9767
    %v9769 = vpop.f32.mrb[0].mxu0
    %v9770 = vpop.f32.mrb[0].mxu0
    %9771 = vdwg.mxu0
    %9772 = vmatprep.subr.bf16.mxu0 %v9325
    %9773 = vmatpush1.bf16.msra.mxu0 %v9324
    %9774 = vmatprep.subr.bf16.mxu0 %v9329
    %9775 = vmatpush1.bf16.msra.mxu0 %v9328
    %9776 = vmatprep.subr.bf16.mxu0 %v9333
    %9777 = vmatpush1.bf16.msra.mxu0 %v9332
    %9778 = vmatprep.subr.bf16.mxu0 %v9337
    %9779 = vmatpush1.bf16.msra.mxu0 %v9336
    %9780 = vmatprep.subr.bf16.mxu0 %v9341
    %9781 = vmatpush1.bf16.msra.mxu0 %v9340
    %9782 = vmatprep.subr.bf16.mxu0 %v9345
    %9783 = vmatpush1.bf16.msra.mxu0 %v9344
    %9784 = vmatprep.subr.bf16.mxu0 %v9349
    %9785 = vmatpush1.bf16.msra.mxu0 %v9348
    %9786 = vmatprep.subr.bf16.mxu0 %v9353
    %9787 = vmatpush1.bf16.msra.mxu0 %v9352
    %9788 = vmatprep.subr.bf16.mxu0 0
    %9789 = vmatpush1.bf16.msra.mxu0 0
    %9790 = vmatprep.subr.bf16.mxu0 0
    %9791 = vmatpush1.bf16.msra.mxu0 0
    %9792 = vmatprep.subr.bf16.mxu0 0
    %9793 = vmatpush1.bf16.msra.mxu0 0
    %9794 = vmatprep.subr.bf16.mxu0 0
    %9795 = vmatpush1.bf16.msra.mxu0 0
    %9796 = vmatprep.subr.bf16.mxu0 0
    %9797 = vmatpush1.bf16.msra.mxu0 0
    %9798 = vmatprep.subr.bf16.mxu0 0
    %9799 = vmatpush1.bf16.msra.mxu0 0
    %9800 = vmatprep.subr.bf16.mxu0 0
    %9801 = vmatpush1.bf16.msra.mxu0 0
    %9802 = vmatprep.subr.bf16.mxu0 0
    %9803 = vmatpush1.bf16.msra.mxu0 0
    %9804 = vmatprep.mubr.bf16.mxu0 0
    %9805 = vmatmul.mubr.bf16.gmra.mrb[0].mxu0 %v9730
    %v9806 = vpop.f32.mrb[0].mxu0
    %v9807 = vadd.f32 0.0, %v9806
    %v9808 = vpop.f32.mrb[0].mxu0
    %v9809 = vadd.f32 0.0, %v9808
    %v9810 = vpop.f32.mrb[0].mxu0
    %v9811 = vpop.f32.mrb[0].mxu0
    %9812 = vdwg.mxu0
    %v9813 = vadd.f32 %v9726, %v9766
    %v9814 = vadd.f32 %v9727, %v9768
    %v9815 = vadd.f32 %v9728, %v9807
    %v9816 = vadd.f32 %v9729, %v9809
    %v9817 = vxor.u32 %v9813, 2147483648
    %v9818 = vxor.u32 %v9814, 2147483648
    %v9819 = vxor.u32 %v9815, 2147483648
    %v9820 = vmul.f32 %v9817, 1.442695
    %v9821 = vpow.pop %v9820
    %v9822 = vmul.f32 %v9818, 1.442695
    %v9823 = vpow.pop %v9822
    %v9824 = vmul.f32 %v9819, 1.442695
    %v9825 = vpow.pop %v9824
    %v9826 = vadd.f32 %v9821, 1.0
    %v9827 = vadd.f32 %v9823, 1.0
    %v9828 = vadd.f32 %v9825, 1.0
    %v9829 = vrcp.pop %v9826
    %v9830 = vmul.f32 1.0, %v9829
    %v9831 = vrcp.pop %v9827
    %v9832 = vmul.f32 1.0, %v9831
    %v9833 = vrcp.pop %v9828
    %v9834 = vmul.f32 1.0, %v9833
    %v9835 = vtanh.pop %v9816
    %v9836 = vmul.f32 %v9832, %v9723
    %v9837 = vmul.f32 %v9830, %v9835
    %v9838 = vadd.f32 %v9836, %v9837
    %v9839 = vtanh.pop %v9838
    %v9840 = vmul.f32 %v9834, %v9839
    %v9841 = vld [vmem:[%s1793] sm:$0xff]
    %v9842 = vld [vmem:[%s1793 + $0x8] sm:$0xff]
    %v9843 = vld [vmem:[%s1793 + $0x10] sm:$0xff]
    %v9844 = vld [vmem:[%s1793 + $0x18] sm:$0xff]
    %v9845 = vpack.c.bf16 %v9840, %v9840
    %9846 = vmatprep.subr.bf16.mxu0 %v9323
    %9847 = vmatpush1.bf16.msra.mxu0 %v9322
    %9848 = vmatprep.subr.bf16.mxu0 %v9327
    %9849 = vmatpush1.bf16.msra.mxu0 %v9326
    %9850 = vmatprep.subr.bf16.mxu0 %v9331
    %9851 = vmatpush1.bf16.msra.mxu0 %v9330
    %9852 = vmatprep.subr.bf16.mxu0 %v9335
    %9853 = vmatpush1.bf16.msra.mxu0 %v9334
    %9854 = vmatprep.subr.bf16.mxu0 %v9339
    %9855 = vmatpush1.bf16.msra.mxu0 %v9338
    %9856 = vmatprep.subr.bf16.mxu0 %v9343
    %9857 = vmatpush1.bf16.msra.mxu0 %v9342
    %9858 = vmatprep.subr.bf16.mxu0 %v9347
    %9859 = vmatpush1.bf16.msra.mxu0 %v9346
    %9860 = vmatprep.subr.bf16.mxu0 %v9351
    %9861 = vmatpush1.bf16.msra.mxu0 %v9350
    %9862 = vmatprep.subr.bf16.mxu0 0
    %9863 = vmatpush1.bf16.msra.mxu0 0
    %9864 = vmatprep.subr.bf16.mxu0 0
    %9865 = vmatpush1.bf16.msra.mxu0 0
    %9866 = vmatprep.subr.bf16.mxu0 0
    %9867 = vmatpush1.bf16.msra.mxu0 0
    %9868 = vmatprep.subr.bf16.mxu0 0
    %9869 = vmatpush1.bf16.msra.mxu0 0
    %9870 = vmatprep.subr.bf16.mxu0 0
    %9871 = vmatpush1.bf16.msra.mxu0 0
    %9872 = vmatprep.subr.bf16.mxu0 0
    %9873 = vmatpush1.bf16.msra.mxu0 0
    %9874 = vmatprep.subr.bf16.mxu0 0
    %9875 = vmatpush1.bf16.msra.mxu0 0
    %9876 = vmatprep.subr.bf16.mxu0 0
    %9877 = vmatpush1.bf16.msra.mxu0 0
    %9878 = vmatprep.mubr.bf16.mxu0 0
    %9879 = vmatmul.mubr.bf16.gmra.mrb[0].mxu0 %v9845
    %v9880 = vpop.f32.mrb[0].mxu0
    %v9881 = vadd.f32 0.0, %v9880
    %v9882 = vpop.f32.mrb[0].mxu0
    %v9883 = vadd.f32 0.0, %v9882
    %v9884 = vpop.f32.mrb[0].mxu0
    %v9885 = vpop.f32.mrb[0].mxu0
    %9886 = vdwg.mxu0
    %9887 = vmatprep.subr.bf16.mxu0 %v9325
    %9888 = vmatpush1.bf16.msra.mxu0 %v9324
    %9889 = vmatprep.subr.bf16.mxu0 %v9329
    %9890 = vmatpush1.bf16.msra.mxu0 %v9328
    %9891 = vmatprep.subr.bf16.mxu0 %v9333
    %9892 = vmatpush1.bf16.msra.mxu0 %v9332
    %9893 = vmatprep.subr.bf16.mxu0 %v9337
    %9894 = vmatpush1.bf16.msra.mxu0 %v9336
    %9895 = vmatprep.subr.bf16.mxu0 %v9341
    %9896 = vmatpush1.bf16.msra.mxu0 %v9340
    %9897 = vmatprep.subr.bf16.mxu0 %v9345
    %9898 = vmatpush1.bf16.msra.mxu0 %v9344
    %9899 = vmatprep.subr.bf16.mxu0 %v9349
    %9900 = vmatpush1.bf16.msra.mxu0 %v9348
    %9901 = vmatprep.subr.bf16.mxu0 %v9353
    %9902 = vmatpush1.bf16.msra.mxu0 %v9352
    %9903 = vmatprep.subr.bf16.mxu0 0
    %9904 = vmatpush1.bf16.msra.mxu0 0
    %9905 = vmatprep.subr.bf16.mxu0 0
    %9906 = vmatpush1.bf16.msra.mxu0 0
    %9907 = vmatprep.subr.bf16.mxu0 0
    %9908 = vmatpush1.bf16.msra.mxu0 0
    %9909 = vmatprep.subr.bf16.mxu0 0
    %9910 = vmatpush1.bf16.msra.mxu0 0
    %9911 = vmatprep.subr.bf16.mxu0 0
    %9912 = vmatpush1.bf16.msra.mxu0 0
    %9913 = vmatprep.subr.bf16.mxu0 0
    %9914 = vmatpush1.bf16.msra.mxu0 0
    %9915 = vmatprep.subr.bf16.mxu0 0
    %9916 = vmatpush1.bf16.msra.mxu0 0
    %9917 = vmatprep.subr.bf16.mxu0 0
    %9918 = vmatpush1.bf16.msra.mxu0 0
    %9919 = vmatprep.mubr.bf16.mxu0 0
    %9920 = vmatmul.mubr.bf16.gmra.mrb[0].mxu0 %v9845
    %v9921 = vpop.f32.mrb[0].mxu0
    %v9922 = vadd.f32 0.0, %v9921
    %v9923 = vpop.f32.mrb[0].mxu0
    %v9924 = vadd.f32 0.0, %v9923
    %v9925 = vpop.f32.mrb[0].mxu0
    %v9926 = vpop.f32.mrb[0].mxu0
    %9927 = vdwg.mxu0
    %v9928 = vadd.f32 %v9841, %v9881
    %v9929 = vadd.f32 %v9842, %v9883
    %v9930 = vadd.f32 %v9843, %v9922
    %v9931 = vadd.f32 %v9844, %v9924
    %v9932 = vxor.u32 %v9928, 2147483648
    %v9933 = vxor.u32 %v9929, 2147483648
    %v9934 = vxor.u32 %v9930, 2147483648
    %v9935 = vmul.f32 %v9932, 1.442695
    %v9936 = vpow.pop %v9935
    %v9937 = vmul.f32 %v9933, 1.442695
    %v9938 = vpow.pop %v9937
    %v9939 = vmul.f32 %v9934, 1.442695
    %v9940 = vpow.pop %v9939
    %v9941 = vadd.f32 %v9936, 1.0
    %v9942 = vadd.f32 %v9938, 1.0
    %v9943 = vadd.f32 %v9940, 1.0
    %v9944 = vrcp.pop %v9941
    %v9945 = vmul.f32 1.0, %v9944
    %v9946 = vrcp.pop %v9942
    %v9947 = vmul.f32 1.0, %v9946
    %v9948 = vrcp.pop %v9943
    %v9949 = vmul.f32 1.0, %v9948
    %v9950 = vtanh.pop %v9931
    %v9951 = vmul.f32 %v9947, %v9838
    %v9952 = vmul.f32 %v9945, %v9950
    %v9953 = vadd.f32 %v9951, %v9952
    %v9954 = vtanh.pop %v9953
    %v9955 = vmul.f32 %v9949, %v9954
    %v9956 = vld [vmem:[%s2103] sm:$0xff]
    %v9957 = vld [vmem:[%s2103 + $0x8] sm:$0xff]
    %v9958 = vld [vmem:[%s2103 + $0x10] sm:$0xff]
    %v9959 = vld [vmem:[%s2103 + $0x18] sm:$0xff]
    %v9960 = vpack.c.bf16 %v9955, %v9955
    %9961 = vmatprep.subr.bf16.mxu0 %v9323
    %9962 = vmatpush1.bf16.msra.mxu0 %v9322
    %9963 = vmatprep.subr.bf16.mxu0 %v9327
    %9964 = vmatpush1.bf16.msra.mxu0 %v9326
    %9965 = vmatprep.subr.bf16.mxu0 %v9331
    %9966 = vmatpush1.bf16.msra.mxu0 %v9330
    %9967 = vmatprep.subr.bf16.mxu0 %v9335
    %9968 = vmatpush1.bf16.msra.mxu0 %v9334
    %9969 = vmatprep.subr.bf16.mxu0 %v9339
    %9970 = vmatpush1.bf16.msra.mxu0 %v9338
    %9971 = vmatprep.subr.bf16.mxu0 %v9343
    %9972 = vmatpush1.bf16.msra.mxu0 %v9342
    %9973 = vmatprep.subr.bf16.mxu0 %v9347
    %9974 = vmatpush1.bf16.msra.mxu0 %v9346
    %9975 = vmatprep.subr.bf16.mxu0 %v9351
    %9976 = vmatpush1.bf16.msra.mxu0 %v9350
    %9977 = vmatprep.subr.bf16.mxu0 0
    %9978 = vmatpush1.bf16.msra.mxu0 0
    %9979 = vmatprep.subr.bf16.mxu0 0
    %9980 = vmatpush1.bf16.msra.mxu0 0
    %9981 = vmatprep.subr.bf16.mxu0 0
    %9982 = vmatpush1.bf16.msra.mxu0 0
    %9983 = vmatprep.subr.bf16.mxu0 0
    %9984 = vmatpush1.bf16.msra.mxu0 0
    %9985 = vmatprep.subr.bf16.mxu0 0
    %9986 = vmatpush1.bf16.msra.mxu0 0
    %9987 = vmatprep.subr.bf16.mxu0 0
    %9988 = vmatpush1.bf16.msra.mxu0 0
    %9989 = vmatprep.subr.bf16.mxu0 0
    %9990 = vmatpush1.bf16.msra.mxu0 0
    %9991 = vmatprep.subr.bf16.mxu0 0
    %9992 = vmatpush1.bf16.msra.mxu0 0
    %9993 = vmatprep.mubr.bf16.mxu0 0
    %9994 = vmatmul.mubr.bf16.gmra.mrb[0].mxu0 %v9960
    %v9995 = vpop.f32.mrb[0].mxu0
    %v9996 = vadd.f32 0.0, %v9995
    %v9997 = vpop.f32.mrb[0].mxu0
    %v9998 = vadd.f32 0.0, %v9997
    %v9999 = vpop.f32.mrb[0].mxu0
    %v10000 = vpop.f32.mrb[0].mxu0
    %10001 = vdwg.mxu0
    %10002 = vmatprep.subr.bf16.mxu0 %v9325
    %10003 = vmatpush1.bf16.msra.mxu0 %v9324
    %10004 = vmatprep.subr.bf16.mxu0 %v9329
    %10005 = vmatpush1.bf16.msra.mxu0 %v9328
    %10006 = vmatprep.subr.bf16.mxu0 %v9333
    %10007 = vmatpush1.bf16.msra.mxu0 %v9332
    %10008 = vmatprep.subr.bf16.mxu0 %v9337
    %10009 = vmatpush1.bf16.msra.mxu0 %v9336
    %10010 = vmatprep.subr.bf16.mxu0 %v9341
    %10011 = vmatpush1.bf16.msra.mxu0 %v9340
    %10012 = vmatprep.subr.bf16.mxu0 %v9345
    %10013 = vmatpush1.bf16.msra.mxu0 %v9344
    %10014 = vmatprep.subr.bf16.mxu0 %v9349
    %10015 = vmatpush1.bf16.msra.mxu0 %v9348
    %10016 = vmatprep.subr.bf16.mxu0 %v9353
    %10017 = vmatpush1.bf16.msra.mxu0 %v9352
    %10018 = vmatprep.subr.bf16.mxu0 0
    %10019 = vmatpush1.bf16.msra.mxu0 0
    %10020 = vmatprep.subr.bf16.mxu0 0
    %10021 = vmatpush1.bf16.msra.mxu0 0
    %10022 = vmatprep.subr.bf16.mxu0 0
    %10023 = vmatpush1.bf16.msra.mxu0 0
    %10024 = vmatprep.subr.bf16.mxu0 0
    %10025 = vmatpush1.bf16.msra.mxu0 0
    %10026 = vmatprep.subr.bf16.mxu0 0
    %10027 = vmatpush1.bf16.msra.mxu0 0
    %10028 = vmatprep.subr.bf16.mxu0 0
    %10029 = vmatpush1.bf16.msra.mxu0 0
    %10030 = vmatprep.subr.bf16.mxu0 0
    %10031 = vmatpush1.bf16.msra.mxu0 0
    %10032 = vmatprep.subr.bf16.mxu0 0
    %10033 = vmatpush1.bf16.msra.mxu0 0
    %10034 = vmatprep.mubr.bf16.mxu0 0
    %10035 = vmatmul.mubr.bf16.gmra.mrb[0].mxu0 %v9960
    %v10036 = vpop.f32.mrb[0].mxu0
    %v10037 = vadd.f32 0.0, %v10036
    %v10038 = vpop.f32.mrb[0].mxu0
    %v10039 = vadd.f32 0.0, %v10038
    %v10040 = vpop.f32.mrb[0].mxu0
    %v10041 = vpop.f32.mrb[0].mxu0
    %10042 = vdwg.mxu0
    %v10043 = vadd.f32 %v9956, %v9996
    %v10044 = vadd.f32 %v9957, %v9998
    %v10045 = vadd.f32 %v9958, %v10037
    %v10046 = vadd.f32 %v9959, %v10039
    %v10047 = vxor.u32 %v10043, 2147483648
    %v10048 = vxor.u32 %v10044, 2147483648
    %v10049 = vxor.u32 %v10045, 2147483648
    %v10050 = vmul.f32 %v10047, 1.442695
    %v10051 = vpow.pop %v10050
    %v10052 = vmul.f32 %v10048, 1.442695
    %v10053 = vpow.pop %v10052
    %v10054 = vmul.f32 %v10049, 1.442695
    %v10055 = vpow.pop %v10054
    %v10056 = vadd.f32 %v10051, 1.0
    %v10057 = vadd.f32 %v10053, 1.0
    %v10058 = vadd.f32 %v10055, 1.0
    %v10059 = vrcp.pop %v10056
    %v10060 = vmul.f32 1.0, %v10059
    %v10061 = vrcp.pop %v10057
    %v10062 = vmul.f32 1.0, %v10061
    %v10063 = vrcp.pop %v10058
    %v10064 = vmul.f32 1.0, %v10063
    %v10065 = vtanh.pop %v10046
    %v10066 = vmul.f32 %v10062, %v9953
    %v10067 = vmul.f32 %v10060, %v10065
    %v10068 = vadd.f32 %v10066, %v10067
    %v10069 = vtanh.pop %v10068
    %v10070 = vmul.f32 %v10064, %v10069
    %v10071 = vld [vmem:[%s2413] sm:$0xff]
    %v10072 = vld [vmem:[%s2413 + $0x8] sm:$0xff]
    %v10073 = vld [vmem:[%s2413 + $0x10] sm:$0xff]
    %v10074 = vld [vmem:[%s2413 + $0x18] sm:$0xff]
    %v10075 = vpack.c.bf16 %v10070, %v10070
    %10076 = vmatprep.subr.bf16.mxu0 %v9323
    %10077 = vmatpush1.bf16.msra.mxu0 %v9322
    %10078 = vmatprep.subr.bf16.mxu0 %v9327
    %10079 = vmatpush1.bf16.msra.mxu0 %v9326
    %10080 = vmatprep.subr.bf16.mxu0 %v9331
    %10081 = vmatpush1.bf16.msra.mxu0 %v9330
    %10082 = vmatprep.subr.bf16.mxu0 %v9335
    %10083 = vmatpush1.bf16.msra.mxu0 %v9334
    %10084 = vmatprep.subr.bf16.mxu0 %v9339
    %10085 = vmatpush1.bf16.msra.mxu0 %v9338
    %10086 = vmatprep.subr.bf16.mxu0 %v9343
    %10087 = vmatpush1.bf16.msra.mxu0 %v9342
    %10088 = vmatprep.subr.bf16.mxu0 %v9347
    %10089 = vmatpush1.bf16.msra.mxu0 %v9346
    %10090 = vmatprep.subr.bf16.mxu0 %v9351
    %10091 = vmatpush1.bf16.msra.mxu0 %v9350
    %10092 = vmatprep.subr.bf16.mxu0 0
    %10093 = vmatpush1.bf16.msra.mxu0 0
    %10094 = vmatprep.subr.bf16.mxu0 0
    %10095 = vmatpush1.bf16.msra.mxu0 0
    %10096 = vmatprep.subr.bf16.mxu0 0
    %10097 = vmatpush1.bf16.msra.mxu0 0
    %10098 = vmatprep.subr.bf16.mxu0 0
    %10099 = vmatpush1.bf16.msra.mxu0 0
    %10100 = vmatprep.subr.bf16.mxu0 0
    %10101 = vmatpush1.bf16.msra.mxu0 0
    %10102 = vmatprep.subr.bf16.mxu0 0
    %10103 = vmatpush1.bf16.msra.mxu0 0
    %10104 = vmatprep.subr.bf16.mxu0 0
    %10105 = vmatpush1.bf16.msra.mxu0 0
    %10106 = vmatprep.subr.bf16.mxu0 0
    %10107 = vmatpush1.bf16.msra.mxu0 0
    %10108 = vmatprep.mubr.bf16.mxu0 0
    %10109 = vmatmul.mubr.bf16.gmra.mrb[0].mxu0 %v10075
    %v10110 = vpop.f32.mrb[0].mxu0
    %v10111 = vadd.f32 0.0, %v10110
    %v10112 = vpop.f32.mrb[0].mxu0
    %v10113 = vadd.f32 0.0, %v10112
    %v10114 = vpop.f32.mrb[0].mxu0
    %v10115 = vpop.f32.mrb[0].mxu0
    %10116 = vdwg.mxu0
    %10117 = vmatprep.subr.bf16.mxu0 %v9325
    %10118 = vmatpush1.bf16.msra.mxu0 %v9324
    %10119 = vmatprep.subr.bf16.mxu0 %v9329
    %10120 = vmatpush1.bf16.msra.mxu0 %v9328
    %10121 = vmatprep.subr.bf16.mxu0 %v9333
    %10122 = vmatpush1.bf16.msra.mxu0 %v9332
    %10123 = vmatprep.subr.bf16.mxu0 %v9337
    %10124 = vmatpush1.bf16.msra.mxu0 %v9336
    %10125 = vmatprep.subr.bf16.mxu0 %v9341
    %10126 = vmatpush1.bf16.msra.mxu0 %v9340
    %10127 = vmatprep.subr.bf16.mxu0 %v9345
    %10128 = vmatpush1.bf16.msra.mxu0 %v9344
    %10129 = vmatprep.subr.bf16.mxu0 %v9349
    %10130 = vmatpush1.bf16.msra.mxu0 %v9348
    %10131 = vmatprep.subr.bf16.mxu0 %v9353
    %10132 = vmatpush1.bf16.msra.mxu0 %v9352
    %10133 = vmatprep.subr.bf16.mxu0 0
    %10134 = vmatpush1.bf16.msra.mxu0 0
    %10135 = vmatprep.subr.bf16.mxu0 0
    %10136 = vmatpush1.bf16.msra.mxu0 0
    %10137 = vmatprep.subr.bf16.mxu0 0
    %10138 = vmatpush1.bf16.msra.mxu0 0
    %10139 = vmatprep.subr.bf16.mxu0 0
    %10140 = vmatpush1.bf16.msra.mxu0 0
    %10141 = vmatprep.subr.bf16.mxu0 0
    %10142 = vmatpush1.bf16.msra.mxu0 0
    %10143 = vmatprep.subr.bf16.mxu0 0
    %10144 = vmatpush1.bf16.msra.mxu0 0
    %10145 = vmatprep.subr.bf16.mxu0 0
    %10146 = vmatpush1.bf16.msra.mxu0 0
    %10147 = vmatprep.subr.bf16.mxu0 0
    %10148 = vmatpush1.bf16.msra.mxu0 0
    %10149 = vmatprep.mubr.bf16.mxu0 0
    %10150 = vmatmul.mubr.bf16.gmra.mrb[0].mxu0 %v10075
    %v10151 = vpop.f32.mrb[0].mxu0
    %v10152 = vadd.f32 0.0, %v10151
    %v10153 = vpop.f32.mrb[0].mxu0
    %v10154 = vadd.f32 0.0, %v10153
    %v10155 = vpop.f32.mrb[0].mxu0
    %v10156 = vpop.f32.mrb[0].mxu0
    %10157 = vdwg.mxu0
    %v10158 = vadd.f32 %v10071, %v10111
    %v10159 = vadd.f32 %v10072, %v10113
    %v10160 = vadd.f32 %v10073, %v10152
    %v10161 = vadd.f32 %v10074, %v10154
    %v10162 = vxor.u32 %v10158, 2147483648
    %v10163 = vxor.u32 %v10159, 2147483648
    %v10164 = vxor.u32 %v10160, 2147483648
    %v10165 = vmul.f32 %v10162, 1.442695
    %v10166 = vpow.pop %v10165
    %v10167 = vmul.f32 %v10163, 1.442695
    %v10168 = vpow.pop %v10167
    %v10169 = vmul.f32 %v10164, 1.442695
    %v10170 = vpow.pop %v10169
    %v10171 = vadd.f32 %v10166, 1.0
    %v10172 = vadd.f32 %v10168, 1.0
    %v10173 = vadd.f32 %v10170, 1.0
    %v10174 = vrcp.pop %v10171
    %v10175 = vmul.f32 1.0, %v10174
    %v10176 = vrcp.pop %v10172
    %v10177 = vmul.f32 1.0, %v10176
    %v10178 = vrcp.pop %v10173
    %v10179 = vmul.f32 1.0, %v10178
    %v10180 = vtanh.pop %v10161
    %v10181 = vmul.f32 %v10177, %v10068
    %v10182 = vmul.f32 %v10175, %v10180
    %v10183 = vadd.f32 %v10181, %v10182
    %v10184 = vtanh.pop %v10183
    %v10185 = vmul.f32 %v10179, %v10184
    %v10186 = vld [vmem:[%s2723] sm:$0xff]
    %v10187 = vld [vmem:[%s2723 + $0x8] sm:$0xff]
    %v10188 = vld [vmem:[%s2723 + $0x10] sm:$0xff]
    %v10189 = vld [vmem:[%s2723 + $0x18] sm:$0xff]
    %v10190 = vpack.c.bf16 %v10185, %v10185
    %10191 = vmatprep.subr.bf16.mxu0 %v9323
    %10192 = vmatpush1.bf16.msra.mxu0 %v9322
    %10193 = vmatprep.subr.bf16.mxu0 %v9327
    %10194 = vmatpush1.bf16.msra.mxu0 %v9326
    %10195 = vmatprep.subr.bf16.mxu0 %v9331
    %10196 = vmatpush1.bf16.msra.mxu0 %v9330
    %10197 = vmatprep.subr.bf16.mxu0 %v9335
    %10198 = vmatpush1.bf16.msra.mxu0 %v9334
    %10199 = vmatprep.subr.bf16.mxu0 %v9339
    %10200 = vmatpush1.bf16.msra.mxu0 %v9338
    %10201 = vmatprep.subr.bf16.mxu0 %v9343
    %10202 = vmatpush1.bf16.msra.mxu0 %v9342
    %10203 = vmatprep.subr.bf16.mxu0 %v9347
    %10204 = vmatpush1.bf16.msra.mxu0 %v9346
    %10205 = vmatprep.subr.bf16.mxu0 %v9351
    %10206 = vmatpush1.bf16.msra.mxu0 %v9350
    %10207 = vmatprep.subr.bf16.mxu0 0
    %10208 = vmatpush1.bf16.msra.mxu0 0
    %10209 = vmatprep.subr.bf16.mxu0 0
    %10210 = vmatpush1.bf16.msra.mxu0 0
    %10211 = vmatprep.subr.bf16.mxu0 0
    %10212 = vmatpush1.bf16.msra.mxu0 0
    %10213 = vmatprep.subr.bf16.mxu0 0
    %10214 = vmatpush1.bf16.msra.mxu0 0
    %10215 = vmatprep.subr.bf16.mxu0 0
    %10216 = vmatpush1.bf16.msra.mxu0 0
    %10217 = vmatprep.subr.bf16.mxu0 0
    %10218 = vmatpush1.bf16.msra.mxu0 0
    %10219 = vmatprep.subr.bf16.mxu0 0
    %10220 = vmatpush1.bf16.msra.mxu0 0
    %10221 = vmatprep.subr.bf16.mxu0 0
    %10222 = vmatpush1.bf16.msra.mxu0 0
    %10223 = vmatprep.mubr.bf16.mxu0 0
    %10224 = vmatmul.mubr.bf16.gmra.mrb[0].mxu0 %v10190
    %v10225 = vpop.f32.mrb[0].mxu0
    %v10226 = vadd.f32 0.0, %v10225
    %v10227 = vpop.f32.mrb[0].mxu0
    %v10228 = vadd.f32 0.0, %v10227
    %v10229 = vpop.f32.mrb[0].mxu0
    %v10230 = vpop.f32.mrb[0].mxu0
    %10231 = vdwg.mxu0
    %10232 = vmatprep.subr.bf16.mxu0 %v9325
    %10233 = vmatpush1.bf16.msra.mxu0 %v9324
    %10234 = vmatprep.subr.bf16.mxu0 %v9329
    %10235 = vmatpush1.bf16.msra.mxu0 %v9328
    %10236 = vmatprep.subr.bf16.mxu0 %v9333
    %10237 = vmatpush1.bf16.msra.mxu0 %v9332
    %10238 = vmatprep.subr.bf16.mxu0 %v9337
    %10239 = vmatpush1.bf16.msra.mxu0 %v9336
    %10240 = vmatprep.subr.bf16.mxu0 %v9341
    %10241 = vmatpush1.bf16.msra.mxu0 %v9340
    %10242 = vmatprep.subr.bf16.mxu0 %v9345
    %10243 = vmatpush1.bf16.msra.mxu0 %v9344
    %10244 = vmatprep.subr.bf16.mxu0 %v9349
    %10245 = vmatpush1.bf16.msra.mxu0 %v9348
    %10246 = vmatprep.subr.bf16.mxu0 %v9353
    %10247 = vmatpush1.bf16.msra.mxu0 %v9352
    %10248 = vmatprep.subr.bf16.mxu0 0
    %10249 = vmatpush1.bf16.msra.mxu0 0
    %10250 = vmatprep.subr.bf16.mxu0 0
    %10251 = vmatpush1.bf16.msra.mxu0 0
    %10252 = vmatprep.subr.bf16.mxu0 0
    %10253 = vmatpush1.bf16.msra.mxu0 0
    %10254 = vmatprep.subr.bf16.mxu0 0
    %10255 = vmatpush1.bf16.msra.mxu0 0
    %10256 = vmatprep.subr.bf16.mxu0 0
    %10257 = vmatpush1.bf16.msra.mxu0 0
    %10258 = vmatprep.subr.bf16.mxu0 0
    %10259 = vmatpush1.bf16.msra.mxu0 0
    %10260 = vmatprep.subr.bf16.mxu0 0
    %10261 = vmatpush1.bf16.msra.mxu0 0
    %10262 = vmatprep.subr.bf16.mxu0 0
    %10263 = vmatpush1.bf16.msra.mxu0 0
    %10264 = vmatprep.mubr.bf16.mxu0 0
    %10265 = vmatmul.mubr.bf16.gmra.mrb[0].mxu0 %v10190
    %v10266 = vpop.f32.mrb[0].mxu0
    %v10267 = vadd.f32 0.0, %v10266
    %v10268 = vpop.f32.mrb[0].mxu0
    %v10269 = vadd.f32 0.0, %v10268
    %v10270 = vpop.f32.mrb[0].mxu0
    %v10271 = vpop.f32.mrb[0].mxu0
    %10272 = vdwg.mxu0
    %v10273 = vadd.f32 %v10186, %v10226
    %v10274 = vadd.f32 %v10187, %v10228
    %v10275 = vadd.f32 %v10188, %v10267
    %v10276 = vadd.f32 %v10189, %v10269
    %v10277 = vxor.u32 %v10273, 2147483648
    %v10278 = vxor.u32 %v10274, 2147483648
    %v10279 = vxor.u32 %v10275, 2147483648
    %v10280 = vmul.f32 %v10277, 1.442695
    %v10281 = vpow.pop %v10280
    %v10282 = vmul.f32 %v10278, 1.442695
    %v10283 = vpow.pop %v10282
    %v10284 = vmul.f32 %v10279, 1.442695
    %v10285 = vpow.pop %v10284
    %v10286 = vadd.f32 %v10281, 1.0
    %v10287 = vadd.f32 %v10283, 1.0
    %v10288 = vadd.f32 %v10285, 1.0
    %v10289 = vrcp.pop %v10286
    %v10290 = vmul.f32 1.0, %v10289
    %v10291 = vrcp.pop %v10287
    %v10292 = vmul.f32 1.0, %v10291
    %v10293 = vrcp.pop %v10288
    %v10294 = vmul.f32 1.0, %v10293
    %v10295 = vtanh.pop %v10276
    %v10296 = vmul.f32 %v10292, %v10183
    %v10297 = vmul.f32 %v10290, %v10295
    %v10298 = vadd.f32 %v10296, %v10297
    %v10299 = vtanh.pop %v10298
    %v10300 = vmul.f32 %v10294, %v10299
    %10301 = vst [vmem:[#allocation18] sm:$0xff] %v10300
    // Predicated region
    $region78: #{tpu_custom_call.1} parent=1 // pred_check
      _
    $region79: #{tpu_custom_call.1} parent=1 // pred_check_branch
      %10303 = sbr.rel (0) target = $region81
    $region80: #{tpu_custom_call.1} parent=1 // pred_region
      %s10305 = ssub.s32 128, 128
      %10306 = vsyncadd [#allocation6], %s10305
      %s10308 = sshll.u32 [#allocation18], 4
      %s10309 = int_to_ptr.vmem [resolvable:$true] %s10308
      %10311 = dma.vmem_to_hbm [thread:$0]  %s10309, 128, %s11, [#allocation6]
    $region81: #{tpu_custom_call.1} parent=1 // pred_fallthru
      _
    // Predicated region
    $region82: #{tpu_custom_call.1} parent=1 // pred_check
      _
    $region83: #{tpu_custom_call.1} parent=1 // pred_check_branch
      %10313 = sbr.rel (0) target = $region85
    $region84: #{tpu_custom_call.1} parent=1 // pred_region
      %10314 = dma.done [#allocation6], 128
    $region85: #{tpu_custom_call.1} parent=1 // pred_fallthru
      _
    %10315 = vsyncpa [#allocation5], 1
    %10316 = vsyncpa [#allocation8], 1
    %10317 = vsyncpa [#allocation11], 1
    %10318 = vsyncpa [#allocation14], 1
    %10319 = vsyncpa [#allocation17], 1
    %10320 = vsyncpa [#allocation6], 1

</llo_original>
